<compile_context>
chip_gen: v6e
topology: v6e:2x2x1
jax: 0.10.0
libtpu: 0.0.40
codegen_flags: <defaults>
</compile_context>

<pallas_src>
import functools
import math

import jax
import jax.numpy as jnp
from jax.experimental import pallas as pl
from jax.experimental.pallas import tpu as pltpu


# ------------------------------ fused kernel --------------------------------

def _fused_kernel(t_ref,
                  a_wqkv_ref, a_bqkv_ref, a_wo_ref, a_bo_ref,
                  a_pw_w_ref, a_pw_b_ref,
                  n_wqkv_ref, n_bqkv_ref, n_conv_w_ref, n_conv_b_ref,
                  n_pw_w_ref, n_pw_b_ref,
                  f_w_ref, f_b_ref,
                  o_ref, *, num_heads, K, magnitude_type):
    f32 = jnp.float32
    t = t_ref[0]                                  # (Cin, N) channel-major tokens
    cin, N = t.shape
    c1 = a_wo_ref.shape[0]                        # Attention1d inner width
    dh = c1 // num_heads

    def mm(a, b):                                 # standard A @ B (NN form)
        return jnp.dot(a, b, preferred_element_type=f32)

    def mm_nt(a, b):                              # contract last dims: A @ B^T
        return jax.lax.dot_general(a, b, (((1,), (1,)), ((), ())),
                                   preferred_element_type=f32)

    # ---------------- branch 1: multi-head self-attention ------------------
    # TODO(synk): Attention1d source was not provided; standard multi-head
    # self-attention (1x1-conv q/k/v + output projection) assumed.
    qkv = mm(a_wqkv_ref[...], t) + a_bqkv_ref[...]         # (3*c1, N)
    q = qkv[0:c1]                                          # (c1, N), scale folded in
    k = qkv[c1:2 * c1]
    v = qkv[2 * c1:3 * c1]
    q_tok = jnp.transpose(q)                               # (N, c1), once for all heads
    a_wo = a_wo_ref[...]
    o1 = None
    for h in range(num_heads):                             # static, tiny
        sl = slice(h * dh, (h + 1) * dh)
        s = mm(q_tok[:, sl], k[sl])                        # (N, N)
        m = jnp.max(s, axis=-1, keepdims=True)
        e = jnp.exp(s - m)
        p = e * pl.reciprocal(jnp.sum(e, axis=-1, keepdims=True), approx=True)
        oh = mm_nt(v[sl], p)                               # (dh, N)
        contrib = mm(a_wo[:, sl], oh)                      # (c1, N) — concat folded away
        o1 = contrib if o1 is None else o1 + contrib
    o1 = o1 + a_bo_ref[...]
    y1 = jnp.maximum(mm(a_pw_w_ref[...], o1) + a_pw_b_ref[...], 0.0)   # (r0, N)

    # ------------- branch 2: K-nearest-neighbor attention conv --------------
    # TODO(synk): Conv1d_NN_Attn source was not provided; assumed semantics:
    # q/k/v projections, top-K nearest-neighbor selection per token, gather of
    # neighbor values, then Conv1d(kernel=K, stride=K) over the gathered stack.
    qkv2 = mm(n_wqkv_ref[...], t) + n_bqkv_ref[...]        # (3*cin, N)
    q2 = qkv2[0:cin]
    k2 = qkv2[cin:2 * cin]
    v2 = qkv2[2 * cin:3 * cin]
    dots = mm(jnp.transpose(q2), k2)                       # (N, N)
    if magnitude_type == "similarity":
        sc = dots
    else:
        # Negative squared euclidean distance; the per-query ||q_i||^2 term is
        # a per-row constant and cannot change the per-row top-K selection, so
        # it is dropped (kn stays row-oriented: no transpose needed).
        kn = jnp.sum(k2 * k2, axis=0, keepdims=True)       # (1, N)
        sc = 2.0 * dots - kn

    # Per-neighbor conv-weight-projected values, hoisted out of the top-K loop.
    n_conv_w = n_conv_w_ref[...]
    vws = [mm(n_conv_w[:, kk * cin:(kk + 1) * cin], v2) for kk in range(K)]  # (c2, N)

    col = jax.lax.broadcasted_iota(jnp.int32, (N, N), 1)   # loop-invariant
    oob = jnp.int32(N)
    neg_inf = f32(-1e30)
    o2 = None
    for kk in range(K):                                    # iterative top-K, in VMEM
        m = jnp.max(sc, axis=-1, keepdims=True)
        masked_col = jnp.where(sc >= m, col, oob)
        idx = jnp.min(masked_col, axis=-1, keepdims=True)  # argmax, first-tie break
        sel = col == idx                                   # reused: gather + mask
        contrib = mm_nt(vws[kk], sel.astype(f32))          # (c2, N), gather as MXU matmul
        o2 = contrib if o2 is None else o2 + contrib
        if kk + 1 < K:                                     # skip mask on last iter
            sc = jnp.where(sel, neg_inf, sc)
    o2 = o2 + n_conv_b_ref[...]
    y2 = jnp.maximum(mm(n_pw_w_ref[...], o2) + n_pw_b_ref[...], 0.0)   # (r1, N)

    # --------- final 1x1 conv over concat([y1, y2]) as a split matmul --------
    r0 = y1.shape[0]
    fw = f_w_ref[...]
    out = mm(fw[:, 0:r0], y1) + mm(fw[:, r0:], y2) + f_b_ref[...]      # (out_ch, N)
    o_ref[0] = out                                         # lane-dense store (N on lanes)


# --------------------------- parameter construction -------------------------

def _linear_init(key, fan_in, fan_out):
    kw, kb = jax.random.split(key)
    w = jax.random.normal(kw, (fan_in, fan_out), jnp.float32) / math.sqrt(fan_in)
    b = 0.01 * jax.random.normal(kb, (fan_out,), jnp.float32)
    return w, b


def init_params(key, in_channels, out_channels, channel_ratio, num_heads, K):
    c_in1d = in_channels + 2        # location_channels=True, shuffle_pattern='NA'
    c1 = channel_ratio[0] + 2       # Attention1d out channels
    c2 = channel_ratio[1] + 2       # Conv1d_NN_Attn out channels
    assert c1 % num_heads == 0, "head dim must divide (channel_ratio[0] + 2)"
    dh = c1 // num_heads
    scale = 1.0 / math.sqrt(dh)
    keys = jax.random.split(key, 11)
    p = {}
    # branch1: Attention1d — fused qkv weight, softmax scale folded into q part.
    wq, bq = _linear_init(keys[0], c_in1d, c1)
    wk, bk = _linear_init(keys[1], c_in1d, c1)
    wv, bv = _linear_init(keys[2], c_in1d, c1)
    p["a_wqkv"] = jnp.concatenate([wq * scale, wk, wv], axis=1)
    p["a_bqkv"] = jnp.concatenate([bq * scale, bk, bv])
    p["a_wo"], p["a_bo"] = _linear_init(keys[3], c1, c1)
    p["a_pw_w"], p["a_pw_b"] = _linear_init(keys[4], c1, channel_ratio[0])
    # branch2: Conv1d_NN_Attn — fused qkv weight + K-strided conv + pointwise.
    wq2, bq2 = _linear_init(keys[5], c_in1d, c_in1d)
    wk2, bk2 = _linear_init(keys[6], c_in1d, c_in1d)
    wv2, bv2 = _linear_init(keys[7], c_in1d, c_in1d)
    p["n_wqkv"] = jnp.concatenate([wq2, wk2, wv2], axis=1)
    p["n_bqkv"] = jnp.concatenate([bq2, bk2, bv2])
    p["n_conv_w"], p["n_conv_b"] = _linear_init(keys[8], c_in1d * K, c2)
    p["n_pw_w"], p["n_pw_b"] = _linear_init(keys[9], c2, channel_ratio[1])
    # final pointwise conv: 2*out_channels -> out_channels
    p["f_w"], p["f_b"] = _linear_init(keys[10], 2 * out_channels, out_channels)
    return p


# ------------------------------- forward pass -------------------------------

def coordinate_channels(B, H, W):
    # Matches coordinate_channels: meshgrid + F.normalize(p=2, dim=1).
    xg = jnp.broadcast_to(jnp.arange(H, dtype=jnp.float32)[:, None], (H, W))
    yg = jnp.broadcast_to(jnp.arange(W, dtype=jnp.float32)[None, :], (H, W))
    xy = jnp.stack([xg, yg], axis=0)                        # (2, H, W)
    norm = jnp.sqrt(jnp.sum(xy * xy, axis=0, keepdims=True))
    xy = xy / jnp.maximum(norm, 1e-12)
    return jnp.broadcast_to(xy[None], (B, 2, H, W))


def _full_spec(arr):
    nd = arr.ndim
    return pl.BlockSpec(arr.shape, lambda i, _nd=nd: (0,) * _nd)


def _prep_weights(params):
    """Pre-transpose weights to (out, in) for channel-major in-kernel matmuls;
    biases become (d, 1) columns so they lane-broadcast over N."""
    def tr(w):
        return jnp.transpose(w)

    def colv(b):
        return b.reshape(-1, 1)

    return [
        tr(params["a_wqkv"]), colv(params["a_bqkv"]),
        tr(params["a_wo"]),   colv(params["a_bo"]),
        tr(params["a_pw_w"]), colv(params["a_pw_b"]),
        tr(params["n_wqkv"]), colv(params["n_bqkv"]),
        tr(params["n_conv_w"]), colv(params["n_conv_b"]),
        tr(params["n_pw_w"]), colv(params["n_pw_b"]),
        tr(params["f_w"]),    colv(params["f_b"]),
    ]


def attention_convnn_attn_branching(x_nchw, params, *, num_heads, K,
                                    magnitude_type):
    B, C, H, W = x_nchw.shape
    N = H * W
    cin1d = C + 2
    # Channel-major tokens (B, C+2, N): matches the reference's flatten(start_dim=2)
    # layout and keeps N on the lane axis inside the kernel (no transpose needed).
    coords = coordinate_channels(B, H, W)
    x1 = jnp.concatenate([x_nchw, coords], axis=1)           # (B, C+2, H, W)
    t = x1.reshape(B, cin1d, N)                               # (B, C+2, N)

    weights = _prep_weights(params)
    out_ch = params["f_w"].shape[1]

    kernel = functools.partial(_fused_kernel, num_heads=num_heads, K=K,
                               magnitude_type=magnitude_type)
    in_specs = [pl.BlockSpec((1, cin1d, N), lambda i: (i, 0, 0))]
    in_specs += [_full_spec(w) for w in weights]

    y_tokens = pl.pallas_call(
        kernel,
        out_shape=jax.ShapeDtypeStruct((B, out_ch, N), jnp.float32),
        grid=(B,),
        in_specs=in_specs,
        out_specs=pl.BlockSpec((1, out_ch, N), lambda i: (i, 0, 0)),
        compiler_params=pltpu.CompilerParams(
            dimension_semantics=("parallel",)),
    )(t, *weights)

    # Output is already channel-major; just unflatten the spatial axis.
    return y_tokens.reshape(B, out_ch, H, W)


# ----------------------------------- main -----------------------------------

if __name__ == "__main__":
    key = jax.random.PRNGKey(0)
    kx, kp = jax.random.split(key)

    B, C_in, H, W = 2, 4, 16, 16
    out_channels = 4
    channel_ratio = (4, 4)          # sums to 2*out_channels
    num_heads = 2
    K = 4                           # K == stride
    magnitude_type = "similarity"
    # shuffle_pattern='NA' (pixel shuffle/unshuffle skipped), samples='all',
    # location_channels=True.

    x = jax.random.normal(kx, (B, C_in, H, W), jnp.float32)
    params = init_params(kp, C_in, out_channels, channel_ratio, num_heads, K)

    fwd = jax.jit(functools.partial(attention_convnn_attn_branching,
                                    num_heads=num_heads, K=K,
                                    magnitude_type=magnitude_type))
    y = fwd(x, params)
    jax.block_until_ready(y)
    assert y.shape == (B, out_channels, H, W), y.shape
    assert bool(jnp.all(jnp.isfinite(y)))
    print("KERNEL_OK")
</pallas_src>

<mosaic_0001>
module attributes {stable_mosaic.version = 11 : i64} {
  func.func @_fused_kernel(%arg0: i32, %arg1: memref<1x6x256xf32, #tpu.memory_space<vmem>>, %arg2: memref<18x6xf32, #tpu.memory_space<vmem>>, %arg3: memref<18x1xf32, #tpu.memory_space<vmem>>, %arg4: memref<6x6xf32, #tpu.memory_space<vmem>>, %arg5: memref<6x1xf32, #tpu.memory_space<vmem>>, %arg6: memref<4x6xf32, #tpu.memory_space<vmem>>, %arg7: memref<4x1xf32, #tpu.memory_space<vmem>>, %arg8: memref<18x6xf32, #tpu.memory_space<vmem>>, %arg9: memref<18x1xf32, #tpu.memory_space<vmem>>, %arg10: memref<6x24xf32, #tpu.memory_space<vmem>>, %arg11: memref<6x1xf32, #tpu.memory_space<vmem>>, %arg12: memref<4x6xf32, #tpu.memory_space<vmem>>, %arg13: memref<4x1xf32, #tpu.memory_space<vmem>>, %arg14: memref<4x8xf32, #tpu.memory_space<vmem>>, %arg15: memref<4x1xf32, #tpu.memory_space<vmem>>, %arg16: memref<1x4x256xf32, #tpu.memory_space<vmem>>) attributes {dimension_semantics = [#tpu.dimension_semantics<parallel>], iteration_bounds = array<i64: 2>, scalar_prefetch = 0 : i64, scratch_operands = 0 : i64, tpu.core_type = #tpu.core_type<tc>, window_params = [{transform_indices = @transform_0, window_bounds = array<i64: 1, 6, 256>}, {pipeline_mode = #tpu.pipeline_mode<synchronous>, transform_indices = @transform_1, window_bounds = array<i64: 18, 6>}, {pipeline_mode = #tpu.pipeline_mode<synchronous>, transform_indices = @transform_2, window_bounds = array<i64: 18, 1>}, {pipeline_mode = #tpu.pipeline_mode<synchronous>, transform_indices = @transform_3, window_bounds = array<i64: 6, 6>}, {pipeline_mode = #tpu.pipeline_mode<synchronous>, transform_indices = @transform_4, window_bounds = array<i64: 6, 1>}, {pipeline_mode = #tpu.pipeline_mode<synchronous>, transform_indices = @transform_5, window_bounds = array<i64: 4, 6>}, {pipeline_mode = #tpu.pipeline_mode<synchronous>, transform_indices = @transform_6, window_bounds = array<i64: 4, 1>}, {pipeline_mode = #tpu.pipeline_mode<synchronous>, transform_indices = @transform_7, window_bounds = array<i64: 18, 6>}, {pipeline_mode = #tpu.pipeline_mode<synchronous>, transform_indices = @transform_8, window_bounds = array<i64: 18, 1>}, {pipeline_mode = #tpu.pipeline_mode<synchronous>, transform_indices = @transform_9, window_bounds = array<i64: 6, 24>}, {pipeline_mode = #tpu.pipeline_mode<synchronous>, transform_indices = @transform_10, window_bounds = array<i64: 6, 1>}, {pipeline_mode = #tpu.pipeline_mode<synchronous>, transform_indices = @transform_11, window_bounds = array<i64: 4, 6>}, {pipeline_mode = #tpu.pipeline_mode<synchronous>, transform_indices = @transform_12, window_bounds = array<i64: 4, 1>}, {pipeline_mode = #tpu.pipeline_mode<synchronous>, transform_indices = @transform_13, window_bounds = array<i64: 4, 8>}, {pipeline_mode = #tpu.pipeline_mode<synchronous>, transform_indices = @transform_14, window_bounds = array<i64: 4, 1>}, {transform_indices = @transform_15, window_bounds = array<i64: 1, 4, 256>}]} {
    %c0 = arith.constant 0 : index
    %c0_0 = arith.constant 0 : index
    %c0_1 = arith.constant 0 : index
    %0 = vector.load %arg1[%c0, %c0_0, %c0_1] : memref<1x6x256xf32, #tpu.memory_space<vmem>>, vector<1x6x256xf32>
    %1 = vector.shape_cast %0 : vector<1x6x256xf32> to vector<6x256xf32>
    %c0_2 = arith.constant 0 : index
    %c0_3 = arith.constant 0 : index
    %2 = vector.load %arg2[%c0_2, %c0_3] : memref<18x6xf32, #tpu.memory_space<vmem>>, vector<18x6xf32>
    %cst = arith.constant dense<0.000000e+00> : vector<18x256xf32>
    %3 = tpu.matmul %2, %1, %cst {dimension_numbers = #tpu.dot_dimension_numbers<[1], [0], [0], [1], [0, 0, 1, 1], [], []>} : vector<18x6xf32>, vector<6x256xf32>, vector<18x256xf32> -> vector<18x256xf32>
    %c0_4 = arith.constant 0 : index
    %c0_5 = arith.constant 0 : index
    %4 = vector.load %arg3[%c0_4, %c0_5] : memref<18x1xf32, #tpu.memory_space<vmem>>, vector<18x1xf32>
    %5 = vector.broadcast %4 : vector<18x1xf32> to vector<18x256xf32>
    %6 = arith.addf %3, %5 : vector<18x256xf32>
    %7 = vector.extract_strided_slice %6 {offsets = [0, 0], sizes = [6, 256], strides = [1, 1]} : vector<18x256xf32> to vector<6x256xf32>
    %8 = vector.extract_strided_slice %6 {offsets = [6, 0], sizes = [6, 256], strides = [1, 1]} : vector<18x256xf32> to vector<6x256xf32>
    %9 = vector.extract_strided_slice %6 {offsets = [12, 0], sizes = [6, 256], strides = [1, 1]} : vector<18x256xf32> to vector<6x256xf32>
    %10 = tpu.transpose %7, [1, 0] : vector<6x256xf32> -> vector<256x6xf32>
    %c0_6 = arith.constant 0 : index
    %c0_7 = arith.constant 0 : index
    %11 = vector.load %arg4[%c0_6, %c0_7] : memref<6x6xf32, #tpu.memory_space<vmem>>, vector<6x6xf32>
    %12 = vector.extract_strided_slice %10 {offsets = [0, 0], sizes = [256, 3], strides = [1, 1]} : vector<256x6xf32> to vector<256x3xf32>
    %13 = vector.extract_strided_slice %8 {offsets = [0, 0], sizes = [3, 256], strides = [1, 1]} : vector<6x256xf32> to vector<3x256xf32>
    %cst_8 = arith.constant dense<0.000000e+00> : vector<256x256xf32>
    %14 = tpu.matmul %12, %13, %cst_8 {dimension_numbers = #tpu.dot_dimension_numbers<[1], [0], [0], [1], [0, 0, 1, 1], [], []>} : vector<256x3xf32>, vector<3x256xf32>, vector<256x256xf32> -> vector<256x256xf32>
    %cst_9 = arith.constant dense<0xFF800000> : vector<256xf32>
    %15 = vector.multi_reduction <maximumf>, %14, %cst_9 [1] : vector<256x256xf32> to vector<256xf32>
    %16 = vector.shape_cast %15 : vector<256xf32> to vector<256x1xf32>
    %17 = vector.broadcast %16 : vector<256x1xf32> to vector<256x256xf32>
    %18 = arith.subf %14, %17 : vector<256x256xf32>
    %19 = math.exp %18 : vector<256x256xf32>
    %cst_10 = arith.constant dense<0.000000e+00> : vector<256xf32>
    %20 = vector.multi_reduction <add>, %19, %cst_10 [1] : vector<256x256xf32> to vector<256xf32>
    %21 = vector.shape_cast %20 : vector<256xf32> to vector<256x1xf32>
    %22 = tpu.reciprocal %21 {approx = true} : vector<256x1xf32> -> vector<256x1xf32>
    %23 = vector.broadcast %22 : vector<256x1xf32> to vector<256x256xf32>
    %24 = arith.mulf %19, %23 : vector<256x256xf32>
    %25 = vector.extract_strided_slice %9 {offsets = [0, 0], sizes = [3, 256], strides = [1, 1]} : vector<6x256xf32> to vector<3x256xf32>
    %cst_11 = arith.constant dense<0.000000e+00> : vector<3x256xf32>
    %26 = tpu.matmul %25, %24, %cst_11 {dimension_numbers = #tpu.dot_dimension_numbers<[1], [1], [0], [0], [0, 0, 1, 0], [], []>} : vector<3x256xf32>, vector<256x256xf32>, vector<3x256xf32> -> vector<3x256xf32>
    %27 = vector.extract_strided_slice %11 {offsets = [0, 0], sizes = [6, 3], strides = [1, 1]} : vector<6x6xf32> to vector<6x3xf32>
    %cst_12 = arith.constant dense<0.000000e+00> : vector<6x256xf32>
    %28 = tpu.matmul %27, %26, %cst_12 {dimension_numbers = #tpu.dot_dimension_numbers<[1], [0], [0], [1], [0, 0, 1, 1], [], []>} : vector<6x3xf32>, vector<3x256xf32>, vector<6x256xf32> -> vector<6x256xf32>
    %29 = vector.extract_strided_slice %10 {offsets = [0, 3], sizes = [256, 3], strides = [1, 1]} : vector<256x6xf32> to vector<256x3xf32>
    %30 = vector.extract_strided_slice %8 {offsets = [3, 0], sizes = [3, 256], strides = [1, 1]} : vector<6x256xf32> to vector<3x256xf32>
    %cst_13 = arith.constant dense<0.000000e+00> : vector<256x256xf32>
    %31 = tpu.matmul %29, %30, %cst_13 {dimension_numbers = #tpu.dot_dimension_numbers<[1], [0], [0], [1], [0, 0, 1, 1], [], []>} : vector<256x3xf32>, vector<3x256xf32>, vector<256x256xf32> -> vector<256x256xf32>
    %cst_14 = arith.constant dense<0xFF800000> : vector<256xf32>
    %32 = vector.multi_reduction <maximumf>, %31, %cst_14 [1] : vector<256x256xf32> to vector<256xf32>
    %33 = vector.shape_cast %32 : vector<256xf32> to vector<256x1xf32>
    %34 = vector.broadcast %33 : vector<256x1xf32> to vector<256x256xf32>
    %35 = arith.subf %31, %34 : vector<256x256xf32>
    %36 = math.exp %35 : vector<256x256xf32>
    %cst_15 = arith.constant dense<0.000000e+00> : vector<256xf32>
    %37 = vector.multi_reduction <add>, %36, %cst_15 [1] : vector<256x256xf32> to vector<256xf32>
    %38 = vector.shape_cast %37 : vector<256xf32> to vector<256x1xf32>
    %39 = tpu.reciprocal %38 {approx = true} : vector<256x1xf32> -> vector<256x1xf32>
    %40 = vector.broadcast %39 : vector<256x1xf32> to vector<256x256xf32>
    %41 = arith.mulf %36, %40 : vector<256x256xf32>
    %42 = vector.extract_strided_slice %9 {offsets = [3, 0], sizes = [3, 256], strides = [1, 1]} : vector<6x256xf32> to vector<3x256xf32>
    %cst_16 = arith.constant dense<0.000000e+00> : vector<3x256xf32>
    %43 = tpu.matmul %42, %41, %cst_16 {dimension_numbers = #tpu.dot_dimension_numbers<[1], [1], [0], [0], [0, 0, 1, 0], [], []>} : vector<3x256xf32>, vector<256x256xf32>, vector<3x256xf32> -> vector<3x256xf32>
    %44 = vector.extract_strided_slice %11 {offsets = [0, 3], sizes = [6, 3], strides = [1, 1]} : vector<6x6xf32> to vector<6x3xf32>
    %cst_17 = arith.constant dense<0.000000e+00> : vector<6x256xf32>
    %45 = tpu.matmul %44, %43, %cst_17 {dimension_numbers = #tpu.dot_dimension_numbers<[1], [0], [0], [1], [0, 0, 1, 1], [], []>} : vector<6x3xf32>, vector<3x256xf32>, vector<6x256xf32> -> vector<6x256xf32>
    %46 = arith.addf %28, %45 : vector<6x256xf32>
    %c0_18 = arith.constant 0 : index
    %c0_19 = arith.constant 0 : index
    %47 = vector.load %arg5[%c0_18, %c0_19] : memref<6x1xf32, #tpu.memory_space<vmem>>, vector<6x1xf32>
    %48 = vector.broadcast %47 : vector<6x1xf32> to vector<6x256xf32>
    %49 = arith.addf %46, %48 : vector<6x256xf32>
    %c0_20 = arith.constant 0 : index
    %c0_21 = arith.constant 0 : index
    %50 = vector.load %arg6[%c0_20, %c0_21] : memref<4x6xf32, #tpu.memory_space<vmem>>, vector<4x6xf32>
    %cst_22 = arith.constant dense<0.000000e+00> : vector<4x256xf32>
    %51 = tpu.matmul %50, %49, %cst_22 {dimension_numbers = #tpu.dot_dimension_numbers<[1], [0], [0], [1], [0, 0, 1, 1], [], []>} : vector<4x6xf32>, vector<6x256xf32>, vector<4x256xf32> -> vector<4x256xf32>
    %c0_23 = arith.constant 0 : index
    %c0_24 = arith.constant 0 : index
    %52 = vector.load %arg7[%c0_23, %c0_24] : memref<4x1xf32, #tpu.memory_space<vmem>>, vector<4x1xf32>
    %53 = vector.broadcast %52 : vector<4x1xf32> to vector<4x256xf32>
    %54 = arith.addf %51, %53 : vector<4x256xf32>
    %cst_25 = arith.constant 0.000000e+00 : f32
    %55 = vector.broadcast %cst_25 : f32 to vector<4x256xf32>
    %56 = arith.maximumf %54, %55 : vector<4x256xf32>
    %c0_26 = arith.constant 0 : index
    %c0_27 = arith.constant 0 : index
    %57 = vector.load %arg8[%c0_26, %c0_27] : memref<18x6xf32, #tpu.memory_space<vmem>>, vector<18x6xf32>
    %cst_28 = arith.constant dense<0.000000e+00> : vector<18x256xf32>
    %58 = tpu.matmul %57, %1, %cst_28 {dimension_numbers = #tpu.dot_dimension_numbers<[1], [0], [0], [1], [0, 0, 1, 1], [], []>} : vector<18x6xf32>, vector<6x256xf32>, vector<18x256xf32> -> vector<18x256xf32>
    %c0_29 = arith.constant 0 : index
    %c0_30 = arith.constant 0 : index
    %59 = vector.load %arg9[%c0_29, %c0_30] : memref<18x1xf32, #tpu.memory_space<vmem>>, vector<18x1xf32>
    %60 = vector.broadcast %59 : vector<18x1xf32> to vector<18x256xf32>
    %61 = arith.addf %58, %60 : vector<18x256xf32>
    %62 = vector.extract_strided_slice %61 {offsets = [0, 0], sizes = [6, 256], strides = [1, 1]} : vector<18x256xf32> to vector<6x256xf32>
    %63 = vector.extract_strided_slice %61 {offsets = [6, 0], sizes = [6, 256], strides = [1, 1]} : vector<18x256xf32> to vector<6x256xf32>
    %64 = vector.extract_strided_slice %61 {offsets = [12, 0], sizes = [6, 256], strides = [1, 1]} : vector<18x256xf32> to vector<6x256xf32>
    %65 = tpu.transpose %62, [1, 0] : vector<6x256xf32> -> vector<256x6xf32>
    %cst_31 = arith.constant dense<0.000000e+00> : vector<256x256xf32>
    %66 = tpu.matmul %65, %63, %cst_31 {dimension_numbers = #tpu.dot_dimension_numbers<[1], [0], [0], [1], [0, 0, 1, 1], [], []>} : vector<256x6xf32>, vector<6x256xf32>, vector<256x256xf32> -> vector<256x256xf32>
    %c0_32 = arith.constant 0 : index
    %c0_33 = arith.constant 0 : index
    %67 = vector.load %arg10[%c0_32, %c0_33] : memref<6x24xf32, #tpu.memory_space<vmem>>, vector<6x24xf32>
    %68 = vector.extract_strided_slice %67 {offsets = [0, 0], sizes = [6, 6], strides = [1, 1]} : vector<6x24xf32> to vector<6x6xf32>
    %cst_34 = arith.constant dense<0.000000e+00> : vector<6x256xf32>
    %69 = tpu.matmul %68, %64, %cst_34 {dimension_numbers = #tpu.dot_dimension_numbers<[1], [0], [0], [1], [0, 0, 1, 1], [], []>} : vector<6x6xf32>, vector<6x256xf32>, vector<6x256xf32> -> vector<6x256xf32>
    %70 = vector.extract_strided_slice %67 {offsets = [0, 6], sizes = [6, 6], strides = [1, 1]} : vector<6x24xf32> to vector<6x6xf32>
    %cst_35 = arith.constant dense<0.000000e+00> : vector<6x256xf32>
    %71 = tpu.matmul %70, %64, %cst_35 {dimension_numbers = #tpu.dot_dimension_numbers<[1], [0], [0], [1], [0, 0, 1, 1], [], []>} : vector<6x6xf32>, vector<6x256xf32>, vector<6x256xf32> -> vector<6x256xf32>
    %72 = vector.extract_strided_slice %67 {offsets = [0, 12], sizes = [6, 6], strides = [1, 1]} : vector<6x24xf32> to vector<6x6xf32>
    %cst_36 = arith.constant dense<0.000000e+00> : vector<6x256xf32>
    %73 = tpu.matmul %72, %64, %cst_36 {dimension_numbers = #tpu.dot_dimension_numbers<[1], [0], [0], [1], [0, 0, 1, 1], [], []>} : vector<6x6xf32>, vector<6x256xf32>, vector<6x256xf32> -> vector<6x256xf32>
    %74 = vector.extract_strided_slice %67 {offsets = [0, 18], sizes = [6, 6], strides = [1, 1]} : vector<6x24xf32> to vector<6x6xf32>
    %cst_37 = arith.constant dense<0.000000e+00> : vector<6x256xf32>
    %75 = tpu.matmul %74, %64, %cst_37 {dimension_numbers = #tpu.dot_dimension_numbers<[1], [0], [0], [1], [0, 0, 1, 1], [], []>} : vector<6x6xf32>, vector<6x256xf32>, vector<6x256xf32> -> vector<6x256xf32>
    %76 = tpu.iota {dimensions = array<i32: 1>} : vector<256x256xi32>
    %cst_38 = arith.constant dense<0xFF800000> : vector<256xf32>
    %77 = vector.multi_reduction <maximumf>, %66, %cst_38 [1] : vector<256x256xf32> to vector<256xf32>
    %78 = vector.shape_cast %77 : vector<256xf32> to vector<256x1xf32>
    %79 = vector.broadcast %78 : vector<256x1xf32> to vector<256x256xf32>
    %80 = arith.cmpf oge, %66, %79 : vector<256x256xf32>
    %c256_i32 = arith.constant 256 : i32
    %81 = vector.broadcast %c256_i32 : i32 to vector<256x256xi32>
    %82 = arith.select %80, %76, %81 : vector<256x256xi1>, vector<256x256xi32>
    %cst_39 = arith.constant dense<2147483647> : vector<256xi32>
    %83 = vector.multi_reduction <minsi>, %82, %cst_39 [1] : vector<256x256xi32> to vector<256xi32>
    %84 = vector.shape_cast %83 : vector<256xi32> to vector<256x1xi32>
    %85 = vector.broadcast %84 : vector<256x1xi32> to vector<256x256xi32>
    %86 = arith.cmpi eq, %76, %85 : vector<256x256xi32>
    %87 = arith.extui %86 : vector<256x256xi1> to vector<256x256xi32>
    %88 = arith.sitofp %87 : vector<256x256xi32> to vector<256x256xf32>
    %cst_40 = arith.constant dense<0.000000e+00> : vector<6x256xf32>
    %89 = tpu.matmul %69, %88, %cst_40 {dimension_numbers = #tpu.dot_dimension_numbers<[1], [1], [0], [0], [0, 0, 1, 0], [], []>} : vector<6x256xf32>, vector<256x256xf32>, vector<6x256xf32> -> vector<6x256xf32>
    %cst_41 = arith.constant -1.000000e+30 : f32
    %90 = vector.broadcast %cst_41 : f32 to vector<256x256xf32>
    %91 = arith.select %86, %90, %66 : vector<256x256xi1>, vector<256x256xf32>
    %cst_42 = arith.constant dense<0xFF800000> : vector<256xf32>
    %92 = vector.multi_reduction <maximumf>, %91, %cst_42 [1] : vector<256x256xf32> to vector<256xf32>
    %93 = vector.shape_cast %92 : vector<256xf32> to vector<256x1xf32>
    %94 = vector.broadcast %93 : vector<256x1xf32> to vector<256x256xf32>
    %95 = arith.cmpf oge, %91, %94 : vector<256x256xf32>
    %c256_i32_43 = arith.constant 256 : i32
    %96 = vector.broadcast %c256_i32_43 : i32 to vector<256x256xi32>
    %97 = arith.select %95, %76, %96 : vector<256x256xi1>, vector<256x256xi32>
    %cst_44 = arith.constant dense<2147483647> : vector<256xi32>
    %98 = vector.multi_reduction <minsi>, %97, %cst_44 [1] : vector<256x256xi32> to vector<256xi32>
    %99 = vector.shape_cast %98 : vector<256xi32> to vector<256x1xi32>
    %100 = vector.broadcast %99 : vector<256x1xi32> to vector<256x256xi32>
    %101 = arith.cmpi eq, %76, %100 : vector<256x256xi32>
    %102 = arith.extui %101 : vector<256x256xi1> to vector<256x256xi32>
    %103 = arith.sitofp %102 : vector<256x256xi32> to vector<256x256xf32>
    %cst_45 = arith.constant dense<0.000000e+00> : vector<6x256xf32>
    %104 = tpu.matmul %71, %103, %cst_45 {dimension_numbers = #tpu.dot_dimension_numbers<[1], [1], [0], [0], [0, 0, 1, 0], [], []>} : vector<6x256xf32>, vector<256x256xf32>, vector<6x256xf32> -> vector<6x256xf32>
    %105 = arith.addf %89, %104 : vector<6x256xf32>
    %cst_46 = arith.constant -1.000000e+30 : f32
    %106 = vector.broadcast %cst_46 : f32 to vector<256x256xf32>
    %107 = arith.select %101, %106, %91 : vector<256x256xi1>, vector<256x256xf32>
    %cst_47 = arith.constant dense<0xFF800000> : vector<256xf32>
    %108 = vector.multi_reduction <maximumf>, %107, %cst_47 [1] : vector<256x256xf32> to vector<256xf32>
    %109 = vector.shape_cast %108 : vector<256xf32> to vector<256x1xf32>
    %110 = vector.broadcast %109 : vector<256x1xf32> to vector<256x256xf32>
    %111 = arith.cmpf oge, %107, %110 : vector<256x256xf32>
    %c256_i32_48 = arith.constant 256 : i32
    %112 = vector.broadcast %c256_i32_48 : i32 to vector<256x256xi32>
    %113 = arith.select %111, %76, %112 : vector<256x256xi1>, vector<256x256xi32>
    %cst_49 = arith.constant dense<2147483647> : vector<256xi32>
    %114 = vector.multi_reduction <minsi>, %113, %cst_49 [1] : vector<256x256xi32> to vector<256xi32>
    %115 = vector.shape_cast %114 : vector<256xi32> to vector<256x1xi32>
    %116 = vector.broadcast %115 : vector<256x1xi32> to vector<256x256xi32>
    %117 = arith.cmpi eq, %76, %116 : vector<256x256xi32>
    %118 = arith.extui %117 : vector<256x256xi1> to vector<256x256xi32>
    %119 = arith.sitofp %118 : vector<256x256xi32> to vector<256x256xf32>
    %cst_50 = arith.constant dense<0.000000e+00> : vector<6x256xf32>
    %120 = tpu.matmul %73, %119, %cst_50 {dimension_numbers = #tpu.dot_dimension_numbers<[1], [1], [0], [0], [0, 0, 1, 0], [], []>} : vector<6x256xf32>, vector<256x256xf32>, vector<6x256xf32> -> vector<6x256xf32>
    %121 = arith.addf %105, %120 : vector<6x256xf32>
    %cst_51 = arith.constant -1.000000e+30 : f32
    %122 = vector.broadcast %cst_51 : f32 to vector<256x256xf32>
    %123 = arith.select %117, %122, %107 : vector<256x256xi1>, vector<256x256xf32>
    %cst_52 = arith.constant dense<0xFF800000> : vector<256xf32>
    %124 = vector.multi_reduction <maximumf>, %123, %cst_52 [1] : vector<256x256xf32> to vector<256xf32>
    %125 = vector.shape_cast %124 : vector<256xf32> to vector<256x1xf32>
    %126 = vector.broadcast %125 : vector<256x1xf32> to vector<256x256xf32>
    %127 = arith.cmpf oge, %123, %126 : vector<256x256xf32>
    %c256_i32_53 = arith.constant 256 : i32
    %128 = vector.broadcast %c256_i32_53 : i32 to vector<256x256xi32>
    %129 = arith.select %127, %76, %128 : vector<256x256xi1>, vector<256x256xi32>
    %cst_54 = arith.constant dense<2147483647> : vector<256xi32>
    %130 = vector.multi_reduction <minsi>, %129, %cst_54 [1] : vector<256x256xi32> to vector<256xi32>
    %131 = vector.shape_cast %130 : vector<256xi32> to vector<256x1xi32>
    %132 = vector.broadcast %131 : vector<256x1xi32> to vector<256x256xi32>
    %133 = arith.cmpi eq, %76, %132 : vector<256x256xi32>
    %134 = arith.extui %133 : vector<256x256xi1> to vector<256x256xi32>
    %135 = arith.sitofp %134 : vector<256x256xi32> to vector<256x256xf32>
    %cst_55 = arith.constant dense<0.000000e+00> : vector<6x256xf32>
    %136 = tpu.matmul %75, %135, %cst_55 {dimension_numbers = #tpu.dot_dimension_numbers<[1], [1], [0], [0], [0, 0, 1, 0], [], []>} : vector<6x256xf32>, vector<256x256xf32>, vector<6x256xf32> -> vector<6x256xf32>
    %137 = arith.addf %121, %136 : vector<6x256xf32>
    %c0_56 = arith.constant 0 : index
    %c0_57 = arith.constant 0 : index
    %138 = vector.load %arg11[%c0_56, %c0_57] : memref<6x1xf32, #tpu.memory_space<vmem>>, vector<6x1xf32>
    %139 = vector.broadcast %138 : vector<6x1xf32> to vector<6x256xf32>
    %140 = arith.addf %137, %139 : vector<6x256xf32>
    %c0_58 = arith.constant 0 : index
    %c0_59 = arith.constant 0 : index
    %141 = vector.load %arg12[%c0_58, %c0_59] : memref<4x6xf32, #tpu.memory_space<vmem>>, vector<4x6xf32>
    %cst_60 = arith.constant dense<0.000000e+00> : vector<4x256xf32>
    %142 = tpu.matmul %141, %140, %cst_60 {dimension_numbers = #tpu.dot_dimension_numbers<[1], [0], [0], [1], [0, 0, 1, 1], [], []>} : vector<4x6xf32>, vector<6x256xf32>, vector<4x256xf32> -> vector<4x256xf32>
    %c0_61 = arith.constant 0 : index
    %c0_62 = arith.constant 0 : index
    %143 = vector.load %arg13[%c0_61, %c0_62] : memref<4x1xf32, #tpu.memory_space<vmem>>, vector<4x1xf32>
    %144 = vector.broadcast %143 : vector<4x1xf32> to vector<4x256xf32>
    %145 = arith.addf %142, %144 : vector<4x256xf32>
    %cst_63 = arith.constant 0.000000e+00 : f32
    %146 = vector.broadcast %cst_63 : f32 to vector<4x256xf32>
    %147 = arith.maximumf %145, %146 : vector<4x256xf32>
    %c0_64 = arith.constant 0 : index
    %c0_65 = arith.constant 0 : index
    %148 = vector.load %arg14[%c0_64, %c0_65] : memref<4x8xf32, #tpu.memory_space<vmem>>, vector<4x8xf32>
    %149 = vector.extract_strided_slice %148 {offsets = [0, 0], sizes = [4, 4], strides = [1, 1]} : vector<4x8xf32> to vector<4x4xf32>
    %cst_66 = arith.constant dense<0.000000e+00> : vector<4x256xf32>
    %150 = tpu.matmul %149, %56, %cst_66 {dimension_numbers = #tpu.dot_dimension_numbers<[1], [0], [0], [1], [0, 0, 1, 1], [], []>} : vector<4x4xf32>, vector<4x256xf32>, vector<4x256xf32> -> vector<4x256xf32>
    %151 = vector.extract_strided_slice %148 {offsets = [0, 4], sizes = [4, 4], strides = [1, 1]} : vector<4x8xf32> to vector<4x4xf32>
    %cst_67 = arith.constant dense<0.000000e+00> : vector<4x256xf32>
    %152 = tpu.matmul %151, %147, %cst_67 {dimension_numbers = #tpu.dot_dimension_numbers<[1], [0], [0], [1], [0, 0, 1, 1], [], []>} : vector<4x4xf32>, vector<4x256xf32>, vector<4x256xf32> -> vector<4x256xf32>
    %153 = arith.addf %150, %152 : vector<4x256xf32>
    %c0_68 = arith.constant 0 : index
    %c0_69 = arith.constant 0 : index
    %154 = vector.load %arg15[%c0_68, %c0_69] : memref<4x1xf32, #tpu.memory_space<vmem>>, vector<4x1xf32>
    %155 = vector.broadcast %154 : vector<4x1xf32> to vector<4x256xf32>
    %156 = arith.addf %153, %155 : vector<4x256xf32>
    %c0_70 = arith.constant 0 : index
    %c0_71 = arith.constant 0 : index
    %c0_72 = arith.constant 0 : index
    %157 = vector.load %arg16[%c0_70, %c0_71, %c0_72] : memref<1x4x256xf32, #tpu.memory_space<vmem>>, vector<1x4x256xf32>
    %158 = vector.shape_cast %157 : vector<1x4x256xf32> to vector<4x256xf32>
    %159 = vector.shape_cast %156 : vector<4x256xf32> to vector<1x4x256xf32>
    tpu.vector_store %arg16[%c0_70, %c0_71, %c0_72], %159 {strides = array<i32>} : memref<1x4x256xf32, #tpu.memory_space<vmem>>, vector<1x4x256xf32>,
    return
  }
  func.func @transform_0(%arg0: i32) -> (i32, i32, i32) {
    %c0_i32 = arith.constant 0 : i32
    %c0_i32_0 = arith.constant 0 : i32
    %c0_i32_1 = arith.constant 0 : i32
    return %arg0, %c0_i32, %c0_i32_0 : i32, i32, i32
  }
  func.func @transform_1(%arg0: i32) -> (i32, i32) {
    %c0_i32 = arith.constant 0 : i32
    %c0_i32_0 = arith.constant 0 : i32
    %c0_i32_1 = arith.constant 0 : i32
    return %c0_i32, %c0_i32_0 : i32, i32
  }
  func.func @transform_2(%arg0: i32) -> (i32, i32) {
    %c0_i32 = arith.constant 0 : i32
    %c0_i32_0 = arith.constant 0 : i32
    %c0_i32_1 = arith.constant 0 : i32
    return %c0_i32, %c0_i32_0 : i32, i32
  }
  func.func @transform_3(%arg0: i32) -> (i32, i32) {
    %c0_i32 = arith.constant 0 : i32
    %c0_i32_0 = arith.constant 0 : i32
    %c0_i32_1 = arith.constant 0 : i32
    return %c0_i32, %c0_i32_0 : i32, i32
  }
  func.func @transform_4(%arg0: i32) -> (i32, i32) {
    %c0_i32 = arith.constant 0 : i32
    %c0_i32_0 = arith.constant 0 : i32
    %c0_i32_1 = arith.constant 0 : i32
    return %c0_i32, %c0_i32_0 : i32, i32
  }
  func.func @transform_5(%arg0: i32) -> (i32, i32) {
    %c0_i32 = arith.constant 0 : i32
    %c0_i32_0 = arith.constant 0 : i32
    %c0_i32_1 = arith.constant 0 : i32
    return %c0_i32, %c0_i32_0 : i32, i32
  }
  func.func @transform_6(%arg0: i32) -> (i32, i32) {
    %c0_i32 = arith.constant 0 : i32
    %c0_i32_0 = arith.constant 0 : i32
    %c0_i32_1 = arith.constant 0 : i32
    return %c0_i32, %c0_i32_0 : i32, i32
  }
  func.func @transform_7(%arg0: i32) -> (i32, i32) {
    %c0_i32 = arith.constant 0 : i32
    %c0_i32_0 = arith.constant 0 : i32
    %c0_i32_1 = arith.constant 0 : i32
    return %c0_i32, %c0_i32_0 : i32, i32
  }
  func.func @transform_8(%arg0: i32) -> (i32, i32) {
    %c0_i32 = arith.constant 0 : i32
    %c0_i32_0 = arith.constant 0 : i32
    %c0_i32_1 = arith.constant 0 : i32
    return %c0_i32, %c0_i32_0 : i32, i32
  }
  func.func @transform_9(%arg0: i32) -> (i32, i32) {
    %c0_i32 = arith.constant 0 : i32
    %c0_i32_0 = arith.constant 0 : i32
    %c0_i32_1 = arith.constant 0 : i32
    return %c0_i32, %c0_i32_0 : i32, i32
  }
  func.func @transform_10(%arg0: i32) -> (i32, i32) {
    %c0_i32 = arith.constant 0 : i32
    %c0_i32_0 = arith.constant 0 : i32
    %c0_i32_1 = arith.constant 0 : i32
    return %c0_i32, %c0_i32_0 : i32, i32
  }
  func.func @transform_11(%arg0: i32) -> (i32, i32) {
    %c0_i32 = arith.constant 0 : i32
    %c0_i32_0 = arith.constant 0 : i32
    %c0_i32_1 = arith.constant 0 : i32
    return %c0_i32, %c0_i32_0 : i32, i32
  }
  func.func @transform_12(%arg0: i32) -> (i32, i32) {
    %c0_i32 = arith.constant 0 : i32
    %c0_i32_0 = arith.constant 0 : i32
    %c0_i32_1 = arith.constant 0 : i32
    return %c0_i32, %c0_i32_0 : i32, i32
  }
  func.func @transform_13(%arg0: i32) -> (i32, i32) {
    %c0_i32 = arith.constant 0 : i32
    %c0_i32_0 = arith.constant 0 : i32
    %c0_i32_1 = arith.constant 0 : i32
    return %c0_i32, %c0_i32_0 : i32, i32
  }
  func.func @transform_14(%arg0: i32) -> (i32, i32) {
    %c0_i32 = arith.constant 0 : i32
    %c0_i32_0 = arith.constant 0 : i32
    %c0_i32_1 = arith.constant 0 : i32
    return %c0_i32, %c0_i32_0 : i32, i32
  }
  func.func @transform_15(%arg0: i32) -> (i32, i32, i32) {
    %c0_i32 = arith.constant 0 : i32
    %c0_i32_0 = arith.constant 0 : i32
    %c0_i32_1 = arith.constant 0 : i32
    return %arg0, %c0_i32, %c0_i32_0 : i32, i32, i32
  }
}

</mosaic_0001>

<llo_original>
// kernel: attention_convnn_attn_branching.1
$region0: #{attention_convnn_attn_branching.1}
  #allocation0 [shape = 'u32[]', space=smem, size = 0x4, offset = 0x4, fixed_abs, tag = 'smem constant byte address 0x4 - core index']
  #allocation1 [shape = 'u32[144,128]{1,0:T(1,128)}', space=vmem, size = 0x12000, scoped, tag = 'internal scratch']
  %s0 = inlined_call_operand.vmem [shape: f32[2,6,256], index: 0, kind: input, shape index: {}]
  %s1 = inlined_call_operand.vmem [shape: f32[18,6], index: 1, kind: input, shape index: {}]
  %s2 = inlined_call_operand.vmem [shape: f32[18,1], index: 2, kind: input, shape index: {}]
  %s3 = inlined_call_operand.vmem [shape: f32[6,6], index: 3, kind: input, shape index: {}]
  %s4 = inlined_call_operand.vmem [shape: f32[6,1], index: 4, kind: input, shape index: {}]
  %s5 = inlined_call_operand.vmem [shape: f32[4,6], index: 5, kind: input, shape index: {}]
  %s6 = inlined_call_operand.vmem [shape: f32[4,1], index: 6, kind: input, shape index: {}]
  %s7 = inlined_call_operand.vmem [shape: f32[18,6], index: 7, kind: input, shape index: {}]
  %s8 = inlined_call_operand.vmem [shape: f32[18,1], index: 8, kind: input, shape index: {}]
  %s9 = inlined_call_operand.vmem [shape: f32[6,24], index: 9, kind: input, shape index: {}]
  %s10 = inlined_call_operand.vmem [shape: f32[6,1], index: 10, kind: input, shape index: {}]
  %s11 = inlined_call_operand.vmem [shape: f32[4,6], index: 11, kind: input, shape index: {}]
  %s12 = inlined_call_operand.vmem [shape: f32[4,1], index: 12, kind: input, shape index: {}]
  %s13 = inlined_call_operand.vmem [shape: f32[4,8], index: 13, kind: input, shape index: {}]
  %s14 = inlined_call_operand.vmem [shape: f32[4,1], index: 14, kind: input, shape index: {}]
  %s15 = inlined_call_operand.vmem [shape: f32[2,4,256], index: 15, kind: output, shape index: {}]
  %s16 = sld [smem:[#allocation0]]
  $region93: #{attention_convnn_attn_branching.1} parent=0
    _
  %s18 = ssub.s32 1, %s16
  %s19 = scalar_select 0, %s18, %s16
  loop: start=0, step=1, limit=4
  $region2: #{attention_convnn_attn_branching.1} parent=0 // loop_pre_header
    _
  $region3: #{attention_convnn_attn_branching.1} parent=0 // loop_header
    %s21 = sphi 0, %s25
    %p22 = scmp.ge.s32.totalorder %s21, 4
    %s31 = sphi 0, %s33
    %s34 = sphi 0, %s31
    %s35 = sphi 0, %s34
    %s51 = sphi 0, %s35
    %s55 = sphi 0, %s55
    %s57 = sphi 0, %s55
    %s58 = sphi 0, %s57
    %s72 = sphi 0, %s58
    %s76 = sphi 0, %s76
    %s78 = sphi 0, %s76
    %s79 = sphi 0, %s78
    %s93 = sphi 0, %s79
    %s97 = sphi 0, %s97
    %s99 = sphi 0, %s97
    %s100 = sphi 0, %s99
    %s114 = sphi 0, %s100
    %s118 = sphi 0, %s118
    %s120 = sphi 0, %s118
    %s121 = sphi 0, %s120
    %s135 = sphi 0, %s121
    %s139 = sphi 0, %s139
    %s141 = sphi 0, %s139
    %s142 = sphi 0, %s141
    %s156 = sphi 0, %s142
    %s160 = sphi 0, %s160
    %s162 = sphi 0, %s160
    %s163 = sphi 0, %s162
    %s177 = sphi 0, %s163
    %s181 = sphi 0, %s181
    %s183 = sphi 0, %s181
    %s184 = sphi 0, %s183
    %s198 = sphi 0, %s184
    %s202 = sphi 0, %s202
    %s204 = sphi 0, %s202
    %s205 = sphi 0, %s204
    %s219 = sphi 0, %s205
    %s223 = sphi 0, %s223
    %s225 = sphi 0, %s223
    %s226 = sphi 0, %s225
    %s240 = sphi 0, %s226
    %s244 = sphi 0, %s244
    %s246 = sphi 0, %s244
    %s247 = sphi 0, %s246
    %s261 = sphi 0, %s247
    %s265 = sphi 0, %s265
    %s267 = sphi 0, %s265
    %s268 = sphi 0, %s267
    %s282 = sphi 0, %s268
    %s286 = sphi 0, %s286
    %s288 = sphi 0, %s286
    %s289 = sphi 0, %s288
    %s303 = sphi 0, %s289
    %s307 = sphi 0, %s307
    %s309 = sphi 0, %s307
    %s310 = sphi 0, %s309
    %s324 = sphi 0, %s310
    %s328 = sphi 0, %s328
    %s330 = sphi 0, %s328
    %s331 = sphi 0, %s330
    %s345 = sphi 0, %s331
    %s351 = sphi 0, %s353
    %s354 = sphi 0, %s351
    %s355 = sphi 0, %s354
    %s371 = sphi 0, %s355
  $region4: #{attention_convnn_attn_branching.1} parent=0 // loop_header_branch
    %24 = sbr.rel (%p22) target = $region8
  $region5: #{attention_convnn_attn_branching.1} parent=0 // loop_body
    %s26 = ssub.s32 %s21, 1
    %s27 = ssub.s32 %s21, 2
    %s28 = sadd.s32 %s21, 1
    %s29 = ssub.s32 %s21, %s28
    %p30 = scmp.eq.s32.totalorder %s29, 0
    %s32 = sadd.s32 %s31, 1
    %s33 = scalar_select %p30, %s31, %s32
    %p36 = pneg %p30
    %p37 = scmp.eq.s32.totalorder %s21, 1
    %p38 = por %p36, %p37
    %p39 = scmp.ne.s32.totalorder %s31, %s34
    %p40 = scmp.eq.s32.totalorder %s21, 0
    %p41 = por %p39, %p40
    %p42 = scmp.ne.s32.totalorder %s31, %s34
    %p43 = scmp.eq.s32.totalorder %s26, 1
    %p44 = por %p42, %p43
    %p45 = scmp.ne.s32.totalorder %s34, %s35
    %p46 = scmp.eq.s32.totalorder %s26, 0
    %p47 = por %p45, %p46
    %p48 = scmp.ne.s32.totalorder %s34, %s35
    %p49 = scmp.eq.s32.totalorder %s27, 1
    %p50 = por %p48, %p49
    %p52 = scmp.ne.s32.totalorder %s35, %s51
    %p53 = scmp.eq.s32.totalorder %s27, 0
    %p54 = por %p52, %p53
    %s56 = sadd.s32 %s55, 1
    %p59 = scmp.eq.s32.totalorder %s21, 1
    %p60 = scmp.ne.s32.totalorder %s55, %s57
    %p61 = scmp.eq.s32.totalorder %s21, 0
    %p62 = por %p60, %p61
    %p63 = scmp.ne.s32.totalorder %s55, %s57
    %p64 = scmp.eq.s32.totalorder %s26, 1
    %p65 = por %p63, %p64
    %p66 = scmp.ne.s32.totalorder %s57, %s58
    %p67 = scmp.eq.s32.totalorder %s26, 0
    %p68 = por %p66, %p67
    %p69 = scmp.ne.s32.totalorder %s57, %s58
    %p70 = scmp.eq.s32.totalorder %s27, 1
    %p71 = por %p69, %p70
    %p73 = scmp.ne.s32.totalorder %s58, %s72
    %p74 = scmp.eq.s32.totalorder %s27, 0
    %p75 = por %p73, %p74
    %s77 = sadd.s32 %s76, 1
    %p80 = scmp.eq.s32.totalorder %s21, 1
    %p81 = scmp.ne.s32.totalorder %s76, %s78
    %p82 = scmp.eq.s32.totalorder %s21, 0
    %p83 = por %p81, %p82
    %p84 = scmp.ne.s32.totalorder %s76, %s78
    %p85 = scmp.eq.s32.totalorder %s26, 1
    %p86 = por %p84, %p85
    %p87 = scmp.ne.s32.totalorder %s78, %s79
    %p88 = scmp.eq.s32.totalorder %s26, 0
    %p89 = por %p87, %p88
    %p90 = scmp.ne.s32.totalorder %s78, %s79
    %p91 = scmp.eq.s32.totalorder %s27, 1
    %p92 = por %p90, %p91
    %p94 = scmp.ne.s32.totalorder %s79, %s93
    %p95 = scmp.eq.s32.totalorder %s27, 0
    %p96 = por %p94, %p95
    %s98 = sadd.s32 %s97, 1
    %p101 = scmp.eq.s32.totalorder %s21, 1
    %p102 = scmp.ne.s32.totalorder %s97, %s99
    %p103 = scmp.eq.s32.totalorder %s21, 0
    %p104 = por %p102, %p103
    %p105 = scmp.ne.s32.totalorder %s97, %s99
    %p106 = scmp.eq.s32.totalorder %s26, 1
    %p107 = por %p105, %p106
    %p108 = scmp.ne.s32.totalorder %s99, %s100
    %p109 = scmp.eq.s32.totalorder %s26, 0
    %p110 = por %p108, %p109
    %p111 = scmp.ne.s32.totalorder %s99, %s100
    %p112 = scmp.eq.s32.totalorder %s27, 1
    %p113 = por %p111, %p112
    %p115 = scmp.ne.s32.totalorder %s100, %s114
    %p116 = scmp.eq.s32.totalorder %s27, 0
    %p117 = por %p115, %p116
    %s119 = sadd.s32 %s118, 1
    %p122 = scmp.eq.s32.totalorder %s21, 1
    %p123 = scmp.ne.s32.totalorder %s118, %s120
    %p124 = scmp.eq.s32.totalorder %s21, 0
    %p125 = por %p123, %p124
    %p126 = scmp.ne.s32.totalorder %s118, %s120
    %p127 = scmp.eq.s32.totalorder %s26, 1
    %p128 = por %p126, %p127
    %p129 = scmp.ne.s32.totalorder %s120, %s121
    %p130 = scmp.eq.s32.totalorder %s26, 0
    %p131 = por %p129, %p130
    %p132 = scmp.ne.s32.totalorder %s120, %s121
    %p133 = scmp.eq.s32.totalorder %s27, 1
    %p134 = por %p132, %p133
    %p136 = scmp.ne.s32.totalorder %s121, %s135
    %p137 = scmp.eq.s32.totalorder %s27, 0
    %p138 = por %p136, %p137
    %s140 = sadd.s32 %s139, 1
    %p143 = scmp.eq.s32.totalorder %s21, 1
    %p144 = scmp.ne.s32.totalorder %s139, %s141
    %p145 = scmp.eq.s32.totalorder %s21, 0
    %p146 = por %p144, %p145
    %p147 = scmp.ne.s32.totalorder %s139, %s141
    %p148 = scmp.eq.s32.totalorder %s26, 1
    %p149 = por %p147, %p148
    %p150 = scmp.ne.s32.totalorder %s141, %s142
    %p151 = scmp.eq.s32.totalorder %s26, 0
    %p152 = por %p150, %p151
    %p153 = scmp.ne.s32.totalorder %s141, %s142
    %p154 = scmp.eq.s32.totalorder %s27, 1
    %p155 = por %p153, %p154
    %p157 = scmp.ne.s32.totalorder %s142, %s156
    %p158 = scmp.eq.s32.totalorder %s27, 0
    %p159 = por %p157, %p158
    %s161 = sadd.s32 %s160, 1
    %p164 = scmp.eq.s32.totalorder %s21, 1
    %p165 = scmp.ne.s32.totalorder %s160, %s162
    %p166 = scmp.eq.s32.totalorder %s21, 0
    %p167 = por %p165, %p166
    %p168 = scmp.ne.s32.totalorder %s160, %s162
    %p169 = scmp.eq.s32.totalorder %s26, 1
    %p170 = por %p168, %p169
    %p171 = scmp.ne.s32.totalorder %s162, %s163
    %p172 = scmp.eq.s32.totalorder %s26, 0
    %p173 = por %p171, %p172
    %p174 = scmp.ne.s32.totalorder %s162, %s163
    %p175 = scmp.eq.s32.totalorder %s27, 1
    %p176 = por %p174, %p175
    %p178 = scmp.ne.s32.totalorder %s163, %s177
    %p179 = scmp.eq.s32.totalorder %s27, 0
    %p180 = por %p178, %p179
    %s182 = sadd.s32 %s181, 1
    %p185 = scmp.eq.s32.totalorder %s21, 1
    %p186 = scmp.ne.s32.totalorder %s181, %s183
    %p187 = scmp.eq.s32.totalorder %s21, 0
    %p188 = por %p186, %p187
    %p189 = scmp.ne.s32.totalorder %s181, %s183
    %p190 = scmp.eq.s32.totalorder %s26, 1
    %p191 = por %p189, %p190
    %p192 = scmp.ne.s32.totalorder %s183, %s184
    %p193 = scmp.eq.s32.totalorder %s26, 0
    %p194 = por %p192, %p193
    %p195 = scmp.ne.s32.totalorder %s183, %s184
    %p196 = scmp.eq.s32.totalorder %s27, 1
    %p197 = por %p195, %p196
    %p199 = scmp.ne.s32.totalorder %s184, %s198
    %p200 = scmp.eq.s32.totalorder %s27, 0
    %p201 = por %p199, %p200
    %s203 = sadd.s32 %s202, 1
    %p206 = scmp.eq.s32.totalorder %s21, 1
    %p207 = scmp.ne.s32.totalorder %s202, %s204
    %p208 = scmp.eq.s32.totalorder %s21, 0
    %p209 = por %p207, %p208
    %p210 = scmp.ne.s32.totalorder %s202, %s204
    %p211 = scmp.eq.s32.totalorder %s26, 1
    %p212 = por %p210, %p211
    %p213 = scmp.ne.s32.totalorder %s204, %s205
    %p214 = scmp.eq.s32.totalorder %s26, 0
    %p215 = por %p213, %p214
    %p216 = scmp.ne.s32.totalorder %s204, %s205
    %p217 = scmp.eq.s32.totalorder %s27, 1
    %p218 = por %p216, %p217
    %p220 = scmp.ne.s32.totalorder %s205, %s219
    %p221 = scmp.eq.s32.totalorder %s27, 0
    %p222 = por %p220, %p221
    %s224 = sadd.s32 %s223, 1
    %p227 = scmp.eq.s32.totalorder %s21, 1
    %p228 = scmp.ne.s32.totalorder %s223, %s225
    %p229 = scmp.eq.s32.totalorder %s21, 0
    %p230 = por %p228, %p229
    %p231 = scmp.ne.s32.totalorder %s223, %s225
    %p232 = scmp.eq.s32.totalorder %s26, 1
    %p233 = por %p231, %p232
    %p234 = scmp.ne.s32.totalorder %s225, %s226
    %p235 = scmp.eq.s32.totalorder %s26, 0
    %p236 = por %p234, %p235
    %p237 = scmp.ne.s32.totalorder %s225, %s226
    %p238 = scmp.eq.s32.totalorder %s27, 1
    %p239 = por %p237, %p238
    %p241 = scmp.ne.s32.totalorder %s226, %s240
    %p242 = scmp.eq.s32.totalorder %s27, 0
    %p243 = por %p241, %p242
    %s245 = sadd.s32 %s244, 1
    %p248 = scmp.eq.s32.totalorder %s21, 1
    %p249 = scmp.ne.s32.totalorder %s244, %s246
    %p250 = scmp.eq.s32.totalorder %s21, 0
    %p251 = por %p249, %p250
    %p252 = scmp.ne.s32.totalorder %s244, %s246
    %p253 = scmp.eq.s32.totalorder %s26, 1
    %p254 = por %p252, %p253
    %p255 = scmp.ne.s32.totalorder %s246, %s247
    %p256 = scmp.eq.s32.totalorder %s26, 0
    %p257 = por %p255, %p256
    %p258 = scmp.ne.s32.totalorder %s246, %s247
    %p259 = scmp.eq.s32.totalorder %s27, 1
    %p260 = por %p258, %p259
    %p262 = scmp.ne.s32.totalorder %s247, %s261
    %p263 = scmp.eq.s32.totalorder %s27, 0
    %p264 = por %p262, %p263
    %s266 = sadd.s32 %s265, 1
    %p269 = scmp.eq.s32.totalorder %s21, 1
    %p270 = scmp.ne.s32.totalorder %s265, %s267
    %p271 = scmp.eq.s32.totalorder %s21, 0
    %p272 = por %p270, %p271
    %p273 = scmp.ne.s32.totalorder %s265, %s267
    %p274 = scmp.eq.s32.totalorder %s26, 1
    %p275 = por %p273, %p274
    %p276 = scmp.ne.s32.totalorder %s267, %s268
    %p277 = scmp.eq.s32.totalorder %s26, 0
    %p278 = por %p276, %p277
    %p279 = scmp.ne.s32.totalorder %s267, %s268
    %p280 = scmp.eq.s32.totalorder %s27, 1
    %p281 = por %p279, %p280
    %p283 = scmp.ne.s32.totalorder %s268, %s282
    %p284 = scmp.eq.s32.totalorder %s27, 0
    %p285 = por %p283, %p284
    %s287 = sadd.s32 %s286, 1
    %p290 = scmp.eq.s32.totalorder %s21, 1
    %p291 = scmp.ne.s32.totalorder %s286, %s288
    %p292 = scmp.eq.s32.totalorder %s21, 0
    %p293 = por %p291, %p292
    %p294 = scmp.ne.s32.totalorder %s286, %s288
    %p295 = scmp.eq.s32.totalorder %s26, 1
    %p296 = por %p294, %p295
    %p297 = scmp.ne.s32.totalorder %s288, %s289
    %p298 = scmp.eq.s32.totalorder %s26, 0
    %p299 = por %p297, %p298
    %p300 = scmp.ne.s32.totalorder %s288, %s289
    %p301 = scmp.eq.s32.totalorder %s27, 1
    %p302 = por %p300, %p301
    %p304 = scmp.ne.s32.totalorder %s289, %s303
    %p305 = scmp.eq.s32.totalorder %s27, 0
    %p306 = por %p304, %p305
    %s308 = sadd.s32 %s307, 1
    %p311 = scmp.eq.s32.totalorder %s21, 1
    %p312 = scmp.ne.s32.totalorder %s307, %s309
    %p313 = scmp.eq.s32.totalorder %s21, 0
    %p314 = por %p312, %p313
    %p315 = scmp.ne.s32.totalorder %s307, %s309
    %p316 = scmp.eq.s32.totalorder %s26, 1
    %p317 = por %p315, %p316
    %p318 = scmp.ne.s32.totalorder %s309, %s310
    %p319 = scmp.eq.s32.totalorder %s26, 0
    %p320 = por %p318, %p319
    %p321 = scmp.ne.s32.totalorder %s309, %s310
    %p322 = scmp.eq.s32.totalorder %s27, 1
    %p323 = por %p321, %p322
    %p325 = scmp.ne.s32.totalorder %s310, %s324
    %p326 = scmp.eq.s32.totalorder %s27, 0
    %p327 = por %p325, %p326
    %s329 = sadd.s32 %s328, 1
    %p332 = scmp.eq.s32.totalorder %s21, 1
    %p333 = scmp.ne.s32.totalorder %s328, %s330
    %p334 = scmp.eq.s32.totalorder %s21, 0
    %p335 = por %p333, %p334
    %p336 = scmp.ne.s32.totalorder %s328, %s330
    %p337 = scmp.eq.s32.totalorder %s26, 1
    %p338 = por %p336, %p337
    %p339 = scmp.ne.s32.totalorder %s330, %s331
    %p340 = scmp.eq.s32.totalorder %s26, 0
    %p341 = por %p339, %p340
    %p342 = scmp.ne.s32.totalorder %s330, %s331
    %p343 = scmp.eq.s32.totalorder %s27, 1
    %p344 = por %p342, %p343
    %p346 = scmp.ne.s32.totalorder %s331, %s345
    %p347 = scmp.eq.s32.totalorder %s27, 0
    %p348 = por %p346, %p347
    %s349 = ssub.s32 %s21, %s28
    %p350 = scmp.eq.s32.totalorder %s349, 0
    %s352 = sadd.s32 %s351, 1
    %s353 = scalar_select %p350, %s351, %s352
    %p356 = pneg %p350
    %p357 = scmp.eq.s32.totalorder %s21, 1
    %p358 = por %p356, %p357
    %p359 = scmp.ne.s32.totalorder %s351, %s354
    %p360 = scmp.eq.s32.totalorder %s21, 0
    %p361 = por %p359, %p360
    %p362 = scmp.ne.s32.totalorder %s351, %s354
    %p363 = scmp.eq.s32.totalorder %s26, 1
    %p364 = por %p362, %p363
    %p365 = scmp.ne.s32.totalorder %s354, %s355
    %p366 = scmp.eq.s32.totalorder %s26, 0
    %p367 = por %p365, %p366
    %p368 = scmp.ne.s32.totalorder %s354, %s355
    %p369 = scmp.eq.s32.totalorder %s27, 1
    %p370 = por %p368, %p369
    %p372 = scmp.ne.s32.totalorder %s355, %s371
    %p373 = scmp.eq.s32.totalorder %s27, 0
    %p374 = por %p372, %p373
    %p375 = scmp.le.s32.totalorder 1, %s21
    %p376 = scmp.lt.s32.totalorder %s21, 3
    %p377 = pnand %p375, %p376
    %p378 = pneg %p377
    // Predicated region
    $region9: #{attention_convnn_attn_branching.1} parent=5 // pred_check
      _
    $region10: #{attention_convnn_attn_branching.1} parent=5 // pred_check_branch
      %380 = sbr.rel (%p377) target = $region12
    $region11: #{attention_convnn_attn_branching.1} parent=5 // pred_region
      %s381 = ssub.s32 %s21, 1
      // Predicated region
      $region13: #{attention_convnn_attn_branching.1} parent=11 // pred_check
        %p382 = pneg %p68
      $region14: #{attention_convnn_attn_branching.1} parent=11 // pred_check_branch
        %384 = sbr.rel (%p382) target = $region16
      $region15: #{attention_convnn_attn_branching.1} parent=11 // pred_region
        _
      $region16: #{attention_convnn_attn_branching.1} parent=11 // pred_fallthru
        _
      // Predicated region
      $region17: #{attention_convnn_attn_branching.1} parent=11 // pred_check
        %p385 = pneg %p89
      $region18: #{attention_convnn_attn_branching.1} parent=11 // pred_check_branch
        %387 = sbr.rel (%p385) target = $region20
      $region19: #{attention_convnn_attn_branching.1} parent=11 // pred_region
        _
      $region20: #{attention_convnn_attn_branching.1} parent=11 // pred_fallthru
        _
      // Predicated region
      $region21: #{attention_convnn_attn_branching.1} parent=11 // pred_check
        %p388 = pneg %p110
      $region22: #{attention_convnn_attn_branching.1} parent=11 // pred_check_branch
        %390 = sbr.rel (%p388) target = $region24
      $region23: #{attention_convnn_attn_branching.1} parent=11 // pred_region
        _
      $region24: #{attention_convnn_attn_branching.1} parent=11 // pred_fallthru
        _
      // Predicated region
      $region25: #{attention_convnn_attn_branching.1} parent=11 // pred_check
        %p391 = pneg %p131
      $region26: #{attention_convnn_attn_branching.1} parent=11 // pred_check_branch
        %393 = sbr.rel (%p391) target = $region28
      $region27: #{attention_convnn_attn_branching.1} parent=11 // pred_region
        _
      $region28: #{attention_convnn_attn_branching.1} parent=11 // pred_fallthru
        _
      // Predicated region
      $region29: #{attention_convnn_attn_branching.1} parent=11 // pred_check
        %p394 = pneg %p152
      $region30: #{attention_convnn_attn_branching.1} parent=11 // pred_check_branch
        %396 = sbr.rel (%p394) target = $region32
      $region31: #{attention_convnn_attn_branching.1} parent=11 // pred_region
        _
      $region32: #{attention_convnn_attn_branching.1} parent=11 // pred_fallthru
        _
      // Predicated region
      $region33: #{attention_convnn_attn_branching.1} parent=11 // pred_check
        %p397 = pneg %p173
      $region34: #{attention_convnn_attn_branching.1} parent=11 // pred_check_branch
        %399 = sbr.rel (%p397) target = $region36
      $region35: #{attention_convnn_attn_branching.1} parent=11 // pred_region
        _
      $region36: #{attention_convnn_attn_branching.1} parent=11 // pred_fallthru
        _
      // Predicated region
      $region37: #{attention_convnn_attn_branching.1} parent=11 // pred_check
        %p400 = pneg %p194
      $region38: #{attention_convnn_attn_branching.1} parent=11 // pred_check_branch
        %402 = sbr.rel (%p400) target = $region40
      $region39: #{attention_convnn_attn_branching.1} parent=11 // pred_region
        _
      $region40: #{attention_convnn_attn_branching.1} parent=11 // pred_fallthru
        _
      // Predicated region
      $region41: #{attention_convnn_attn_branching.1} parent=11 // pred_check
        %p403 = pneg %p215
      $region42: #{attention_convnn_attn_branching.1} parent=11 // pred_check_branch
        %405 = sbr.rel (%p403) target = $region44
      $region43: #{attention_convnn_attn_branching.1} parent=11 // pred_region
        _
      $region44: #{attention_convnn_attn_branching.1} parent=11 // pred_fallthru
        _
      // Predicated region
      $region45: #{attention_convnn_attn_branching.1} parent=11 // pred_check
        %p406 = pneg %p236
      $region46: #{attention_convnn_attn_branching.1} parent=11 // pred_check_branch
        %408 = sbr.rel (%p406) target = $region48
      $region47: #{attention_convnn_attn_branching.1} parent=11 // pred_region
        _
      $region48: #{attention_convnn_attn_branching.1} parent=11 // pred_fallthru
        _
      // Predicated region
      $region49: #{attention_convnn_attn_branching.1} parent=11 // pred_check
        %p409 = pneg %p257
      $region50: #{attention_convnn_attn_branching.1} parent=11 // pred_check_branch
        %411 = sbr.rel (%p409) target = $region52
      $region51: #{attention_convnn_attn_branching.1} parent=11 // pred_region
        _
      $region52: #{attention_convnn_attn_branching.1} parent=11 // pred_fallthru
        _
      // Predicated region
      $region53: #{attention_convnn_attn_branching.1} parent=11 // pred_check
        %p412 = pneg %p278
      $region54: #{attention_convnn_attn_branching.1} parent=11 // pred_check_branch
        %414 = sbr.rel (%p412) target = $region56
      $region55: #{attention_convnn_attn_branching.1} parent=11 // pred_region
        _
      $region56: #{attention_convnn_attn_branching.1} parent=11 // pred_fallthru
        _
      // Predicated region
      $region57: #{attention_convnn_attn_branching.1} parent=11 // pred_check
        %p415 = pneg %p299
      $region58: #{attention_convnn_attn_branching.1} parent=11 // pred_check_branch
        %417 = sbr.rel (%p415) target = $region60
      $region59: #{attention_convnn_attn_branching.1} parent=11 // pred_region
        _
      $region60: #{attention_convnn_attn_branching.1} parent=11 // pred_fallthru
        _
      // Predicated region
      $region61: #{attention_convnn_attn_branching.1} parent=11 // pred_check
        %p418 = pneg %p320
      $region62: #{attention_convnn_attn_branching.1} parent=11 // pred_check_branch
        %420 = sbr.rel (%p418) target = $region64
      $region63: #{attention_convnn_attn_branching.1} parent=11 // pred_region
        _
      $region64: #{attention_convnn_attn_branching.1} parent=11 // pred_fallthru
        _
      // Predicated region
      $region65: #{attention_convnn_attn_branching.1} parent=11 // pred_check
        %p421 = pneg %p341
      $region66: #{attention_convnn_attn_branching.1} parent=11 // pred_check_branch
        %423 = sbr.rel (%p421) target = $region68
      $region67: #{attention_convnn_attn_branching.1} parent=11 // pred_region
        _
      $region68: #{attention_convnn_attn_branching.1} parent=11 // pred_fallthru
        _
    $region12: #{attention_convnn_attn_branching.1} parent=5 // pred_fallthru
      _
    %p424 = scmp.lt.s32.totalorder %s21, 2
    // Predicated region
    $region69: #{attention_convnn_attn_branching.1} parent=5 // pred_check
      %p425 = pneg %p424
    $region70: #{attention_convnn_attn_branching.1} parent=5 // pred_check_branch
      %427 = sbr.rel (%p425) target = $region72
    $region71: #{attention_convnn_attn_branching.1} parent=5 // pred_region
      // Predicated region
      $region73: #{attention_convnn_attn_branching.1} parent=71 // pred_check
        %p428 = pneg %p41
      $region74: #{attention_convnn_attn_branching.1} parent=71 // pred_check_branch
        %430 = sbr.rel (%p428) target = $region76
      $region75: #{attention_convnn_attn_branching.1} parent=71 // pred_region
        %p431 = scmp.lt.s32.totalorder %s21, 1
        %s432 = scalar_select %p431, %s21, 1
        %s433 = smul.addr %s432, 2
        %s434 = smul.addr %s433, 8
        %s435 = scalar_lea.vmem %s0, %s434
      $region76: #{attention_convnn_attn_branching.1} parent=71 // pred_fallthru
        _
    $region72: #{attention_convnn_attn_branching.1} parent=5 // pred_fallthru
      _
    %p436 = scmp.le.s32.totalorder 1, %s21
    %p437 = scmp.lt.s32.totalorder %s21, 3
    %p438 = pnand %p436, %p437
    %p439 = pneg %p438
    // Predicated region
    $region77: #{attention_convnn_attn_branching.1} parent=5 // pred_check
      _
    $region78: #{attention_convnn_attn_branching.1} parent=5 // pred_check_branch
      %441 = sbr.rel (%p438) target = $region80
    $region79: #{attention_convnn_attn_branching.1} parent=5 // pred_region
      %s442 = ssub.s32 %s21, 1
      %p443 = scmp.lt.s32.totalorder %s26, 1
      %s444 = scalar_select %p443, %s26, 1
      %s445 = smul.addr %s444, 2
      %s446 = smul.addr %s445, 8
      %s447 = scalar_lea.vmem %s0, %s446
      %p448 = pneg %p47
      %p449 = pneg %p44
      %p450 = pneg %p68
      %p451 = pneg %p65
      %p452 = pneg %p89
      %p453 = pneg %p86
      %p454 = pneg %p110
      %p455 = pneg %p107
      %p456 = pneg %p131
      %p457 = pneg %p128
      %p458 = pneg %p152
      %p459 = pneg %p149
      %p460 = pneg %p173
      %p461 = pneg %p170
      %p462 = pneg %p194
      %p463 = pneg %p191
      %p464 = pneg %p215
      %p465 = pneg %p212
      %p466 = pneg %p236
      %p467 = pneg %p233
      %p468 = pneg %p257
      %p469 = pneg %p254
      %p470 = pneg %p278
      %p471 = pneg %p275
      %p472 = pneg %p299
      %p473 = pneg %p296
      %p474 = pneg %p320
      %p475 = pneg %p317
      %p476 = pneg %p341
      %p477 = pneg %p338
      %p478 = pneg %p367
      %p479 = pneg %p364
      %p480 = scmp.lt.s32.totalorder %s26, 1
      %s481 = scalar_select %p480, %s26, 1
      %s482 = smul.addr %s481, 2
      %s483 = smul.addr %s482, 4
      %s484 = scalar_lea.vmem %s15, %s483
      %p485 = scmp.lt.s32.totalorder %s26, 1
      %s486 = scalar_select %p485, %s26, 1
      %s487 = smul.addr %s486, 2
      %s488 = smul.addr %s487, 8
      %s489 = scalar_lea.vmem %s0, %s488
      %p490 = scmp.lt.s32.totalorder %s26, 1
      %s491 = scalar_select %p490, %s26, 1
      %s492 = smul.addr %s491, 2
      %s493 = smul.addr %s492, 4
      %s494 = scalar_lea.vmem %s15, %s493
      %v495 = vld [vmem:[%s489] sm:$0x3f]
      %v496 = vld [vmem:[%s489 + $0x8] sm:$0x3f]
      %v497 = vld [vmem:[%s1] sm:$0xff]
      %v498 = vld [vmem:[%s1 + $0x8] sm:$0xff]
      %v499 = vld [vmem:[%s1 + $0x10] sm:$0x3]
      %v500 = vld [vmem:[%s2] sm:$0xff]
      %v501 = vld [vmem:[%s2 + $0x8] sm:$0xff]
      %v502 = vld [vmem:[%s2 + $0x10] sm:$0x3]
      %504 = vset.pattern.permute.xlu0 0
      %505 = vperm.xlu0 %504, %v500
      %v506 = vpop.permute.xlu0 %505
      %509 = vset.pattern.permute.xlu0 0
      %510 = vperm.xlu0 %509, %v501
      %v511 = vpop.permute.xlu0 %510
      %514 = vset.pattern.permute.xlu0 0
      %515 = vperm.xlu0 %514, %v502
      %v516 = vpop.permute.xlu0 %515
      %vm518 = vcmask 48128
      %v520 = vsel %vm518, %v497, 0
      %v523 = vsel %vm518, %v498, 0
      %v526 = vsel %vm518, %v499, 0
      %vm528 = vcmask 1045504
      %v530 = vsel %vm528, %v495, 0
      %v533 = vsel %vm528, %v496, 0
      %535 = vmatprep.subr.mxu0 0.0
      %536 = vmatpush1.msra.mxu0 0.0
      %537 = vmatprep.subr.mxu0 0.0
      %538 = vmatpush1.msra.mxu0 0.0
      %539 = vmatprep.subr.mxu0 0.0
      %540 = vmatpush1.msra.mxu0 0.0
      %541 = vmatprep.subr.mxu0 0.0
      %542 = vmatpush1.msra.mxu0 0.0
      %543 = vmatprep.subr.mxu0 0.0
      %544 = vmatpush1.msra.mxu0 0.0
      %545 = vmatprep.subr.mxu0 0.0
      %546 = vmatpush1.msra.mxu0 0.0
      %547 = vmatprep.subr.mxu0 0.0
      %548 = vmatpush1.msra.mxu0 0.0
      %549 = vmatprep.subr.mxu0 0.0
      %550 = vmatpush1.msra.mxu0 0.0
      %551 = vmatprep.subr.mxu0 0.0
      %552 = vmatpush1.msra.mxu0 0.0
      %553 = vmatprep.subr.mxu0 0.0
      %554 = vmatpush1.msra.mxu0 0.0
      %555 = vmatprep.subr.mxu0 0.0
      %556 = vmatpush1.msra.mxu0 0.0
      %557 = vmatprep.subr.mxu0 0.0
      %558 = vmatpush1.msra.mxu0 0.0
      %559 = vmatprep.subr.mxu0 0.0
      %560 = vmatpush1.msra.mxu0 0.0
      %561 = vmatprep.subr.mxu0 0.0
      %562 = vmatpush1.msra.mxu0 0.0
      %563 = vmatprep.subr.mxu0 0.0
      %564 = vmatpush1.msra.mxu0 0.0
      %565 = vmatprep.subr.mxu0 %v533
      %566 = vmatpush1.msra.mxu0 %v530
      %567 = vmatprep.subr.mxu0 0.0
      %568 = vmatpush2.msra.mxu0 0.0
      %569 = vmatprep.subr.mxu0 0.0
      %570 = vmatpush2.msra.mxu0 0.0
      %571 = vmatprep.subr.mxu0 0.0
      %572 = vmatpush2.msra.mxu0 0.0
      %573 = vmatprep.subr.mxu0 0.0
      %574 = vmatpush2.msra.mxu0 0.0
      %575 = vmatprep.subr.mxu0 0.0
      %576 = vmatpush2.msra.mxu0 0.0
      %577 = vmatprep.subr.mxu0 0.0
      %578 = vmatpush2.msra.mxu0 0.0
      %579 = vmatprep.subr.mxu0 0.0
      %580 = vmatpush2.msra.mxu0 0.0
      %581 = vmatprep.subr.mxu0 0.0
      %582 = vmatpush2.msra.mxu0 0.0
      %583 = vmatprep.subr.mxu0 0.0
      %584 = vmatpush2.msra.mxu0 0.0
      %585 = vmatprep.subr.mxu0 0.0
      %586 = vmatpush2.msra.mxu0 0.0
      %587 = vmatprep.subr.mxu0 0.0
      %588 = vmatpush2.msra.mxu0 0.0
      %589 = vmatprep.subr.mxu0 0.0
      %590 = vmatpush2.msra.mxu0 0.0
      %591 = vmatprep.subr.mxu0 0.0
      %592 = vmatpush2.msra.mxu0 0.0
      %593 = vmatprep.subr.mxu0 0.0
      %594 = vmatpush2.msra.mxu0 0.0
      %595 = vmatprep.subr.mxu0 0.0
      %596 = vmatpush2.msra.mxu0 0.0
      %597 = vmatprep.subr.mxu0 0.0
      %598 = vmatpush2.msra.mxu0 0.0
      %599 = vmatprep.mubr.f32.mxu0 0.0
      %600 = vmatmul.mubr.f32.gmra.mxu0 %v520
      %v601 = vpop.f32.mrf.mxu0
      %v602 = vadd.f32 %v506, %v601
      %v603 = vpop.f32.mrf.mxu0
      %v604 = vadd.f32 %v506, %v603
      %605 = vmatprep.mubr.f32.mxu0 0.0
      %606 = vmatmul.mubr.f32.gmra.mxu0 %v523
      %v607 = vpop.f32.mrf.mxu0
      %v608 = vadd.f32 %v511, %v607
      %v609 = vpop.f32.mrf.mxu0
      %v610 = vadd.f32 %v511, %v609
      %611 = vmatprep.mubr.f32.mxu0 0.0
      %612 = vmatmul.mubr.f32.gmra.mxu0 %v526
      %v613 = vpop.f32.mrf.mxu0
      %v614 = vadd.f32 %v516, %v613
      %v615 = vpop.f32.mrf.mxu0
      %v616 = vadd.f32 %v516, %v615
      %617 = vdwg.mxu0
      %618 = vxpose.xlu0.b32.start [1/16] %v602, 128
      %619 = vxpose.xlu0.b32.cont [2/16] 0.0, 128
      %620 = vxpose.xlu0.b32.cont [3/16] 0.0, 128
      %621 = vxpose.xlu0.b32.cont [4/16] 0.0, 128
      %622 = vxpose.xlu0.b32.cont [5/16] 0.0, 128
      %623 = vxpose.xlu0.b32.cont [6/16] 0.0, 128
      %624 = vxpose.xlu0.b32.cont [7/16] 0.0, 128
      %625 = vxpose.xlu0.b32.cont [8/16] 0.0, 128
      %626 = vxpose.xlu0.b32.cont [9/16] 0.0, 128
      %627 = vxpose.xlu0.b32.cont [10/16] 0.0, 128
      %628 = vxpose.xlu0.b32.cont [11/16] 0.0, 128
      %629 = vxpose.xlu0.b32.cont [12/16] 0.0, 128
      %630 = vxpose.xlu0.b32.cont [13/16] 0.0, 128
      %631 = vxpose.xlu0.b32.cont [14/16] 0.0, 128
      %632 = vxpose.xlu0.b32.cont [15/16] 0.0, 128
      %633 = vxpose.xlu0.b32.end [16/16] 0.0, 128
      %v634 = vpop.trf.xlu0
      %v635 = vpop.trf.xlu0
      %v636 = vpop.trf.xlu0
      %v637 = vpop.trf.xlu0
      %v638 = vpop.trf.xlu0
      %v639 = vpop.trf.xlu0
      %v640 = vpop.trf.xlu0
      %v641 = vpop.trf.xlu0
      %v642 = vpop.trf.xlu0
      %v643 = vpop.trf.xlu0
      %v644 = vpop.trf.xlu0
      %v645 = vpop.trf.xlu0
      %v646 = vpop.trf.xlu0
      %v647 = vpop.trf.xlu0
      %v648 = vpop.trf.xlu0
      %v649 = vpop.trf.xlu0
      %650 = vxpose.xlu0.b32.start [1/16] %v604, 128
      %651 = vxpose.xlu0.b32.cont [2/16] 0.0, 128
      %652 = vxpose.xlu0.b32.cont [3/16] 0.0, 128
      %653 = vxpose.xlu0.b32.cont [4/16] 0.0, 128
      %654 = vxpose.xlu0.b32.cont [5/16] 0.0, 128
      %655 = vxpose.xlu0.b32.cont [6/16] 0.0, 128
      %656 = vxpose.xlu0.b32.cont [7/16] 0.0, 128
      %657 = vxpose.xlu0.b32.cont [8/16] 0.0, 128
      %658 = vxpose.xlu0.b32.cont [9/16] 0.0, 128
      %659 = vxpose.xlu0.b32.cont [10/16] 0.0, 128
      %660 = vxpose.xlu0.b32.cont [11/16] 0.0, 128
      %661 = vxpose.xlu0.b32.cont [12/16] 0.0, 128
      %662 = vxpose.xlu0.b32.cont [13/16] 0.0, 128
      %663 = vxpose.xlu0.b32.cont [14/16] 0.0, 128
      %664 = vxpose.xlu0.b32.cont [15/16] 0.0, 128
      %665 = vxpose.xlu0.b32.end [16/16] 0.0, 128
      %v666 = vpop.trf.xlu0
      %v667 = vpop.trf.xlu0
      %v668 = vpop.trf.xlu0
      %v669 = vpop.trf.xlu0
      %v670 = vpop.trf.xlu0
      %v671 = vpop.trf.xlu0
      %v672 = vpop.trf.xlu0
      %v673 = vpop.trf.xlu0
      %v674 = vpop.trf.xlu0
      %v675 = vpop.trf.xlu0
      %v676 = vpop.trf.xlu0
      %v677 = vpop.trf.xlu0
      %v678 = vpop.trf.xlu0
      %v679 = vpop.trf.xlu0
      %v680 = vpop.trf.xlu0
      %v681 = vpop.trf.xlu0
      %v682 = vld [vmem:[%s3] sm:$0x3f]
      %vm687 = vcmask 1041408
      %v688 = vrot.slane %v602, 6
      %v689 = vrot.slane %v608, 6
      %v690 = vsel %vm687, %v688, %v689
      %v691 = vrot.slane %v604, 6
      %v692 = vrot.slane %v610, 6
      %v693 = vsel %vm687, %v691, %v692
      %vm694 = vcmask 23552
      %v696 = vsel %vm694, %v634, 0
      %v699 = vsel %vm694, %v635, 0
      %v702 = vsel %vm694, %v636, 0
      %v705 = vsel %vm694, %v637, 0
      %v708 = vsel %vm694, %v638, 0
      %v711 = vsel %vm694, %v639, 0
      %v714 = vsel %vm694, %v640, 0
      %v717 = vsel %vm694, %v641, 0
      %v720 = vsel %vm694, %v642, 0
      %v723 = vsel %vm694, %v643, 0
      %v726 = vsel %vm694, %v644, 0
      %v729 = vsel %vm694, %v645, 0
      %v732 = vsel %vm694, %v646, 0
      %v735 = vsel %vm694, %v647, 0
      %v738 = vsel %vm694, %v648, 0
      %v741 = vsel %vm694, %v649, 0
      %v744 = vsel %vm694, %v666, 0
      %v747 = vsel %vm694, %v667, 0
      %v750 = vsel %vm694, %v668, 0
      %v753 = vsel %vm694, %v669, 0
      %v756 = vsel %vm694, %v670, 0
      %v759 = vsel %vm694, %v671, 0
      %v762 = vsel %vm694, %v672, 0
      %v765 = vsel %vm694, %v673, 0
      %v768 = vsel %vm694, %v674, 0
      %v771 = vsel %vm694, %v675, 0
      %v774 = vsel %vm694, %v676, 0
      %v777 = vsel %vm694, %v677, 0
      %v780 = vsel %vm694, %v678, 0
      %v783 = vsel %vm694, %v679, 0
      %v786 = vsel %vm694, %v680, 0
      %v789 = vsel %vm694, %v681, 0
      %vm791 = vcmask 1042432
      %v792 = vsel %vm791, %v690, 0
      %v794 = vsel %vm791, %v693, 0
      %796 = vmatprep.subr.mxu0 0.0
      %797 = vmatpush1.msra.mxu0 0.0
      %798 = vmatprep.subr.mxu0 0.0
      %799 = vmatpush1.msra.mxu0 0.0
      %800 = vmatprep.subr.mxu0 0.0
      %801 = vmatpush1.msra.mxu0 0.0
      %802 = vmatprep.subr.mxu0 0.0
      %803 = vmatpush1.msra.mxu0 0.0
      %804 = vmatprep.subr.mxu0 0.0
      %805 = vmatpush1.msra.mxu0 0.0
      %806 = vmatprep.subr.mxu0 0.0
      %807 = vmatpush1.msra.mxu0 0.0
      %808 = vmatprep.subr.mxu0 0.0
      %809 = vmatpush1.msra.mxu0 0.0
      %810 = vmatprep.subr.mxu0 0.0
      %811 = vmatpush1.msra.mxu0 0.0
      %812 = vmatprep.subr.mxu0 0.0
      %813 = vmatpush1.msra.mxu0 0.0
      %814 = vmatprep.subr.mxu0 0.0
      %815 = vmatpush1.msra.mxu0 0.0
      %816 = vmatprep.subr.mxu0 0.0
      %817 = vmatpush1.msra.mxu0 0.0
      %818 = vmatprep.subr.mxu0 0.0
      %819 = vmatpush1.msra.mxu0 0.0
      %820 = vmatprep.subr.mxu0 0.0
      %821 = vmatpush1.msra.mxu0 0.0
      %822 = vmatprep.subr.mxu0 0.0
      %823 = vmatpush1.msra.mxu0 0.0
      %824 = vmatprep.subr.mxu0 0.0
      %825 = vmatpush1.msra.mxu0 0.0
      %826 = vmatprep.subr.mxu0 %v794
      %827 = vmatpush1.msra.mxu0 %v792
      %828 = vmatprep.subr.mxu0 0.0
      %829 = vmatpush2.msra.mxu0 0.0
      %830 = vmatprep.subr.mxu0 0.0
      %831 = vmatpush2.msra.mxu0 0.0
      %832 = vmatprep.subr.mxu0 0.0
      %833 = vmatpush2.msra.mxu0 0.0
      %834 = vmatprep.subr.mxu0 0.0
      %835 = vmatpush2.msra.mxu0 0.0
      %836 = vmatprep.subr.mxu0 0.0
      %837 = vmatpush2.msra.mxu0 0.0
      %838 = vmatprep.subr.mxu0 0.0
      %839 = vmatpush2.msra.mxu0 0.0
      %840 = vmatprep.subr.mxu0 0.0
      %841 = vmatpush2.msra.mxu0 0.0
      %842 = vmatprep.subr.mxu0 0.0
      %843 = vmatpush2.msra.mxu0 0.0
      %844 = vmatprep.subr.mxu0 0.0
      %845 = vmatpush2.msra.mxu0 0.0
      %846 = vmatprep.subr.mxu0 0.0
      %847 = vmatpush2.msra.mxu0 0.0
      %848 = vmatprep.subr.mxu0 0.0
      %849 = vmatpush2.msra.mxu0 0.0
      %850 = vmatprep.subr.mxu0 0.0
      %851 = vmatpush2.msra.mxu0 0.0
      %852 = vmatprep.subr.mxu0 0.0
      %853 = vmatpush2.msra.mxu0 0.0
      %854 = vmatprep.subr.mxu0 0.0
      %855 = vmatpush2.msra.mxu0 0.0
      %856 = vmatprep.subr.mxu0 0.0
      %857 = vmatpush2.msra.mxu0 0.0
      %858 = vmatprep.subr.mxu0 0.0
      %859 = vmatpush2.msra.mxu0 0.0
      %860 = vmatprep.mubr.f32.mxu0 0.0
      %861 = vmatmul.mubr.f32.gmra.mxu0 %v696
      %v862 = vpop.f32.mrf.mxu0
      %v863 = vadd.f32 0.0, %v862
      %v864 = vpop.f32.mrf.mxu0
      %v865 = vadd.f32 0.0, %v864
      %866 = vmatprep.mubr.f32.mxu0 0.0
      %867 = vmatmul.mubr.f32.gmra.mxu0 %v699
      %v868 = vpop.f32.mrf.mxu0
      %v869 = vadd.f32 0.0, %v868
      %v870 = vpop.f32.mrf.mxu0
      %v871 = vadd.f32 0.0, %v870
      %872 = vmatprep.mubr.f32.mxu0 0.0
      %873 = vmatmul.mubr.f32.gmra.mxu0 %v702
      %v874 = vpop.f32.mrf.mxu0
      %v875 = vadd.f32 0.0, %v874
      %v876 = vpop.f32.mrf.mxu0
      %v877 = vadd.f32 0.0, %v876
      %878 = vmatprep.mubr.f32.mxu0 0.0
      %879 = vmatmul.mubr.f32.gmra.mxu0 %v705
      %v880 = vpop.f32.mrf.mxu0
      %v881 = vadd.f32 0.0, %v880
      %v882 = vpop.f32.mrf.mxu0
      %v883 = vadd.f32 0.0, %v882
      %884 = vmatprep.mubr.f32.mxu0 0.0
      %885 = vmatmul.mubr.f32.gmra.mxu0 %v708
      %v886 = vpop.f32.mrf.mxu0
      %v887 = vadd.f32 0.0, %v886
      %v888 = vpop.f32.mrf.mxu0
      %v889 = vadd.f32 0.0, %v888
      %890 = vmatprep.mubr.f32.mxu0 0.0
      %891 = vmatmul.mubr.f32.gmra.mxu0 %v711
      %v892 = vpop.f32.mrf.mxu0
      %v893 = vadd.f32 0.0, %v892
      %v894 = vpop.f32.mrf.mxu0
      %v895 = vadd.f32 0.0, %v894
      %896 = vmatprep.mubr.f32.mxu0 0.0
      %897 = vmatmul.mubr.f32.gmra.mxu0 %v714
      %v898 = vpop.f32.mrf.mxu0
      %v899 = vadd.f32 0.0, %v898
      %v900 = vpop.f32.mrf.mxu0
      %v901 = vadd.f32 0.0, %v900
      %902 = vmatprep.mubr.f32.mxu0 0.0
      %903 = vmatmul.mubr.f32.gmra.mxu0 %v717
      %v904 = vpop.f32.mrf.mxu0
      %v905 = vadd.f32 0.0, %v904
      %v906 = vpop.f32.mrf.mxu0
      %v907 = vadd.f32 0.0, %v906
      %908 = vmatprep.mubr.f32.mxu0 0.0
      %909 = vmatmul.mubr.f32.gmra.mxu0 %v720
      %v910 = vpop.f32.mrf.mxu0
      %v911 = vadd.f32 0.0, %v910
      %v912 = vpop.f32.mrf.mxu0
      %v913 = vadd.f32 0.0, %v912
      %914 = vmatprep.mubr.f32.mxu0 0.0
      %915 = vmatmul.mubr.f32.gmra.mxu0 %v723
      %v916 = vpop.f32.mrf.mxu0
      %v917 = vadd.f32 0.0, %v916
      %v918 = vpop.f32.mrf.mxu0
      %v919 = vadd.f32 0.0, %v918
      %920 = vmatprep.mubr.f32.mxu0 0.0
      %921 = vmatmul.mubr.f32.gmra.mxu0 %v726
      %v922 = vpop.f32.mrf.mxu0
      %v923 = vadd.f32 0.0, %v922
      %v924 = vpop.f32.mrf.mxu0
      %v925 = vadd.f32 0.0, %v924
      %926 = vmatprep.mubr.f32.mxu0 0.0
      %927 = vmatmul.mubr.f32.gmra.mxu0 %v729
      %v928 = vpop.f32.mrf.mxu0
      %v929 = vadd.f32 0.0, %v928
      %v930 = vpop.f32.mrf.mxu0
      %v931 = vadd.f32 0.0, %v930
      %932 = vmatprep.mubr.f32.mxu0 0.0
      %933 = vmatmul.mubr.f32.gmra.mxu0 %v732
      %v934 = vpop.f32.mrf.mxu0
      %v935 = vadd.f32 0.0, %v934
      %v936 = vpop.f32.mrf.mxu0
      %v937 = vadd.f32 0.0, %v936
      %938 = vmatprep.mubr.f32.mxu0 0.0
      %939 = vmatmul.mubr.f32.gmra.mxu0 %v735
      %v940 = vpop.f32.mrf.mxu0
      %v941 = vadd.f32 0.0, %v940
      %v942 = vpop.f32.mrf.mxu0
      %v943 = vadd.f32 0.0, %v942
      %944 = vmatprep.mubr.f32.mxu0 0.0
      %945 = vmatmul.mubr.f32.gmra.mxu0 %v738
      %v946 = vpop.f32.mrf.mxu0
      %v947 = vadd.f32 0.0, %v946
      %v948 = vpop.f32.mrf.mxu0
      %v949 = vadd.f32 0.0, %v948
      %950 = vmatprep.mubr.f32.mxu0 0.0
      %951 = vmatmul.mubr.f32.gmra.mxu0 %v741
      %v952 = vpop.f32.mrf.mxu0
      %v953 = vadd.f32 0.0, %v952
      %v954 = vpop.f32.mrf.mxu0
      %v955 = vadd.f32 0.0, %v954
      %956 = vmatprep.mubr.f32.mxu0 0.0
      %957 = vmatmul.mubr.f32.gmra.mxu0 %v744
      %v958 = vpop.f32.mrf.mxu0
      %v959 = vadd.f32 0.0, %v958
      %v960 = vpop.f32.mrf.mxu0
      %v961 = vadd.f32 0.0, %v960
      %962 = vmatprep.mubr.f32.mxu0 0.0
      %963 = vmatmul.mubr.f32.gmra.mxu0 %v747
      %v964 = vpop.f32.mrf.mxu0
      %v965 = vadd.f32 0.0, %v964
      %v966 = vpop.f32.mrf.mxu0
      %v967 = vadd.f32 0.0, %v966
      %968 = vmatprep.mubr.f32.mxu0 0.0
      %969 = vmatmul.mubr.f32.gmra.mxu0 %v750
      %v970 = vpop.f32.mrf.mxu0
      %v971 = vadd.f32 0.0, %v970
      %v972 = vpop.f32.mrf.mxu0
      %v973 = vadd.f32 0.0, %v972
      %974 = vmatprep.mubr.f32.mxu0 0.0
      %975 = vmatmul.mubr.f32.gmra.mxu0 %v753
      %v976 = vpop.f32.mrf.mxu0
      %v977 = vadd.f32 0.0, %v976
      %v978 = vpop.f32.mrf.mxu0
      %v979 = vadd.f32 0.0, %v978
      %980 = vmatprep.mubr.f32.mxu0 0.0
      %981 = vmatmul.mubr.f32.gmra.mxu0 %v756
      %v982 = vpop.f32.mrf.mxu0
      %v983 = vadd.f32 0.0, %v982
      %v984 = vpop.f32.mrf.mxu0
      %v985 = vadd.f32 0.0, %v984
      %986 = vmatprep.mubr.f32.mxu0 0.0
      %987 = vmatmul.mubr.f32.gmra.mxu0 %v759
      %v988 = vpop.f32.mrf.mxu0
      %v989 = vadd.f32 0.0, %v988
      %v990 = vpop.f32.mrf.mxu0
      %v991 = vadd.f32 0.0, %v990
      %992 = vmatprep.mubr.f32.mxu0 0.0
      %993 = vmatmul.mubr.f32.gmra.mxu0 %v762
      %v994 = vpop.f32.mrf.mxu0
      %v995 = vadd.f32 0.0, %v994
      %v996 = vpop.f32.mrf.mxu0
      %v997 = vadd.f32 0.0, %v996
      %998 = vmatprep.mubr.f32.mxu0 0.0
      %999 = vmatmul.mubr.f32.gmra.mxu0 %v765
      %v1000 = vpop.f32.mrf.mxu0
      %v1001 = vadd.f32 0.0, %v1000
      %v1002 = vpop.f32.mrf.mxu0
      %v1003 = vadd.f32 0.0, %v1002
      %1004 = vmatprep.mubr.f32.mxu0 0.0
      %1005 = vmatmul.mubr.f32.gmra.mxu0 %v768
      %v1006 = vpop.f32.mrf.mxu0
      %v1007 = vadd.f32 0.0, %v1006
      %v1008 = vpop.f32.mrf.mxu0
      %v1009 = vadd.f32 0.0, %v1008
      %1010 = vmatprep.mubr.f32.mxu0 0.0
      %1011 = vmatmul.mubr.f32.gmra.mxu0 %v771
      %v1012 = vpop.f32.mrf.mxu0
      %v1013 = vadd.f32 0.0, %v1012
      %v1014 = vpop.f32.mrf.mxu0
      %v1015 = vadd.f32 0.0, %v1014
      %1016 = vmatprep.mubr.f32.mxu0 0.0
      %1017 = vmatmul.mubr.f32.gmra.mxu0 %v774
      %v1018 = vpop.f32.mrf.mxu0
      %v1019 = vadd.f32 0.0, %v1018
      %v1020 = vpop.f32.mrf.mxu0
      %v1021 = vadd.f32 0.0, %v1020
      %1022 = vmatprep.mubr.f32.mxu0 0.0
      %1023 = vmatmul.mubr.f32.gmra.mxu0 %v777
      %v1024 = vpop.f32.mrf.mxu0
      %v1025 = vadd.f32 0.0, %v1024
      %v1026 = vpop.f32.mrf.mxu0
      %v1027 = vadd.f32 0.0, %v1026
      %1028 = vmatprep.mubr.f32.mxu0 0.0
      %1029 = vmatmul.mubr.f32.gmra.mxu0 %v780
      %v1030 = vpop.f32.mrf.mxu0
      %v1031 = vadd.f32 0.0, %v1030
      %v1032 = vpop.f32.mrf.mxu0
      %v1033 = vadd.f32 0.0, %v1032
      %1034 = vmatprep.mubr.f32.mxu0 0.0
      %1035 = vmatmul.mubr.f32.gmra.mxu0 %v783
      %v1036 = vpop.f32.mrf.mxu0
      %v1037 = vadd.f32 0.0, %v1036
      %v1038 = vpop.f32.mrf.mxu0
      %v1039 = vadd.f32 0.0, %v1038
      %1040 = vmatprep.mubr.f32.mxu0 0.0
      %1041 = vmatmul.mubr.f32.gmra.mxu0 %v786
      %v1042 = vpop.f32.mrf.mxu0
      %v1043 = vadd.f32 0.0, %v1042
      %v1044 = vpop.f32.mrf.mxu0
      %v1045 = vadd.f32 0.0, %v1044
      %1046 = vmatprep.mubr.f32.mxu0 0.0
      %1047 = vmatmul.mubr.f32.gmra.mxu0 %v789
      %v1048 = vpop.f32.mrf.mxu0
      %v1049 = vadd.f32 0.0, %v1048
      %v1050 = vpop.f32.mrf.mxu0
      %v1051 = vadd.f32 0.0, %v1050
      %1052 = vdwg.mxu0
      %v1053 = vmax.f32 %v863, %v865
      %1054 = vmax.xlane.f32.xlu0 %v1053
      %v1055 = vpop.xlane.xlu0 %1054
      %v1056 = vmax.f32 %v869, %v871
      %1057 = vmax.xlane.f32.xlu0 %v1056
      %v1058 = vpop.xlane.xlu0 %1057
      %v1059 = vmax.f32 %v875, %v877
      %1060 = vmax.xlane.f32.xlu0 %v1059
      %v1061 = vpop.xlane.xlu0 %1060
      %v1062 = vmax.f32 %v881, %v883
      %1063 = vmax.xlane.f32.xlu0 %v1062
      %v1064 = vpop.xlane.xlu0 %1063
      %v1065 = vmax.f32 %v887, %v889
      %1066 = vmax.xlane.f32.xlu0 %v1065
      %v1067 = vpop.xlane.xlu0 %1066
      %v1068 = vmax.f32 %v893, %v895
      %1069 = vmax.xlane.f32.xlu0 %v1068
      %v1070 = vpop.xlane.xlu0 %1069
      %v1071 = vmax.f32 %v899, %v901
      %1072 = vmax.xlane.f32.xlu0 %v1071
      %v1073 = vpop.xlane.xlu0 %1072
      %v1074 = vmax.f32 %v905, %v907
      %1075 = vmax.xlane.f32.xlu0 %v1074
      %v1076 = vpop.xlane.xlu0 %1075
      %v1077 = vmax.f32 %v911, %v913
      %1078 = vmax.xlane.f32.xlu0 %v1077
      %v1079 = vpop.xlane.xlu0 %1078
      %v1080 = vmax.f32 %v917, %v919
      %1081 = vmax.xlane.f32.xlu0 %v1080
      %v1082 = vpop.xlane.xlu0 %1081
      %v1083 = vmax.f32 %v923, %v925
      %1084 = vmax.xlane.f32.xlu0 %v1083
      %v1085 = vpop.xlane.xlu0 %1084
      %v1086 = vmax.f32 %v929, %v931
      %1087 = vmax.xlane.f32.xlu0 %v1086
      %v1088 = vpop.xlane.xlu0 %1087
      %v1089 = vmax.f32 %v935, %v937
      %1090 = vmax.xlane.f32.xlu0 %v1089
      %v1091 = vpop.xlane.xlu0 %1090
      %v1092 = vmax.f32 %v941, %v943
      %1093 = vmax.xlane.f32.xlu0 %v1092
      %v1094 = vpop.xlane.xlu0 %1093
      %v1095 = vmax.f32 %v947, %v949
      %1096 = vmax.xlane.f32.xlu0 %v1095
      %v1097 = vpop.xlane.xlu0 %1096
      %v1098 = vmax.f32 %v953, %v955
      %1099 = vmax.xlane.f32.xlu0 %v1098
      %v1100 = vpop.xlane.xlu0 %1099
      %v1101 = vmax.f32 %v959, %v961
      %1102 = vmax.xlane.f32.xlu0 %v1101
      %v1103 = vpop.xlane.xlu0 %1102
      %v1104 = vmax.f32 %v965, %v967
      %1105 = vmax.xlane.f32.xlu0 %v1104
      %v1106 = vpop.xlane.xlu0 %1105
      %v1107 = vmax.f32 %v971, %v973
      %1108 = vmax.xlane.f32.xlu0 %v1107
      %v1109 = vpop.xlane.xlu0 %1108
      %v1110 = vmax.f32 %v977, %v979
      %1111 = vmax.xlane.f32.xlu0 %v1110
      %v1112 = vpop.xlane.xlu0 %1111
      %v1113 = vmax.f32 %v983, %v985
      %1114 = vmax.xlane.f32.xlu0 %v1113
      %v1115 = vpop.xlane.xlu0 %1114
      %v1116 = vmax.f32 %v989, %v991
      %1117 = vmax.xlane.f32.xlu0 %v1116
      %v1118 = vpop.xlane.xlu0 %1117
      %v1119 = vmax.f32 %v995, %v997
      %1120 = vmax.xlane.f32.xlu0 %v1119
      %v1121 = vpop.xlane.xlu0 %1120
      %v1122 = vmax.f32 %v1001, %v1003
      %1123 = vmax.xlane.f32.xlu0 %v1122
      %v1124 = vpop.xlane.xlu0 %1123
      %v1125 = vmax.f32 %v1007, %v1009
      %1126 = vmax.xlane.f32.xlu0 %v1125
      %v1127 = vpop.xlane.xlu0 %1126
      %v1128 = vmax.f32 %v1013, %v1015
      %1129 = vmax.xlane.f32.xlu0 %v1128
      %v1130 = vpop.xlane.xlu0 %1129
      %v1131 = vmax.f32 %v1019, %v1021
      %1132 = vmax.xlane.f32.xlu0 %v1131
      %v1133 = vpop.xlane.xlu0 %1132
      %v1134 = vmax.f32 %v1025, %v1027
      %1135 = vmax.xlane.f32.xlu0 %v1134
      %v1136 = vpop.xlane.xlu0 %1135
      %v1137 = vmax.f32 %v1031, %v1033
      %1138 = vmax.xlane.f32.xlu0 %v1137
      %v1139 = vpop.xlane.xlu0 %1138
      %v1140 = vmax.f32 %v1037, %v1039
      %1141 = vmax.xlane.f32.xlu0 %v1140
      %v1142 = vpop.xlane.xlu0 %1141
      %v1143 = vmax.f32 %v1043, %v1045
      %1144 = vmax.xlane.f32.xlu0 %v1143
      %v1145 = vpop.xlane.xlu0 %1144
      %v1146 = vmax.f32 %v1049, %v1051
      %1147 = vmax.xlane.f32.xlu0 %v1146
      %v1148 = vpop.xlane.xlu0 %1147
      %v1149 = vsub.f32 %v863, %v1055
      %v1150 = vsub.f32 %v865, %v1055
      %v1151 = vsub.f32 %v869, %v1058
      %v1152 = vsub.f32 %v871, %v1058
      %v1153 = vsub.f32 %v875, %v1061
      %v1154 = vsub.f32 %v877, %v1061
      %v1155 = vsub.f32 %v881, %v1064
      %v1156 = vsub.f32 %v883, %v1064
      %v1157 = vsub.f32 %v887, %v1067
      %v1158 = vsub.f32 %v889, %v1067
      %v1159 = vsub.f32 %v893, %v1070
      %v1160 = vsub.f32 %v895, %v1070
      %v1161 = vsub.f32 %v899, %v1073
      %v1162 = vsub.f32 %v901, %v1073
      %v1163 = vsub.f32 %v905, %v1076
      %v1164 = vsub.f32 %v907, %v1076
      %v1165 = vsub.f32 %v911, %v1079
      %v1166 = vsub.f32 %v913, %v1079
      %v1167 = vsub.f32 %v917, %v1082
      %v1168 = vsub.f32 %v919, %v1082
      %v1169 = vsub.f32 %v923, %v1085
      %v1170 = vsub.f32 %v925, %v1085
      %v1171 = vsub.f32 %v929, %v1088
      %v1172 = vsub.f32 %v931, %v1088
      %v1173 = vsub.f32 %v935, %v1091
      %v1174 = vsub.f32 %v937, %v1091
      %v1175 = vsub.f32 %v941, %v1094
      %v1176 = vsub.f32 %v943, %v1094
      %v1177 = vsub.f32 %v947, %v1097
      %v1178 = vsub.f32 %v949, %v1097
      %v1179 = vsub.f32 %v953, %v1100
      %v1180 = vsub.f32 %v955, %v1100
      %v1181 = vsub.f32 %v959, %v1103
      %v1182 = vsub.f32 %v961, %v1103
      %v1183 = vsub.f32 %v965, %v1106
      %v1184 = vsub.f32 %v967, %v1106
      %v1185 = vsub.f32 %v971, %v1109
      %v1186 = vsub.f32 %v973, %v1109
      %v1187 = vsub.f32 %v977, %v1112
      %v1188 = vsub.f32 %v979, %v1112
      %v1189 = vsub.f32 %v983, %v1115
      %v1190 = vsub.f32 %v985, %v1115
      %v1191 = vsub.f32 %v989, %v1118
      %v1192 = vsub.f32 %v991, %v1118
      %v1193 = vsub.f32 %v995, %v1121
      %v1194 = vsub.f32 %v997, %v1121
      %v1195 = vsub.f32 %v1001, %v1124
      %v1196 = vsub.f32 %v1003, %v1124
      %v1197 = vsub.f32 %v1007, %v1127
      %v1198 = vsub.f32 %v1009, %v1127
      %v1199 = vsub.f32 %v1013, %v1130
      %v1200 = vsub.f32 %v1015, %v1130
      %v1201 = vsub.f32 %v1019, %v1133
      %v1202 = vsub.f32 %v1021, %v1133
      %v1203 = vsub.f32 %v1025, %v1136
      %v1204 = vsub.f32 %v1027, %v1136
      %v1205 = vsub.f32 %v1031, %v1139
      %v1206 = vsub.f32 %v1033, %v1139
      %v1207 = vsub.f32 %v1037, %v1142
      %v1208 = vsub.f32 %v1039, %v1142
      %v1209 = vsub.f32 %v1043, %v1145
      %v1210 = vsub.f32 %v1045, %v1145
      %v1211 = vsub.f32 %v1049, %v1148
      %v1212 = vsub.f32 %v1051, %v1148
      %v1213 = vmul.f32 %v1149, 1.442695
      %v1214 = vpow.pop %v1213
      %v1215 = vmul.f32 %v1150, 1.442695
      %v1216 = vpow.pop %v1215
      %v1217 = vmul.f32 %v1151, 1.442695
      %v1218 = vpow.pop %v1217
      %v1219 = vmul.f32 %v1152, 1.442695
      %v1220 = vpow.pop %v1219
      %v1221 = vmul.f32 %v1153, 1.442695
      %v1222 = vpow.pop %v1221
      %v1223 = vmul.f32 %v1154, 1.442695
      %v1224 = vpow.pop %v1223
      %v1225 = vmul.f32 %v1155, 1.442695
      %v1226 = vpow.pop %v1225
      %v1227 = vmul.f32 %v1156, 1.442695
      %v1228 = vpow.pop %v1227
      %v1229 = vmul.f32 %v1157, 1.442695
      %v1230 = vpow.pop %v1229
      %v1231 = vmul.f32 %v1158, 1.442695
      %v1232 = vpow.pop %v1231
      %v1233 = vmul.f32 %v1159, 1.442695
      %v1234 = vpow.pop %v1233
      %v1235 = vmul.f32 %v1160, 1.442695
      %v1236 = vpow.pop %v1235
      %v1237 = vmul.f32 %v1161, 1.442695
      %v1238 = vpow.pop %v1237
      %v1239 = vmul.f32 %v1162, 1.442695
      %v1240 = vpow.pop %v1239
      %v1241 = vmul.f32 %v1163, 1.442695
      %v1242 = vpow.pop %v1241
      %v1243 = vmul.f32 %v1164, 1.442695
      %v1244 = vpow.pop %v1243
      %v1245 = vmul.f32 %v1165, 1.442695
      %v1246 = vpow.pop %v1245
      %v1247 = vmul.f32 %v1166, 1.442695
      %v1248 = vpow.pop %v1247
      %v1249 = vmul.f32 %v1167, 1.442695
      %v1250 = vpow.pop %v1249
      %v1251 = vmul.f32 %v1168, 1.442695
      %v1252 = vpow.pop %v1251
      %v1253 = vmul.f32 %v1169, 1.442695
      %v1254 = vpow.pop %v1253
      %v1255 = vmul.f32 %v1170, 1.442695
      %v1256 = vpow.pop %v1255
      %v1257 = vmul.f32 %v1171, 1.442695
      %v1258 = vpow.pop %v1257
      %v1259 = vmul.f32 %v1172, 1.442695
      %v1260 = vpow.pop %v1259
      %v1261 = vmul.f32 %v1173, 1.442695
      %v1262 = vpow.pop %v1261
      %v1263 = vmul.f32 %v1174, 1.442695
      %v1264 = vpow.pop %v1263
      %v1265 = vmul.f32 %v1175, 1.442695
      %v1266 = vpow.pop %v1265
      %v1267 = vmul.f32 %v1176, 1.442695
      %v1268 = vpow.pop %v1267
      %v1269 = vmul.f32 %v1177, 1.442695
      %v1270 = vpow.pop %v1269
      %v1271 = vmul.f32 %v1178, 1.442695
      %v1272 = vpow.pop %v1271
      %v1273 = vmul.f32 %v1179, 1.442695
      %v1274 = vpow.pop %v1273
      %v1275 = vmul.f32 %v1180, 1.442695
      %v1276 = vpow.pop %v1275
      %v1277 = vmul.f32 %v1181, 1.442695
      %v1278 = vpow.pop %v1277
      %v1279 = vmul.f32 %v1182, 1.442695
      %v1280 = vpow.pop %v1279
      %v1281 = vmul.f32 %v1183, 1.442695
      %v1282 = vpow.pop %v1281
      %v1283 = vmul.f32 %v1184, 1.442695
      %v1284 = vpow.pop %v1283
      %v1285 = vmul.f32 %v1185, 1.442695
      %v1286 = vpow.pop %v1285
      %v1287 = vmul.f32 %v1186, 1.442695
      %v1288 = vpow.pop %v1287
      %v1289 = vmul.f32 %v1187, 1.442695
      %v1290 = vpow.pop %v1289
      %v1291 = vmul.f32 %v1188, 1.442695
      %v1292 = vpow.pop %v1291
      %v1293 = vmul.f32 %v1189, 1.442695
      %v1294 = vpow.pop %v1293
      %v1295 = vmul.f32 %v1190, 1.442695
      %v1296 = vpow.pop %v1295
      %v1297 = vmul.f32 %v1191, 1.442695
      %v1298 = vpow.pop %v1297
      %v1299 = vmul.f32 %v1192, 1.442695
      %v1300 = vpow.pop %v1299
      %v1301 = vmul.f32 %v1193, 1.442695
      %v1302 = vpow.pop %v1301
      %v1303 = vmul.f32 %v1194, 1.442695
      %v1304 = vpow.pop %v1303
      %v1305 = vmul.f32 %v1195, 1.442695
      %v1306 = vpow.pop %v1305
      %v1307 = vmul.f32 %v1196, 1.442695
      %v1308 = vpow.pop %v1307
      %v1309 = vmul.f32 %v1197, 1.442695
      %v1310 = vpow.pop %v1309
      %v1311 = vmul.f32 %v1198, 1.442695
      %v1312 = vpow.pop %v1311
      %v1313 = vmul.f32 %v1199, 1.442695
      %v1314 = vpow.pop %v1313
      %v1315 = vmul.f32 %v1200, 1.442695
      %v1316 = vpow.pop %v1315
      %v1317 = vmul.f32 %v1201, 1.442695
      %v1318 = vpow.pop %v1317
      %v1319 = vmul.f32 %v1202, 1.442695
      %v1320 = vpow.pop %v1319
      %v1321 = vmul.f32 %v1203, 1.442695
      %v1322 = vpow.pop %v1321
      %v1323 = vmul.f32 %v1204, 1.442695
      %v1324 = vpow.pop %v1323
      %v1325 = vmul.f32 %v1205, 1.442695
      %v1326 = vpow.pop %v1325
      %v1327 = vmul.f32 %v1206, 1.442695
      %v1328 = vpow.pop %v1327
      %v1329 = vmul.f32 %v1207, 1.442695
      %v1330 = vpow.pop %v1329
      %v1331 = vmul.f32 %v1208, 1.442695
      %v1332 = vpow.pop %v1331
      %v1333 = vmul.f32 %v1209, 1.442695
      %v1334 = vpow.pop %v1333
      %v1335 = vmul.f32 %v1210, 1.442695
      %v1336 = vpow.pop %v1335
      %v1337 = vmul.f32 %v1211, 1.442695
      %v1338 = vpow.pop %v1337
      %v1339 = vmul.f32 %v1212, 1.442695
      %v1340 = vpow.pop %v1339
      %v1341 = vadd.f32 %v1214, %v1216
      %1342 = vadd.xlane.f32.xlu0 %v1341
      %v1343 = vpop.xlane.xlu0 %1342
      %v1344 = vadd.f32 %v1218, %v1220
      %1345 = vadd.xlane.f32.xlu0 %v1344
      %v1346 = vpop.xlane.xlu0 %1345
      %v1347 = vadd.f32 %v1222, %v1224
      %1348 = vadd.xlane.f32.xlu0 %v1347
      %v1349 = vpop.xlane.xlu0 %1348
      %v1350 = vadd.f32 %v1226, %v1228
      %1351 = vadd.xlane.f32.xlu0 %v1350
      %v1352 = vpop.xlane.xlu0 %1351
      %v1353 = vadd.f32 %v1230, %v1232
      %1354 = vadd.xlane.f32.xlu0 %v1353
      %v1355 = vpop.xlane.xlu0 %1354
      %v1356 = vadd.f32 %v1234, %v1236
      %1357 = vadd.xlane.f32.xlu0 %v1356
      %v1358 = vpop.xlane.xlu0 %1357
      %v1359 = vadd.f32 %v1238, %v1240
      %1360 = vadd.xlane.f32.xlu0 %v1359
      %v1361 = vpop.xlane.xlu0 %1360
      %v1362 = vadd.f32 %v1242, %v1244
      %1363 = vadd.xlane.f32.xlu0 %v1362
      %v1364 = vpop.xlane.xlu0 %1363
      %v1365 = vadd.f32 %v1246, %v1248
      %1366 = vadd.xlane.f32.xlu0 %v1365
      %v1367 = vpop.xlane.xlu0 %1366
      %v1368 = vadd.f32 %v1250, %v1252
      %1369 = vadd.xlane.f32.xlu0 %v1368
      %v1370 = vpop.xlane.xlu0 %1369
      %v1371 = vadd.f32 %v1254, %v1256
      %1372 = vadd.xlane.f32.xlu0 %v1371
      %v1373 = vpop.xlane.xlu0 %1372
      %v1374 = vadd.f32 %v1258, %v1260
      %1375 = vadd.xlane.f32.xlu0 %v1374
      %v1376 = vpop.xlane.xlu0 %1375
      %v1377 = vadd.f32 %v1262, %v1264
      %1378 = vadd.xlane.f32.xlu0 %v1377
      %v1379 = vpop.xlane.xlu0 %1378
      %v1380 = vadd.f32 %v1266, %v1268
      %1381 = vadd.xlane.f32.xlu0 %v1380
      %v1382 = vpop.xlane.xlu0 %1381
      %v1383 = vadd.f32 %v1270, %v1272
      %1384 = vadd.xlane.f32.xlu0 %v1383
      %v1385 = vpop.xlane.xlu0 %1384
      %v1386 = vadd.f32 %v1274, %v1276
      %1387 = vadd.xlane.f32.xlu0 %v1386
      %v1388 = vpop.xlane.xlu0 %1387
      %v1389 = vadd.f32 %v1278, %v1280
      %1390 = vadd.xlane.f32.xlu0 %v1389
      %v1391 = vpop.xlane.xlu0 %1390
      %v1392 = vadd.f32 %v1282, %v1284
      %1393 = vadd.xlane.f32.xlu0 %v1392
      %v1394 = vpop.xlane.xlu0 %1393
      %v1395 = vadd.f32 %v1286, %v1288
      %1396 = vadd.xlane.f32.xlu0 %v1395
      %v1397 = vpop.xlane.xlu0 %1396
      %v1398 = vadd.f32 %v1290, %v1292
      %1399 = vadd.xlane.f32.xlu0 %v1398
      %v1400 = vpop.xlane.xlu0 %1399
      %v1401 = vadd.f32 %v1294, %v1296
      %1402 = vadd.xlane.f32.xlu0 %v1401
      %v1403 = vpop.xlane.xlu0 %1402
      %v1404 = vadd.f32 %v1298, %v1300
      %1405 = vadd.xlane.f32.xlu0 %v1404
      %v1406 = vpop.xlane.xlu0 %1405
      %v1407 = vadd.f32 %v1302, %v1304
      %1408 = vadd.xlane.f32.xlu0 %v1407
      %v1409 = vpop.xlane.xlu0 %1408
      %v1410 = vadd.f32 %v1306, %v1308
      %1411 = vadd.xlane.f32.xlu0 %v1410
      %v1412 = vpop.xlane.xlu0 %1411
      %v1413 = vadd.f32 %v1310, %v1312
      %1414 = vadd.xlane.f32.xlu0 %v1413
      %v1415 = vpop.xlane.xlu0 %1414
      %v1416 = vadd.f32 %v1314, %v1316
      %1417 = vadd.xlane.f32.xlu0 %v1416
      %v1418 = vpop.xlane.xlu0 %1417
      %v1419 = vadd.f32 %v1318, %v1320
      %1420 = vadd.xlane.f32.xlu0 %v1419
      %v1421 = vpop.xlane.xlu0 %1420
      %v1422 = vadd.f32 %v1322, %v1324
      %1423 = vadd.xlane.f32.xlu0 %v1422
      %v1424 = vpop.xlane.xlu0 %1423
      %v1425 = vadd.f32 %v1326, %v1328
      %1426 = vadd.xlane.f32.xlu0 %v1425
      %v1427 = vpop.xlane.xlu0 %1426
      %v1428 = vadd.f32 %v1330, %v1332
      %1429 = vadd.xlane.f32.xlu0 %v1428
      %v1430 = vpop.xlane.xlu0 %1429
      %v1431 = vadd.f32 %v1334, %v1336
      %1432 = vadd.xlane.f32.xlu0 %v1431
      %v1433 = vpop.xlane.xlu0 %1432
      %v1434 = vadd.f32 %v1338, %v1340
      %1435 = vadd.xlane.f32.xlu0 %v1434
      %v1436 = vpop.xlane.xlu0 %1435
      %v1437 = vrcp.pop %v1343
      %v1438 = vrcp.pop %v1346
      %v1439 = vrcp.pop %v1349
      %v1440 = vrcp.pop %v1352
      %v1441 = vrcp.pop %v1355
      %v1442 = vrcp.pop %v1358
      %v1443 = vrcp.pop %v1361
      %v1444 = vrcp.pop %v1364
      %v1445 = vrcp.pop %v1367
      %v1446 = vrcp.pop %v1370
      %v1447 = vrcp.pop %v1373
      %v1448 = vrcp.pop %v1376
      %v1449 = vrcp.pop %v1379
      %v1450 = vrcp.pop %v1382
      %v1451 = vrcp.pop %v1385
      %v1452 = vrcp.pop %v1388
      %v1453 = vrcp.pop %v1391
      %v1454 = vrcp.pop %v1394
      %v1455 = vrcp.pop %v1397
      %v1456 = vrcp.pop %v1400
      %v1457 = vrcp.pop %v1403
      %v1458 = vrcp.pop %v1406
      %v1459 = vrcp.pop %v1409
      %v1460 = vrcp.pop %v1412
      %v1461 = vrcp.pop %v1415
      %v1462 = vrcp.pop %v1418
      %v1463 = vrcp.pop %v1421
      %v1464 = vrcp.pop %v1424
      %v1465 = vrcp.pop %v1427
      %v1466 = vrcp.pop %v1430
      %v1467 = vrcp.pop %v1433
      %v1468 = vrcp.pop %v1436
      %v1469 = vmul.f32 %v1214, %v1437
      %v1470 = vmul.f32 %v1216, %v1437
      %v1471 = vmul.f32 %v1218, %v1438
      %v1472 = vmul.f32 %v1220, %v1438
      %v1473 = vmul.f32 %v1222, %v1439
      %v1474 = vmul.f32 %v1224, %v1439
      %v1475 = vmul.f32 %v1226, %v1440
      %v1476 = vmul.f32 %v1228, %v1440
      %v1477 = vmul.f32 %v1230, %v1441
      %v1478 = vmul.f32 %v1232, %v1441
      %v1479 = vmul.f32 %v1234, %v1442
      %v1480 = vmul.f32 %v1236, %v1442
      %v1481 = vmul.f32 %v1238, %v1443
      %v1482 = vmul.f32 %v1240, %v1443
      %v1483 = vmul.f32 %v1242, %v1444
      %v1484 = vmul.f32 %v1244, %v1444
      %v1485 = vmul.f32 %v1246, %v1445
      %v1486 = vmul.f32 %v1248, %v1445
      %v1487 = vmul.f32 %v1250, %v1446
      %v1488 = vmul.f32 %v1252, %v1446
      %v1489 = vmul.f32 %v1254, %v1447
      %v1490 = vmul.f32 %v1256, %v1447
      %v1491 = vmul.f32 %v1258, %v1448
      %v1492 = vmul.f32 %v1260, %v1448
      %v1493 = vmul.f32 %v1262, %v1449
      %v1494 = vmul.f32 %v1264, %v1449
      %v1495 = vmul.f32 %v1266, %v1450
      %v1496 = vmul.f32 %v1268, %v1450
      %v1497 = vmul.f32 %v1270, %v1451
      %v1498 = vmul.f32 %v1272, %v1451
      %v1499 = vmul.f32 %v1274, %v1452
      %v1500 = vmul.f32 %v1276, %v1452
      %v1501 = vmul.f32 %v1278, %v1453
      %v1502 = vmul.f32 %v1280, %v1453
      %v1503 = vmul.f32 %v1282, %v1454
      %v1504 = vmul.f32 %v1284, %v1454
      %v1505 = vmul.f32 %v1286, %v1455
      %v1506 = vmul.f32 %v1288, %v1455
      %v1507 = vmul.f32 %v1290, %v1456
      %v1508 = vmul.f32 %v1292, %v1456
      %v1509 = vmul.f32 %v1294, %v1457
      %v1510 = vmul.f32 %v1296, %v1457
      %v1511 = vmul.f32 %v1298, %v1458
      %v1512 = vmul.f32 %v1300, %v1458
      %v1513 = vmul.f32 %v1302, %v1459
      %v1514 = vmul.f32 %v1304, %v1459
      %v1515 = vmul.f32 %v1306, %v1460
      %v1516 = vmul.f32 %v1308, %v1460
      %v1517 = vmul.f32 %v1310, %v1461
      %v1518 = vmul.f32 %v1312, %v1461
      %v1519 = vmul.f32 %v1314, %v1462
      %v1520 = vmul.f32 %v1316, %v1462
      %v1521 = vmul.f32 %v1318, %v1463
      %v1522 = vmul.f32 %v1320, %v1463
      %v1523 = vmul.f32 %v1322, %v1464
      %v1524 = vmul.f32 %v1324, %v1464
      %v1525 = vmul.f32 %v1326, %v1465
      %v1526 = vmul.f32 %v1328, %v1465
      %v1527 = vmul.f32 %v1330, %v1466
      %v1528 = vmul.f32 %v1332, %v1466
      %v1529 = vmul.f32 %v1334, %v1467
      %v1530 = vmul.f32 %v1336, %v1467
      %v1531 = vmul.f32 %v1338, %v1468
      %v1532 = vmul.f32 %v1340, %v1468
      %v1533 = vrot.slane %v608, 4
      %v1534 = vrot.slane %v610, 4
      %1537 = vmatprep.subr.mxu0 %v1500
      %1538 = vmatpush1.xpose.msra.mxu0 %v1499
      %1539 = vmatprep.subr.mxu0 %v1498
      %1540 = vmatpush1.xpose.msra.mxu0 %v1497
      %1541 = vmatprep.subr.mxu0 %v1496
      %1542 = vmatpush1.xpose.msra.mxu0 %v1495
      %1543 = vmatprep.subr.mxu0 %v1494
      %1544 = vmatpush1.xpose.msra.mxu0 %v1493
      %1545 = vmatprep.subr.mxu0 %v1492
      %1546 = vmatpush1.xpose.msra.mxu0 %v1491
      %1547 = vmatprep.subr.mxu0 %v1490
      %1548 = vmatpush1.xpose.msra.mxu0 %v1489
      %1549 = vmatprep.subr.mxu0 %v1488
      %1550 = vmatpush1.xpose.msra.mxu0 %v1487
      %1551 = vmatprep.subr.mxu0 %v1486
      %1552 = vmatpush1.xpose.msra.mxu0 %v1485
      %1553 = vmatprep.subr.mxu0 %v1484
      %1554 = vmatpush1.xpose.msra.mxu0 %v1483
      %1555 = vmatprep.subr.mxu0 %v1482
      %1556 = vmatpush1.xpose.msra.mxu0 %v1481
      %1557 = vmatprep.subr.mxu0 %v1480
      %1558 = vmatpush1.xpose.msra.mxu0 %v1479
      %1559 = vmatprep.subr.mxu0 %v1478
      %1560 = vmatpush1.xpose.msra.mxu0 %v1477
      %1561 = vmatprep.subr.mxu0 %v1476
      %1562 = vmatpush1.xpose.msra.mxu0 %v1475
      %1563 = vmatprep.subr.mxu0 %v1474
      %1564 = vmatpush1.xpose.msra.mxu0 %v1473
      %1565 = vmatprep.subr.mxu0 %v1472
      %1566 = vmatpush1.xpose.msra.mxu0 %v1471
      %1567 = vmatprep.subr.mxu0 %v1470
      %1568 = vmatpush1.xpose.msra.mxu0 %v1469
      %1569 = vmatprep.subr.mxu0 %v1532
      %1570 = vmatpush2.xpose.msra.mxu0 %v1531
      %1571 = vmatprep.subr.mxu0 %v1530
      %1572 = vmatpush2.xpose.msra.mxu0 %v1529
      %1573 = vmatprep.subr.mxu0 %v1528
      %1574 = vmatpush2.xpose.msra.mxu0 %v1527
      %1575 = vmatprep.subr.mxu0 %v1526
      %1576 = vmatpush2.xpose.msra.mxu0 %v1525
      %1577 = vmatprep.subr.mxu0 %v1524
      %1578 = vmatpush2.xpose.msra.mxu0 %v1523
      %1579 = vmatprep.subr.mxu0 %v1522
      %1580 = vmatpush2.xpose.msra.mxu0 %v1521
      %1581 = vmatprep.subr.mxu0 %v1520
      %1582 = vmatpush2.xpose.msra.mxu0 %v1519
      %1583 = vmatprep.subr.mxu0 %v1518
      %1584 = vmatpush2.xpose.msra.mxu0 %v1517
      %1585 = vmatprep.subr.mxu0 %v1516
      %1586 = vmatpush2.xpose.msra.mxu0 %v1515
      %1587 = vmatprep.subr.mxu0 %v1514
      %1588 = vmatpush2.xpose.msra.mxu0 %v1513
      %1589 = vmatprep.subr.mxu0 %v1512
      %1590 = vmatpush2.xpose.msra.mxu0 %v1511
      %1591 = vmatprep.subr.mxu0 %v1510
      %1592 = vmatpush2.xpose.msra.mxu0 %v1509
      %1593 = vmatprep.subr.mxu0 %v1508
      %1594 = vmatpush2.xpose.msra.mxu0 %v1507
      %1595 = vmatprep.subr.mxu0 %v1506
      %1596 = vmatpush2.xpose.msra.mxu0 %v1505
      %1597 = vmatprep.subr.mxu0 %v1504
      %1598 = vmatpush2.xpose.msra.mxu0 %v1503
      %1599 = vmatprep.subr.mxu0 %v1502
      %1600 = vmatpush2.xpose.msra.mxu0 %v1501
      %1601 = vmatprep.mubr.f32.mxu0 %v1534
      %1602 = vmatmul.mubr.f32.gmra.mxu0 %v1533
      %v1603 = vpop.f32.mrf.mxu0
      %v1604 = vadd.f32 0.0, %v1603
      %v1605 = vpop.f32.mrf.mxu0
      %v1606 = vadd.f32 0.0, %v1605
      %1607 = vdwg.mxu0
      %1608 = vrot.lane.b32.xlu0 %v634, 125
      %v1609 = vpop.permute.xlu0 %1608
      %1610 = vrot.lane.b32.xlu0 %v635, 125
      %v1611 = vpop.permute.xlu0 %1610
      %1612 = vrot.lane.b32.xlu0 %v636, 125
      %v1613 = vpop.permute.xlu0 %1612
      %1614 = vrot.lane.b32.xlu0 %v637, 125
      %v1615 = vpop.permute.xlu0 %1614
      %1616 = vrot.lane.b32.xlu0 %v638, 125
      %v1617 = vpop.permute.xlu0 %1616
      %1618 = vrot.lane.b32.xlu0 %v639, 125
      %v1619 = vpop.permute.xlu0 %1618
      %1620 = vrot.lane.b32.xlu0 %v640, 125
      %v1621 = vpop.permute.xlu0 %1620
      %1622 = vrot.lane.b32.xlu0 %v641, 125
      %v1623 = vpop.permute.xlu0 %1622
      %1624 = vrot.lane.b32.xlu0 %v642, 125
      %v1625 = vpop.permute.xlu0 %1624
      %1626 = vrot.lane.b32.xlu0 %v643, 125
      %v1627 = vpop.permute.xlu0 %1626
      %1628 = vrot.lane.b32.xlu0 %v644, 125
      %v1629 = vpop.permute.xlu0 %1628
      %1630 = vrot.lane.b32.xlu0 %v645, 125
      %v1631 = vpop.permute.xlu0 %1630
      %1632 = vrot.lane.b32.xlu0 %v646, 125
      %v1633 = vpop.permute.xlu0 %1632
      %1634 = vrot.lane.b32.xlu0 %v647, 125
      %v1635 = vpop.permute.xlu0 %1634
      %1636 = vrot.lane.b32.xlu0 %v648, 125
      %v1637 = vpop.permute.xlu0 %1636
      %1638 = vrot.lane.b32.xlu0 %v649, 125
      %v1639 = vpop.permute.xlu0 %1638
      %1640 = vrot.lane.b32.xlu0 %v666, 125
      %v1641 = vpop.permute.xlu0 %1640
      %1642 = vrot.lane.b32.xlu0 %v667, 125
      %v1643 = vpop.permute.xlu0 %1642
      %1644 = vrot.lane.b32.xlu0 %v668, 125
      %v1645 = vpop.permute.xlu0 %1644
      %1646 = vrot.lane.b32.xlu0 %v669, 125
      %v1647 = vpop.permute.xlu0 %1646
      %1648 = vrot.lane.b32.xlu0 %v670, 125
      %v1649 = vpop.permute.xlu0 %1648
      %1650 = vrot.lane.b32.xlu0 %v671, 125
      %v1651 = vpop.permute.xlu0 %1650
      %1652 = vrot.lane.b32.xlu0 %v672, 125
      %v1653 = vpop.permute.xlu0 %1652
      %1654 = vrot.lane.b32.xlu0 %v673, 125
      %v1655 = vpop.permute.xlu0 %1654
      %1656 = vrot.lane.b32.xlu0 %v674, 125
      %v1657 = vpop.permute.xlu0 %1656
      %1658 = vrot.lane.b32.xlu0 %v675, 125
      %v1659 = vpop.permute.xlu0 %1658
      %1660 = vrot.lane.b32.xlu0 %v676, 125
      %v1661 = vpop.permute.xlu0 %1660
      %1662 = vrot.lane.b32.xlu0 %v677, 125
      %v1663 = vpop.permute.xlu0 %1662
      %1664 = vrot.lane.b32.xlu0 %v678, 125
      %v1665 = vpop.permute.xlu0 %1664
      %1666 = vrot.lane.b32.xlu0 %v679, 125
      %v1667 = vpop.permute.xlu0 %1666
      %1668 = vrot.lane.b32.xlu0 %v680, 125
      %v1669 = vpop.permute.xlu0 %1668
      %1670 = vrot.lane.b32.xlu0 %v681, 125
      %v1671 = vpop.permute.xlu0 %1670
      %v1672 = vrot.slane %v608, 1
      %v1673 = vrot.slane %v610, 1
      %v1674 = vsel %vm694, %v1609, 0
      %v1676 = vsel %vm694, %v1611, 0
      %v1678 = vsel %vm694, %v1613, 0
      %v1680 = vsel %vm694, %v1615, 0
      %v1682 = vsel %vm694, %v1617, 0
      %v1684 = vsel %vm694, %v1619, 0
      %v1686 = vsel %vm694, %v1621, 0
      %v1688 = vsel %vm694, %v1623, 0
      %v1690 = vsel %vm694, %v1625, 0
      %v1692 = vsel %vm694, %v1627, 0
      %v1694 = vsel %vm694, %v1629, 0
      %v1696 = vsel %vm694, %v1631, 0
      %v1698 = vsel %vm694, %v1633, 0
      %v1700 = vsel %vm694, %v1635, 0
      %v1702 = vsel %vm694, %v1637, 0
      %v1704 = vsel %vm694, %v1639, 0
      %v1706 = vsel %vm694, %v1641, 0
      %v1708 = vsel %vm694, %v1643, 0
      %v1710 = vsel %vm694, %v1645, 0
      %v1712 = vsel %vm694, %v1647, 0
      %v1714 = vsel %vm694, %v1649, 0
      %v1716 = vsel %vm694, %v1651, 0
      %v1718 = vsel %vm694, %v1653, 0
      %v1720 = vsel %vm694, %v1655, 0
      %v1722 = vsel %vm694, %v1657, 0
      %v1724 = vsel %vm694, %v1659, 0
      %v1726 = vsel %vm694, %v1661, 0
      %v1728 = vsel %vm694, %v1663, 0
      %v1730 = vsel %vm694, %v1665, 0
      %v1732 = vsel %vm694, %v1667, 0
      %v1734 = vsel %vm694, %v1669, 0
      %v1736 = vsel %vm694, %v1671, 0
      %v1738 = vsel %vm791, %v1672, 0
      %v1740 = vsel %vm791, %v1673, 0
      %1742 = vmatprep.subr.mxu0 0.0
      %1743 = vmatpush1.msra.mxu0 0.0
      %1744 = vmatprep.subr.mxu0 0.0
      %1745 = vmatpush1.msra.mxu0 0.0
      %1746 = vmatprep.subr.mxu0 0.0
      %1747 = vmatpush1.msra.mxu0 0.0
      %1748 = vmatprep.subr.mxu0 0.0
      %1749 = vmatpush1.msra.mxu0 0.0
      %1750 = vmatprep.subr.mxu0 0.0
      %1751 = vmatpush1.msra.mxu0 0.0
      %1752 = vmatprep.subr.mxu0 0.0
      %1753 = vmatpush1.msra.mxu0 0.0
      %1754 = vmatprep.subr.mxu0 0.0
      %1755 = vmatpush1.msra.mxu0 0.0
      %1756 = vmatprep.subr.mxu0 0.0
      %1757 = vmatpush1.msra.mxu0 0.0
      %1758 = vmatprep.subr.mxu0 0.0
      %1759 = vmatpush1.msra.mxu0 0.0
      %1760 = vmatprep.subr.mxu0 0.0
      %1761 = vmatpush1.msra.mxu0 0.0
      %1762 = vmatprep.subr.mxu0 0.0
      %1763 = vmatpush1.msra.mxu0 0.0
      %1764 = vmatprep.subr.mxu0 0.0
      %1765 = vmatpush1.msra.mxu0 0.0
      %1766 = vmatprep.subr.mxu0 0.0
      %1767 = vmatpush1.msra.mxu0 0.0
      %1768 = vmatprep.subr.mxu0 0.0
      %1769 = vmatpush1.msra.mxu0 0.0
      %1770 = vmatprep.subr.mxu0 0.0
      %1771 = vmatpush1.msra.mxu0 0.0
      %1772 = vmatprep.subr.mxu0 %v1740
      %1773 = vmatpush1.msra.mxu0 %v1738
      %1774 = vmatprep.subr.mxu0 0.0
      %1775 = vmatpush2.msra.mxu0 0.0
      %1776 = vmatprep.subr.mxu0 0.0
      %1777 = vmatpush2.msra.mxu0 0.0
      %1778 = vmatprep.subr.mxu0 0.0
      %1779 = vmatpush2.msra.mxu0 0.0
      %1780 = vmatprep.subr.mxu0 0.0
      %1781 = vmatpush2.msra.mxu0 0.0
      %1782 = vmatprep.subr.mxu0 0.0
      %1783 = vmatpush2.msra.mxu0 0.0
      %1784 = vmatprep.subr.mxu0 0.0
      %1785 = vmatpush2.msra.mxu0 0.0
      %1786 = vmatprep.subr.mxu0 0.0
      %1787 = vmatpush2.msra.mxu0 0.0
      %1788 = vmatprep.subr.mxu0 0.0
      %1789 = vmatpush2.msra.mxu0 0.0
      %1790 = vmatprep.subr.mxu0 0.0
      %1791 = vmatpush2.msra.mxu0 0.0
      %1792 = vmatprep.subr.mxu0 0.0
      %1793 = vmatpush2.msra.mxu0 0.0
      %1794 = vmatprep.subr.mxu0 0.0
      %1795 = vmatpush2.msra.mxu0 0.0
      %1796 = vmatprep.subr.mxu0 0.0
      %1797 = vmatpush2.msra.mxu0 0.0
      %1798 = vmatprep.subr.mxu0 0.0
      %1799 = vmatpush2.msra.mxu0 0.0
      %1800 = vmatprep.subr.mxu0 0.0
      %1801 = vmatpush2.msra.mxu0 0.0
      %1802 = vmatprep.subr.mxu0 0.0
      %1803 = vmatpush2.msra.mxu0 0.0
      %1804 = vmatprep.subr.mxu0 0.0
      %1805 = vmatpush2.msra.mxu0 0.0
      %1806 = vmatprep.mubr.f32.mxu0 0.0
      %1807 = vmatmul.mubr.f32.gmra.mxu0 %v1674
      %v1808 = vpop.f32.mrf.mxu0
      %v1809 = vadd.f32 0.0, %v1808
      %v1810 = vpop.f32.mrf.mxu0
      %v1811 = vadd.f32 0.0, %v1810
      %1812 = vmatprep.mubr.f32.mxu0 0.0
      %1813 = vmatmul.mubr.f32.gmra.mxu0 %v1676
      %v1814 = vpop.f32.mrf.mxu0
      %v1815 = vadd.f32 0.0, %v1814
      %v1816 = vpop.f32.mrf.mxu0
      %v1817 = vadd.f32 0.0, %v1816
      %1818 = vmatprep.mubr.f32.mxu0 0.0
      %1819 = vmatmul.mubr.f32.gmra.mxu0 %v1678
      %v1820 = vpop.f32.mrf.mxu0
      %v1821 = vadd.f32 0.0, %v1820
      %v1822 = vpop.f32.mrf.mxu0
      %v1823 = vadd.f32 0.0, %v1822
      %1824 = vmatprep.mubr.f32.mxu0 0.0
      %1825 = vmatmul.mubr.f32.gmra.mxu0 %v1680
      %v1826 = vpop.f32.mrf.mxu0
      %v1827 = vadd.f32 0.0, %v1826
      %v1828 = vpop.f32.mrf.mxu0
      %v1829 = vadd.f32 0.0, %v1828
      %1830 = vmatprep.mubr.f32.mxu0 0.0
      %1831 = vmatmul.mubr.f32.gmra.mxu0 %v1682
      %v1832 = vpop.f32.mrf.mxu0
      %v1833 = vadd.f32 0.0, %v1832
      %v1834 = vpop.f32.mrf.mxu0
      %v1835 = vadd.f32 0.0, %v1834
      %1836 = vmatprep.mubr.f32.mxu0 0.0
      %1837 = vmatmul.mubr.f32.gmra.mxu0 %v1684
      %v1838 = vpop.f32.mrf.mxu0
      %v1839 = vadd.f32 0.0, %v1838
      %v1840 = vpop.f32.mrf.mxu0
      %v1841 = vadd.f32 0.0, %v1840
      %1842 = vmatprep.mubr.f32.mxu0 0.0
      %1843 = vmatmul.mubr.f32.gmra.mxu0 %v1686
      %v1844 = vpop.f32.mrf.mxu0
      %v1845 = vadd.f32 0.0, %v1844
      %v1846 = vpop.f32.mrf.mxu0
      %v1847 = vadd.f32 0.0, %v1846
      %1848 = vmatprep.mubr.f32.mxu0 0.0
      %1849 = vmatmul.mubr.f32.gmra.mxu0 %v1688
      %v1850 = vpop.f32.mrf.mxu0
      %v1851 = vadd.f32 0.0, %v1850
      %v1852 = vpop.f32.mrf.mxu0
      %v1853 = vadd.f32 0.0, %v1852
      %1854 = vmatprep.mubr.f32.mxu0 0.0
      %1855 = vmatmul.mubr.f32.gmra.mxu0 %v1690
      %v1856 = vpop.f32.mrf.mxu0
      %v1857 = vadd.f32 0.0, %v1856
      %v1858 = vpop.f32.mrf.mxu0
      %v1859 = vadd.f32 0.0, %v1858
      %1860 = vmatprep.mubr.f32.mxu0 0.0
      %1861 = vmatmul.mubr.f32.gmra.mxu0 %v1692
      %v1862 = vpop.f32.mrf.mxu0
      %v1863 = vadd.f32 0.0, %v1862
      %v1864 = vpop.f32.mrf.mxu0
      %v1865 = vadd.f32 0.0, %v1864
      %1866 = vmatprep.mubr.f32.mxu0 0.0
      %1867 = vmatmul.mubr.f32.gmra.mxu0 %v1694
      %v1868 = vpop.f32.mrf.mxu0
      %v1869 = vadd.f32 0.0, %v1868
      %v1870 = vpop.f32.mrf.mxu0
      %v1871 = vadd.f32 0.0, %v1870
      %1872 = vmatprep.mubr.f32.mxu0 0.0
      %1873 = vmatmul.mubr.f32.gmra.mxu0 %v1696
      %v1874 = vpop.f32.mrf.mxu0
      %v1875 = vadd.f32 0.0, %v1874
      %v1876 = vpop.f32.mrf.mxu0
      %v1877 = vadd.f32 0.0, %v1876
      %1878 = vmatprep.mubr.f32.mxu0 0.0
      %1879 = vmatmul.mubr.f32.gmra.mxu0 %v1698
      %v1880 = vpop.f32.mrf.mxu0
      %v1881 = vadd.f32 0.0, %v1880
      %v1882 = vpop.f32.mrf.mxu0
      %v1883 = vadd.f32 0.0, %v1882
      %1884 = vmatprep.mubr.f32.mxu0 0.0
      %1885 = vmatmul.mubr.f32.gmra.mxu0 %v1700
      %v1886 = vpop.f32.mrf.mxu0
      %v1887 = vadd.f32 0.0, %v1886
      %v1888 = vpop.f32.mrf.mxu0
      %v1889 = vadd.f32 0.0, %v1888
      %1890 = vmatprep.mubr.f32.mxu0 0.0
      %1891 = vmatmul.mubr.f32.gmra.mxu0 %v1702
      %v1892 = vpop.f32.mrf.mxu0
      %v1893 = vadd.f32 0.0, %v1892
      %v1894 = vpop.f32.mrf.mxu0
      %v1895 = vadd.f32 0.0, %v1894
      %1896 = vmatprep.mubr.f32.mxu0 0.0
      %1897 = vmatmul.mubr.f32.gmra.mxu0 %v1704
      %v1898 = vpop.f32.mrf.mxu0
      %v1899 = vadd.f32 0.0, %v1898
      %v1900 = vpop.f32.mrf.mxu0
      %v1901 = vadd.f32 0.0, %v1900
      %1902 = vmatprep.mubr.f32.mxu0 0.0
      %1903 = vmatmul.mubr.f32.gmra.mxu0 %v1706
      %v1904 = vpop.f32.mrf.mxu0
      %v1905 = vadd.f32 0.0, %v1904
      %v1906 = vpop.f32.mrf.mxu0
      %v1907 = vadd.f32 0.0, %v1906
      %1908 = vmatprep.mubr.f32.mxu0 0.0
      %1909 = vmatmul.mubr.f32.gmra.mxu0 %v1708
      %v1910 = vpop.f32.mrf.mxu0
      %v1911 = vadd.f32 0.0, %v1910
      %v1912 = vpop.f32.mrf.mxu0
      %v1913 = vadd.f32 0.0, %v1912
      %1914 = vmatprep.mubr.f32.mxu0 0.0
      %1915 = vmatmul.mubr.f32.gmra.mxu0 %v1710
      %v1916 = vpop.f32.mrf.mxu0
      %v1917 = vadd.f32 0.0, %v1916
      %v1918 = vpop.f32.mrf.mxu0
      %v1919 = vadd.f32 0.0, %v1918
      %1920 = vmatprep.mubr.f32.mxu0 0.0
      %1921 = vmatmul.mubr.f32.gmra.mxu0 %v1712
      %v1922 = vpop.f32.mrf.mxu0
      %v1923 = vadd.f32 0.0, %v1922
      %v1924 = vpop.f32.mrf.mxu0
      %v1925 = vadd.f32 0.0, %v1924
      %1926 = vmatprep.mubr.f32.mxu0 0.0
      %1927 = vmatmul.mubr.f32.gmra.mxu0 %v1714
      %v1928 = vpop.f32.mrf.mxu0
      %v1929 = vadd.f32 0.0, %v1928
      %v1930 = vpop.f32.mrf.mxu0
      %v1931 = vadd.f32 0.0, %v1930
      %1932 = vmatprep.mubr.f32.mxu0 0.0
      %1933 = vmatmul.mubr.f32.gmra.mxu0 %v1716
      %v1934 = vpop.f32.mrf.mxu0
      %v1935 = vadd.f32 0.0, %v1934
      %v1936 = vpop.f32.mrf.mxu0
      %v1937 = vadd.f32 0.0, %v1936
      %1938 = vmatprep.mubr.f32.mxu0 0.0
      %1939 = vmatmul.mubr.f32.gmra.mxu0 %v1718
      %v1940 = vpop.f32.mrf.mxu0
      %v1941 = vadd.f32 0.0, %v1940
      %v1942 = vpop.f32.mrf.mxu0
      %v1943 = vadd.f32 0.0, %v1942
      %1944 = vmatprep.mubr.f32.mxu0 0.0
      %1945 = vmatmul.mubr.f32.gmra.mxu0 %v1720
      %v1946 = vpop.f32.mrf.mxu0
      %v1947 = vadd.f32 0.0, %v1946
      %v1948 = vpop.f32.mrf.mxu0
      %v1949 = vadd.f32 0.0, %v1948
      %1950 = vmatprep.mubr.f32.mxu0 0.0
      %1951 = vmatmul.mubr.f32.gmra.mxu0 %v1722
      %v1952 = vpop.f32.mrf.mxu0
      %v1953 = vadd.f32 0.0, %v1952
      %v1954 = vpop.f32.mrf.mxu0
      %v1955 = vadd.f32 0.0, %v1954
      %1956 = vmatprep.mubr.f32.mxu0 0.0
      %1957 = vmatmul.mubr.f32.gmra.mxu0 %v1724
      %v1958 = vpop.f32.mrf.mxu0
      %v1959 = vadd.f32 0.0, %v1958
      %v1960 = vpop.f32.mrf.mxu0
      %v1961 = vadd.f32 0.0, %v1960
      %1962 = vmatprep.mubr.f32.mxu0 0.0
      %1963 = vmatmul.mubr.f32.gmra.mxu0 %v1726
      %v1964 = vpop.f32.mrf.mxu0
      %v1965 = vadd.f32 0.0, %v1964
      %v1966 = vpop.f32.mrf.mxu0
      %v1967 = vadd.f32 0.0, %v1966
      %1968 = vmatprep.mubr.f32.mxu0 0.0
      %1969 = vmatmul.mubr.f32.gmra.mxu0 %v1728
      %v1970 = vpop.f32.mrf.mxu0
      %v1971 = vadd.f32 0.0, %v1970
      %v1972 = vpop.f32.mrf.mxu0
      %v1973 = vadd.f32 0.0, %v1972
      %1974 = vmatprep.mubr.f32.mxu0 0.0
      %1975 = vmatmul.mubr.f32.gmra.mxu0 %v1730
      %v1976 = vpop.f32.mrf.mxu0
      %v1977 = vadd.f32 0.0, %v1976
      %v1978 = vpop.f32.mrf.mxu0
      %v1979 = vadd.f32 0.0, %v1978
      %1980 = vmatprep.mubr.f32.mxu0 0.0
      %1981 = vmatmul.mubr.f32.gmra.mxu0 %v1732
      %v1982 = vpop.f32.mrf.mxu0
      %v1983 = vadd.f32 0.0, %v1982
      %v1984 = vpop.f32.mrf.mxu0
      %v1985 = vadd.f32 0.0, %v1984
      %1986 = vmatprep.mubr.f32.mxu0 0.0
      %1987 = vmatmul.mubr.f32.gmra.mxu0 %v1734
      %v1988 = vpop.f32.mrf.mxu0
      %v1989 = vadd.f32 0.0, %v1988
      %v1990 = vpop.f32.mrf.mxu0
      %v1991 = vadd.f32 0.0, %v1990
      %1992 = vmatprep.mubr.f32.mxu0 0.0
      %1993 = vmatmul.mubr.f32.gmra.mxu0 %v1736
      %v1994 = vpop.f32.mrf.mxu0
      %v1995 = vadd.f32 0.0, %v1994
      %v1996 = vpop.f32.mrf.mxu0
      %v1997 = vadd.f32 0.0, %v1996
      %1998 = vdwg.mxu0
      %v1999 = vmax.f32 %v1809, %v1811
      %2000 = vmax.xlane.f32.xlu0 %v1999
      %v2001 = vpop.xlane.xlu0 %2000
      %v2002 = vmax.f32 %v1815, %v1817
      %2003 = vmax.xlane.f32.xlu0 %v2002
      %v2004 = vpop.xlane.xlu0 %2003
      %v2005 = vmax.f32 %v1821, %v1823
      %2006 = vmax.xlane.f32.xlu0 %v2005
      %v2007 = vpop.xlane.xlu0 %2006
      %v2008 = vmax.f32 %v1827, %v1829
      %2009 = vmax.xlane.f32.xlu0 %v2008
      %v2010 = vpop.xlane.xlu0 %2009
      %v2011 = vmax.f32 %v1833, %v1835
      %2012 = vmax.xlane.f32.xlu0 %v2011
      %v2013 = vpop.xlane.xlu0 %2012
      %v2014 = vmax.f32 %v1839, %v1841
      %2015 = vmax.xlane.f32.xlu0 %v2014
      %v2016 = vpop.xlane.xlu0 %2015
      %v2017 = vmax.f32 %v1845, %v1847
      %2018 = vmax.xlane.f32.xlu0 %v2017
      %v2019 = vpop.xlane.xlu0 %2018
      %v2020 = vmax.f32 %v1851, %v1853
      %2021 = vmax.xlane.f32.xlu0 %v2020
      %v2022 = vpop.xlane.xlu0 %2021
      %v2023 = vmax.f32 %v1857, %v1859
      %2024 = vmax.xlane.f32.xlu0 %v2023
      %v2025 = vpop.xlane.xlu0 %2024
      %v2026 = vmax.f32 %v1863, %v1865
      %2027 = vmax.xlane.f32.xlu0 %v2026
      %v2028 = vpop.xlane.xlu0 %2027
      %v2029 = vmax.f32 %v1869, %v1871
      %2030 = vmax.xlane.f32.xlu0 %v2029
      %v2031 = vpop.xlane.xlu0 %2030
      %v2032 = vmax.f32 %v1875, %v1877
      %2033 = vmax.xlane.f32.xlu0 %v2032
      %v2034 = vpop.xlane.xlu0 %2033
      %v2035 = vmax.f32 %v1881, %v1883
      %2036 = vmax.xlane.f32.xlu0 %v2035
      %v2037 = vpop.xlane.xlu0 %2036
      %v2038 = vmax.f32 %v1887, %v1889
      %2039 = vmax.xlane.f32.xlu0 %v2038
      %v2040 = vpop.xlane.xlu0 %2039
      %v2041 = vmax.f32 %v1893, %v1895
      %2042 = vmax.xlane.f32.xlu0 %v2041
      %v2043 = vpop.xlane.xlu0 %2042
      %v2044 = vmax.f32 %v1899, %v1901
      %2045 = vmax.xlane.f32.xlu0 %v2044
      %v2046 = vpop.xlane.xlu0 %2045
      %v2047 = vmax.f32 %v1905, %v1907
      %2048 = vmax.xlane.f32.xlu0 %v2047
      %v2049 = vpop.xlane.xlu0 %2048
      %v2050 = vmax.f32 %v1911, %v1913
      %2051 = vmax.xlane.f32.xlu0 %v2050
      %v2052 = vpop.xlane.xlu0 %2051
      %v2053 = vmax.f32 %v1917, %v1919
      %2054 = vmax.xlane.f32.xlu0 %v2053
      %v2055 = vpop.xlane.xlu0 %2054
      %v2056 = vmax.f32 %v1923, %v1925
      %2057 = vmax.xlane.f32.xlu0 %v2056
      %v2058 = vpop.xlane.xlu0 %2057
      %v2059 = vmax.f32 %v1929, %v1931
      %2060 = vmax.xlane.f32.xlu0 %v2059
      %v2061 = vpop.xlane.xlu0 %2060
      %v2062 = vmax.f32 %v1935, %v1937
      %2063 = vmax.xlane.f32.xlu0 %v2062
      %v2064 = vpop.xlane.xlu0 %2063
      %v2065 = vmax.f32 %v1941, %v1943
      %2066 = vmax.xlane.f32.xlu0 %v2065
      %v2067 = vpop.xlane.xlu0 %2066
      %v2068 = vmax.f32 %v1947, %v1949
      %2069 = vmax.xlane.f32.xlu0 %v2068
      %v2070 = vpop.xlane.xlu0 %2069
      %v2071 = vmax.f32 %v1953, %v1955
      %2072 = vmax.xlane.f32.xlu0 %v2071
      %v2073 = vpop.xlane.xlu0 %2072
      %v2074 = vmax.f32 %v1959, %v1961
      %2075 = vmax.xlane.f32.xlu0 %v2074
      %v2076 = vpop.xlane.xlu0 %2075
      %v2077 = vmax.f32 %v1965, %v1967
      %2078 = vmax.xlane.f32.xlu0 %v2077
      %v2079 = vpop.xlane.xlu0 %2078
      %v2080 = vmax.f32 %v1971, %v1973
      %2081 = vmax.xlane.f32.xlu0 %v2080
      %v2082 = vpop.xlane.xlu0 %2081
      %v2083 = vmax.f32 %v1977, %v1979
      %2084 = vmax.xlane.f32.xlu0 %v2083
      %v2085 = vpop.xlane.xlu0 %2084
      %v2086 = vmax.f32 %v1983, %v1985
      %2087 = vmax.xlane.f32.xlu0 %v2086
      %v2088 = vpop.xlane.xlu0 %2087
      %v2089 = vmax.f32 %v1989, %v1991
      %2090 = vmax.xlane.f32.xlu0 %v2089
      %v2091 = vpop.xlane.xlu0 %2090
      %v2092 = vmax.f32 %v1995, %v1997
      %2093 = vmax.xlane.f32.xlu0 %v2092
      %v2094 = vpop.xlane.xlu0 %2093
      %v2095 = vsub.f32 %v1809, %v2001
      %v2096 = vsub.f32 %v1811, %v2001
      %v2097 = vsub.f32 %v1815, %v2004
      %v2098 = vsub.f32 %v1817, %v2004
      %v2099 = vsub.f32 %v1821, %v2007
      %v2100 = vsub.f32 %v1823, %v2007
      %v2101 = vsub.f32 %v1827, %v2010
      %v2102 = vsub.f32 %v1829, %v2010
      %v2103 = vsub.f32 %v1833, %v2013
      %v2104 = vsub.f32 %v1835, %v2013
      %v2105 = vsub.f32 %v1839, %v2016
      %v2106 = vsub.f32 %v1841, %v2016
      %v2107 = vsub.f32 %v1845, %v2019
      %v2108 = vsub.f32 %v1847, %v2019
      %v2109 = vsub.f32 %v1851, %v2022
      %v2110 = vsub.f32 %v1853, %v2022
      %v2111 = vsub.f32 %v1857, %v2025
      %v2112 = vsub.f32 %v1859, %v2025
      %v2113 = vsub.f32 %v1863, %v2028
      %v2114 = vsub.f32 %v1865, %v2028
      %v2115 = vsub.f32 %v1869, %v2031
      %v2116 = vsub.f32 %v1871, %v2031
      %v2117 = vsub.f32 %v1875, %v2034
      %v2118 = vsub.f32 %v1877, %v2034
      %v2119 = vsub.f32 %v1881, %v2037
      %v2120 = vsub.f32 %v1883, %v2037
      %v2121 = vsub.f32 %v1887, %v2040
      %v2122 = vsub.f32 %v1889, %v2040
      %v2123 = vsub.f32 %v1893, %v2043
      %v2124 = vsub.f32 %v1895, %v2043
      %v2125 = vsub.f32 %v1899, %v2046
      %v2126 = vsub.f32 %v1901, %v2046
      %v2127 = vsub.f32 %v1905, %v2049
      %v2128 = vsub.f32 %v1907, %v2049
      %v2129 = vsub.f32 %v1911, %v2052
      %v2130 = vsub.f32 %v1913, %v2052
      %v2131 = vsub.f32 %v1917, %v2055
      %v2132 = vsub.f32 %v1919, %v2055
      %v2133 = vsub.f32 %v1923, %v2058
      %v2134 = vsub.f32 %v1925, %v2058
      %v2135 = vsub.f32 %v1929, %v2061
      %v2136 = vsub.f32 %v1931, %v2061
      %v2137 = vsub.f32 %v1935, %v2064
      %v2138 = vsub.f32 %v1937, %v2064
      %v2139 = vsub.f32 %v1941, %v2067
      %v2140 = vsub.f32 %v1943, %v2067
      %v2141 = vsub.f32 %v1947, %v2070
      %v2142 = vsub.f32 %v1949, %v2070
      %v2143 = vsub.f32 %v1953, %v2073
      %v2144 = vsub.f32 %v1955, %v2073
      %v2145 = vsub.f32 %v1959, %v2076
      %v2146 = vsub.f32 %v1961, %v2076
      %v2147 = vsub.f32 %v1965, %v2079
      %v2148 = vsub.f32 %v1967, %v2079
      %v2149 = vsub.f32 %v1971, %v2082
      %v2150 = vsub.f32 %v1973, %v2082
      %v2151 = vsub.f32 %v1977, %v2085
      %v2152 = vsub.f32 %v1979, %v2085
      %v2153 = vsub.f32 %v1983, %v2088
      %v2154 = vsub.f32 %v1985, %v2088
      %v2155 = vsub.f32 %v1989, %v2091
      %v2156 = vsub.f32 %v1991, %v2091
      %v2157 = vsub.f32 %v1995, %v2094
      %v2158 = vsub.f32 %v1997, %v2094
      %v2159 = vmul.f32 %v2095, 1.442695
      %v2160 = vpow.pop %v2159
      %v2161 = vmul.f32 %v2096, 1.442695
      %v2162 = vpow.pop %v2161
      %v2163 = vmul.f32 %v2097, 1.442695
      %v2164 = vpow.pop %v2163
      %v2165 = vmul.f32 %v2098, 1.442695
      %v2166 = vpow.pop %v2165
      %v2167 = vmul.f32 %v2099, 1.442695
      %v2168 = vpow.pop %v2167
      %v2169 = vmul.f32 %v2100, 1.442695
      %v2170 = vpow.pop %v2169
      %v2171 = vmul.f32 %v2101, 1.442695
      %v2172 = vpow.pop %v2171
      %v2173 = vmul.f32 %v2102, 1.442695
      %v2174 = vpow.pop %v2173
      %v2175 = vmul.f32 %v2103, 1.442695
      %v2176 = vpow.pop %v2175
      %v2177 = vmul.f32 %v2104, 1.442695
      %v2178 = vpow.pop %v2177
      %v2179 = vmul.f32 %v2105, 1.442695
      %v2180 = vpow.pop %v2179
      %v2181 = vmul.f32 %v2106, 1.442695
      %v2182 = vpow.pop %v2181
      %v2183 = vmul.f32 %v2107, 1.442695
      %v2184 = vpow.pop %v2183
      %v2185 = vmul.f32 %v2108, 1.442695
      %v2186 = vpow.pop %v2185
      %v2187 = vmul.f32 %v2109, 1.442695
      %v2188 = vpow.pop %v2187
      %v2189 = vmul.f32 %v2110, 1.442695
      %v2190 = vpow.pop %v2189
      %v2191 = vmul.f32 %v2111, 1.442695
      %v2192 = vpow.pop %v2191
      %v2193 = vmul.f32 %v2112, 1.442695
      %v2194 = vpow.pop %v2193
      %v2195 = vmul.f32 %v2113, 1.442695
      %v2196 = vpow.pop %v2195
      %v2197 = vmul.f32 %v2114, 1.442695
      %v2198 = vpow.pop %v2197
      %v2199 = vmul.f32 %v2115, 1.442695
      %v2200 = vpow.pop %v2199
      %v2201 = vmul.f32 %v2116, 1.442695
      %v2202 = vpow.pop %v2201
      %v2203 = vmul.f32 %v2117, 1.442695
      %v2204 = vpow.pop %v2203
      %v2205 = vmul.f32 %v2118, 1.442695
      %v2206 = vpow.pop %v2205
      %v2207 = vmul.f32 %v2119, 1.442695
      %v2208 = vpow.pop %v2207
      %v2209 = vmul.f32 %v2120, 1.442695
      %v2210 = vpow.pop %v2209
      %v2211 = vmul.f32 %v2121, 1.442695
      %v2212 = vpow.pop %v2211
      %v2213 = vmul.f32 %v2122, 1.442695
      %v2214 = vpow.pop %v2213
      %v2215 = vmul.f32 %v2123, 1.442695
      %v2216 = vpow.pop %v2215
      %v2217 = vmul.f32 %v2124, 1.442695
      %v2218 = vpow.pop %v2217
      %v2219 = vmul.f32 %v2125, 1.442695
      %v2220 = vpow.pop %v2219
      %v2221 = vmul.f32 %v2126, 1.442695
      %v2222 = vpow.pop %v2221
      %v2223 = vmul.f32 %v2127, 1.442695
      %v2224 = vpow.pop %v2223
      %v2225 = vmul.f32 %v2128, 1.442695
      %v2226 = vpow.pop %v2225
      %v2227 = vmul.f32 %v2129, 1.442695
      %v2228 = vpow.pop %v2227
      %v2229 = vmul.f32 %v2130, 1.442695
      %v2230 = vpow.pop %v2229
      %v2231 = vmul.f32 %v2131, 1.442695
      %v2232 = vpow.pop %v2231
      %v2233 = vmul.f32 %v2132, 1.442695
      %v2234 = vpow.pop %v2233
      %v2235 = vmul.f32 %v2133, 1.442695
      %v2236 = vpow.pop %v2235
      %v2237 = vmul.f32 %v2134, 1.442695
      %v2238 = vpow.pop %v2237
      %v2239 = vmul.f32 %v2135, 1.442695
      %v2240 = vpow.pop %v2239
      %v2241 = vmul.f32 %v2136, 1.442695
      %v2242 = vpow.pop %v2241
      %v2243 = vmul.f32 %v2137, 1.442695
      %v2244 = vpow.pop %v2243
      %v2245 = vmul.f32 %v2138, 1.442695
      %v2246 = vpow.pop %v2245
      %v2247 = vmul.f32 %v2139, 1.442695
      %v2248 = vpow.pop %v2247
      %v2249 = vmul.f32 %v2140, 1.442695
      %v2250 = vpow.pop %v2249
      %v2251 = vmul.f32 %v2141, 1.442695
      %v2252 = vpow.pop %v2251
      %v2253 = vmul.f32 %v2142, 1.442695
      %v2254 = vpow.pop %v2253
      %v2255 = vmul.f32 %v2143, 1.442695
      %v2256 = vpow.pop %v2255
      %v2257 = vmul.f32 %v2144, 1.442695
      %v2258 = vpow.pop %v2257
      %v2259 = vmul.f32 %v2145, 1.442695
      %v2260 = vpow.pop %v2259
      %v2261 = vmul.f32 %v2146, 1.442695
      %v2262 = vpow.pop %v2261
      %v2263 = vmul.f32 %v2147, 1.442695
      %v2264 = vpow.pop %v2263
      %v2265 = vmul.f32 %v2148, 1.442695
      %v2266 = vpow.pop %v2265
      %v2267 = vmul.f32 %v2149, 1.442695
      %v2268 = vpow.pop %v2267
      %v2269 = vmul.f32 %v2150, 1.442695
      %v2270 = vpow.pop %v2269
      %v2271 = vmul.f32 %v2151, 1.442695
      %v2272 = vpow.pop %v2271
      %v2273 = vmul.f32 %v2152, 1.442695
      %v2274 = vpow.pop %v2273
      %v2275 = vmul.f32 %v2153, 1.442695
      %v2276 = vpow.pop %v2275
      %v2277 = vmul.f32 %v2154, 1.442695
      %v2278 = vpow.pop %v2277
      %v2279 = vmul.f32 %v2155, 1.442695
      %v2280 = vpow.pop %v2279
      %v2281 = vmul.f32 %v2156, 1.442695
      %v2282 = vpow.pop %v2281
      %v2283 = vmul.f32 %v2157, 1.442695
      %v2284 = vpow.pop %v2283
      %v2285 = vmul.f32 %v2158, 1.442695
      %v2286 = vpow.pop %v2285
      %v2287 = vadd.f32 %v2160, %v2162
      %2288 = vadd.xlane.f32.xlu0 %v2287
      %v2289 = vpop.xlane.xlu0 %2288
      %v2290 = vadd.f32 %v2164, %v2166
      %2291 = vadd.xlane.f32.xlu0 %v2290
      %v2292 = vpop.xlane.xlu0 %2291
      %v2293 = vadd.f32 %v2168, %v2170
      %2294 = vadd.xlane.f32.xlu0 %v2293
      %v2295 = vpop.xlane.xlu0 %2294
      %v2296 = vadd.f32 %v2172, %v2174
      %2297 = vadd.xlane.f32.xlu0 %v2296
      %v2298 = vpop.xlane.xlu0 %2297
      %v2299 = vadd.f32 %v2176, %v2178
      %2300 = vadd.xlane.f32.xlu0 %v2299
      %v2301 = vpop.xlane.xlu0 %2300
      %v2302 = vadd.f32 %v2180, %v2182
      %2303 = vadd.xlane.f32.xlu0 %v2302
      %v2304 = vpop.xlane.xlu0 %2303
      %v2305 = vadd.f32 %v2184, %v2186
      %2306 = vadd.xlane.f32.xlu0 %v2305
      %v2307 = vpop.xlane.xlu0 %2306
      %v2308 = vadd.f32 %v2188, %v2190
      %2309 = vadd.xlane.f32.xlu0 %v2308
      %v2310 = vpop.xlane.xlu0 %2309
      %v2311 = vadd.f32 %v2192, %v2194
      %2312 = vadd.xlane.f32.xlu0 %v2311
      %v2313 = vpop.xlane.xlu0 %2312
      %v2314 = vadd.f32 %v2196, %v2198
      %2315 = vadd.xlane.f32.xlu0 %v2314
      %v2316 = vpop.xlane.xlu0 %2315
      %v2317 = vadd.f32 %v2200, %v2202
      %2318 = vadd.xlane.f32.xlu0 %v2317
      %v2319 = vpop.xlane.xlu0 %2318
      %v2320 = vadd.f32 %v2204, %v2206
      %2321 = vadd.xlane.f32.xlu0 %v2320
      %v2322 = vpop.xlane.xlu0 %2321
      %v2323 = vadd.f32 %v2208, %v2210
      %2324 = vadd.xlane.f32.xlu0 %v2323
      %v2325 = vpop.xlane.xlu0 %2324
      %v2326 = vadd.f32 %v2212, %v2214
      %2327 = vadd.xlane.f32.xlu0 %v2326
      %v2328 = vpop.xlane.xlu0 %2327
      %v2329 = vadd.f32 %v2216, %v2218
      %2330 = vadd.xlane.f32.xlu0 %v2329
      %v2331 = vpop.xlane.xlu0 %2330
      %v2332 = vadd.f32 %v2220, %v2222
      %2333 = vadd.xlane.f32.xlu0 %v2332
      %v2334 = vpop.xlane.xlu0 %2333
      %v2335 = vadd.f32 %v2224, %v2226
      %2336 = vadd.xlane.f32.xlu0 %v2335
      %v2337 = vpop.xlane.xlu0 %2336
      %v2338 = vadd.f32 %v2228, %v2230
      %2339 = vadd.xlane.f32.xlu0 %v2338
      %v2340 = vpop.xlane.xlu0 %2339
      %v2341 = vadd.f32 %v2232, %v2234
      %2342 = vadd.xlane.f32.xlu0 %v2341
      %v2343 = vpop.xlane.xlu0 %2342
      %v2344 = vadd.f32 %v2236, %v2238
      %2345 = vadd.xlane.f32.xlu0 %v2344
      %v2346 = vpop.xlane.xlu0 %2345
      %v2347 = vadd.f32 %v2240, %v2242
      %2348 = vadd.xlane.f32.xlu0 %v2347
      %v2349 = vpop.xlane.xlu0 %2348
      %v2350 = vadd.f32 %v2244, %v2246
      %2351 = vadd.xlane.f32.xlu0 %v2350
      %v2352 = vpop.xlane.xlu0 %2351
      %v2353 = vadd.f32 %v2248, %v2250
      %2354 = vadd.xlane.f32.xlu0 %v2353
      %v2355 = vpop.xlane.xlu0 %2354
      %v2356 = vadd.f32 %v2252, %v2254
      %2357 = vadd.xlane.f32.xlu0 %v2356
      %v2358 = vpop.xlane.xlu0 %2357
      %v2359 = vadd.f32 %v2256, %v2258
      %2360 = vadd.xlane.f32.xlu0 %v2359
      %v2361 = vpop.xlane.xlu0 %2360
      %v2362 = vadd.f32 %v2260, %v2262
      %2363 = vadd.xlane.f32.xlu0 %v2362
      %v2364 = vpop.xlane.xlu0 %2363
      %v2365 = vadd.f32 %v2264, %v2266
      %2366 = vadd.xlane.f32.xlu0 %v2365
      %v2367 = vpop.xlane.xlu0 %2366
      %v2368 = vadd.f32 %v2268, %v2270
      %2369 = vadd.xlane.f32.xlu0 %v2368
      %v2370 = vpop.xlane.xlu0 %2369
      %v2371 = vadd.f32 %v2272, %v2274
      %2372 = vadd.xlane.f32.xlu0 %v2371
      %v2373 = vpop.xlane.xlu0 %2372
      %v2374 = vadd.f32 %v2276, %v2278
      %2375 = vadd.xlane.f32.xlu0 %v2374
      %v2376 = vpop.xlane.xlu0 %2375
      %v2377 = vadd.f32 %v2280, %v2282
      %2378 = vadd.xlane.f32.xlu0 %v2377
      %v2379 = vpop.xlane.xlu0 %2378
      %v2380 = vadd.f32 %v2284, %v2286
      %2381 = vadd.xlane.f32.xlu0 %v2380
      %v2382 = vpop.xlane.xlu0 %2381
      %v2383 = vrcp.pop %v2289
      %v2384 = vrcp.pop %v2292
      %v2385 = vrcp.pop %v2295
      %v2386 = vrcp.pop %v2298
      %v2387 = vrcp.pop %v2301
      %v2388 = vrcp.pop %v2304
      %v2389 = vrcp.pop %v2307
      %v2390 = vrcp.pop %v2310
      %v2391 = vrcp.pop %v2313
      %v2392 = vrcp.pop %v2316
      %v2393 = vrcp.pop %v2319
      %v2394 = vrcp.pop %v2322
      %v2395 = vrcp.pop %v2325
      %v2396 = vrcp.pop %v2328
      %v2397 = vrcp.pop %v2331
      %v2398 = vrcp.pop %v2334
      %v2399 = vrcp.pop %v2337
      %v2400 = vrcp.pop %v2340
      %v2401 = vrcp.pop %v2343
      %v2402 = vrcp.pop %v2346
      %v2403 = vrcp.pop %v2349
      %v2404 = vrcp.pop %v2352
      %v2405 = vrcp.pop %v2355
      %v2406 = vrcp.pop %v2358
      %v2407 = vrcp.pop %v2361
      %v2408 = vrcp.pop %v2364
      %v2409 = vrcp.pop %v2367
      %v2410 = vrcp.pop %v2370
      %v2411 = vrcp.pop %v2373
      %v2412 = vrcp.pop %v2376
      %v2413 = vrcp.pop %v2379
      %v2414 = vrcp.pop %v2382
      %v2415 = vmul.f32 %v2160, %v2383
      %v2416 = vmul.f32 %v2162, %v2383
      %v2417 = vmul.f32 %v2164, %v2384
      %v2418 = vmul.f32 %v2166, %v2384
      %v2419 = vmul.f32 %v2168, %v2385
      %v2420 = vmul.f32 %v2170, %v2385
      %v2421 = vmul.f32 %v2172, %v2386
      %v2422 = vmul.f32 %v2174, %v2386
      %v2423 = vmul.f32 %v2176, %v2387
      %v2424 = vmul.f32 %v2178, %v2387
      %v2425 = vmul.f32 %v2180, %v2388
      %v2426 = vmul.f32 %v2182, %v2388
      %v2427 = vmul.f32 %v2184, %v2389
      %v2428 = vmul.f32 %v2186, %v2389
      %v2429 = vmul.f32 %v2188, %v2390
      %v2430 = vmul.f32 %v2190, %v2390
      %v2431 = vmul.f32 %v2192, %v2391
      %v2432 = vmul.f32 %v2194, %v2391
      %v2433 = vmul.f32 %v2196, %v2392
      %v2434 = vmul.f32 %v2198, %v2392
      %v2435 = vmul.f32 %v2200, %v2393
      %v2436 = vmul.f32 %v2202, %v2393
      %v2437 = vmul.f32 %v2204, %v2394
      %v2438 = vmul.f32 %v2206, %v2394
      %v2439 = vmul.f32 %v2208, %v2395
      %v2440 = vmul.f32 %v2210, %v2395
      %v2441 = vmul.f32 %v2212, %v2396
      %v2442 = vmul.f32 %v2214, %v2396
      %v2443 = vmul.f32 %v2216, %v2397
      %v2444 = vmul.f32 %v2218, %v2397
      %v2445 = vmul.f32 %v2220, %v2398
      %v2446 = vmul.f32 %v2222, %v2398
      %v2447 = vmul.f32 %v2224, %v2399
      %v2448 = vmul.f32 %v2226, %v2399
      %v2449 = vmul.f32 %v2228, %v2400
      %v2450 = vmul.f32 %v2230, %v2400
      %v2451 = vmul.f32 %v2232, %v2401
      %v2452 = vmul.f32 %v2234, %v2401
      %v2453 = vmul.f32 %v2236, %v2402
      %v2454 = vmul.f32 %v2238, %v2402
      %v2455 = vmul.f32 %v2240, %v2403
      %v2456 = vmul.f32 %v2242, %v2403
      %v2457 = vmul.f32 %v2244, %v2404
      %v2458 = vmul.f32 %v2246, %v2404
      %v2459 = vmul.f32 %v2248, %v2405
      %v2460 = vmul.f32 %v2250, %v2405
      %v2461 = vmul.f32 %v2252, %v2406
      %v2462 = vmul.f32 %v2254, %v2406
      %v2463 = vmul.f32 %v2256, %v2407
      %v2464 = vmul.f32 %v2258, %v2407
      %v2465 = vmul.f32 %v2260, %v2408
      %v2466 = vmul.f32 %v2262, %v2408
      %v2467 = vmul.f32 %v2264, %v2409
      %v2468 = vmul.f32 %v2266, %v2409
      %v2469 = vmul.f32 %v2268, %v2410
      %v2470 = vmul.f32 %v2270, %v2410
      %v2471 = vmul.f32 %v2272, %v2411
      %v2472 = vmul.f32 %v2274, %v2411
      %v2473 = vmul.f32 %v2276, %v2412
      %v2474 = vmul.f32 %v2278, %v2412
      %v2475 = vmul.f32 %v2280, %v2413
      %v2476 = vmul.f32 %v2282, %v2413
      %v2477 = vmul.f32 %v2284, %v2414
      %v2478 = vmul.f32 %v2286, %v2414
      %vm2481 = vcmask 1040384
      %v2482 = vrot.slane %v608, 7
      %v2483 = vrot.slane %v614, 7
      %v2484 = vsel %vm2481, %v2482, %v2483
      %v2485 = vrot.slane %v610, 7
      %v2486 = vrot.slane %v616, 7
      %v2487 = vsel %vm2481, %v2485, %v2486
      %2490 = vmatprep.subr.mxu0 %v2446
      %2491 = vmatpush1.xpose.msra.mxu0 %v2445
      %2492 = vmatprep.subr.mxu0 %v2444
      %2493 = vmatpush1.xpose.msra.mxu0 %v2443
      %2494 = vmatprep.subr.mxu0 %v2442
      %2495 = vmatpush1.xpose.msra.mxu0 %v2441
      %2496 = vmatprep.subr.mxu0 %v2440
      %2497 = vmatpush1.xpose.msra.mxu0 %v2439
      %2498 = vmatprep.subr.mxu0 %v2438
      %2499 = vmatpush1.xpose.msra.mxu0 %v2437
      %2500 = vmatprep.subr.mxu0 %v2436
      %2501 = vmatpush1.xpose.msra.mxu0 %v2435
      %2502 = vmatprep.subr.mxu0 %v2434
      %2503 = vmatpush1.xpose.msra.mxu0 %v2433
      %2504 = vmatprep.subr.mxu0 %v2432
      %2505 = vmatpush1.xpose.msra.mxu0 %v2431
      %2506 = vmatprep.subr.mxu0 %v2430
      %2507 = vmatpush1.xpose.msra.mxu0 %v2429
      %2508 = vmatprep.subr.mxu0 %v2428
      %2509 = vmatpush1.xpose.msra.mxu0 %v2427
      %2510 = vmatprep.subr.mxu0 %v2426
      %2511 = vmatpush1.xpose.msra.mxu0 %v2425
      %2512 = vmatprep.subr.mxu0 %v2424
      %2513 = vmatpush1.xpose.msra.mxu0 %v2423
      %2514 = vmatprep.subr.mxu0 %v2422
      %2515 = vmatpush1.xpose.msra.mxu0 %v2421
      %2516 = vmatprep.subr.mxu0 %v2420
      %2517 = vmatpush1.xpose.msra.mxu0 %v2419
      %2518 = vmatprep.subr.mxu0 %v2418
      %2519 = vmatpush1.xpose.msra.mxu0 %v2417
      %2520 = vmatprep.subr.mxu0 %v2416
      %2521 = vmatpush1.xpose.msra.mxu0 %v2415
      %2522 = vmatprep.subr.mxu0 %v2478
      %2523 = vmatpush2.xpose.msra.mxu0 %v2477
      %2524 = vmatprep.subr.mxu0 %v2476
      %2525 = vmatpush2.xpose.msra.mxu0 %v2475
      %2526 = vmatprep.subr.mxu0 %v2474
      %2527 = vmatpush2.xpose.msra.mxu0 %v2473
      %2528 = vmatprep.subr.mxu0 %v2472
      %2529 = vmatpush2.xpose.msra.mxu0 %v2471
      %2530 = vmatprep.subr.mxu0 %v2470
      %2531 = vmatpush2.xpose.msra.mxu0 %v2469
      %2532 = vmatprep.subr.mxu0 %v2468
      %2533 = vmatpush2.xpose.msra.mxu0 %v2467
      %2534 = vmatprep.subr.mxu0 %v2466
      %2535 = vmatpush2.xpose.msra.mxu0 %v2465
      %2536 = vmatprep.subr.mxu0 %v2464
      %2537 = vmatpush2.xpose.msra.mxu0 %v2463
      %2538 = vmatprep.subr.mxu0 %v2462
      %2539 = vmatpush2.xpose.msra.mxu0 %v2461
      %2540 = vmatprep.subr.mxu0 %v2460
      %2541 = vmatpush2.xpose.msra.mxu0 %v2459
      %2542 = vmatprep.subr.mxu0 %v2458
      %2543 = vmatpush2.xpose.msra.mxu0 %v2457
      %2544 = vmatprep.subr.mxu0 %v2456
      %2545 = vmatpush2.xpose.msra.mxu0 %v2455
      %2546 = vmatprep.subr.mxu0 %v2454
      %2547 = vmatpush2.xpose.msra.mxu0 %v2453
      %2548 = vmatprep.subr.mxu0 %v2452
      %2549 = vmatpush2.xpose.msra.mxu0 %v2451
      %2550 = vmatprep.subr.mxu0 %v2450
      %2551 = vmatpush2.xpose.msra.mxu0 %v2449
      %2552 = vmatprep.subr.mxu0 %v2448
      %2553 = vmatpush2.xpose.msra.mxu0 %v2447
      %2554 = vmatprep.mubr.f32.mxu0 %v2487
      %2555 = vmatmul.mubr.f32.gmra.mxu0 %v2484
      %v2556 = vpop.f32.mrf.mxu0
      %v2557 = vadd.f32 0.0, %v2556
      %v2558 = vpop.f32.mrf.mxu0
      %v2559 = vadd.f32 0.0, %v2558
      %2560 = vdwg.mxu0
      %2562 = vrot.lane.b32.xlu0 %v682, 125
      %v2563 = vpop.permute.xlu0 %2562
      %v2564 = vsel %vm694, %v2563, 0
      %v2567 = vsel %vm791, %v2557, 0
      %v2570 = vsel %vm791, %v2559, 0
      %2572 = vmatprep.subr.mxu0 0.0
      %2573 = vmatpush1.msra.mxu0 0.0
      %2574 = vmatprep.subr.mxu0 0.0
      %2575 = vmatpush1.msra.mxu0 0.0
      %2576 = vmatprep.subr.mxu0 0.0
      %2577 = vmatpush1.msra.mxu0 0.0
      %2578 = vmatprep.subr.mxu0 0.0
      %2579 = vmatpush1.msra.mxu0 0.0
      %2580 = vmatprep.subr.mxu0 0.0
      %2581 = vmatpush1.msra.mxu0 0.0
      %2582 = vmatprep.subr.mxu0 0.0
      %2583 = vmatpush1.msra.mxu0 0.0
      %2584 = vmatprep.subr.mxu0 0.0
      %2585 = vmatpush1.msra.mxu0 0.0
      %2586 = vmatprep.subr.mxu0 0.0
      %2587 = vmatpush1.msra.mxu0 0.0
      %2588 = vmatprep.subr.mxu0 0.0
      %2589 = vmatpush1.msra.mxu0 0.0
      %2590 = vmatprep.subr.mxu0 0.0
      %2591 = vmatpush1.msra.mxu0 0.0
      %2592 = vmatprep.subr.mxu0 0.0
      %2593 = vmatpush1.msra.mxu0 0.0
      %2594 = vmatprep.subr.mxu0 0.0
      %2595 = vmatpush1.msra.mxu0 0.0
      %2596 = vmatprep.subr.mxu0 0.0
      %2597 = vmatpush1.msra.mxu0 0.0
      %2598 = vmatprep.subr.mxu0 0.0
      %2599 = vmatpush1.msra.mxu0 0.0
      %2600 = vmatprep.subr.mxu0 0.0
      %2601 = vmatpush1.msra.mxu0 0.0
      %2602 = vmatprep.subr.mxu0 %v2570
      %2603 = vmatpush1.msra.mxu0 %v2567
      %2604 = vmatprep.subr.mxu0 0.0
      %2605 = vmatpush2.msra.mxu0 0.0
      %2606 = vmatprep.subr.mxu0 0.0
      %2607 = vmatpush2.msra.mxu0 0.0
      %2608 = vmatprep.subr.mxu0 0.0
      %2609 = vmatpush2.msra.mxu0 0.0
      %2610 = vmatprep.subr.mxu0 0.0
      %2611 = vmatpush2.msra.mxu0 0.0
      %2612 = vmatprep.subr.mxu0 0.0
      %2613 = vmatpush2.msra.mxu0 0.0
      %2614 = vmatprep.subr.mxu0 0.0
      %2615 = vmatpush2.msra.mxu0 0.0
      %2616 = vmatprep.subr.mxu0 0.0
      %2617 = vmatpush2.msra.mxu0 0.0
      %2618 = vmatprep.subr.mxu0 0.0
      %2619 = vmatpush2.msra.mxu0 0.0
      %2620 = vmatprep.subr.mxu0 0.0
      %2621 = vmatpush2.msra.mxu0 0.0
      %2622 = vmatprep.subr.mxu0 0.0
      %2623 = vmatpush2.msra.mxu0 0.0
      %2624 = vmatprep.subr.mxu0 0.0
      %2625 = vmatpush2.msra.mxu0 0.0
      %2626 = vmatprep.subr.mxu0 0.0
      %2627 = vmatpush2.msra.mxu0 0.0
      %2628 = vmatprep.subr.mxu0 0.0
      %2629 = vmatpush2.msra.mxu0 0.0
      %2630 = vmatprep.subr.mxu0 0.0
      %2631 = vmatpush2.msra.mxu0 0.0
      %2632 = vmatprep.subr.mxu0 0.0
      %2633 = vmatpush2.msra.mxu0 0.0
      %2634 = vmatprep.subr.mxu0 0.0
      %2635 = vmatpush2.msra.mxu0 0.0
      %2636 = vmatprep.mubr.f32.mxu0 0.0
      %2637 = vmatmul.mubr.f32.gmra.mxu0 %v2564
      %v2638 = vpop.f32.mrf.mxu0
      %v2639 = vadd.f32 0.0, %v2638
      %v2640 = vpop.f32.mrf.mxu0
      %v2641 = vadd.f32 0.0, %v2640
      %2642 = vdwg.mxu0
      %v2643 = vsel %vm694, %v682, 0
      %v2646 = vsel %vm791, %v1604, 0
      %v2649 = vsel %vm791, %v1606, 0
      %2651 = vmatprep.subr.mxu0 0.0
      %2652 = vmatpush1.msra.mxu0 0.0
      %2653 = vmatprep.subr.mxu0 0.0
      %2654 = vmatpush1.msra.mxu0 0.0
      %2655 = vmatprep.subr.mxu0 0.0
      %2656 = vmatpush1.msra.mxu0 0.0
      %2657 = vmatprep.subr.mxu0 0.0
      %2658 = vmatpush1.msra.mxu0 0.0
      %2659 = vmatprep.subr.mxu0 0.0
      %2660 = vmatpush1.msra.mxu0 0.0
      %2661 = vmatprep.subr.mxu0 0.0
      %2662 = vmatpush1.msra.mxu0 0.0
      %2663 = vmatprep.subr.mxu0 0.0
      %2664 = vmatpush1.msra.mxu0 0.0
      %2665 = vmatprep.subr.mxu0 0.0
      %2666 = vmatpush1.msra.mxu0 0.0
      %2667 = vmatprep.subr.mxu0 0.0
      %2668 = vmatpush1.msra.mxu0 0.0
      %2669 = vmatprep.subr.mxu0 0.0
      %2670 = vmatpush1.msra.mxu0 0.0
      %2671 = vmatprep.subr.mxu0 0.0
      %2672 = vmatpush1.msra.mxu0 0.0
      %2673 = vmatprep.subr.mxu0 0.0
      %2674 = vmatpush1.msra.mxu0 0.0
      %2675 = vmatprep.subr.mxu0 0.0
      %2676 = vmatpush1.msra.mxu0 0.0
      %2677 = vmatprep.subr.mxu0 0.0
      %2678 = vmatpush1.msra.mxu0 0.0
      %2679 = vmatprep.subr.mxu0 0.0
      %2680 = vmatpush1.msra.mxu0 0.0
      %2681 = vmatprep.subr.mxu0 %v2649
      %2682 = vmatpush1.msra.mxu0 %v2646
      %2683 = vmatprep.subr.mxu0 0.0
      %2684 = vmatpush2.msra.mxu0 0.0
      %2685 = vmatprep.subr.mxu0 0.0
      %2686 = vmatpush2.msra.mxu0 0.0
      %2687 = vmatprep.subr.mxu0 0.0
      %2688 = vmatpush2.msra.mxu0 0.0
      %2689 = vmatprep.subr.mxu0 0.0
      %2690 = vmatpush2.msra.mxu0 0.0
      %2691 = vmatprep.subr.mxu0 0.0
      %2692 = vmatpush2.msra.mxu0 0.0
      %2693 = vmatprep.subr.mxu0 0.0
      %2694 = vmatpush2.msra.mxu0 0.0
      %2695 = vmatprep.subr.mxu0 0.0
      %2696 = vmatpush2.msra.mxu0 0.0
      %2697 = vmatprep.subr.mxu0 0.0
      %2698 = vmatpush2.msra.mxu0 0.0
      %2699 = vmatprep.subr.mxu0 0.0
      %2700 = vmatpush2.msra.mxu0 0.0
      %2701 = vmatprep.subr.mxu0 0.0
      %2702 = vmatpush2.msra.mxu0 0.0
      %2703 = vmatprep.subr.mxu0 0.0
      %2704 = vmatpush2.msra.mxu0 0.0
      %2705 = vmatprep.subr.mxu0 0.0
      %2706 = vmatpush2.msra.mxu0 0.0
      %2707 = vmatprep.subr.mxu0 0.0
      %2708 = vmatpush2.msra.mxu0 0.0
      %2709 = vmatprep.subr.mxu0 0.0
      %2710 = vmatpush2.msra.mxu0 0.0
      %2711 = vmatprep.subr.mxu0 0.0
      %2712 = vmatpush2.msra.mxu0 0.0
      %2713 = vmatprep.subr.mxu0 0.0
      %2714 = vmatpush2.msra.mxu0 0.0
      %2715 = vmatprep.mubr.f32.mxu0 0.0
      %2716 = vmatmul.mubr.f32.gmra.mxu0 %v2643
      %v2717 = vpop.f32.mrf.mxu0
      %v2718 = vadd.f32 %v2639, %v2717
      %v2719 = vpop.f32.mrf.mxu0
      %v2720 = vadd.f32 %v2641, %v2719
      %2721 = vdwg.mxu0
      %v2722 = vld [vmem:[%s4] sm:$0x3f]
      %2724 = vset.pattern.permute.xlu0 0
      %2725 = vperm.xlu0 %2724, %v2722
      %v2726 = vpop.permute.xlu0 %2725
      %v2728 = vadd.f32 %v2718, %v2726
      %v2729 = vadd.f32 %v2720, %v2726
      %v2730 = vld [vmem:[%s5] sm:$0xf]
      %v2731 = vld [vmem:[%s6] sm:$0xf]
      %2733 = vset.pattern.permute.xlu0 0
      %2734 = vperm.xlu0 %2733, %v2731
      %v2735 = vpop.permute.xlu0 %2734
      %v2738 = vsel %vm518, %v2730, 0
      %v2741 = vsel %vm528, %v2728, 0
      %v2744 = vsel %vm528, %v2729, 0
      %2746 = vmatprep.subr.mxu0 0.0
      %2747 = vmatpush1.msra.mxu0 0.0
      %2748 = vmatprep.subr.mxu0 0.0
      %2749 = vmatpush1.msra.mxu0 0.0
      %2750 = vmatprep.subr.mxu0 0.0
      %2751 = vmatpush1.msra.mxu0 0.0
      %2752 = vmatprep.subr.mxu0 0.0
      %2753 = vmatpush1.msra.mxu0 0.0
      %2754 = vmatprep.subr.mxu0 0.0
      %2755 = vmatpush1.msra.mxu0 0.0
      %2756 = vmatprep.subr.mxu0 0.0
      %2757 = vmatpush1.msra.mxu0 0.0
      %2758 = vmatprep.subr.mxu0 0.0
      %2759 = vmatpush1.msra.mxu0 0.0
      %2760 = vmatprep.subr.mxu0 0.0
      %2761 = vmatpush1.msra.mxu0 0.0
      %2762 = vmatprep.subr.mxu0 0.0
      %2763 = vmatpush1.msra.mxu0 0.0
      %2764 = vmatprep.subr.mxu0 0.0
      %2765 = vmatpush1.msra.mxu0 0.0
      %2766 = vmatprep.subr.mxu0 0.0
      %2767 = vmatpush1.msra.mxu0 0.0
      %2768 = vmatprep.subr.mxu0 0.0
      %2769 = vmatpush1.msra.mxu0 0.0
      %2770 = vmatprep.subr.mxu0 0.0
      %2771 = vmatpush1.msra.mxu0 0.0
      %2772 = vmatprep.subr.mxu0 0.0
      %2773 = vmatpush1.msra.mxu0 0.0
      %2774 = vmatprep.subr.mxu0 0.0
      %2775 = vmatpush1.msra.mxu0 0.0
      %2776 = vmatprep.subr.mxu0 %v2744
      %2777 = vmatpush1.msra.mxu0 %v2741
      %2778 = vmatprep.subr.mxu0 0.0
      %2779 = vmatpush2.msra.mxu0 0.0
      %2780 = vmatprep.subr.mxu0 0.0
      %2781 = vmatpush2.msra.mxu0 0.0
      %2782 = vmatprep.subr.mxu0 0.0
      %2783 = vmatpush2.msra.mxu0 0.0
      %2784 = vmatprep.subr.mxu0 0.0
      %2785 = vmatpush2.msra.mxu0 0.0
      %2786 = vmatprep.subr.mxu0 0.0
      %2787 = vmatpush2.msra.mxu0 0.0
      %2788 = vmatprep.subr.mxu0 0.0
      %2789 = vmatpush2.msra.mxu0 0.0
      %2790 = vmatprep.subr.mxu0 0.0
      %2791 = vmatpush2.msra.mxu0 0.0
      %2792 = vmatprep.subr.mxu0 0.0
      %2793 = vmatpush2.msra.mxu0 0.0
      %2794 = vmatprep.subr.mxu0 0.0
      %2795 = vmatpush2.msra.mxu0 0.0
      %2796 = vmatprep.subr.mxu0 0.0
      %2797 = vmatpush2.msra.mxu0 0.0
      %2798 = vmatprep.subr.mxu0 0.0
      %2799 = vmatpush2.msra.mxu0 0.0
      %2800 = vmatprep.subr.mxu0 0.0
      %2801 = vmatpush2.msra.mxu0 0.0
      %2802 = vmatprep.subr.mxu0 0.0
      %2803 = vmatpush2.msra.mxu0 0.0
      %2804 = vmatprep.subr.mxu0 0.0
      %2805 = vmatpush2.msra.mxu0 0.0
      %2806 = vmatprep.subr.mxu0 0.0
      %2807 = vmatpush2.msra.mxu0 0.0
      %2808 = vmatprep.subr.mxu0 0.0
      %2809 = vmatpush2.msra.mxu0 0.0
      %2810 = vmatprep.mubr.f32.mxu0 0.0
      %2811 = vmatmul.mubr.f32.gmra.mxu0 %v2738
      %v2812 = vpop.f32.mrf.mxu0
      %v2813 = vadd.f32 %v2735, %v2812
      %v2814 = vpop.f32.mrf.mxu0
      %v2815 = vadd.f32 %v2735, %v2814
      %2816 = vdwg.mxu0
      %v2817 = vmax.f32 %v2813, 0.0
      %v2818 = vmax.f32 %v2815, 0.0
      %v2819 = vld [vmem:[%s7] sm:$0xff]
      %v2820 = vld [vmem:[%s7 + $0x8] sm:$0xff]
      %v2821 = vld [vmem:[%s7 + $0x10] sm:$0x3]
      %v2822 = vld [vmem:[%s8] sm:$0xff]
      %v2823 = vld [vmem:[%s8 + $0x8] sm:$0xff]
      %v2824 = vld [vmem:[%s8 + $0x10] sm:$0x3]
      %2826 = vset.pattern.permute.xlu0 0
      %2827 = vperm.xlu0 %2826, %v2822
      %v2828 = vpop.permute.xlu0 %2827
      %2831 = vset.pattern.permute.xlu0 0
      %2832 = vperm.xlu0 %2831, %v2823
      %v2833 = vpop.permute.xlu0 %2832
      %2836 = vset.pattern.permute.xlu0 0
      %2837 = vperm.xlu0 %2836, %v2824
      %v2838 = vpop.permute.xlu0 %2837
      %v2841 = vsel %vm518, %v2819, 0
      %v2844 = vsel %vm518, %v2820, 0
      %v2847 = vsel %vm518, %v2821, 0
      %2849 = vmatprep.subr.mxu0 0.0
      %2850 = vmatpush1.msra.mxu0 0.0
      %2851 = vmatprep.subr.mxu0 0.0
      %2852 = vmatpush1.msra.mxu0 0.0
      %2853 = vmatprep.subr.mxu0 0.0
      %2854 = vmatpush1.msra.mxu0 0.0
      %2855 = vmatprep.subr.mxu0 0.0
      %2856 = vmatpush1.msra.mxu0 0.0
      %2857 = vmatprep.subr.mxu0 0.0
      %2858 = vmatpush1.msra.mxu0 0.0
      %2859 = vmatprep.subr.mxu0 0.0
      %2860 = vmatpush1.msra.mxu0 0.0
      %2861 = vmatprep.subr.mxu0 0.0
      %2862 = vmatpush1.msra.mxu0 0.0
      %2863 = vmatprep.subr.mxu0 0.0
      %2864 = vmatpush1.msra.mxu0 0.0
      %2865 = vmatprep.subr.mxu0 0.0
      %2866 = vmatpush1.msra.mxu0 0.0
      %2867 = vmatprep.subr.mxu0 0.0
      %2868 = vmatpush1.msra.mxu0 0.0
      %2869 = vmatprep.subr.mxu0 0.0
      %2870 = vmatpush1.msra.mxu0 0.0
      %2871 = vmatprep.subr.mxu0 0.0
      %2872 = vmatpush1.msra.mxu0 0.0
      %2873 = vmatprep.subr.mxu0 0.0
      %2874 = vmatpush1.msra.mxu0 0.0
      %2875 = vmatprep.subr.mxu0 0.0
      %2876 = vmatpush1.msra.mxu0 0.0
      %2877 = vmatprep.subr.mxu0 0.0
      %2878 = vmatpush1.msra.mxu0 0.0
      %2879 = vmatprep.subr.mxu0 %v533
      %2880 = vmatpush1.msra.mxu0 %v530
      %2881 = vmatprep.subr.mxu0 0.0
      %2882 = vmatpush2.msra.mxu0 0.0
      %2883 = vmatprep.subr.mxu0 0.0
      %2884 = vmatpush2.msra.mxu0 0.0
      %2885 = vmatprep.subr.mxu0 0.0
      %2886 = vmatpush2.msra.mxu0 0.0
      %2887 = vmatprep.subr.mxu0 0.0
      %2888 = vmatpush2.msra.mxu0 0.0
      %2889 = vmatprep.subr.mxu0 0.0
      %2890 = vmatpush2.msra.mxu0 0.0
      %2891 = vmatprep.subr.mxu0 0.0
      %2892 = vmatpush2.msra.mxu0 0.0
      %2893 = vmatprep.subr.mxu0 0.0
      %2894 = vmatpush2.msra.mxu0 0.0
      %2895 = vmatprep.subr.mxu0 0.0
      %2896 = vmatpush2.msra.mxu0 0.0
      %2897 = vmatprep.subr.mxu0 0.0
      %2898 = vmatpush2.msra.mxu0 0.0
      %2899 = vmatprep.subr.mxu0 0.0
      %2900 = vmatpush2.msra.mxu0 0.0
      %2901 = vmatprep.subr.mxu0 0.0
      %2902 = vmatpush2.msra.mxu0 0.0
      %2903 = vmatprep.subr.mxu0 0.0
      %2904 = vmatpush2.msra.mxu0 0.0
      %2905 = vmatprep.subr.mxu0 0.0
      %2906 = vmatpush2.msra.mxu0 0.0
      %2907 = vmatprep.subr.mxu0 0.0
      %2908 = vmatpush2.msra.mxu0 0.0
      %2909 = vmatprep.subr.mxu0 0.0
      %2910 = vmatpush2.msra.mxu0 0.0
      %2911 = vmatprep.subr.mxu0 0.0
      %2912 = vmatpush2.msra.mxu0 0.0
      %2913 = vmatprep.mubr.f32.mxu0 0.0
      %2914 = vmatmul.mubr.f32.gmra.mxu0 %v2841
      %v2915 = vpop.f32.mrf.mxu0
      %v2916 = vadd.f32 %v2828, %v2915
      %v2917 = vpop.f32.mrf.mxu0
      %v2918 = vadd.f32 %v2828, %v2917
      %2919 = vmatprep.mubr.f32.mxu0 0.0
      %2920 = vmatmul.mubr.f32.gmra.mxu0 %v2844
      %v2921 = vpop.f32.mrf.mxu0
      %v2922 = vadd.f32 %v2833, %v2921
      %v2923 = vpop.f32.mrf.mxu0
      %v2924 = vadd.f32 %v2833, %v2923
      %2925 = vmatprep.mubr.f32.mxu0 0.0
      %2926 = vmatmul.mubr.f32.gmra.mxu0 %v2847
      %v2927 = vpop.f32.mrf.mxu0
      %v2928 = vadd.f32 %v2838, %v2927
      %v2929 = vpop.f32.mrf.mxu0
      %v2930 = vadd.f32 %v2838, %v2929
      %2931 = vdwg.mxu0
      %2932 = vxpose.xlu0.b32.start [1/16] %v2916, 128
      %2933 = vxpose.xlu0.b32.cont [2/16] 0.0, 128
      %2934 = vxpose.xlu0.b32.cont [3/16] 0.0, 128
      %2935 = vxpose.xlu0.b32.cont [4/16] 0.0, 128
      %2936 = vxpose.xlu0.b32.cont [5/16] 0.0, 128
      %2937 = vxpose.xlu0.b32.cont [6/16] 0.0, 128
      %2938 = vxpose.xlu0.b32.cont [7/16] 0.0, 128
      %2939 = vxpose.xlu0.b32.cont [8/16] 0.0, 128
      %2940 = vxpose.xlu0.b32.cont [9/16] 0.0, 128
      %2941 = vxpose.xlu0.b32.cont [10/16] 0.0, 128
      %2942 = vxpose.xlu0.b32.cont [11/16] 0.0, 128
      %2943 = vxpose.xlu0.b32.cont [12/16] 0.0, 128
      %2944 = vxpose.xlu0.b32.cont [13/16] 0.0, 128
      %2945 = vxpose.xlu0.b32.cont [14/16] 0.0, 128
      %2946 = vxpose.xlu0.b32.cont [15/16] 0.0, 128
      %2947 = vxpose.xlu0.b32.end [16/16] 0.0, 128
      %v2948 = vpop.trf.xlu0
      %v2949 = vpop.trf.xlu0
      %v2950 = vpop.trf.xlu0
      %v2951 = vpop.trf.xlu0
      %v2952 = vpop.trf.xlu0
      %v2953 = vpop.trf.xlu0
      %v2954 = vpop.trf.xlu0
      %v2955 = vpop.trf.xlu0
      %v2956 = vpop.trf.xlu0
      %v2957 = vpop.trf.xlu0
      %v2958 = vpop.trf.xlu0
      %v2959 = vpop.trf.xlu0
      %v2960 = vpop.trf.xlu0
      %v2961 = vpop.trf.xlu0
      %v2962 = vpop.trf.xlu0
      %v2963 = vpop.trf.xlu0
      %2964 = vxpose.xlu0.b32.start [1/16] %v2918, 128
      %2965 = vxpose.xlu0.b32.cont [2/16] 0.0, 128
      %2966 = vxpose.xlu0.b32.cont [3/16] 0.0, 128
      %2967 = vxpose.xlu0.b32.cont [4/16] 0.0, 128
      %2968 = vxpose.xlu0.b32.cont [5/16] 0.0, 128
      %2969 = vxpose.xlu0.b32.cont [6/16] 0.0, 128
      %2970 = vxpose.xlu0.b32.cont [7/16] 0.0, 128
      %2971 = vxpose.xlu0.b32.cont [8/16] 0.0, 128
      %2972 = vxpose.xlu0.b32.cont [9/16] 0.0, 128
      %2973 = vxpose.xlu0.b32.cont [10/16] 0.0, 128
      %2974 = vxpose.xlu0.b32.cont [11/16] 0.0, 128
      %2975 = vxpose.xlu0.b32.cont [12/16] 0.0, 128
      %2976 = vxpose.xlu0.b32.cont [13/16] 0.0, 128
      %2977 = vxpose.xlu0.b32.cont [14/16] 0.0, 128
      %2978 = vxpose.xlu0.b32.cont [15/16] 0.0, 128
      %2979 = vxpose.xlu0.b32.end [16/16] 0.0, 128
      %v2980 = vpop.trf.xlu0
      %v2981 = vpop.trf.xlu0
      %v2982 = vpop.trf.xlu0
      %v2983 = vpop.trf.xlu0
      %v2984 = vpop.trf.xlu0
      %v2985 = vpop.trf.xlu0
      %v2986 = vpop.trf.xlu0
      %v2987 = vpop.trf.xlu0
      %v2988 = vpop.trf.xlu0
      %v2989 = vpop.trf.xlu0
      %v2990 = vpop.trf.xlu0
      %v2991 = vpop.trf.xlu0
      %v2992 = vpop.trf.xlu0
      %v2993 = vpop.trf.xlu0
      %v2994 = vpop.trf.xlu0
      %v2995 = vpop.trf.xlu0
      %v3000 = vrot.slane %v2916, 6
      %v3001 = vrot.slane %v2922, 6
      %v3002 = vsel %vm687, %v3000, %v3001
      %v3003 = vrot.slane %v2918, 6
      %v3004 = vrot.slane %v2924, 6
      %v3005 = vsel %vm687, %v3003, %v3004
      %v3007 = vsel %vm518, %v2948, 0
      %v3010 = vsel %vm518, %v2949, 0
      %v3013 = vsel %vm518, %v2950, 0
      %v3016 = vsel %vm518, %v2951, 0
      %v3019 = vsel %vm518, %v2952, 0
      %v3022 = vsel %vm518, %v2953, 0
      %v3025 = vsel %vm518, %v2954, 0
      %v3028 = vsel %vm518, %v2955, 0
      %v3031 = vsel %vm518, %v2956, 0
      %v3034 = vsel %vm518, %v2957, 0
      %v3037 = vsel %vm518, %v2958, 0
      %v3040 = vsel %vm518, %v2959, 0
      %v3043 = vsel %vm518, %v2960, 0
      %v3046 = vsel %vm518, %v2961, 0
      %v3049 = vsel %vm518, %v2962, 0
      %v3052 = vsel %vm518, %v2963, 0
      %v3055 = vsel %vm518, %v2980, 0
      %v3058 = vsel %vm518, %v2981, 0
      %v3061 = vsel %vm518, %v2982, 0
      %v3064 = vsel %vm518, %v2983, 0
      %v3067 = vsel %vm518, %v2984, 0
      %v3070 = vsel %vm518, %v2985, 0
      %v3073 = vsel %vm518, %v2986, 0
      %v3076 = vsel %vm518, %v2987, 0
      %v3079 = vsel %vm518, %v2988, 0
      %v3082 = vsel %vm518, %v2989, 0
      %v3085 = vsel %vm518, %v2990, 0
      %v3088 = vsel %vm518, %v2991, 0
      %v3091 = vsel %vm518, %v2992, 0
      %v3094 = vsel %vm518, %v2993, 0
      %v3097 = vsel %vm518, %v2994, 0
      %v3100 = vsel %vm518, %v2995, 0
      %v3102 = vsel %vm528, %v3002, 0
      %v3104 = vsel %vm528, %v3005, 0
      %3106 = vmatprep.subr.mxu0 0.0
      %3107 = vmatpush1.msra.mxu0 0.0
      %3108 = vmatprep.subr.mxu0 0.0
      %3109 = vmatpush1.msra.mxu0 0.0
      %3110 = vmatprep.subr.mxu0 0.0
      %3111 = vmatpush1.msra.mxu0 0.0
      %3112 = vmatprep.subr.mxu0 0.0
      %3113 = vmatpush1.msra.mxu0 0.0
      %3114 = vmatprep.subr.mxu0 0.0
      %3115 = vmatpush1.msra.mxu0 0.0
      %3116 = vmatprep.subr.mxu0 0.0
      %3117 = vmatpush1.msra.mxu0 0.0
      %3118 = vmatprep.subr.mxu0 0.0
      %3119 = vmatpush1.msra.mxu0 0.0
      %3120 = vmatprep.subr.mxu0 0.0
      %3121 = vmatpush1.msra.mxu0 0.0
      %3122 = vmatprep.subr.mxu0 0.0
      %3123 = vmatpush1.msra.mxu0 0.0
      %3124 = vmatprep.subr.mxu0 0.0
      %3125 = vmatpush1.msra.mxu0 0.0
      %3126 = vmatprep.subr.mxu0 0.0
      %3127 = vmatpush1.msra.mxu0 0.0
      %3128 = vmatprep.subr.mxu0 0.0
      %3129 = vmatpush1.msra.mxu0 0.0
      %3130 = vmatprep.subr.mxu0 0.0
      %3131 = vmatpush1.msra.mxu0 0.0
      %3132 = vmatprep.subr.mxu0 0.0
      %3133 = vmatpush1.msra.mxu0 0.0
      %3134 = vmatprep.subr.mxu0 0.0
      %3135 = vmatpush1.msra.mxu0 0.0
      %3136 = vmatprep.subr.mxu0 %v3104
      %3137 = vmatpush1.msra.mxu0 %v3102
      %3138 = vmatprep.subr.mxu0 0.0
      %3139 = vmatpush2.msra.mxu0 0.0
      %3140 = vmatprep.subr.mxu0 0.0
      %3141 = vmatpush2.msra.mxu0 0.0
      %3142 = vmatprep.subr.mxu0 0.0
      %3143 = vmatpush2.msra.mxu0 0.0
      %3144 = vmatprep.subr.mxu0 0.0
      %3145 = vmatpush2.msra.mxu0 0.0
      %3146 = vmatprep.subr.mxu0 0.0
      %3147 = vmatpush2.msra.mxu0 0.0
      %3148 = vmatprep.subr.mxu0 0.0
      %3149 = vmatpush2.msra.mxu0 0.0
      %3150 = vmatprep.subr.mxu0 0.0
      %3151 = vmatpush2.msra.mxu0 0.0
      %3152 = vmatprep.subr.mxu0 0.0
      %3153 = vmatpush2.msra.mxu0 0.0
      %3154 = vmatprep.subr.mxu0 0.0
      %3155 = vmatpush2.msra.mxu0 0.0
      %3156 = vmatprep.subr.mxu0 0.0
      %3157 = vmatpush2.msra.mxu0 0.0
      %3158 = vmatprep.subr.mxu0 0.0
      %3159 = vmatpush2.msra.mxu0 0.0
      %3160 = vmatprep.subr.mxu0 0.0
      %3161 = vmatpush2.msra.mxu0 0.0
      %3162 = vmatprep.subr.mxu0 0.0
      %3163 = vmatpush2.msra.mxu0 0.0
      %3164 = vmatprep.subr.mxu0 0.0
      %3165 = vmatpush2.msra.mxu0 0.0
      %3166 = vmatprep.subr.mxu0 0.0
      %3167 = vmatpush2.msra.mxu0 0.0
      %3168 = vmatprep.subr.mxu0 0.0
      %3169 = vmatpush2.msra.mxu0 0.0
      %3170 = vmatprep.mubr.f32.mxu0 0.0
      %3171 = vmatmul.mubr.f32.gmra.mxu0 %v3007
      %v3172 = vpop.f32.mrf.mxu0
      %v3173 = vadd.f32 0.0, %v3172
      %v3174 = vpop.f32.mrf.mxu0
      %v3175 = vadd.f32 0.0, %v3174
      %3176 = vmatprep.mubr.f32.mxu0 0.0
      %3177 = vmatmul.mubr.f32.gmra.mxu0 %v3010
      %v3178 = vpop.f32.mrf.mxu0
      %v3179 = vadd.f32 0.0, %v3178
      %v3180 = vpop.f32.mrf.mxu0
      %v3181 = vadd.f32 0.0, %v3180
      %3182 = vmatprep.mubr.f32.mxu0 0.0
      %3183 = vmatmul.mubr.f32.gmra.mxu0 %v3013
      %v3184 = vpop.f32.mrf.mxu0
      %v3185 = vadd.f32 0.0, %v3184
      %v3186 = vpop.f32.mrf.mxu0
      %v3187 = vadd.f32 0.0, %v3186
      %3188 = vmatprep.mubr.f32.mxu0 0.0
      %3189 = vmatmul.mubr.f32.gmra.mxu0 %v3016
      %v3190 = vpop.f32.mrf.mxu0
      %v3191 = vadd.f32 0.0, %v3190
      %v3192 = vpop.f32.mrf.mxu0
      %v3193 = vadd.f32 0.0, %v3192
      %3194 = vmatprep.mubr.f32.mxu0 0.0
      %3195 = vmatmul.mubr.f32.gmra.mxu0 %v3019
      %v3196 = vpop.f32.mrf.mxu0
      %v3197 = vadd.f32 0.0, %v3196
      %v3198 = vpop.f32.mrf.mxu0
      %v3199 = vadd.f32 0.0, %v3198
      %3200 = vmatprep.mubr.f32.mxu0 0.0
      %3201 = vmatmul.mubr.f32.gmra.mxu0 %v3022
      %v3202 = vpop.f32.mrf.mxu0
      %v3203 = vadd.f32 0.0, %v3202
      %v3204 = vpop.f32.mrf.mxu0
      %v3205 = vadd.f32 0.0, %v3204
      %3206 = vmatprep.mubr.f32.mxu0 0.0
      %3207 = vmatmul.mubr.f32.gmra.mxu0 %v3025
      %v3208 = vpop.f32.mrf.mxu0
      %v3209 = vadd.f32 0.0, %v3208
      %v3210 = vpop.f32.mrf.mxu0
      %v3211 = vadd.f32 0.0, %v3210
      %3212 = vmatprep.mubr.f32.mxu0 0.0
      %3213 = vmatmul.mubr.f32.gmra.mxu0 %v3028
      %v3214 = vpop.f32.mrf.mxu0
      %v3215 = vadd.f32 0.0, %v3214
      %v3216 = vpop.f32.mrf.mxu0
      %v3217 = vadd.f32 0.0, %v3216
      %3218 = vmatprep.mubr.f32.mxu0 0.0
      %3219 = vmatmul.mubr.f32.gmra.mxu0 %v3031
      %v3220 = vpop.f32.mrf.mxu0
      %v3221 = vadd.f32 0.0, %v3220
      %v3222 = vpop.f32.mrf.mxu0
      %v3223 = vadd.f32 0.0, %v3222
      %3224 = vmatprep.mubr.f32.mxu0 0.0
      %3225 = vmatmul.mubr.f32.gmra.mxu0 %v3034
      %v3226 = vpop.f32.mrf.mxu0
      %v3227 = vadd.f32 0.0, %v3226
      %v3228 = vpop.f32.mrf.mxu0
      %v3229 = vadd.f32 0.0, %v3228
      %3230 = vmatprep.mubr.f32.mxu0 0.0
      %3231 = vmatmul.mubr.f32.gmra.mxu0 %v3037
      %v3232 = vpop.f32.mrf.mxu0
      %v3233 = vadd.f32 0.0, %v3232
      %v3234 = vpop.f32.mrf.mxu0
      %v3235 = vadd.f32 0.0, %v3234
      %3236 = vmatprep.mubr.f32.mxu0 0.0
      %3237 = vmatmul.mubr.f32.gmra.mxu0 %v3040
      %v3238 = vpop.f32.mrf.mxu0
      %v3239 = vadd.f32 0.0, %v3238
      %v3240 = vpop.f32.mrf.mxu0
      %v3241 = vadd.f32 0.0, %v3240
      %3242 = vmatprep.mubr.f32.mxu0 0.0
      %3243 = vmatmul.mubr.f32.gmra.mxu0 %v3043
      %v3244 = vpop.f32.mrf.mxu0
      %v3245 = vadd.f32 0.0, %v3244
      %v3246 = vpop.f32.mrf.mxu0
      %v3247 = vadd.f32 0.0, %v3246
      %3248 = vmatprep.mubr.f32.mxu0 0.0
      %3249 = vmatmul.mubr.f32.gmra.mxu0 %v3046
      %v3250 = vpop.f32.mrf.mxu0
      %v3251 = vadd.f32 0.0, %v3250
      %v3252 = vpop.f32.mrf.mxu0
      %v3253 = vadd.f32 0.0, %v3252
      %3254 = vmatprep.mubr.f32.mxu0 0.0
      %3255 = vmatmul.mubr.f32.gmra.mxu0 %v3049
      %v3256 = vpop.f32.mrf.mxu0
      %v3257 = vadd.f32 0.0, %v3256
      %v3258 = vpop.f32.mrf.mxu0
      %v3259 = vadd.f32 0.0, %v3258
      %3260 = vmatprep.mubr.f32.mxu0 0.0
      %3261 = vmatmul.mubr.f32.gmra.mxu0 %v3052
      %v3262 = vpop.f32.mrf.mxu0
      %v3263 = vadd.f32 0.0, %v3262
      %v3264 = vpop.f32.mrf.mxu0
      %v3265 = vadd.f32 0.0, %v3264
      %3266 = vmatprep.mubr.f32.mxu0 0.0
      %3267 = vmatmul.mubr.f32.gmra.mxu0 %v3055
      %v3268 = vpop.f32.mrf.mxu0
      %v3269 = vadd.f32 0.0, %v3268
      %v3270 = vpop.f32.mrf.mxu0
      %v3271 = vadd.f32 0.0, %v3270
      %3272 = vmatprep.mubr.f32.mxu0 0.0
      %3273 = vmatmul.mubr.f32.gmra.mxu0 %v3058
      %v3274 = vpop.f32.mrf.mxu0
      %v3275 = vadd.f32 0.0, %v3274
      %v3276 = vpop.f32.mrf.mxu0
      %v3277 = vadd.f32 0.0, %v3276
      %3278 = vmatprep.mubr.f32.mxu0 0.0
      %3279 = vmatmul.mubr.f32.gmra.mxu0 %v3061
      %v3280 = vpop.f32.mrf.mxu0
      %v3281 = vadd.f32 0.0, %v3280
      %v3282 = vpop.f32.mrf.mxu0
      %v3283 = vadd.f32 0.0, %v3282
      %3284 = vmatprep.mubr.f32.mxu0 0.0
      %3285 = vmatmul.mubr.f32.gmra.mxu0 %v3064
      %v3286 = vpop.f32.mrf.mxu0
      %v3287 = vadd.f32 0.0, %v3286
      %v3288 = vpop.f32.mrf.mxu0
      %v3289 = vadd.f32 0.0, %v3288
      %3290 = vmatprep.mubr.f32.mxu0 0.0
      %3291 = vmatmul.mubr.f32.gmra.mxu0 %v3067
      %v3292 = vpop.f32.mrf.mxu0
      %v3293 = vadd.f32 0.0, %v3292
      %v3294 = vpop.f32.mrf.mxu0
      %v3295 = vadd.f32 0.0, %v3294
      %3296 = vmatprep.mubr.f32.mxu0 0.0
      %3297 = vmatmul.mubr.f32.gmra.mxu0 %v3070
      %v3298 = vpop.f32.mrf.mxu0
      %v3299 = vadd.f32 0.0, %v3298
      %v3300 = vpop.f32.mrf.mxu0
      %v3301 = vadd.f32 0.0, %v3300
      %3302 = vmatprep.mubr.f32.mxu0 0.0
      %3303 = vmatmul.mubr.f32.gmra.mxu0 %v3073
      %v3304 = vpop.f32.mrf.mxu0
      %v3305 = vadd.f32 0.0, %v3304
      %v3306 = vpop.f32.mrf.mxu0
      %v3307 = vadd.f32 0.0, %v3306
      %3308 = vmatprep.mubr.f32.mxu0 0.0
      %3309 = vmatmul.mubr.f32.gmra.mxu0 %v3076
      %v3310 = vpop.f32.mrf.mxu0
      %v3311 = vadd.f32 0.0, %v3310
      %v3312 = vpop.f32.mrf.mxu0
      %v3313 = vadd.f32 0.0, %v3312
      %3314 = vmatprep.mubr.f32.mxu0 0.0
      %3315 = vmatmul.mubr.f32.gmra.mxu0 %v3079
      %v3316 = vpop.f32.mrf.mxu0
      %v3317 = vadd.f32 0.0, %v3316
      %v3318 = vpop.f32.mrf.mxu0
      %v3319 = vadd.f32 0.0, %v3318
      %3320 = vmatprep.mubr.f32.mxu0 0.0
      %3321 = vmatmul.mubr.f32.gmra.mxu0 %v3082
      %v3322 = vpop.f32.mrf.mxu0
      %v3323 = vadd.f32 0.0, %v3322
      %v3324 = vpop.f32.mrf.mxu0
      %v3325 = vadd.f32 0.0, %v3324
      %3326 = vmatprep.mubr.f32.mxu0 0.0
      %3327 = vmatmul.mubr.f32.gmra.mxu0 %v3085
      %v3328 = vpop.f32.mrf.mxu0
      %v3329 = vadd.f32 0.0, %v3328
      %v3330 = vpop.f32.mrf.mxu0
      %v3331 = vadd.f32 0.0, %v3330
      %3332 = vmatprep.mubr.f32.mxu0 0.0
      %3333 = vmatmul.mubr.f32.gmra.mxu0 %v3088
      %v3334 = vpop.f32.mrf.mxu0
      %v3335 = vadd.f32 0.0, %v3334
      %v3336 = vpop.f32.mrf.mxu0
      %v3337 = vadd.f32 0.0, %v3336
      %3338 = vmatprep.mubr.f32.mxu0 0.0
      %3339 = vmatmul.mubr.f32.gmra.mxu0 %v3091
      %v3340 = vpop.f32.mrf.mxu0
      %v3341 = vadd.f32 0.0, %v3340
      %v3342 = vpop.f32.mrf.mxu0
      %v3343 = vadd.f32 0.0, %v3342
      %3344 = vmatprep.mubr.f32.mxu0 0.0
      %3345 = vmatmul.mubr.f32.gmra.mxu0 %v3094
      %v3346 = vpop.f32.mrf.mxu0
      %v3347 = vadd.f32 0.0, %v3346
      %v3348 = vpop.f32.mrf.mxu0
      %v3349 = vadd.f32 0.0, %v3348
      %3350 = vmatprep.mubr.f32.mxu0 0.0
      %3351 = vmatmul.mubr.f32.gmra.mxu0 %v3097
      %v3352 = vpop.f32.mrf.mxu0
      %v3353 = vadd.f32 0.0, %v3352
      %v3354 = vpop.f32.mrf.mxu0
      %v3355 = vadd.f32 0.0, %v3354
      %3356 = vmatprep.mubr.f32.mxu0 0.0
      %3357 = vmatmul.mubr.f32.gmra.mxu0 %v3100
      %v3358 = vpop.f32.mrf.mxu0
      %v3359 = vadd.f32 0.0, %v3358
      %v3360 = vpop.f32.mrf.mxu0
      %v3361 = vadd.f32 0.0, %v3360
      %3362 = vdwg.mxu0
      %v3363 = vld [vmem:[%s9] sm:$0x3f]
      %vm3366 = vcmask 1043456
      %v3367 = vrot.slane %v2922, 4
      %v3368 = vrot.slane %v2928, 4
      %v3369 = vsel %vm3366, %v3367, %v3368
      %v3370 = vrot.slane %v2924, 4
      %v3371 = vrot.slane %v2930, 4
      %v3372 = vsel %vm3366, %v3370, %v3371
      %v3374 = vsel %vm518, %v3363, 0
      %v3376 = vsel %vm528, %v3369, 0
      %v3378 = vsel %vm528, %v3372, 0
      %3380 = vmatprep.subr.mxu0 0.0
      %3381 = vmatpush1.msra.mxu0 0.0
      %3382 = vmatprep.subr.mxu0 0.0
      %3383 = vmatpush1.msra.mxu0 0.0
      %3384 = vmatprep.subr.mxu0 0.0
      %3385 = vmatpush1.msra.mxu0 0.0
      %3386 = vmatprep.subr.mxu0 0.0
      %3387 = vmatpush1.msra.mxu0 0.0
      %3388 = vmatprep.subr.mxu0 0.0
      %3389 = vmatpush1.msra.mxu0 0.0
      %3390 = vmatprep.subr.mxu0 0.0
      %3391 = vmatpush1.msra.mxu0 0.0
      %3392 = vmatprep.subr.mxu0 0.0
      %3393 = vmatpush1.msra.mxu0 0.0
      %3394 = vmatprep.subr.mxu0 0.0
      %3395 = vmatpush1.msra.mxu0 0.0
      %3396 = vmatprep.subr.mxu0 0.0
      %3397 = vmatpush1.msra.mxu0 0.0
      %3398 = vmatprep.subr.mxu0 0.0
      %3399 = vmatpush1.msra.mxu0 0.0
      %3400 = vmatprep.subr.mxu0 0.0
      %3401 = vmatpush1.msra.mxu0 0.0
      %3402 = vmatprep.subr.mxu0 0.0
      %3403 = vmatpush1.msra.mxu0 0.0
      %3404 = vmatprep.subr.mxu0 0.0
      %3405 = vmatpush1.msra.mxu0 0.0
      %3406 = vmatprep.subr.mxu0 0.0
      %3407 = vmatpush1.msra.mxu0 0.0
      %3408 = vmatprep.subr.mxu0 0.0
      %3409 = vmatpush1.msra.mxu0 0.0
      %3410 = vmatprep.subr.mxu0 %v3378
      %3411 = vmatpush1.msra.mxu0 %v3376
      %3412 = vmatprep.subr.mxu0 0.0
      %3413 = vmatpush2.msra.mxu0 0.0
      %3414 = vmatprep.subr.mxu0 0.0
      %3415 = vmatpush2.msra.mxu0 0.0
      %3416 = vmatprep.subr.mxu0 0.0
      %3417 = vmatpush2.msra.mxu0 0.0
      %3418 = vmatprep.subr.mxu0 0.0
      %3419 = vmatpush2.msra.mxu0 0.0
      %3420 = vmatprep.subr.mxu0 0.0
      %3421 = vmatpush2.msra.mxu0 0.0
      %3422 = vmatprep.subr.mxu0 0.0
      %3423 = vmatpush2.msra.mxu0 0.0
      %3424 = vmatprep.subr.mxu0 0.0
      %3425 = vmatpush2.msra.mxu0 0.0
      %3426 = vmatprep.subr.mxu0 0.0
      %3427 = vmatpush2.msra.mxu0 0.0
      %3428 = vmatprep.subr.mxu0 0.0
      %3429 = vmatpush2.msra.mxu0 0.0
      %3430 = vmatprep.subr.mxu0 0.0
      %3431 = vmatpush2.msra.mxu0 0.0
      %3432 = vmatprep.subr.mxu0 0.0
      %3433 = vmatpush2.msra.mxu0 0.0
      %3434 = vmatprep.subr.mxu0 0.0
      %3435 = vmatpush2.msra.mxu0 0.0
      %3436 = vmatprep.subr.mxu0 0.0
      %3437 = vmatpush2.msra.mxu0 0.0
      %3438 = vmatprep.subr.mxu0 0.0
      %3439 = vmatpush2.msra.mxu0 0.0
      %3440 = vmatprep.subr.mxu0 0.0
      %3441 = vmatpush2.msra.mxu0 0.0
      %3442 = vmatprep.subr.mxu0 0.0
      %3443 = vmatpush2.msra.mxu0 0.0
      %3444 = vmatprep.mubr.f32.mxu0 0.0
      %3445 = vmatmul.mubr.f32.gmra.mxu0 %v3374
      %v3446 = vpop.f32.mrf.mxu0
      %v3447 = vadd.f32 0.0, %v3446
      %v3448 = vpop.f32.mrf.mxu0
      %v3449 = vadd.f32 0.0, %v3448
      %3450 = vdwg.mxu0
      %3451 = vrot.lane.b32.xlu0 %v3363, 122
      %v3452 = vpop.permute.xlu0 %3451
      %v3453 = vsel %vm518, %v3452, 0
      %3455 = vmatprep.subr.mxu0 0.0
      %3456 = vmatpush1.msra.mxu0 0.0
      %3457 = vmatprep.subr.mxu0 0.0
      %3458 = vmatpush1.msra.mxu0 0.0
      %3459 = vmatprep.subr.mxu0 0.0
      %3460 = vmatpush1.msra.mxu0 0.0
      %3461 = vmatprep.subr.mxu0 0.0
      %3462 = vmatpush1.msra.mxu0 0.0
      %3463 = vmatprep.subr.mxu0 0.0
      %3464 = vmatpush1.msra.mxu0 0.0
      %3465 = vmatprep.subr.mxu0 0.0
      %3466 = vmatpush1.msra.mxu0 0.0
      %3467 = vmatprep.subr.mxu0 0.0
      %3468 = vmatpush1.msra.mxu0 0.0
      %3469 = vmatprep.subr.mxu0 0.0
      %3470 = vmatpush1.msra.mxu0 0.0
      %3471 = vmatprep.subr.mxu0 0.0
      %3472 = vmatpush1.msra.mxu0 0.0
      %3473 = vmatprep.subr.mxu0 0.0
      %3474 = vmatpush1.msra.mxu0 0.0
      %3475 = vmatprep.subr.mxu0 0.0
      %3476 = vmatpush1.msra.mxu0 0.0
      %3477 = vmatprep.subr.mxu0 0.0
      %3478 = vmatpush1.msra.mxu0 0.0
      %3479 = vmatprep.subr.mxu0 0.0
      %3480 = vmatpush1.msra.mxu0 0.0
      %3481 = vmatprep.subr.mxu0 0.0
      %3482 = vmatpush1.msra.mxu0 0.0
      %3483 = vmatprep.subr.mxu0 0.0
      %3484 = vmatpush1.msra.mxu0 0.0
      %3485 = vmatprep.subr.mxu0 %v3378
      %3486 = vmatpush1.msra.mxu0 %v3376
      %3487 = vmatprep.subr.mxu0 0.0
      %3488 = vmatpush2.msra.mxu0 0.0
      %3489 = vmatprep.subr.mxu0 0.0
      %3490 = vmatpush2.msra.mxu0 0.0
      %3491 = vmatprep.subr.mxu0 0.0
      %3492 = vmatpush2.msra.mxu0 0.0
      %3493 = vmatprep.subr.mxu0 0.0
      %3494 = vmatpush2.msra.mxu0 0.0
      %3495 = vmatprep.subr.mxu0 0.0
      %3496 = vmatpush2.msra.mxu0 0.0
      %3497 = vmatprep.subr.mxu0 0.0
      %3498 = vmatpush2.msra.mxu0 0.0
      %3499 = vmatprep.subr.mxu0 0.0
      %3500 = vmatpush2.msra.mxu0 0.0
      %3501 = vmatprep.subr.mxu0 0.0
      %3502 = vmatpush2.msra.mxu0 0.0
      %3503 = vmatprep.subr.mxu0 0.0
      %3504 = vmatpush2.msra.mxu0 0.0
      %3505 = vmatprep.subr.mxu0 0.0
      %3506 = vmatpush2.msra.mxu0 0.0
      %3507 = vmatprep.subr.mxu0 0.0
      %3508 = vmatpush2.msra.mxu0 0.0
      %3509 = vmatprep.subr.mxu0 0.0
      %3510 = vmatpush2.msra.mxu0 0.0
      %3511 = vmatprep.subr.mxu0 0.0
      %3512 = vmatpush2.msra.mxu0 0.0
      %3513 = vmatprep.subr.mxu0 0.0
      %3514 = vmatpush2.msra.mxu0 0.0
      %3515 = vmatprep.subr.mxu0 0.0
      %3516 = vmatpush2.msra.mxu0 0.0
      %3517 = vmatprep.subr.mxu0 0.0
      %3518 = vmatpush2.msra.mxu0 0.0
      %3519 = vmatprep.mubr.f32.mxu0 0.0
      %3520 = vmatmul.mubr.f32.gmra.mxu0 %v3453
      %v3521 = vpop.f32.mrf.mxu0
      %v3522 = vadd.f32 0.0, %v3521
      %v3523 = vpop.f32.mrf.mxu0
      %v3524 = vadd.f32 0.0, %v3523
      %3525 = vdwg.mxu0
      %3526 = vrot.lane.b32.xlu0 %v3363, 116
      %v3527 = vpop.permute.xlu0 %3526
      %v3528 = vsel %vm518, %v3527, 0
      %3530 = vmatprep.subr.mxu0 0.0
      %3531 = vmatpush1.msra.mxu0 0.0
      %3532 = vmatprep.subr.mxu0 0.0
      %3533 = vmatpush1.msra.mxu0 0.0
      %3534 = vmatprep.subr.mxu0 0.0
      %3535 = vmatpush1.msra.mxu0 0.0
      %3536 = vmatprep.subr.mxu0 0.0
      %3537 = vmatpush1.msra.mxu0 0.0
      %3538 = vmatprep.subr.mxu0 0.0
      %3539 = vmatpush1.msra.mxu0 0.0
      %3540 = vmatprep.subr.mxu0 0.0
      %3541 = vmatpush1.msra.mxu0 0.0
      %3542 = vmatprep.subr.mxu0 0.0
      %3543 = vmatpush1.msra.mxu0 0.0
      %3544 = vmatprep.subr.mxu0 0.0
      %3545 = vmatpush1.msra.mxu0 0.0
      %3546 = vmatprep.subr.mxu0 0.0
      %3547 = vmatpush1.msra.mxu0 0.0
      %3548 = vmatprep.subr.mxu0 0.0
      %3549 = vmatpush1.msra.mxu0 0.0
      %3550 = vmatprep.subr.mxu0 0.0
      %3551 = vmatpush1.msra.mxu0 0.0
      %3552 = vmatprep.subr.mxu0 0.0
      %3553 = vmatpush1.msra.mxu0 0.0
      %3554 = vmatprep.subr.mxu0 0.0
      %3555 = vmatpush1.msra.mxu0 0.0
      %3556 = vmatprep.subr.mxu0 0.0
      %3557 = vmatpush1.msra.mxu0 0.0
      %3558 = vmatprep.subr.mxu0 0.0
      %3559 = vmatpush1.msra.mxu0 0.0
      %3560 = vmatprep.subr.mxu0 %v3378
      %3561 = vmatpush1.msra.mxu0 %v3376
      %3562 = vmatprep.subr.mxu0 0.0
      %3563 = vmatpush2.msra.mxu0 0.0
      %3564 = vmatprep.subr.mxu0 0.0
      %3565 = vmatpush2.msra.mxu0 0.0
      %3566 = vmatprep.subr.mxu0 0.0
      %3567 = vmatpush2.msra.mxu0 0.0
      %3568 = vmatprep.subr.mxu0 0.0
      %3569 = vmatpush2.msra.mxu0 0.0
      %3570 = vmatprep.subr.mxu0 0.0
      %3571 = vmatpush2.msra.mxu0 0.0
      %3572 = vmatprep.subr.mxu0 0.0
      %3573 = vmatpush2.msra.mxu0 0.0
      %3574 = vmatprep.subr.mxu0 0.0
      %3575 = vmatpush2.msra.mxu0 0.0
      %3576 = vmatprep.subr.mxu0 0.0
      %3577 = vmatpush2.msra.mxu0 0.0
      %3578 = vmatprep.subr.mxu0 0.0
      %3579 = vmatpush2.msra.mxu0 0.0
      %3580 = vmatprep.subr.mxu0 0.0
      %3581 = vmatpush2.msra.mxu0 0.0
      %3582 = vmatprep.subr.mxu0 0.0
      %3583 = vmatpush2.msra.mxu0 0.0
      %3584 = vmatprep.subr.mxu0 0.0
      %3585 = vmatpush2.msra.mxu0 0.0
      %3586 = vmatprep.subr.mxu0 0.0
      %3587 = vmatpush2.msra.mxu0 0.0
      %3588 = vmatprep.subr.mxu0 0.0
      %3589 = vmatpush2.msra.mxu0 0.0
      %3590 = vmatprep.subr.mxu0 0.0
      %3591 = vmatpush2.msra.mxu0 0.0
      %3592 = vmatprep.subr.mxu0 0.0
      %3593 = vmatpush2.msra.mxu0 0.0
      %3594 = vmatprep.mubr.f32.mxu0 0.0
      %3595 = vmatmul.mubr.f32.gmra.mxu0 %v3528
      %v3596 = vpop.f32.mrf.mxu0
      %v3597 = vadd.f32 0.0, %v3596
      %v3598 = vpop.f32.mrf.mxu0
      %v3599 = vadd.f32 0.0, %v3598
      %3600 = vdwg.mxu0
      %3601 = vrot.lane.b32.xlu0 %v3363, 110
      %v3602 = vpop.permute.xlu0 %3601
      %v3603 = vsel %vm518, %v3602, 0
      %3605 = vmatprep.subr.mxu0 0.0
      %3606 = vmatpush1.msra.mxu0 0.0
      %3607 = vmatprep.subr.mxu0 0.0
      %3608 = vmatpush1.msra.mxu0 0.0
      %3609 = vmatprep.subr.mxu0 0.0
      %3610 = vmatpush1.msra.mxu0 0.0
      %3611 = vmatprep.subr.mxu0 0.0
      %3612 = vmatpush1.msra.mxu0 0.0
      %3613 = vmatprep.subr.mxu0 0.0
      %3614 = vmatpush1.msra.mxu0 0.0
      %3615 = vmatprep.subr.mxu0 0.0
      %3616 = vmatpush1.msra.mxu0 0.0
      %3617 = vmatprep.subr.mxu0 0.0
      %3618 = vmatpush1.msra.mxu0 0.0
      %3619 = vmatprep.subr.mxu0 0.0
      %3620 = vmatpush1.msra.mxu0 0.0
      %3621 = vmatprep.subr.mxu0 0.0
      %3622 = vmatpush1.msra.mxu0 0.0
      %3623 = vmatprep.subr.mxu0 0.0
      %3624 = vmatpush1.msra.mxu0 0.0
      %3625 = vmatprep.subr.mxu0 0.0
      %3626 = vmatpush1.msra.mxu0 0.0
      %3627 = vmatprep.subr.mxu0 0.0
      %3628 = vmatpush1.msra.mxu0 0.0
      %3629 = vmatprep.subr.mxu0 0.0
      %3630 = vmatpush1.msra.mxu0 0.0
      %3631 = vmatprep.subr.mxu0 0.0
      %3632 = vmatpush1.msra.mxu0 0.0
      %3633 = vmatprep.subr.mxu0 0.0
      %3634 = vmatpush1.msra.mxu0 0.0
      %3635 = vmatprep.subr.mxu0 %v3378
      %3636 = vmatpush1.msra.mxu0 %v3376
      %3637 = vmatprep.subr.mxu0 0.0
      %3638 = vmatpush2.msra.mxu0 0.0
      %3639 = vmatprep.subr.mxu0 0.0
      %3640 = vmatpush2.msra.mxu0 0.0
      %3641 = vmatprep.subr.mxu0 0.0
      %3642 = vmatpush2.msra.mxu0 0.0
      %3643 = vmatprep.subr.mxu0 0.0
      %3644 = vmatpush2.msra.mxu0 0.0
      %3645 = vmatprep.subr.mxu0 0.0
      %3646 = vmatpush2.msra.mxu0 0.0
      %3647 = vmatprep.subr.mxu0 0.0
      %3648 = vmatpush2.msra.mxu0 0.0
      %3649 = vmatprep.subr.mxu0 0.0
      %3650 = vmatpush2.msra.mxu0 0.0
      %3651 = vmatprep.subr.mxu0 0.0
      %3652 = vmatpush2.msra.mxu0 0.0
      %3653 = vmatprep.subr.mxu0 0.0
      %3654 = vmatpush2.msra.mxu0 0.0
      %3655 = vmatprep.subr.mxu0 0.0
      %3656 = vmatpush2.msra.mxu0 0.0
      %3657 = vmatprep.subr.mxu0 0.0
      %3658 = vmatpush2.msra.mxu0 0.0
      %3659 = vmatprep.subr.mxu0 0.0
      %3660 = vmatpush2.msra.mxu0 0.0
      %3661 = vmatprep.subr.mxu0 0.0
      %3662 = vmatpush2.msra.mxu0 0.0
      %3663 = vmatprep.subr.mxu0 0.0
      %3664 = vmatpush2.msra.mxu0 0.0
      %3665 = vmatprep.subr.mxu0 0.0
      %3666 = vmatpush2.msra.mxu0 0.0
      %3667 = vmatprep.subr.mxu0 0.0
      %3668 = vmatpush2.msra.mxu0 0.0
      %3669 = vmatprep.mubr.f32.mxu0 0.0
      %3670 = vmatmul.mubr.f32.gmra.mxu0 %v3603
      %v3671 = vpop.f32.mrf.mxu0
      %v3672 = vadd.f32 0.0, %v3671
      %v3673 = vpop.f32.mrf.mxu0
      %v3674 = vadd.f32 0.0, %v3673
      %3675 = vdwg.mxu0
      %v3676 = vlaneseq
      %v3677 = vand.u32 %v3676, 127
      %v3678 = vadd.s32 %v3677, 128
      %v3679 = vmax.f32 %v3173, %v3175
      %3680 = vmax.xlane.f32.xlu0 %v3679
      %v3681 = vpop.xlane.xlu0 %3680
      %v3682 = vmax.f32 %v3179, %v3181
      %3683 = vmax.xlane.f32.xlu0 %v3682
      %v3684 = vpop.xlane.xlu0 %3683
      %v3685 = vmax.f32 %v3185, %v3187
      %3686 = vmax.xlane.f32.xlu0 %v3685
      %v3687 = vpop.xlane.xlu0 %3686
      %v3688 = vmax.f32 %v3191, %v3193
      %3689 = vmax.xlane.f32.xlu0 %v3688
      %v3690 = vpop.xlane.xlu0 %3689
      %v3691 = vmax.f32 %v3197, %v3199
      %3692 = vmax.xlane.f32.xlu0 %v3691
      %v3693 = vpop.xlane.xlu0 %3692
      %v3694 = vmax.f32 %v3203, %v3205
      %3695 = vmax.xlane.f32.xlu0 %v3694
      %v3696 = vpop.xlane.xlu0 %3695
      %v3697 = vmax.f32 %v3209, %v3211
      %3698 = vmax.xlane.f32.xlu0 %v3697
      %v3699 = vpop.xlane.xlu0 %3698
      %v3700 = vmax.f32 %v3215, %v3217
      %3701 = vmax.xlane.f32.xlu0 %v3700
      %v3702 = vpop.xlane.xlu0 %3701
      %v3703 = vmax.f32 %v3221, %v3223
      %3704 = vmax.xlane.f32.xlu0 %v3703
      %v3705 = vpop.xlane.xlu0 %3704
      %v3706 = vmax.f32 %v3227, %v3229
      %3707 = vmax.xlane.f32.xlu0 %v3706
      %v3708 = vpop.xlane.xlu0 %3707
      %v3709 = vmax.f32 %v3233, %v3235
      %3710 = vmax.xlane.f32.xlu0 %v3709
      %v3711 = vpop.xlane.xlu0 %3710
      %v3712 = vmax.f32 %v3239, %v3241
      %3713 = vmax.xlane.f32.xlu0 %v3712
      %v3714 = vpop.xlane.xlu0 %3713
      %v3715 = vmax.f32 %v3245, %v3247
      %3716 = vmax.xlane.f32.xlu0 %v3715
      %v3717 = vpop.xlane.xlu0 %3716
      %v3718 = vmax.f32 %v3251, %v3253
      %3719 = vmax.xlane.f32.xlu0 %v3718
      %v3720 = vpop.xlane.xlu0 %3719
      %v3721 = vmax.f32 %v3257, %v3259
      %3722 = vmax.xlane.f32.xlu0 %v3721
      %v3723 = vpop.xlane.xlu0 %3722
      %v3724 = vmax.f32 %v3263, %v3265
      %3725 = vmax.xlane.f32.xlu0 %v3724
      %v3726 = vpop.xlane.xlu0 %3725
      %v3727 = vmax.f32 %v3269, %v3271
      %3728 = vmax.xlane.f32.xlu0 %v3727
      %v3729 = vpop.xlane.xlu0 %3728
      %v3730 = vmax.f32 %v3275, %v3277
      %3731 = vmax.xlane.f32.xlu0 %v3730
      %v3732 = vpop.xlane.xlu0 %3731
      %v3733 = vmax.f32 %v3281, %v3283
      %3734 = vmax.xlane.f32.xlu0 %v3733
      %v3735 = vpop.xlane.xlu0 %3734
      %v3736 = vmax.f32 %v3287, %v3289
      %3737 = vmax.xlane.f32.xlu0 %v3736
      %v3738 = vpop.xlane.xlu0 %3737
      %v3739 = vmax.f32 %v3293, %v3295
      %3740 = vmax.xlane.f32.xlu0 %v3739
      %v3741 = vpop.xlane.xlu0 %3740
      %v3742 = vmax.f32 %v3299, %v3301
      %3743 = vmax.xlane.f32.xlu0 %v3742
      %v3744 = vpop.xlane.xlu0 %3743
      %v3745 = vmax.f32 %v3305, %v3307
      %3746 = vmax.xlane.f32.xlu0 %v3745
      %v3747 = vpop.xlane.xlu0 %3746
      %v3748 = vmax.f32 %v3311, %v3313
      %3749 = vmax.xlane.f32.xlu0 %v3748
      %v3750 = vpop.xlane.xlu0 %3749
      %v3751 = vmax.f32 %v3317, %v3319
      %3752 = vmax.xlane.f32.xlu0 %v3751
      %v3753 = vpop.xlane.xlu0 %3752
      %v3754 = vmax.f32 %v3323, %v3325
      %3755 = vmax.xlane.f32.xlu0 %v3754
      %v3756 = vpop.xlane.xlu0 %3755
      %v3757 = vmax.f32 %v3329, %v3331
      %3758 = vmax.xlane.f32.xlu0 %v3757
      %v3759 = vpop.xlane.xlu0 %3758
      %v3760 = vmax.f32 %v3335, %v3337
      %3761 = vmax.xlane.f32.xlu0 %v3760
      %v3762 = vpop.xlane.xlu0 %3761
      %v3763 = vmax.f32 %v3341, %v3343
      %3764 = vmax.xlane.f32.xlu0 %v3763
      %v3765 = vpop.xlane.xlu0 %3764
      %v3766 = vmax.f32 %v3347, %v3349
      %3767 = vmax.xlane.f32.xlu0 %v3766
      %v3768 = vpop.xlane.xlu0 %3767
      %v3769 = vmax.f32 %v3353, %v3355
      %3770 = vmax.xlane.f32.xlu0 %v3769
      %v3771 = vpop.xlane.xlu0 %3770
      %v3772 = vmax.f32 %v3359, %v3361
      %3773 = vmax.xlane.f32.xlu0 %v3772
      %v3774 = vpop.xlane.xlu0 %3773
      %vm3775 = vcmp.ge.f32.partialorder %v3173, %v3681
      %vm3776 = vcmp.ge.f32.partialorder %v3175, %v3681
      %vm3777 = vcmp.ge.f32.partialorder %v3179, %v3684
      %vm3778 = vcmp.ge.f32.partialorder %v3181, %v3684
      %vm3779 = vcmp.ge.f32.partialorder %v3185, %v3687
      %vm3780 = vcmp.ge.f32.partialorder %v3187, %v3687
      %vm3781 = vcmp.ge.f32.partialorder %v3191, %v3690
      %vm3782 = vcmp.ge.f32.partialorder %v3193, %v3690
      %vm3783 = vcmp.ge.f32.partialorder %v3197, %v3693
      %vm3784 = vcmp.ge.f32.partialorder %v3199, %v3693
      %vm3785 = vcmp.ge.f32.partialorder %v3203, %v3696
      %vm3786 = vcmp.ge.f32.partialorder %v3205, %v3696
      %vm3787 = vcmp.ge.f32.partialorder %v3209, %v3699
      %vm3788 = vcmp.ge.f32.partialorder %v3211, %v3699
      %vm3789 = vcmp.ge.f32.partialorder %v3215, %v3702
      %vm3790 = vcmp.ge.f32.partialorder %v3217, %v3702
      %vm3791 = vcmp.ge.f32.partialorder %v3221, %v3705
      %vm3792 = vcmp.ge.f32.partialorder %v3223, %v3705
      %vm3793 = vcmp.ge.f32.partialorder %v3227, %v3708
      %vm3794 = vcmp.ge.f32.partialorder %v3229, %v3708
      %vm3795 = vcmp.ge.f32.partialorder %v3233, %v3711
      %vm3796 = vcmp.ge.f32.partialorder %v3235, %v3711
      %vm3797 = vcmp.ge.f32.partialorder %v3239, %v3714
      %vm3798 = vcmp.ge.f32.partialorder %v3241, %v3714
      %vm3799 = vcmp.ge.f32.partialorder %v3245, %v3717
      %vm3800 = vcmp.ge.f32.partialorder %v3247, %v3717
      %vm3801 = vcmp.ge.f32.partialorder %v3251, %v3720
      %vm3802 = vcmp.ge.f32.partialorder %v3253, %v3720
      %vm3803 = vcmp.ge.f32.partialorder %v3257, %v3723
      %vm3804 = vcmp.ge.f32.partialorder %v3259, %v3723
      %vm3805 = vcmp.ge.f32.partialorder %v3263, %v3726
      %vm3806 = vcmp.ge.f32.partialorder %v3265, %v3726
      %vm3807 = vcmp.ge.f32.partialorder %v3269, %v3729
      %vm3808 = vcmp.ge.f32.partialorder %v3271, %v3729
      %vm3809 = vcmp.ge.f32.partialorder %v3275, %v3732
      %vm3810 = vcmp.ge.f32.partialorder %v3277, %v3732
      %vm3811 = vcmp.ge.f32.partialorder %v3281, %v3735
      %vm3812 = vcmp.ge.f32.partialorder %v3283, %v3735
      %vm3813 = vcmp.ge.f32.partialorder %v3287, %v3738
      %vm3814 = vcmp.ge.f32.partialorder %v3289, %v3738
      %vm3815 = vcmp.ge.f32.partialorder %v3293, %v3741
      %vm3816 = vcmp.ge.f32.partialorder %v3295, %v3741
      %vm3817 = vcmp.ge.f32.partialorder %v3299, %v3744
      %vm3818 = vcmp.ge.f32.partialorder %v3301, %v3744
      %vm3819 = vcmp.ge.f32.partialorder %v3305, %v3747
      %vm3820 = vcmp.ge.f32.partialorder %v3307, %v3747
      %vm3821 = vcmp.ge.f32.partialorder %v3311, %v3750
      %vm3822 = vcmp.ge.f32.partialorder %v3313, %v3750
      %vm3823 = vcmp.ge.f32.partialorder %v3317, %v3753
      %vm3824 = vcmp.ge.f32.partialorder %v3319, %v3753
      %vm3825 = vcmp.ge.f32.partialorder %v3323, %v3756
      %vm3826 = vcmp.ge.f32.partialorder %v3325, %v3756
      %vm3827 = vcmp.ge.f32.partialorder %v3329, %v3759
      %vm3828 = vcmp.ge.f32.partialorder %v3331, %v3759
      %vm3829 = vcmp.ge.f32.partialorder %v3335, %v3762
      %vm3830 = vcmp.ge.f32.partialorder %v3337, %v3762
      %vm3831 = vcmp.ge.f32.partialorder %v3341, %v3765
      %vm3832 = vcmp.ge.f32.partialorder %v3343, %v3765
      %vm3833 = vcmp.ge.f32.partialorder %v3347, %v3768
      %vm3834 = vcmp.ge.f32.partialorder %v3349, %v3768
      %vm3835 = vcmp.ge.f32.partialorder %v3353, %v3771
      %vm3836 = vcmp.ge.f32.partialorder %v3355, %v3771
      %vm3837 = vcmp.ge.f32.partialorder %v3359, %v3774
      %vm3838 = vcmp.ge.f32.partialorder %v3361, %v3774
      %v3839 = vsel %vm3775, %v3677, 256
      %v3840 = vsel %vm3776, %v3678, 256
      %v3841 = vsel %vm3777, %v3677, 256
      %v3842 = vsel %vm3778, %v3678, 256
      %v3843 = vsel %vm3779, %v3677, 256
      %v3844 = vsel %vm3780, %v3678, 256
      %v3845 = vsel %vm3781, %v3677, 256
      %v3846 = vsel %vm3782, %v3678, 256
      %v3847 = vsel %vm3783, %v3677, 256
      %v3848 = vsel %vm3784, %v3678, 256
      %v3849 = vsel %vm3785, %v3677, 256
      %v3850 = vsel %vm3786, %v3678, 256
      %v3851 = vsel %vm3787, %v3677, 256
      %v3852 = vsel %vm3788, %v3678, 256
      %v3853 = vsel %vm3789, %v3677, 256
      %v3854 = vsel %vm3790, %v3678, 256
      %v3855 = vsel %vm3791, %v3677, 256
      %v3856 = vsel %vm3792, %v3678, 256
      %v3857 = vsel %vm3793, %v3677, 256
      %v3858 = vsel %vm3794, %v3678, 256
      %v3859 = vsel %vm3795, %v3677, 256
      %v3860 = vsel %vm3796, %v3678, 256
      %v3861 = vsel %vm3797, %v3677, 256
      %v3862 = vsel %vm3798, %v3678, 256
      %v3863 = vsel %vm3799, %v3677, 256
      %v3864 = vsel %vm3800, %v3678, 256
      %v3865 = vsel %vm3801, %v3677, 256
      %v3866 = vsel %vm3802, %v3678, 256
      %v3867 = vsel %vm3803, %v3677, 256
      %v3868 = vsel %vm3804, %v3678, 256
      %v3869 = vsel %vm3805, %v3677, 256
      %v3870 = vsel %vm3806, %v3678, 256
      %v3871 = vsel %vm3807, %v3677, 256
      %v3872 = vsel %vm3808, %v3678, 256
      %v3873 = vsel %vm3809, %v3677, 256
      %v3874 = vsel %vm3810, %v3678, 256
      %v3875 = vsel %vm3811, %v3677, 256
      %v3876 = vsel %vm3812, %v3678, 256
      %v3877 = vsel %vm3813, %v3677, 256
      %v3878 = vsel %vm3814, %v3678, 256
      %v3879 = vsel %vm3815, %v3677, 256
      %v3880 = vsel %vm3816, %v3678, 256
      %v3881 = vsel %vm3817, %v3677, 256
      %v3882 = vsel %vm3818, %v3678, 256
      %v3883 = vsel %vm3819, %v3677, 256
      %v3884 = vsel %vm3820, %v3678, 256
      %v3885 = vsel %vm3821, %v3677, 256
      %v3886 = vsel %vm3822, %v3678, 256
      %v3887 = vsel %vm3823, %v3677, 256
      %v3888 = vsel %vm3824, %v3678, 256
      %v3889 = vsel %vm3825, %v3677, 256
      %v3890 = vsel %vm3826, %v3678, 256
      %v3891 = vsel %vm3827, %v3677, 256
      %v3892 = vsel %vm3828, %v3678, 256
      %v3893 = vsel %vm3829, %v3677, 256
      %v3894 = vsel %vm3830, %v3678, 256
      %v3895 = vsel %vm3831, %v3677, 256
      %v3896 = vsel %vm3832, %v3678, 256
      %v3897 = vsel %vm3833, %v3677, 256
      %v3898 = vsel %vm3834, %v3678, 256
      %v3899 = vsel %vm3835, %v3677, 256
      %v3900 = vsel %vm3836, %v3678, 256
      %v3901 = vsel %vm3837, %v3677, 256
      %v3902 = vsel %vm3838, %v3678, 256
      %vm3903 = vcmp.lt.s32.totalorder %v3839, %v3840
      %v3904 = vsel %vm3903, %v3839, %v3840
      %v3905 = vand.u32 %v3904, 65535
      %v3906 = vshra.s32 %v3904, 16
      %v3907 = vcvt.s32.f32 %v3905
      %v3908 = vcvt.s32.f32 %v3906
      %3909 = vmin.xlane.f32.xlu0 %v3908
      %v3910 = vpop.xlane.xlu0 %3909
      %vm3911 = vcmp.eq.f32.partialorder %v3908, %v3910
      %v3912 = vsel %vm3911, %v3907, inf
      %3913 = vmin.xlane.f32.xlu0 %v3912
      %v3914 = vpop.xlane.xlu0 %3913
      %v3915 = vcvt.f32.s32 %v3914
      %v3916 = vcvt.f32.s32 %v3910
      %v3917 = vshll.u32 %v3916, 16
      %v3918 = vadd.s32 %v3917, %v3915
      %vm3919 = vcmp.lt.s32.totalorder %v3841, %v3842
      %v3920 = vsel %vm3919, %v3841, %v3842
      %v3921 = vand.u32 %v3920, 65535
      %v3922 = vshra.s32 %v3920, 16
      %v3923 = vcvt.s32.f32 %v3921
      %v3924 = vcvt.s32.f32 %v3922
      %3925 = vmin.xlane.f32.xlu0 %v3924
      %v3926 = vpop.xlane.xlu0 %3925
      %vm3927 = vcmp.eq.f32.partialorder %v3924, %v3926
      %v3928 = vsel %vm3927, %v3923, inf
      %3929 = vmin.xlane.f32.xlu0 %v3928
      %v3930 = vpop.xlane.xlu0 %3929
      %v3931 = vcvt.f32.s32 %v3930
      %v3932 = vcvt.f32.s32 %v3926
      %v3933 = vshll.u32 %v3932, 16
      %v3934 = vadd.s32 %v3933, %v3931
      %vm3935 = vcmp.lt.s32.totalorder %v3843, %v3844
      %v3936 = vsel %vm3935, %v3843, %v3844
      %v3937 = vand.u32 %v3936, 65535
      %v3938 = vshra.s32 %v3936, 16
      %v3939 = vcvt.s32.f32 %v3937
      %v3940 = vcvt.s32.f32 %v3938
      %3941 = vmin.xlane.f32.xlu0 %v3940
      %v3942 = vpop.xlane.xlu0 %3941
      %vm3943 = vcmp.eq.f32.partialorder %v3940, %v3942
      %v3944 = vsel %vm3943, %v3939, inf
      %3945 = vmin.xlane.f32.xlu0 %v3944
      %v3946 = vpop.xlane.xlu0 %3945
      %v3947 = vcvt.f32.s32 %v3946
      %v3948 = vcvt.f32.s32 %v3942
      %v3949 = vshll.u32 %v3948, 16
      %v3950 = vadd.s32 %v3949, %v3947
      %vm3951 = vcmp.lt.s32.totalorder %v3845, %v3846
      %v3952 = vsel %vm3951, %v3845, %v3846
      %v3953 = vand.u32 %v3952, 65535
      %v3954 = vshra.s32 %v3952, 16
      %v3955 = vcvt.s32.f32 %v3953
      %v3956 = vcvt.s32.f32 %v3954
      %3957 = vmin.xlane.f32.xlu0 %v3956
      %v3958 = vpop.xlane.xlu0 %3957
      %vm3959 = vcmp.eq.f32.partialorder %v3956, %v3958
      %v3960 = vsel %vm3959, %v3955, inf
      %3961 = vmin.xlane.f32.xlu0 %v3960
      %v3962 = vpop.xlane.xlu0 %3961
      %v3963 = vcvt.f32.s32 %v3962
      %v3964 = vcvt.f32.s32 %v3958
      %v3965 = vshll.u32 %v3964, 16
      %v3966 = vadd.s32 %v3965, %v3963
      %vm3967 = vcmp.lt.s32.totalorder %v3847, %v3848
      %v3968 = vsel %vm3967, %v3847, %v3848
      %v3969 = vand.u32 %v3968, 65535
      %v3970 = vshra.s32 %v3968, 16
      %v3971 = vcvt.s32.f32 %v3969
      %v3972 = vcvt.s32.f32 %v3970
      %3973 = vmin.xlane.f32.xlu0 %v3972
      %v3974 = vpop.xlane.xlu0 %3973
      %vm3975 = vcmp.eq.f32.partialorder %v3972, %v3974
      %v3976 = vsel %vm3975, %v3971, inf
      %3977 = vmin.xlane.f32.xlu0 %v3976
      %v3978 = vpop.xlane.xlu0 %3977
      %v3979 = vcvt.f32.s32 %v3978
      %v3980 = vcvt.f32.s32 %v3974
      %v3981 = vshll.u32 %v3980, 16
      %v3982 = vadd.s32 %v3981, %v3979
      %vm3983 = vcmp.lt.s32.totalorder %v3849, %v3850
      %v3984 = vsel %vm3983, %v3849, %v3850
      %v3985 = vand.u32 %v3984, 65535
      %v3986 = vshra.s32 %v3984, 16
      %v3987 = vcvt.s32.f32 %v3985
      %v3988 = vcvt.s32.f32 %v3986
      %3989 = vmin.xlane.f32.xlu0 %v3988
      %v3990 = vpop.xlane.xlu0 %3989
      %vm3991 = vcmp.eq.f32.partialorder %v3988, %v3990
      %v3992 = vsel %vm3991, %v3987, inf
      %3993 = vmin.xlane.f32.xlu0 %v3992
      %v3994 = vpop.xlane.xlu0 %3993
      %v3995 = vcvt.f32.s32 %v3994
      %v3996 = vcvt.f32.s32 %v3990
      %v3997 = vshll.u32 %v3996, 16
      %v3998 = vadd.s32 %v3997, %v3995
      %vm3999 = vcmp.lt.s32.totalorder %v3851, %v3852
      %v4000 = vsel %vm3999, %v3851, %v3852
      %v4001 = vand.u32 %v4000, 65535
      %v4002 = vshra.s32 %v4000, 16
      %v4003 = vcvt.s32.f32 %v4001
      %v4004 = vcvt.s32.f32 %v4002
      %4005 = vmin.xlane.f32.xlu0 %v4004
      %v4006 = vpop.xlane.xlu0 %4005
      %vm4007 = vcmp.eq.f32.partialorder %v4004, %v4006
      %v4008 = vsel %vm4007, %v4003, inf
      %4009 = vmin.xlane.f32.xlu0 %v4008
      %v4010 = vpop.xlane.xlu0 %4009
      %v4011 = vcvt.f32.s32 %v4010
      %v4012 = vcvt.f32.s32 %v4006
      %v4013 = vshll.u32 %v4012, 16
      %v4014 = vadd.s32 %v4013, %v4011
      %vm4015 = vcmp.lt.s32.totalorder %v3853, %v3854
      %v4016 = vsel %vm4015, %v3853, %v3854
      %v4017 = vand.u32 %v4016, 65535
      %v4018 = vshra.s32 %v4016, 16
      %v4019 = vcvt.s32.f32 %v4017
      %v4020 = vcvt.s32.f32 %v4018
      %4021 = vmin.xlane.f32.xlu0 %v4020
      %v4022 = vpop.xlane.xlu0 %4021
      %vm4023 = vcmp.eq.f32.partialorder %v4020, %v4022
      %v4024 = vsel %vm4023, %v4019, inf
      %4025 = vmin.xlane.f32.xlu0 %v4024
      %v4026 = vpop.xlane.xlu0 %4025
      %v4027 = vcvt.f32.s32 %v4026
      %v4028 = vcvt.f32.s32 %v4022
      %v4029 = vshll.u32 %v4028, 16
      %v4030 = vadd.s32 %v4029, %v4027
      %vm4031 = vcmp.lt.s32.totalorder %v3855, %v3856
      %v4032 = vsel %vm4031, %v3855, %v3856
      %v4033 = vand.u32 %v4032, 65535
      %v4034 = vshra.s32 %v4032, 16
      %v4035 = vcvt.s32.f32 %v4033
      %v4036 = vcvt.s32.f32 %v4034
      %4037 = vmin.xlane.f32.xlu0 %v4036
      %v4038 = vpop.xlane.xlu0 %4037
      %vm4039 = vcmp.eq.f32.partialorder %v4036, %v4038
      %v4040 = vsel %vm4039, %v4035, inf
      %4041 = vmin.xlane.f32.xlu0 %v4040
      %v4042 = vpop.xlane.xlu0 %4041
      %v4043 = vcvt.f32.s32 %v4042
      %v4044 = vcvt.f32.s32 %v4038
      %v4045 = vshll.u32 %v4044, 16
      %v4046 = vadd.s32 %v4045, %v4043
      %vm4047 = vcmp.lt.s32.totalorder %v3857, %v3858
      %v4048 = vsel %vm4047, %v3857, %v3858
      %v4049 = vand.u32 %v4048, 65535
      %v4050 = vshra.s32 %v4048, 16
      %v4051 = vcvt.s32.f32 %v4049
      %v4052 = vcvt.s32.f32 %v4050
      %4053 = vmin.xlane.f32.xlu0 %v4052
      %v4054 = vpop.xlane.xlu0 %4053
      %vm4055 = vcmp.eq.f32.partialorder %v4052, %v4054
      %v4056 = vsel %vm4055, %v4051, inf
      %4057 = vmin.xlane.f32.xlu0 %v4056
      %v4058 = vpop.xlane.xlu0 %4057
      %v4059 = vcvt.f32.s32 %v4058
      %v4060 = vcvt.f32.s32 %v4054
      %v4061 = vshll.u32 %v4060, 16
      %v4062 = vadd.s32 %v4061, %v4059
      %vm4063 = vcmp.lt.s32.totalorder %v3859, %v3860
      %v4064 = vsel %vm4063, %v3859, %v3860
      %v4065 = vand.u32 %v4064, 65535
      %v4066 = vshra.s32 %v4064, 16
      %v4067 = vcvt.s32.f32 %v4065
      %v4068 = vcvt.s32.f32 %v4066
      %4069 = vmin.xlane.f32.xlu0 %v4068
      %v4070 = vpop.xlane.xlu0 %4069
      %vm4071 = vcmp.eq.f32.partialorder %v4068, %v4070
      %v4072 = vsel %vm4071, %v4067, inf
      %4073 = vmin.xlane.f32.xlu0 %v4072
      %v4074 = vpop.xlane.xlu0 %4073
      %v4075 = vcvt.f32.s32 %v4074
      %v4076 = vcvt.f32.s32 %v4070
      %v4077 = vshll.u32 %v4076, 16
      %v4078 = vadd.s32 %v4077, %v4075
      %vm4079 = vcmp.lt.s32.totalorder %v3861, %v3862
      %v4080 = vsel %vm4079, %v3861, %v3862
      %v4081 = vand.u32 %v4080, 65535
      %v4082 = vshra.s32 %v4080, 16
      %v4083 = vcvt.s32.f32 %v4081
      %v4084 = vcvt.s32.f32 %v4082
      %4085 = vmin.xlane.f32.xlu0 %v4084
      %v4086 = vpop.xlane.xlu0 %4085
      %vm4087 = vcmp.eq.f32.partialorder %v4084, %v4086
      %v4088 = vsel %vm4087, %v4083, inf
      %4089 = vmin.xlane.f32.xlu0 %v4088
      %v4090 = vpop.xlane.xlu0 %4089
      %v4091 = vcvt.f32.s32 %v4090
      %v4092 = vcvt.f32.s32 %v4086
      %v4093 = vshll.u32 %v4092, 16
      %v4094 = vadd.s32 %v4093, %v4091
      %vm4095 = vcmp.lt.s32.totalorder %v3863, %v3864
      %v4096 = vsel %vm4095, %v3863, %v3864
      %v4097 = vand.u32 %v4096, 65535
      %v4098 = vshra.s32 %v4096, 16
      %v4099 = vcvt.s32.f32 %v4097
      %v4100 = vcvt.s32.f32 %v4098
      %4101 = vmin.xlane.f32.xlu0 %v4100
      %v4102 = vpop.xlane.xlu0 %4101
      %vm4103 = vcmp.eq.f32.partialorder %v4100, %v4102
      %v4104 = vsel %vm4103, %v4099, inf
      %4105 = vmin.xlane.f32.xlu0 %v4104
      %v4106 = vpop.xlane.xlu0 %4105
      %v4107 = vcvt.f32.s32 %v4106
      %v4108 = vcvt.f32.s32 %v4102
      %v4109 = vshll.u32 %v4108, 16
      %v4110 = vadd.s32 %v4109, %v4107
      %vm4111 = vcmp.lt.s32.totalorder %v3865, %v3866
      %v4112 = vsel %vm4111, %v3865, %v3866
      %v4113 = vand.u32 %v4112, 65535
      %v4114 = vshra.s32 %v4112, 16
      %v4115 = vcvt.s32.f32 %v4113
      %v4116 = vcvt.s32.f32 %v4114
      %4117 = vmin.xlane.f32.xlu0 %v4116
      %v4118 = vpop.xlane.xlu0 %4117
      %vm4119 = vcmp.eq.f32.partialorder %v4116, %v4118
      %v4120 = vsel %vm4119, %v4115, inf
      %4121 = vmin.xlane.f32.xlu0 %v4120
      %v4122 = vpop.xlane.xlu0 %4121
      %v4123 = vcvt.f32.s32 %v4122
      %v4124 = vcvt.f32.s32 %v4118
      %v4125 = vshll.u32 %v4124, 16
      %v4126 = vadd.s32 %v4125, %v4123
      %vm4127 = vcmp.lt.s32.totalorder %v3867, %v3868
      %v4128 = vsel %vm4127, %v3867, %v3868
      %v4129 = vand.u32 %v4128, 65535
      %v4130 = vshra.s32 %v4128, 16
      %v4131 = vcvt.s32.f32 %v4129
      %v4132 = vcvt.s32.f32 %v4130
      %4133 = vmin.xlane.f32.xlu0 %v4132
      %v4134 = vpop.xlane.xlu0 %4133
      %vm4135 = vcmp.eq.f32.partialorder %v4132, %v4134
      %v4136 = vsel %vm4135, %v4131, inf
      %4137 = vmin.xlane.f32.xlu0 %v4136
      %v4138 = vpop.xlane.xlu0 %4137
      %v4139 = vcvt.f32.s32 %v4138
      %v4140 = vcvt.f32.s32 %v4134
      %v4141 = vshll.u32 %v4140, 16
      %v4142 = vadd.s32 %v4141, %v4139
      %vm4143 = vcmp.lt.s32.totalorder %v3869, %v3870
      %v4144 = vsel %vm4143, %v3869, %v3870
      %v4145 = vand.u32 %v4144, 65535
      %v4146 = vshra.s32 %v4144, 16
      %v4147 = vcvt.s32.f32 %v4145
      %v4148 = vcvt.s32.f32 %v4146
      %4149 = vmin.xlane.f32.xlu0 %v4148
      %v4150 = vpop.xlane.xlu0 %4149
      %vm4151 = vcmp.eq.f32.partialorder %v4148, %v4150
      %v4152 = vsel %vm4151, %v4147, inf
      %4153 = vmin.xlane.f32.xlu0 %v4152
      %v4154 = vpop.xlane.xlu0 %4153
      %v4155 = vcvt.f32.s32 %v4154
      %v4156 = vcvt.f32.s32 %v4150
      %v4157 = vshll.u32 %v4156, 16
      %v4158 = vadd.s32 %v4157, %v4155
      %vm4159 = vcmp.lt.s32.totalorder %v3871, %v3872
      %v4160 = vsel %vm4159, %v3871, %v3872
      %v4161 = vand.u32 %v4160, 65535
      %v4162 = vshra.s32 %v4160, 16
      %v4163 = vcvt.s32.f32 %v4161
      %v4164 = vcvt.s32.f32 %v4162
      %4165 = vmin.xlane.f32.xlu0 %v4164
      %v4166 = vpop.xlane.xlu0 %4165
      %vm4167 = vcmp.eq.f32.partialorder %v4164, %v4166
      %v4168 = vsel %vm4167, %v4163, inf
      %4169 = vmin.xlane.f32.xlu0 %v4168
      %v4170 = vpop.xlane.xlu0 %4169
      %v4171 = vcvt.f32.s32 %v4170
      %v4172 = vcvt.f32.s32 %v4166
      %v4173 = vshll.u32 %v4172, 16
      %v4174 = vadd.s32 %v4173, %v4171
      %vm4175 = vcmp.lt.s32.totalorder %v3873, %v3874
      %v4176 = vsel %vm4175, %v3873, %v3874
      %v4177 = vand.u32 %v4176, 65535
      %v4178 = vshra.s32 %v4176, 16
      %v4179 = vcvt.s32.f32 %v4177
      %v4180 = vcvt.s32.f32 %v4178
      %4181 = vmin.xlane.f32.xlu0 %v4180
      %v4182 = vpop.xlane.xlu0 %4181
      %vm4183 = vcmp.eq.f32.partialorder %v4180, %v4182
      %v4184 = vsel %vm4183, %v4179, inf
      %4185 = vmin.xlane.f32.xlu0 %v4184
      %v4186 = vpop.xlane.xlu0 %4185
      %v4187 = vcvt.f32.s32 %v4186
      %v4188 = vcvt.f32.s32 %v4182
      %v4189 = vshll.u32 %v4188, 16
      %v4190 = vadd.s32 %v4189, %v4187
      %vm4191 = vcmp.lt.s32.totalorder %v3875, %v3876
      %v4192 = vsel %vm4191, %v3875, %v3876
      %v4193 = vand.u32 %v4192, 65535
      %v4194 = vshra.s32 %v4192, 16
      %v4195 = vcvt.s32.f32 %v4193
      %v4196 = vcvt.s32.f32 %v4194
      %4197 = vmin.xlane.f32.xlu0 %v4196
      %v4198 = vpop.xlane.xlu0 %4197
      %vm4199 = vcmp.eq.f32.partialorder %v4196, %v4198
      %v4200 = vsel %vm4199, %v4195, inf
      %4201 = vmin.xlane.f32.xlu0 %v4200
      %v4202 = vpop.xlane.xlu0 %4201
      %v4203 = vcvt.f32.s32 %v4202
      %v4204 = vcvt.f32.s32 %v4198
      %v4205 = vshll.u32 %v4204, 16
      %v4206 = vadd.s32 %v4205, %v4203
      %vm4207 = vcmp.lt.s32.totalorder %v3877, %v3878
      %v4208 = vsel %vm4207, %v3877, %v3878
      %v4209 = vand.u32 %v4208, 65535
      %v4210 = vshra.s32 %v4208, 16
      %v4211 = vcvt.s32.f32 %v4209
      %v4212 = vcvt.s32.f32 %v4210
      %4213 = vmin.xlane.f32.xlu0 %v4212
      %v4214 = vpop.xlane.xlu0 %4213
      %vm4215 = vcmp.eq.f32.partialorder %v4212, %v4214
      %v4216 = vsel %vm4215, %v4211, inf
      %4217 = vmin.xlane.f32.xlu0 %v4216
      %v4218 = vpop.xlane.xlu0 %4217
      %v4219 = vcvt.f32.s32 %v4218
      %v4220 = vcvt.f32.s32 %v4214
      %v4221 = vshll.u32 %v4220, 16
      %v4222 = vadd.s32 %v4221, %v4219
      %vm4223 = vcmp.lt.s32.totalorder %v3879, %v3880
      %v4224 = vsel %vm4223, %v3879, %v3880
      %v4225 = vand.u32 %v4224, 65535
      %v4226 = vshra.s32 %v4224, 16
      %v4227 = vcvt.s32.f32 %v4225
      %v4228 = vcvt.s32.f32 %v4226
      %4229 = vmin.xlane.f32.xlu0 %v4228
      %v4230 = vpop.xlane.xlu0 %4229
      %vm4231 = vcmp.eq.f32.partialorder %v4228, %v4230
      %v4232 = vsel %vm4231, %v4227, inf
      %4233 = vmin.xlane.f32.xlu0 %v4232
      %v4234 = vpop.xlane.xlu0 %4233
      %v4235 = vcvt.f32.s32 %v4234
      %v4236 = vcvt.f32.s32 %v4230
      %v4237 = vshll.u32 %v4236, 16
      %v4238 = vadd.s32 %v4237, %v4235
      %vm4239 = vcmp.lt.s32.totalorder %v3881, %v3882
      %v4240 = vsel %vm4239, %v3881, %v3882
      %v4241 = vand.u32 %v4240, 65535
      %v4242 = vshra.s32 %v4240, 16
      %v4243 = vcvt.s32.f32 %v4241
      %v4244 = vcvt.s32.f32 %v4242
      %4245 = vmin.xlane.f32.xlu0 %v4244
      %v4246 = vpop.xlane.xlu0 %4245
      %vm4247 = vcmp.eq.f32.partialorder %v4244, %v4246
      %v4248 = vsel %vm4247, %v4243, inf
      %4249 = vmin.xlane.f32.xlu0 %v4248
      %v4250 = vpop.xlane.xlu0 %4249
      %v4251 = vcvt.f32.s32 %v4250
      %v4252 = vcvt.f32.s32 %v4246
      %v4253 = vshll.u32 %v4252, 16
      %v4254 = vadd.s32 %v4253, %v4251
      %vm4255 = vcmp.lt.s32.totalorder %v3883, %v3884
      %v4256 = vsel %vm4255, %v3883, %v3884
      %v4257 = vand.u32 %v4256, 65535
      %v4258 = vshra.s32 %v4256, 16
      %v4259 = vcvt.s32.f32 %v4257
      %v4260 = vcvt.s32.f32 %v4258
      %4261 = vmin.xlane.f32.xlu0 %v4260
      %v4262 = vpop.xlane.xlu0 %4261
      %vm4263 = vcmp.eq.f32.partialorder %v4260, %v4262
      %v4264 = vsel %vm4263, %v4259, inf
      %4265 = vmin.xlane.f32.xlu0 %v4264
      %v4266 = vpop.xlane.xlu0 %4265
      %v4267 = vcvt.f32.s32 %v4266
      %v4268 = vcvt.f32.s32 %v4262
      %v4269 = vshll.u32 %v4268, 16
      %v4270 = vadd.s32 %v4269, %v4267
      %vm4271 = vcmp.lt.s32.totalorder %v3885, %v3886
      %v4272 = vsel %vm4271, %v3885, %v3886
      %v4273 = vand.u32 %v4272, 65535
      %v4274 = vshra.s32 %v4272, 16
      %v4275 = vcvt.s32.f32 %v4273
      %v4276 = vcvt.s32.f32 %v4274
      %4277 = vmin.xlane.f32.xlu0 %v4276
      %v4278 = vpop.xlane.xlu0 %4277
      %vm4279 = vcmp.eq.f32.partialorder %v4276, %v4278
      %v4280 = vsel %vm4279, %v4275, inf
      %4281 = vmin.xlane.f32.xlu0 %v4280
      %v4282 = vpop.xlane.xlu0 %4281
      %v4283 = vcvt.f32.s32 %v4282
      %v4284 = vcvt.f32.s32 %v4278
      %v4285 = vshll.u32 %v4284, 16
      %v4286 = vadd.s32 %v4285, %v4283
      %vm4287 = vcmp.lt.s32.totalorder %v3887, %v3888
      %v4288 = vsel %vm4287, %v3887, %v3888
      %v4289 = vand.u32 %v4288, 65535
      %v4290 = vshra.s32 %v4288, 16
      %v4291 = vcvt.s32.f32 %v4289
      %v4292 = vcvt.s32.f32 %v4290
      %4293 = vmin.xlane.f32.xlu0 %v4292
      %v4294 = vpop.xlane.xlu0 %4293
      %vm4295 = vcmp.eq.f32.partialorder %v4292, %v4294
      %v4296 = vsel %vm4295, %v4291, inf
      %4297 = vmin.xlane.f32.xlu0 %v4296
      %v4298 = vpop.xlane.xlu0 %4297
      %v4299 = vcvt.f32.s32 %v4298
      %v4300 = vcvt.f32.s32 %v4294
      %v4301 = vshll.u32 %v4300, 16
      %v4302 = vadd.s32 %v4301, %v4299
      %vm4303 = vcmp.lt.s32.totalorder %v3889, %v3890
      %v4304 = vsel %vm4303, %v3889, %v3890
      %v4305 = vand.u32 %v4304, 65535
      %v4306 = vshra.s32 %v4304, 16
      %v4307 = vcvt.s32.f32 %v4305
      %v4308 = vcvt.s32.f32 %v4306
      %4309 = vmin.xlane.f32.xlu0 %v4308
      %v4310 = vpop.xlane.xlu0 %4309
      %vm4311 = vcmp.eq.f32.partialorder %v4308, %v4310
      %v4312 = vsel %vm4311, %v4307, inf
      %4313 = vmin.xlane.f32.xlu0 %v4312
      %v4314 = vpop.xlane.xlu0 %4313
      %v4315 = vcvt.f32.s32 %v4314
      %v4316 = vcvt.f32.s32 %v4310
      %v4317 = vshll.u32 %v4316, 16
      %v4318 = vadd.s32 %v4317, %v4315
      %vm4319 = vcmp.lt.s32.totalorder %v3891, %v3892
      %v4320 = vsel %vm4319, %v3891, %v3892
      %v4321 = vand.u32 %v4320, 65535
      %v4322 = vshra.s32 %v4320, 16
      %v4323 = vcvt.s32.f32 %v4321
      %v4324 = vcvt.s32.f32 %v4322
      %4325 = vmin.xlane.f32.xlu0 %v4324
      %v4326 = vpop.xlane.xlu0 %4325
      %vm4327 = vcmp.eq.f32.partialorder %v4324, %v4326
      %v4328 = vsel %vm4327, %v4323, inf
      %4329 = vmin.xlane.f32.xlu0 %v4328
      %v4330 = vpop.xlane.xlu0 %4329
      %v4331 = vcvt.f32.s32 %v4330
      %v4332 = vcvt.f32.s32 %v4326
      %v4333 = vshll.u32 %v4332, 16
      %v4334 = vadd.s32 %v4333, %v4331
      %vm4335 = vcmp.lt.s32.totalorder %v3893, %v3894
      %v4336 = vsel %vm4335, %v3893, %v3894
      %v4337 = vand.u32 %v4336, 65535
      %v4338 = vshra.s32 %v4336, 16
      %v4339 = vcvt.s32.f32 %v4337
      %v4340 = vcvt.s32.f32 %v4338
      %4341 = vmin.xlane.f32.xlu0 %v4340
      %v4342 = vpop.xlane.xlu0 %4341
      %vm4343 = vcmp.eq.f32.partialorder %v4340, %v4342
      %v4344 = vsel %vm4343, %v4339, inf
      %4345 = vmin.xlane.f32.xlu0 %v4344
      %v4346 = vpop.xlane.xlu0 %4345
      %v4347 = vcvt.f32.s32 %v4346
      %v4348 = vcvt.f32.s32 %v4342
      %v4349 = vshll.u32 %v4348, 16
      %v4350 = vadd.s32 %v4349, %v4347
      %vm4351 = vcmp.lt.s32.totalorder %v3895, %v3896
      %v4352 = vsel %vm4351, %v3895, %v3896
      %v4353 = vand.u32 %v4352, 65535
      %v4354 = vshra.s32 %v4352, 16
      %v4355 = vcvt.s32.f32 %v4353
      %v4356 = vcvt.s32.f32 %v4354
      %4357 = vmin.xlane.f32.xlu0 %v4356
      %v4358 = vpop.xlane.xlu0 %4357
      %vm4359 = vcmp.eq.f32.partialorder %v4356, %v4358
      %v4360 = vsel %vm4359, %v4355, inf
      %4361 = vmin.xlane.f32.xlu0 %v4360
      %v4362 = vpop.xlane.xlu0 %4361
      %v4363 = vcvt.f32.s32 %v4362
      %v4364 = vcvt.f32.s32 %v4358
      %v4365 = vshll.u32 %v4364, 16
      %v4366 = vadd.s32 %v4365, %v4363
      %vm4367 = vcmp.lt.s32.totalorder %v3897, %v3898
      %v4368 = vsel %vm4367, %v3897, %v3898
      %v4369 = vand.u32 %v4368, 65535
      %v4370 = vshra.s32 %v4368, 16
      %v4371 = vcvt.s32.f32 %v4369
      %v4372 = vcvt.s32.f32 %v4370
      %4373 = vmin.xlane.f32.xlu0 %v4372
      %v4374 = vpop.xlane.xlu0 %4373
      %vm4375 = vcmp.eq.f32.partialorder %v4372, %v4374
      %v4376 = vsel %vm4375, %v4371, inf
      %4377 = vmin.xlane.f32.xlu0 %v4376
      %v4378 = vpop.xlane.xlu0 %4377
      %v4379 = vcvt.f32.s32 %v4378
      %v4380 = vcvt.f32.s32 %v4374
      %v4381 = vshll.u32 %v4380, 16
      %v4382 = vadd.s32 %v4381, %v4379
      %vm4383 = vcmp.lt.s32.totalorder %v3899, %v3900
      %v4384 = vsel %vm4383, %v3899, %v3900
      %v4385 = vand.u32 %v4384, 65535
      %v4386 = vshra.s32 %v4384, 16
      %v4387 = vcvt.s32.f32 %v4385
      %v4388 = vcvt.s32.f32 %v4386
      %4389 = vmin.xlane.f32.xlu0 %v4388
      %v4390 = vpop.xlane.xlu0 %4389
      %vm4391 = vcmp.eq.f32.partialorder %v4388, %v4390
      %v4392 = vsel %vm4391, %v4387, inf
      %4393 = vmin.xlane.f32.xlu0 %v4392
      %v4394 = vpop.xlane.xlu0 %4393
      %v4395 = vcvt.f32.s32 %v4394
      %v4396 = vcvt.f32.s32 %v4390
      %v4397 = vshll.u32 %v4396, 16
      %v4398 = vadd.s32 %v4397, %v4395
      %vm4399 = vcmp.lt.s32.totalorder %v3901, %v3902
      %v4400 = vsel %vm4399, %v3901, %v3902
      %v4401 = vand.u32 %v4400, 65535
      %v4402 = vshra.s32 %v4400, 16
      %v4403 = vcvt.s32.f32 %v4401
      %v4404 = vcvt.s32.f32 %v4402
      %4405 = vmin.xlane.f32.xlu0 %v4404
      %v4406 = vpop.xlane.xlu0 %4405
      %vm4407 = vcmp.eq.f32.partialorder %v4404, %v4406
      %v4408 = vsel %vm4407, %v4403, inf
      %4409 = vmin.xlane.f32.xlu0 %v4408
      %v4410 = vpop.xlane.xlu0 %4409
      %v4411 = vcvt.f32.s32 %v4410
      %v4412 = vcvt.f32.s32 %v4406
      %v4413 = vshll.u32 %v4412, 16
      %v4414 = vadd.s32 %v4413, %v4411
      %vm4415 = vcmp.eq.s32.totalorder %v3677, %v3918
      %vm4416 = vcmp.eq.s32.totalorder %v3678, %v3918
      %vm4417 = vcmp.eq.s32.totalorder %v3677, %v3934
      %vm4418 = vcmp.eq.s32.totalorder %v3678, %v3934
      %vm4419 = vcmp.eq.s32.totalorder %v3677, %v3950
      %vm4420 = vcmp.eq.s32.totalorder %v3678, %v3950
      %vm4421 = vcmp.eq.s32.totalorder %v3677, %v3966
      %vm4422 = vcmp.eq.s32.totalorder %v3678, %v3966
      %vm4423 = vcmp.eq.s32.totalorder %v3677, %v3982
      %vm4424 = vcmp.eq.s32.totalorder %v3678, %v3982
      %vm4425 = vcmp.eq.s32.totalorder %v3677, %v3998
      %vm4426 = vcmp.eq.s32.totalorder %v3678, %v3998
      %vm4427 = vcmp.eq.s32.totalorder %v3677, %v4014
      %vm4428 = vcmp.eq.s32.totalorder %v3678, %v4014
      %vm4429 = vcmp.eq.s32.totalorder %v3677, %v4030
      %vm4430 = vcmp.eq.s32.totalorder %v3678, %v4030
      %vm4431 = vcmp.eq.s32.totalorder %v3677, %v4046
      %vm4432 = vcmp.eq.s32.totalorder %v3678, %v4046
      %vm4433 = vcmp.eq.s32.totalorder %v3677, %v4062
      %vm4434 = vcmp.eq.s32.totalorder %v3678, %v4062
      %vm4435 = vcmp.eq.s32.totalorder %v3677, %v4078
      %vm4436 = vcmp.eq.s32.totalorder %v3678, %v4078
      %vm4437 = vcmp.eq.s32.totalorder %v3677, %v4094
      %vm4438 = vcmp.eq.s32.totalorder %v3678, %v4094
      %vm4439 = vcmp.eq.s32.totalorder %v3677, %v4110
      %vm4440 = vcmp.eq.s32.totalorder %v3678, %v4110
      %vm4441 = vcmp.eq.s32.totalorder %v3677, %v4126
      %vm4442 = vcmp.eq.s32.totalorder %v3678, %v4126
      %vm4443 = vcmp.eq.s32.totalorder %v3677, %v4142
      %vm4444 = vcmp.eq.s32.totalorder %v3678, %v4142
      %vm4445 = vcmp.eq.s32.totalorder %v3677, %v4158
      %vm4446 = vcmp.eq.s32.totalorder %v3678, %v4158
      %vm4447 = vcmp.eq.s32.totalorder %v3677, %v4174
      %vm4448 = vcmp.eq.s32.totalorder %v3678, %v4174
      %vm4449 = vcmp.eq.s32.totalorder %v3677, %v4190
      %vm4450 = vcmp.eq.s32.totalorder %v3678, %v4190
      %vm4451 = vcmp.eq.s32.totalorder %v3677, %v4206
      %vm4452 = vcmp.eq.s32.totalorder %v3678, %v4206
      %vm4453 = vcmp.eq.s32.totalorder %v3677, %v4222
      %vm4454 = vcmp.eq.s32.totalorder %v3678, %v4222
      %vm4455 = vcmp.eq.s32.totalorder %v3677, %v4238
      %vm4456 = vcmp.eq.s32.totalorder %v3678, %v4238
      %vm4457 = vcmp.eq.s32.totalorder %v3677, %v4254
      %vm4458 = vcmp.eq.s32.totalorder %v3678, %v4254
      %vm4459 = vcmp.eq.s32.totalorder %v3677, %v4270
      %vm4460 = vcmp.eq.s32.totalorder %v3678, %v4270
      %vm4461 = vcmp.eq.s32.totalorder %v3677, %v4286
      %vm4462 = vcmp.eq.s32.totalorder %v3678, %v4286
      %vm4463 = vcmp.eq.s32.totalorder %v3677, %v4302
      %vm4464 = vcmp.eq.s32.totalorder %v3678, %v4302
      %vm4465 = vcmp.eq.s32.totalorder %v3677, %v4318
      %vm4466 = vcmp.eq.s32.totalorder %v3678, %v4318
      %vm4467 = vcmp.eq.s32.totalorder %v3677, %v4334
      %vm4468 = vcmp.eq.s32.totalorder %v3678, %v4334
      %vm4469 = vcmp.eq.s32.totalorder %v3677, %v4350
      %vm4470 = vcmp.eq.s32.totalorder %v3678, %v4350
      %vm4471 = vcmp.eq.s32.totalorder %v3677, %v4366
      %vm4472 = vcmp.eq.s32.totalorder %v3678, %v4366
      %vm4473 = vcmp.eq.s32.totalorder %v3677, %v4382
      %vm4474 = vcmp.eq.s32.totalorder %v3678, %v4382
      %vm4475 = vcmp.eq.s32.totalorder %v3677, %v4398
      %vm4476 = vcmp.eq.s32.totalorder %v3678, %v4398
      %vm4477 = vcmp.eq.s32.totalorder %v3677, %v4414
      %vm4478 = vcmp.eq.s32.totalorder %v3678, %v4414
      %v4479 = vsel %vm4415, 1, 0
      %v4480 = vsel %vm4416, 1, 0
      %v4481 = vsel %vm4417, 1, 0
      %v4482 = vsel %vm4418, 1, 0
      %v4483 = vsel %vm4419, 1, 0
      %v4484 = vsel %vm4420, 1, 0
      %v4485 = vsel %vm4421, 1, 0
      %v4486 = vsel %vm4422, 1, 0
      %v4487 = vsel %vm4423, 1, 0
      %v4488 = vsel %vm4424, 1, 0
      %v4489 = vsel %vm4425, 1, 0
      %v4490 = vsel %vm4426, 1, 0
      %v4491 = vsel %vm4427, 1, 0
      %v4492 = vsel %vm4428, 1, 0
      %v4493 = vsel %vm4429, 1, 0
      %v4494 = vsel %vm4430, 1, 0
      %v4495 = vsel %vm4431, 1, 0
      %v4496 = vsel %vm4432, 1, 0
      %v4497 = vsel %vm4433, 1, 0
      %v4498 = vsel %vm4434, 1, 0
      %v4499 = vsel %vm4435, 1, 0
      %v4500 = vsel %vm4436, 1, 0
      %v4501 = vsel %vm4437, 1, 0
      %v4502 = vsel %vm4438, 1, 0
      %v4503 = vsel %vm4439, 1, 0
      %v4504 = vsel %vm4440, 1, 0
      %v4505 = vsel %vm4441, 1, 0
      %v4506 = vsel %vm4442, 1, 0
      %v4507 = vsel %vm4443, 1, 0
      %v4508 = vsel %vm4444, 1, 0
      %v4509 = vsel %vm4445, 1, 0
      %v4510 = vsel %vm4446, 1, 0
      %v4511 = vsel %vm4447, 1, 0
      %v4512 = vsel %vm4448, 1, 0
      %v4513 = vsel %vm4449, 1, 0
      %v4514 = vsel %vm4450, 1, 0
      %v4515 = vsel %vm4451, 1, 0
      %v4516 = vsel %vm4452, 1, 0
      %v4517 = vsel %vm4453, 1, 0
      %v4518 = vsel %vm4454, 1, 0
      %v4519 = vsel %vm4455, 1, 0
      %v4520 = vsel %vm4456, 1, 0
      %v4521 = vsel %vm4457, 1, 0
      %v4522 = vsel %vm4458, 1, 0
      %v4523 = vsel %vm4459, 1, 0
      %v4524 = vsel %vm4460, 1, 0
      %v4525 = vsel %vm4461, 1, 0
      %v4526 = vsel %vm4462, 1, 0
      %v4527 = vsel %vm4463, 1, 0
      %v4528 = vsel %vm4464, 1, 0
      %v4529 = vsel %vm4465, 1, 0
      %v4530 = vsel %vm4466, 1, 0
      %v4531 = vsel %vm4467, 1, 0
      %v4532 = vsel %vm4468, 1, 0
      %v4533 = vsel %vm4469, 1, 0
      %v4534 = vsel %vm4470, 1, 0
      %v4535 = vsel %vm4471, 1, 0
      %v4536 = vsel %vm4472, 1, 0
      %v4537 = vsel %vm4473, 1, 0
      %v4538 = vsel %vm4474, 1, 0
      %v4539 = vsel %vm4475, 1, 0
      %v4540 = vsel %vm4476, 1, 0
      %v4541 = vsel %vm4477, 1, 0
      %v4542 = vsel %vm4478, 1, 0
      %v4543 = vcvt.s32.f32 %v4479
      %v4544 = vcvt.s32.f32 %v4480
      %v4545 = vcvt.s32.f32 %v4481
      %v4546 = vcvt.s32.f32 %v4482
      %v4547 = vcvt.s32.f32 %v4483
      %v4548 = vcvt.s32.f32 %v4484
      %v4549 = vcvt.s32.f32 %v4485
      %v4550 = vcvt.s32.f32 %v4486
      %v4551 = vcvt.s32.f32 %v4487
      %v4552 = vcvt.s32.f32 %v4488
      %v4553 = vcvt.s32.f32 %v4489
      %v4554 = vcvt.s32.f32 %v4490
      %v4555 = vcvt.s32.f32 %v4491
      %v4556 = vcvt.s32.f32 %v4492
      %v4557 = vcvt.s32.f32 %v4493
      %v4558 = vcvt.s32.f32 %v4494
      %v4559 = vcvt.s32.f32 %v4495
      %v4560 = vcvt.s32.f32 %v4496
      %v4561 = vcvt.s32.f32 %v4497
      %v4562 = vcvt.s32.f32 %v4498
      %v4563 = vcvt.s32.f32 %v4499
      %v4564 = vcvt.s32.f32 %v4500
      %v4565 = vcvt.s32.f32 %v4501
      %v4566 = vcvt.s32.f32 %v4502
      %v4567 = vcvt.s32.f32 %v4503
      %v4568 = vcvt.s32.f32 %v4504
      %v4569 = vcvt.s32.f32 %v4505
      %v4570 = vcvt.s32.f32 %v4506
      %v4571 = vcvt.s32.f32 %v4507
      %v4572 = vcvt.s32.f32 %v4508
      %v4573 = vcvt.s32.f32 %v4509
      %v4574 = vcvt.s32.f32 %v4510
      %v4575 = vcvt.s32.f32 %v4511
      %v4576 = vcvt.s32.f32 %v4512
      %v4577 = vcvt.s32.f32 %v4513
      %v4578 = vcvt.s32.f32 %v4514
      %v4579 = vcvt.s32.f32 %v4515
      %v4580 = vcvt.s32.f32 %v4516
      %v4581 = vcvt.s32.f32 %v4517
      %v4582 = vcvt.s32.f32 %v4518
      %v4583 = vcvt.s32.f32 %v4519
      %v4584 = vcvt.s32.f32 %v4520
      %v4585 = vcvt.s32.f32 %v4521
      %v4586 = vcvt.s32.f32 %v4522
      %v4587 = vcvt.s32.f32 %v4523
      %v4588 = vcvt.s32.f32 %v4524
      %v4589 = vcvt.s32.f32 %v4525
      %v4590 = vcvt.s32.f32 %v4526
      %v4591 = vcvt.s32.f32 %v4527
      %v4592 = vcvt.s32.f32 %v4528
      %v4593 = vcvt.s32.f32 %v4529
      %v4594 = vcvt.s32.f32 %v4530
      %v4595 = vcvt.s32.f32 %v4531
      %v4596 = vcvt.s32.f32 %v4532
      %v4597 = vcvt.s32.f32 %v4533
      %v4598 = vcvt.s32.f32 %v4534
      %v4599 = vcvt.s32.f32 %v4535
      %v4600 = vcvt.s32.f32 %v4536
      %v4601 = vcvt.s32.f32 %v4537
      %v4602 = vcvt.s32.f32 %v4538
      %v4603 = vcvt.s32.f32 %v4539
      %v4604 = vcvt.s32.f32 %v4540
      %v4605 = vcvt.s32.f32 %v4541
      %v4606 = vcvt.s32.f32 %v4542
      %v4607 = vsel %vm4415, -1e+30, %v3173
      %v4608 = vsel %vm4416, -1e+30, %v3175
      %v4609 = vsel %vm4417, -1e+30, %v3179
      %v4610 = vsel %vm4418, -1e+30, %v3181
      %v4611 = vsel %vm4419, -1e+30, %v3185
      %v4612 = vsel %vm4420, -1e+30, %v3187
      %v4613 = vsel %vm4421, -1e+30, %v3191
      %v4614 = vsel %vm4422, -1e+30, %v3193
      %v4615 = vsel %vm4423, -1e+30, %v3197
      %v4616 = vsel %vm4424, -1e+30, %v3199
      %v4617 = vsel %vm4425, -1e+30, %v3203
      %v4618 = vsel %vm4426, -1e+30, %v3205
      %v4619 = vsel %vm4427, -1e+30, %v3209
      %v4620 = vsel %vm4428, -1e+30, %v3211
      %v4621 = vsel %vm4429, -1e+30, %v3215
      %v4622 = vsel %vm4430, -1e+30, %v3217
      %v4623 = vsel %vm4431, -1e+30, %v3221
      %v4624 = vsel %vm4432, -1e+30, %v3223
      %v4625 = vsel %vm4433, -1e+30, %v3227
      %v4626 = vsel %vm4434, -1e+30, %v3229
      %v4627 = vsel %vm4435, -1e+30, %v3233
      %v4628 = vsel %vm4436, -1e+30, %v3235
      %v4629 = vsel %vm4437, -1e+30, %v3239
      %v4630 = vsel %vm4438, -1e+30, %v3241
      %v4631 = vsel %vm4439, -1e+30, %v3245
      %v4632 = vsel %vm4440, -1e+30, %v3247
      %v4633 = vsel %vm4441, -1e+30, %v3251
      %v4634 = vsel %vm4442, -1e+30, %v3253
      %v4635 = vsel %vm4443, -1e+30, %v3257
      %v4636 = vsel %vm4444, -1e+30, %v3259
      %v4637 = vsel %vm4445, -1e+30, %v3263
      %v4638 = vsel %vm4446, -1e+30, %v3265
      %v4639 = vsel %vm4447, -1e+30, %v3269
      %v4640 = vsel %vm4448, -1e+30, %v3271
      %v4641 = vsel %vm4449, -1e+30, %v3275
      %v4642 = vsel %vm4450, -1e+30, %v3277
      %v4643 = vsel %vm4451, -1e+30, %v3281
      %v4644 = vsel %vm4452, -1e+30, %v3283
      %v4645 = vsel %vm4453, -1e+30, %v3287
      %v4646 = vsel %vm4454, -1e+30, %v3289
      %v4647 = vsel %vm4455, -1e+30, %v3293
      %v4648 = vsel %vm4456, -1e+30, %v3295
      %v4649 = vsel %vm4457, -1e+30, %v3299
      %v4650 = vsel %vm4458, -1e+30, %v3301
      %v4651 = vsel %vm4459, -1e+30, %v3305
      %v4652 = vsel %vm4460, -1e+30, %v3307
      %v4653 = vsel %vm4461, -1e+30, %v3311
      %v4654 = vsel %vm4462, -1e+30, %v3313
      %v4655 = vsel %vm4463, -1e+30, %v3317
      %v4656 = vsel %vm4464, -1e+30, %v3319
      %v4657 = vsel %vm4465, -1e+30, %v3323
      %v4658 = vsel %vm4466, -1e+30, %v3325
      %v4659 = vsel %vm4467, -1e+30, %v3329
      %v4660 = vsel %vm4468, -1e+30, %v3331
      %v4661 = vsel %vm4469, -1e+30, %v3335
      %v4662 = vsel %vm4470, -1e+30, %v3337
      %v4663 = vsel %vm4471, -1e+30, %v3341
      %v4664 = vsel %vm4472, -1e+30, %v3343
      %v4665 = vsel %vm4473, -1e+30, %v3347
      %v4666 = vsel %vm4474, -1e+30, %v3349
      %v4667 = vsel %vm4475, -1e+30, %v3353
      %v4668 = vsel %vm4476, -1e+30, %v3355
      %v4669 = vsel %vm4477, -1e+30, %v3359
      %v4670 = vsel %vm4478, -1e+30, %v3361
      %v4671 = vmax.f32 %v4607, %v4608
      %4672 = vmax.xlane.f32.xlu0 %v4671
      %v4673 = vpop.xlane.xlu0 %4672
      %v4674 = vmax.f32 %v4609, %v4610
      %4675 = vmax.xlane.f32.xlu0 %v4674
      %v4676 = vpop.xlane.xlu0 %4675
      %v4677 = vmax.f32 %v4611, %v4612
      %4678 = vmax.xlane.f32.xlu0 %v4677
      %v4679 = vpop.xlane.xlu0 %4678
      %v4680 = vmax.f32 %v4613, %v4614
      %4681 = vmax.xlane.f32.xlu0 %v4680
      %v4682 = vpop.xlane.xlu0 %4681
      %v4683 = vmax.f32 %v4615, %v4616
      %4684 = vmax.xlane.f32.xlu0 %v4683
      %v4685 = vpop.xlane.xlu0 %4684
      %v4686 = vmax.f32 %v4617, %v4618
      %4687 = vmax.xlane.f32.xlu0 %v4686
      %v4688 = vpop.xlane.xlu0 %4687
      %v4689 = vmax.f32 %v4619, %v4620
      %4690 = vmax.xlane.f32.xlu0 %v4689
      %v4691 = vpop.xlane.xlu0 %4690
      %v4692 = vmax.f32 %v4621, %v4622
      %4693 = vmax.xlane.f32.xlu0 %v4692
      %v4694 = vpop.xlane.xlu0 %4693
      %v4695 = vmax.f32 %v4623, %v4624
      %4696 = vmax.xlane.f32.xlu0 %v4695
      %v4697 = vpop.xlane.xlu0 %4696
      %v4698 = vmax.f32 %v4625, %v4626
      %4699 = vmax.xlane.f32.xlu0 %v4698
      %v4700 = vpop.xlane.xlu0 %4699
      %v4701 = vmax.f32 %v4627, %v4628
      %4702 = vmax.xlane.f32.xlu0 %v4701
      %v4703 = vpop.xlane.xlu0 %4702
      %v4704 = vmax.f32 %v4629, %v4630
      %4705 = vmax.xlane.f32.xlu0 %v4704
      %v4706 = vpop.xlane.xlu0 %4705
      %v4707 = vmax.f32 %v4631, %v4632
      %4708 = vmax.xlane.f32.xlu0 %v4707
      %v4709 = vpop.xlane.xlu0 %4708
      %v4710 = vmax.f32 %v4633, %v4634
      %4711 = vmax.xlane.f32.xlu0 %v4710
      %v4712 = vpop.xlane.xlu0 %4711
      %v4713 = vmax.f32 %v4635, %v4636
      %4714 = vmax.xlane.f32.xlu0 %v4713
      %v4715 = vpop.xlane.xlu0 %4714
      %v4716 = vmax.f32 %v4637, %v4638
      %4717 = vmax.xlane.f32.xlu0 %v4716
      %v4718 = vpop.xlane.xlu0 %4717
      %v4719 = vmax.f32 %v4639, %v4640
      %4720 = vmax.xlane.f32.xlu0 %v4719
      %v4721 = vpop.xlane.xlu0 %4720
      %v4722 = vmax.f32 %v4641, %v4642
      %4723 = vmax.xlane.f32.xlu0 %v4722
      %v4724 = vpop.xlane.xlu0 %4723
      %v4725 = vmax.f32 %v4643, %v4644
      %4726 = vmax.xlane.f32.xlu0 %v4725
      %v4727 = vpop.xlane.xlu0 %4726
      %v4728 = vmax.f32 %v4645, %v4646
      %4729 = vmax.xlane.f32.xlu0 %v4728
      %v4730 = vpop.xlane.xlu0 %4729
      %v4731 = vmax.f32 %v4647, %v4648
      %4732 = vmax.xlane.f32.xlu0 %v4731
      %v4733 = vpop.xlane.xlu0 %4732
      %v4734 = vmax.f32 %v4649, %v4650
      %4735 = vmax.xlane.f32.xlu0 %v4734
      %v4736 = vpop.xlane.xlu0 %4735
      %v4737 = vmax.f32 %v4651, %v4652
      %4738 = vmax.xlane.f32.xlu0 %v4737
      %v4739 = vpop.xlane.xlu0 %4738
      %v4740 = vmax.f32 %v4653, %v4654
      %4741 = vmax.xlane.f32.xlu0 %v4740
      %v4742 = vpop.xlane.xlu0 %4741
      %v4743 = vmax.f32 %v4655, %v4656
      %4744 = vmax.xlane.f32.xlu0 %v4743
      %v4745 = vpop.xlane.xlu0 %4744
      %v4746 = vmax.f32 %v4657, %v4658
      %4747 = vmax.xlane.f32.xlu0 %v4746
      %v4748 = vpop.xlane.xlu0 %4747
      %v4749 = vmax.f32 %v4659, %v4660
      %4750 = vmax.xlane.f32.xlu0 %v4749
      %v4751 = vpop.xlane.xlu0 %4750
      %v4752 = vmax.f32 %v4661, %v4662
      %4753 = vmax.xlane.f32.xlu0 %v4752
      %v4754 = vpop.xlane.xlu0 %4753
      %v4755 = vmax.f32 %v4663, %v4664
      %4756 = vmax.xlane.f32.xlu0 %v4755
      %v4757 = vpop.xlane.xlu0 %4756
      %v4758 = vmax.f32 %v4665, %v4666
      %4759 = vmax.xlane.f32.xlu0 %v4758
      %v4760 = vpop.xlane.xlu0 %4759
      %v4761 = vmax.f32 %v4667, %v4668
      %4762 = vmax.xlane.f32.xlu0 %v4761
      %v4763 = vpop.xlane.xlu0 %4762
      %v4764 = vmax.f32 %v4669, %v4670
      %4765 = vmax.xlane.f32.xlu0 %v4764
      %v4766 = vpop.xlane.xlu0 %4765
      %vm4767 = vcmp.ge.f32.partialorder %v4607, %v4673
      %vm4768 = vcmp.ge.f32.partialorder %v4608, %v4673
      %vm4769 = vcmp.ge.f32.partialorder %v4609, %v4676
      %vm4770 = vcmp.ge.f32.partialorder %v4610, %v4676
      %vm4771 = vcmp.ge.f32.partialorder %v4611, %v4679
      %vm4772 = vcmp.ge.f32.partialorder %v4612, %v4679
      %vm4773 = vcmp.ge.f32.partialorder %v4613, %v4682
      %vm4774 = vcmp.ge.f32.partialorder %v4614, %v4682
      %vm4775 = vcmp.ge.f32.partialorder %v4615, %v4685
      %vm4776 = vcmp.ge.f32.partialorder %v4616, %v4685
      %vm4777 = vcmp.ge.f32.partialorder %v4617, %v4688
      %vm4778 = vcmp.ge.f32.partialorder %v4618, %v4688
      %vm4779 = vcmp.ge.f32.partialorder %v4619, %v4691
      %vm4780 = vcmp.ge.f32.partialorder %v4620, %v4691
      %vm4781 = vcmp.ge.f32.partialorder %v4621, %v4694
      %vm4782 = vcmp.ge.f32.partialorder %v4622, %v4694
      %vm4783 = vcmp.ge.f32.partialorder %v4623, %v4697
      %vm4784 = vcmp.ge.f32.partialorder %v4624, %v4697
      %vm4785 = vcmp.ge.f32.partialorder %v4625, %v4700
      %vm4786 = vcmp.ge.f32.partialorder %v4626, %v4700
      %vm4787 = vcmp.ge.f32.partialorder %v4627, %v4703
      %vm4788 = vcmp.ge.f32.partialorder %v4628, %v4703
      %vm4789 = vcmp.ge.f32.partialorder %v4629, %v4706
      %vm4790 = vcmp.ge.f32.partialorder %v4630, %v4706
      %vm4791 = vcmp.ge.f32.partialorder %v4631, %v4709
      %vm4792 = vcmp.ge.f32.partialorder %v4632, %v4709
      %vm4793 = vcmp.ge.f32.partialorder %v4633, %v4712
      %vm4794 = vcmp.ge.f32.partialorder %v4634, %v4712
      %vm4795 = vcmp.ge.f32.partialorder %v4635, %v4715
      %vm4796 = vcmp.ge.f32.partialorder %v4636, %v4715
      %vm4797 = vcmp.ge.f32.partialorder %v4637, %v4718
      %vm4798 = vcmp.ge.f32.partialorder %v4638, %v4718
      %vm4799 = vcmp.ge.f32.partialorder %v4639, %v4721
      %vm4800 = vcmp.ge.f32.partialorder %v4640, %v4721
      %vm4801 = vcmp.ge.f32.partialorder %v4641, %v4724
      %vm4802 = vcmp.ge.f32.partialorder %v4642, %v4724
      %vm4803 = vcmp.ge.f32.partialorder %v4643, %v4727
      %vm4804 = vcmp.ge.f32.partialorder %v4644, %v4727
      %vm4805 = vcmp.ge.f32.partialorder %v4645, %v4730
      %vm4806 = vcmp.ge.f32.partialorder %v4646, %v4730
      %vm4807 = vcmp.ge.f32.partialorder %v4647, %v4733
      %vm4808 = vcmp.ge.f32.partialorder %v4648, %v4733
      %vm4809 = vcmp.ge.f32.partialorder %v4649, %v4736
      %vm4810 = vcmp.ge.f32.partialorder %v4650, %v4736
      %vm4811 = vcmp.ge.f32.partialorder %v4651, %v4739
      %vm4812 = vcmp.ge.f32.partialorder %v4652, %v4739
      %vm4813 = vcmp.ge.f32.partialorder %v4653, %v4742
      %vm4814 = vcmp.ge.f32.partialorder %v4654, %v4742
      %vm4815 = vcmp.ge.f32.partialorder %v4655, %v4745
      %vm4816 = vcmp.ge.f32.partialorder %v4656, %v4745
      %vm4817 = vcmp.ge.f32.partialorder %v4657, %v4748
      %vm4818 = vcmp.ge.f32.partialorder %v4658, %v4748
      %vm4819 = vcmp.ge.f32.partialorder %v4659, %v4751
      %vm4820 = vcmp.ge.f32.partialorder %v4660, %v4751
      %vm4821 = vcmp.ge.f32.partialorder %v4661, %v4754
      %vm4822 = vcmp.ge.f32.partialorder %v4662, %v4754
      %vm4823 = vcmp.ge.f32.partialorder %v4663, %v4757
      %vm4824 = vcmp.ge.f32.partialorder %v4664, %v4757
      %vm4825 = vcmp.ge.f32.partialorder %v4665, %v4760
      %vm4826 = vcmp.ge.f32.partialorder %v4666, %v4760
      %vm4827 = vcmp.ge.f32.partialorder %v4667, %v4763
      %vm4828 = vcmp.ge.f32.partialorder %v4668, %v4763
      %vm4829 = vcmp.ge.f32.partialorder %v4669, %v4766
      %vm4830 = vcmp.ge.f32.partialorder %v4670, %v4766
      %v4831 = vsel %vm4767, %v3677, 256
      %v4832 = vsel %vm4768, %v3678, 256
      %v4833 = vsel %vm4769, %v3677, 256
      %v4834 = vsel %vm4770, %v3678, 256
      %v4835 = vsel %vm4771, %v3677, 256
      %v4836 = vsel %vm4772, %v3678, 256
      %v4837 = vsel %vm4773, %v3677, 256
      %v4838 = vsel %vm4774, %v3678, 256
      %v4839 = vsel %vm4775, %v3677, 256
      %v4840 = vsel %vm4776, %v3678, 256
      %v4841 = vsel %vm4777, %v3677, 256
      %v4842 = vsel %vm4778, %v3678, 256
      %v4843 = vsel %vm4779, %v3677, 256
      %v4844 = vsel %vm4780, %v3678, 256
      %v4845 = vsel %vm4781, %v3677, 256
      %v4846 = vsel %vm4782, %v3678, 256
      %v4847 = vsel %vm4783, %v3677, 256
      %v4848 = vsel %vm4784, %v3678, 256
      %v4849 = vsel %vm4785, %v3677, 256
      %v4850 = vsel %vm4786, %v3678, 256
      %v4851 = vsel %vm4787, %v3677, 256
      %v4852 = vsel %vm4788, %v3678, 256
      %v4853 = vsel %vm4789, %v3677, 256
      %v4854 = vsel %vm4790, %v3678, 256
      %v4855 = vsel %vm4791, %v3677, 256
      %v4856 = vsel %vm4792, %v3678, 256
      %v4857 = vsel %vm4793, %v3677, 256
      %v4858 = vsel %vm4794, %v3678, 256
      %v4859 = vsel %vm4795, %v3677, 256
      %v4860 = vsel %vm4796, %v3678, 256
      %v4861 = vsel %vm4797, %v3677, 256
      %v4862 = vsel %vm4798, %v3678, 256
      %v4863 = vsel %vm4799, %v3677, 256
      %v4864 = vsel %vm4800, %v3678, 256
      %v4865 = vsel %vm4801, %v3677, 256
      %v4866 = vsel %vm4802, %v3678, 256
      %v4867 = vsel %vm4803, %v3677, 256
      %v4868 = vsel %vm4804, %v3678, 256
      %v4869 = vsel %vm4805, %v3677, 256
      %v4870 = vsel %vm4806, %v3678, 256
      %v4871 = vsel %vm4807, %v3677, 256
      %v4872 = vsel %vm4808, %v3678, 256
      %v4873 = vsel %vm4809, %v3677, 256
      %v4874 = vsel %vm4810, %v3678, 256
      %v4875 = vsel %vm4811, %v3677, 256
      %v4876 = vsel %vm4812, %v3678, 256
      %v4877 = vsel %vm4813, %v3677, 256
      %v4878 = vsel %vm4814, %v3678, 256
      %v4879 = vsel %vm4815, %v3677, 256
      %v4880 = vsel %vm4816, %v3678, 256
      %v4881 = vsel %vm4817, %v3677, 256
      %v4882 = vsel %vm4818, %v3678, 256
      %v4883 = vsel %vm4819, %v3677, 256
      %v4884 = vsel %vm4820, %v3678, 256
      %v4885 = vsel %vm4821, %v3677, 256
      %v4886 = vsel %vm4822, %v3678, 256
      %v4887 = vsel %vm4823, %v3677, 256
      %v4888 = vsel %vm4824, %v3678, 256
      %v4889 = vsel %vm4825, %v3677, 256
      %v4890 = vsel %vm4826, %v3678, 256
      %v4891 = vsel %vm4827, %v3677, 256
      %v4892 = vsel %vm4828, %v3678, 256
      %v4893 = vsel %vm4829, %v3677, 256
      %v4894 = vsel %vm4830, %v3678, 256
      %vm4895 = vcmp.lt.s32.totalorder %v4831, %v4832
      %v4896 = vsel %vm4895, %v4831, %v4832
      %v4897 = vand.u32 %v4896, 65535
      %v4898 = vshra.s32 %v4896, 16
      %v4899 = vcvt.s32.f32 %v4897
      %v4900 = vcvt.s32.f32 %v4898
      %4901 = vmin.xlane.f32.xlu0 %v4900
      %v4902 = vpop.xlane.xlu0 %4901
      %vm4903 = vcmp.eq.f32.partialorder %v4900, %v4902
      %v4904 = vsel %vm4903, %v4899, inf
      %4905 = vmin.xlane.f32.xlu0 %v4904
      %v4906 = vpop.xlane.xlu0 %4905
      %v4907 = vcvt.f32.s32 %v4906
      %v4908 = vcvt.f32.s32 %v4902
      %v4909 = vshll.u32 %v4908, 16
      %v4910 = vadd.s32 %v4909, %v4907
      %vm4911 = vcmp.lt.s32.totalorder %v4833, %v4834
      %v4912 = vsel %vm4911, %v4833, %v4834
      %v4913 = vand.u32 %v4912, 65535
      %v4914 = vshra.s32 %v4912, 16
      %v4915 = vcvt.s32.f32 %v4913
      %v4916 = vcvt.s32.f32 %v4914
      %4917 = vmin.xlane.f32.xlu0 %v4916
      %v4918 = vpop.xlane.xlu0 %4917
      %vm4919 = vcmp.eq.f32.partialorder %v4916, %v4918
      %v4920 = vsel %vm4919, %v4915, inf
      %4921 = vmin.xlane.f32.xlu0 %v4920
      %v4922 = vpop.xlane.xlu0 %4921
      %v4923 = vcvt.f32.s32 %v4922
      %v4924 = vcvt.f32.s32 %v4918
      %v4925 = vshll.u32 %v4924, 16
      %v4926 = vadd.s32 %v4925, %v4923
      %vm4927 = vcmp.lt.s32.totalorder %v4835, %v4836
      %v4928 = vsel %vm4927, %v4835, %v4836
      %v4929 = vand.u32 %v4928, 65535
      %v4930 = vshra.s32 %v4928, 16
      %v4931 = vcvt.s32.f32 %v4929
      %v4932 = vcvt.s32.f32 %v4930
      %4933 = vmin.xlane.f32.xlu0 %v4932
      %v4934 = vpop.xlane.xlu0 %4933
      %vm4935 = vcmp.eq.f32.partialorder %v4932, %v4934
      %v4936 = vsel %vm4935, %v4931, inf
      %4937 = vmin.xlane.f32.xlu0 %v4936
      %v4938 = vpop.xlane.xlu0 %4937
      %v4939 = vcvt.f32.s32 %v4938
      %v4940 = vcvt.f32.s32 %v4934
      %v4941 = vshll.u32 %v4940, 16
      %v4942 = vadd.s32 %v4941, %v4939
      %vm4943 = vcmp.lt.s32.totalorder %v4837, %v4838
      %v4944 = vsel %vm4943, %v4837, %v4838
      %v4945 = vand.u32 %v4944, 65535
      %v4946 = vshra.s32 %v4944, 16
      %v4947 = vcvt.s32.f32 %v4945
      %v4948 = vcvt.s32.f32 %v4946
      %4949 = vmin.xlane.f32.xlu0 %v4948
      %v4950 = vpop.xlane.xlu0 %4949
      %vm4951 = vcmp.eq.f32.partialorder %v4948, %v4950
      %v4952 = vsel %vm4951, %v4947, inf
      %4953 = vmin.xlane.f32.xlu0 %v4952
      %v4954 = vpop.xlane.xlu0 %4953
      %v4955 = vcvt.f32.s32 %v4954
      %v4956 = vcvt.f32.s32 %v4950
      %v4957 = vshll.u32 %v4956, 16
      %v4958 = vadd.s32 %v4957, %v4955
      %vm4959 = vcmp.lt.s32.totalorder %v4839, %v4840
      %v4960 = vsel %vm4959, %v4839, %v4840
      %v4961 = vand.u32 %v4960, 65535
      %v4962 = vshra.s32 %v4960, 16
      %v4963 = vcvt.s32.f32 %v4961
      %v4964 = vcvt.s32.f32 %v4962
      %4965 = vmin.xlane.f32.xlu0 %v4964
      %v4966 = vpop.xlane.xlu0 %4965
      %vm4967 = vcmp.eq.f32.partialorder %v4964, %v4966
      %v4968 = vsel %vm4967, %v4963, inf
      %4969 = vmin.xlane.f32.xlu0 %v4968
      %v4970 = vpop.xlane.xlu0 %4969
      %v4971 = vcvt.f32.s32 %v4970
      %v4972 = vcvt.f32.s32 %v4966
      %v4973 = vshll.u32 %v4972, 16
      %v4974 = vadd.s32 %v4973, %v4971
      %vm4975 = vcmp.lt.s32.totalorder %v4841, %v4842
      %v4976 = vsel %vm4975, %v4841, %v4842
      %v4977 = vand.u32 %v4976, 65535
      %v4978 = vshra.s32 %v4976, 16
      %v4979 = vcvt.s32.f32 %v4977
      %v4980 = vcvt.s32.f32 %v4978
      %4981 = vmin.xlane.f32.xlu0 %v4980
      %v4982 = vpop.xlane.xlu0 %4981
      %vm4983 = vcmp.eq.f32.partialorder %v4980, %v4982
      %v4984 = vsel %vm4983, %v4979, inf
      %4985 = vmin.xlane.f32.xlu0 %v4984
      %v4986 = vpop.xlane.xlu0 %4985
      %v4987 = vcvt.f32.s32 %v4986
      %v4988 = vcvt.f32.s32 %v4982
      %v4989 = vshll.u32 %v4988, 16
      %v4990 = vadd.s32 %v4989, %v4987
      %vm4991 = vcmp.lt.s32.totalorder %v4843, %v4844
      %v4992 = vsel %vm4991, %v4843, %v4844
      %v4993 = vand.u32 %v4992, 65535
      %v4994 = vshra.s32 %v4992, 16
      %v4995 = vcvt.s32.f32 %v4993
      %v4996 = vcvt.s32.f32 %v4994
      %4997 = vmin.xlane.f32.xlu0 %v4996
      %v4998 = vpop.xlane.xlu0 %4997
      %vm4999 = vcmp.eq.f32.partialorder %v4996, %v4998
      %v5000 = vsel %vm4999, %v4995, inf
      %5001 = vmin.xlane.f32.xlu0 %v5000
      %v5002 = vpop.xlane.xlu0 %5001
      %v5003 = vcvt.f32.s32 %v5002
      %v5004 = vcvt.f32.s32 %v4998
      %v5005 = vshll.u32 %v5004, 16
      %v5006 = vadd.s32 %v5005, %v5003
      %vm5007 = vcmp.lt.s32.totalorder %v4845, %v4846
      %v5008 = vsel %vm5007, %v4845, %v4846
      %v5009 = vand.u32 %v5008, 65535
      %v5010 = vshra.s32 %v5008, 16
      %v5011 = vcvt.s32.f32 %v5009
      %v5012 = vcvt.s32.f32 %v5010
      %5013 = vmin.xlane.f32.xlu0 %v5012
      %v5014 = vpop.xlane.xlu0 %5013
      %vm5015 = vcmp.eq.f32.partialorder %v5012, %v5014
      %v5016 = vsel %vm5015, %v5011, inf
      %5017 = vmin.xlane.f32.xlu0 %v5016
      %v5018 = vpop.xlane.xlu0 %5017
      %v5019 = vcvt.f32.s32 %v5018
      %v5020 = vcvt.f32.s32 %v5014
      %v5021 = vshll.u32 %v5020, 16
      %v5022 = vadd.s32 %v5021, %v5019
      %vm5023 = vcmp.lt.s32.totalorder %v4847, %v4848
      %v5024 = vsel %vm5023, %v4847, %v4848
      %v5025 = vand.u32 %v5024, 65535
      %v5026 = vshra.s32 %v5024, 16
      %v5027 = vcvt.s32.f32 %v5025
      %v5028 = vcvt.s32.f32 %v5026
      %5029 = vmin.xlane.f32.xlu0 %v5028
      %v5030 = vpop.xlane.xlu0 %5029
      %vm5031 = vcmp.eq.f32.partialorder %v5028, %v5030
      %v5032 = vsel %vm5031, %v5027, inf
      %5033 = vmin.xlane.f32.xlu0 %v5032
      %v5034 = vpop.xlane.xlu0 %5033
      %v5035 = vcvt.f32.s32 %v5034
      %v5036 = vcvt.f32.s32 %v5030
      %v5037 = vshll.u32 %v5036, 16
      %v5038 = vadd.s32 %v5037, %v5035
      %vm5039 = vcmp.lt.s32.totalorder %v4849, %v4850
      %v5040 = vsel %vm5039, %v4849, %v4850
      %v5041 = vand.u32 %v5040, 65535
      %v5042 = vshra.s32 %v5040, 16
      %v5043 = vcvt.s32.f32 %v5041
      %v5044 = vcvt.s32.f32 %v5042
      %5045 = vmin.xlane.f32.xlu0 %v5044
      %v5046 = vpop.xlane.xlu0 %5045
      %vm5047 = vcmp.eq.f32.partialorder %v5044, %v5046
      %v5048 = vsel %vm5047, %v5043, inf
      %5049 = vmin.xlane.f32.xlu0 %v5048
      %v5050 = vpop.xlane.xlu0 %5049
      %v5051 = vcvt.f32.s32 %v5050
      %v5052 = vcvt.f32.s32 %v5046
      %v5053 = vshll.u32 %v5052, 16
      %v5054 = vadd.s32 %v5053, %v5051
      %vm5055 = vcmp.lt.s32.totalorder %v4851, %v4852
      %v5056 = vsel %vm5055, %v4851, %v4852
      %v5057 = vand.u32 %v5056, 65535
      %v5058 = vshra.s32 %v5056, 16
      %v5059 = vcvt.s32.f32 %v5057
      %v5060 = vcvt.s32.f32 %v5058
      %5061 = vmin.xlane.f32.xlu0 %v5060
      %v5062 = vpop.xlane.xlu0 %5061
      %vm5063 = vcmp.eq.f32.partialorder %v5060, %v5062
      %v5064 = vsel %vm5063, %v5059, inf
      %5065 = vmin.xlane.f32.xlu0 %v5064
      %v5066 = vpop.xlane.xlu0 %5065
      %v5067 = vcvt.f32.s32 %v5066
      %v5068 = vcvt.f32.s32 %v5062
      %v5069 = vshll.u32 %v5068, 16
      %v5070 = vadd.s32 %v5069, %v5067
      %vm5071 = vcmp.lt.s32.totalorder %v4853, %v4854
      %v5072 = vsel %vm5071, %v4853, %v4854
      %v5073 = vand.u32 %v5072, 65535
      %v5074 = vshra.s32 %v5072, 16
      %v5075 = vcvt.s32.f32 %v5073
      %v5076 = vcvt.s32.f32 %v5074
      %5077 = vmin.xlane.f32.xlu0 %v5076
      %v5078 = vpop.xlane.xlu0 %5077
      %vm5079 = vcmp.eq.f32.partialorder %v5076, %v5078
      %v5080 = vsel %vm5079, %v5075, inf
      %5081 = vmin.xlane.f32.xlu0 %v5080
      %v5082 = vpop.xlane.xlu0 %5081
      %v5083 = vcvt.f32.s32 %v5082
      %v5084 = vcvt.f32.s32 %v5078
      %v5085 = vshll.u32 %v5084, 16
      %v5086 = vadd.s32 %v5085, %v5083
      %vm5087 = vcmp.lt.s32.totalorder %v4855, %v4856
      %v5088 = vsel %vm5087, %v4855, %v4856
      %v5089 = vand.u32 %v5088, 65535
      %v5090 = vshra.s32 %v5088, 16
      %v5091 = vcvt.s32.f32 %v5089
      %v5092 = vcvt.s32.f32 %v5090
      %5093 = vmin.xlane.f32.xlu0 %v5092
      %v5094 = vpop.xlane.xlu0 %5093
      %vm5095 = vcmp.eq.f32.partialorder %v5092, %v5094
      %v5096 = vsel %vm5095, %v5091, inf
      %5097 = vmin.xlane.f32.xlu0 %v5096
      %v5098 = vpop.xlane.xlu0 %5097
      %v5099 = vcvt.f32.s32 %v5098
      %v5100 = vcvt.f32.s32 %v5094
      %v5101 = vshll.u32 %v5100, 16
      %v5102 = vadd.s32 %v5101, %v5099
      %vm5103 = vcmp.lt.s32.totalorder %v4857, %v4858
      %v5104 = vsel %vm5103, %v4857, %v4858
      %v5105 = vand.u32 %v5104, 65535
      %v5106 = vshra.s32 %v5104, 16
      %v5107 = vcvt.s32.f32 %v5105
      %v5108 = vcvt.s32.f32 %v5106
      %5109 = vmin.xlane.f32.xlu0 %v5108
      %v5110 = vpop.xlane.xlu0 %5109
      %vm5111 = vcmp.eq.f32.partialorder %v5108, %v5110
      %v5112 = vsel %vm5111, %v5107, inf
      %5113 = vmin.xlane.f32.xlu0 %v5112
      %v5114 = vpop.xlane.xlu0 %5113
      %v5115 = vcvt.f32.s32 %v5114
      %v5116 = vcvt.f32.s32 %v5110
      %v5117 = vshll.u32 %v5116, 16
      %v5118 = vadd.s32 %v5117, %v5115
      %vm5119 = vcmp.lt.s32.totalorder %v4859, %v4860
      %v5120 = vsel %vm5119, %v4859, %v4860
      %v5121 = vand.u32 %v5120, 65535
      %v5122 = vshra.s32 %v5120, 16
      %v5123 = vcvt.s32.f32 %v5121
      %v5124 = vcvt.s32.f32 %v5122
      %5125 = vmin.xlane.f32.xlu0 %v5124
      %v5126 = vpop.xlane.xlu0 %5125
      %vm5127 = vcmp.eq.f32.partialorder %v5124, %v5126
      %v5128 = vsel %vm5127, %v5123, inf
      %5129 = vmin.xlane.f32.xlu0 %v5128
      %v5130 = vpop.xlane.xlu0 %5129
      %v5131 = vcvt.f32.s32 %v5130
      %v5132 = vcvt.f32.s32 %v5126
      %v5133 = vshll.u32 %v5132, 16
      %v5134 = vadd.s32 %v5133, %v5131
      %vm5135 = vcmp.lt.s32.totalorder %v4861, %v4862
      %v5136 = vsel %vm5135, %v4861, %v4862
      %v5137 = vand.u32 %v5136, 65535
      %v5138 = vshra.s32 %v5136, 16
      %v5139 = vcvt.s32.f32 %v5137
      %v5140 = vcvt.s32.f32 %v5138
      %5141 = vmin.xlane.f32.xlu0 %v5140
      %v5142 = vpop.xlane.xlu0 %5141
      %vm5143 = vcmp.eq.f32.partialorder %v5140, %v5142
      %v5144 = vsel %vm5143, %v5139, inf
      %5145 = vmin.xlane.f32.xlu0 %v5144
      %v5146 = vpop.xlane.xlu0 %5145
      %v5147 = vcvt.f32.s32 %v5146
      %v5148 = vcvt.f32.s32 %v5142
      %v5149 = vshll.u32 %v5148, 16
      %v5150 = vadd.s32 %v5149, %v5147
      %vm5151 = vcmp.lt.s32.totalorder %v4863, %v4864
      %v5152 = vsel %vm5151, %v4863, %v4864
      %v5153 = vand.u32 %v5152, 65535
      %v5154 = vshra.s32 %v5152, 16
      %v5155 = vcvt.s32.f32 %v5153
      %v5156 = vcvt.s32.f32 %v5154
      %5157 = vmin.xlane.f32.xlu0 %v5156
      %v5158 = vpop.xlane.xlu0 %5157
      %vm5159 = vcmp.eq.f32.partialorder %v5156, %v5158
      %v5160 = vsel %vm5159, %v5155, inf
      %5161 = vmin.xlane.f32.xlu0 %v5160
      %v5162 = vpop.xlane.xlu0 %5161
      %v5163 = vcvt.f32.s32 %v5162
      %v5164 = vcvt.f32.s32 %v5158
      %v5165 = vshll.u32 %v5164, 16
      %v5166 = vadd.s32 %v5165, %v5163
      %vm5167 = vcmp.lt.s32.totalorder %v4865, %v4866
      %v5168 = vsel %vm5167, %v4865, %v4866
      %v5169 = vand.u32 %v5168, 65535
      %v5170 = vshra.s32 %v5168, 16
      %v5171 = vcvt.s32.f32 %v5169
      %v5172 = vcvt.s32.f32 %v5170
      %5173 = vmin.xlane.f32.xlu0 %v5172
      %v5174 = vpop.xlane.xlu0 %5173
      %vm5175 = vcmp.eq.f32.partialorder %v5172, %v5174
      %v5176 = vsel %vm5175, %v5171, inf
      %5177 = vmin.xlane.f32.xlu0 %v5176
      %v5178 = vpop.xlane.xlu0 %5177
      %v5179 = vcvt.f32.s32 %v5178
      %v5180 = vcvt.f32.s32 %v5174
      %v5181 = vshll.u32 %v5180, 16
      %v5182 = vadd.s32 %v5181, %v5179
      %vm5183 = vcmp.lt.s32.totalorder %v4867, %v4868
      %v5184 = vsel %vm5183, %v4867, %v4868
      %v5185 = vand.u32 %v5184, 65535
      %v5186 = vshra.s32 %v5184, 16
      %v5187 = vcvt.s32.f32 %v5185
      %v5188 = vcvt.s32.f32 %v5186
      %5189 = vmin.xlane.f32.xlu0 %v5188
      %v5190 = vpop.xlane.xlu0 %5189
      %vm5191 = vcmp.eq.f32.partialorder %v5188, %v5190
      %v5192 = vsel %vm5191, %v5187, inf
      %5193 = vmin.xlane.f32.xlu0 %v5192
      %v5194 = vpop.xlane.xlu0 %5193
      %v5195 = vcvt.f32.s32 %v5194
      %v5196 = vcvt.f32.s32 %v5190
      %v5197 = vshll.u32 %v5196, 16
      %v5198 = vadd.s32 %v5197, %v5195
      %vm5199 = vcmp.lt.s32.totalorder %v4869, %v4870
      %v5200 = vsel %vm5199, %v4869, %v4870
      %v5201 = vand.u32 %v5200, 65535
      %v5202 = vshra.s32 %v5200, 16
      %v5203 = vcvt.s32.f32 %v5201
      %v5204 = vcvt.s32.f32 %v5202
      %5205 = vmin.xlane.f32.xlu0 %v5204
      %v5206 = vpop.xlane.xlu0 %5205
      %vm5207 = vcmp.eq.f32.partialorder %v5204, %v5206
      %v5208 = vsel %vm5207, %v5203, inf
      %5209 = vmin.xlane.f32.xlu0 %v5208
      %v5210 = vpop.xlane.xlu0 %5209
      %v5211 = vcvt.f32.s32 %v5210
      %v5212 = vcvt.f32.s32 %v5206
      %v5213 = vshll.u32 %v5212, 16
      %v5214 = vadd.s32 %v5213, %v5211
      %vm5215 = vcmp.lt.s32.totalorder %v4871, %v4872
      %v5216 = vsel %vm5215, %v4871, %v4872
      %v5217 = vand.u32 %v5216, 65535
      %v5218 = vshra.s32 %v5216, 16
      %v5219 = vcvt.s32.f32 %v5217
      %v5220 = vcvt.s32.f32 %v5218
      %5221 = vmin.xlane.f32.xlu0 %v5220
      %v5222 = vpop.xlane.xlu0 %5221
      %vm5223 = vcmp.eq.f32.partialorder %v5220, %v5222
      %v5224 = vsel %vm5223, %v5219, inf
      %5225 = vmin.xlane.f32.xlu0 %v5224
      %v5226 = vpop.xlane.xlu0 %5225
      %v5227 = vcvt.f32.s32 %v5226
      %v5228 = vcvt.f32.s32 %v5222
      %v5229 = vshll.u32 %v5228, 16
      %v5230 = vadd.s32 %v5229, %v5227
      %vm5231 = vcmp.lt.s32.totalorder %v4873, %v4874
      %v5232 = vsel %vm5231, %v4873, %v4874
      %v5233 = vand.u32 %v5232, 65535
      %v5234 = vshra.s32 %v5232, 16
      %v5235 = vcvt.s32.f32 %v5233
      %v5236 = vcvt.s32.f32 %v5234
      %5237 = vmin.xlane.f32.xlu0 %v5236
      %v5238 = vpop.xlane.xlu0 %5237
      %vm5239 = vcmp.eq.f32.partialorder %v5236, %v5238
      %v5240 = vsel %vm5239, %v5235, inf
      %5241 = vmin.xlane.f32.xlu0 %v5240
      %v5242 = vpop.xlane.xlu0 %5241
      %v5243 = vcvt.f32.s32 %v5242
      %v5244 = vcvt.f32.s32 %v5238
      %v5245 = vshll.u32 %v5244, 16
      %v5246 = vadd.s32 %v5245, %v5243
      %vm5247 = vcmp.lt.s32.totalorder %v4875, %v4876
      %v5248 = vsel %vm5247, %v4875, %v4876
      %v5249 = vand.u32 %v5248, 65535
      %v5250 = vshra.s32 %v5248, 16
      %v5251 = vcvt.s32.f32 %v5249
      %v5252 = vcvt.s32.f32 %v5250
      %5253 = vmin.xlane.f32.xlu0 %v5252
      %v5254 = vpop.xlane.xlu0 %5253
      %vm5255 = vcmp.eq.f32.partialorder %v5252, %v5254
      %v5256 = vsel %vm5255, %v5251, inf
      %5257 = vmin.xlane.f32.xlu0 %v5256
      %v5258 = vpop.xlane.xlu0 %5257
      %v5259 = vcvt.f32.s32 %v5258
      %v5260 = vcvt.f32.s32 %v5254
      %v5261 = vshll.u32 %v5260, 16
      %v5262 = vadd.s32 %v5261, %v5259
      %vm5263 = vcmp.lt.s32.totalorder %v4877, %v4878
      %v5264 = vsel %vm5263, %v4877, %v4878
      %v5265 = vand.u32 %v5264, 65535
      %v5266 = vshra.s32 %v5264, 16
      %v5267 = vcvt.s32.f32 %v5265
      %v5268 = vcvt.s32.f32 %v5266
      %5269 = vmin.xlane.f32.xlu0 %v5268
      %v5270 = vpop.xlane.xlu0 %5269
      %vm5271 = vcmp.eq.f32.partialorder %v5268, %v5270
      %v5272 = vsel %vm5271, %v5267, inf
      %5273 = vmin.xlane.f32.xlu0 %v5272
      %v5274 = vpop.xlane.xlu0 %5273
      %v5275 = vcvt.f32.s32 %v5274
      %v5276 = vcvt.f32.s32 %v5270
      %v5277 = vshll.u32 %v5276, 16
      %v5278 = vadd.s32 %v5277, %v5275
      %vm5279 = vcmp.lt.s32.totalorder %v4879, %v4880
      %v5280 = vsel %vm5279, %v4879, %v4880
      %v5281 = vand.u32 %v5280, 65535
      %v5282 = vshra.s32 %v5280, 16
      %v5283 = vcvt.s32.f32 %v5281
      %v5284 = vcvt.s32.f32 %v5282
      %5285 = vmin.xlane.f32.xlu0 %v5284
      %v5286 = vpop.xlane.xlu0 %5285
      %vm5287 = vcmp.eq.f32.partialorder %v5284, %v5286
      %v5288 = vsel %vm5287, %v5283, inf
      %5289 = vmin.xlane.f32.xlu0 %v5288
      %v5290 = vpop.xlane.xlu0 %5289
      %v5291 = vcvt.f32.s32 %v5290
      %v5292 = vcvt.f32.s32 %v5286
      %v5293 = vshll.u32 %v5292, 16
      %v5294 = vadd.s32 %v5293, %v5291
      %vm5295 = vcmp.lt.s32.totalorder %v4881, %v4882
      %v5296 = vsel %vm5295, %v4881, %v4882
      %v5297 = vand.u32 %v5296, 65535
      %v5298 = vshra.s32 %v5296, 16
      %v5299 = vcvt.s32.f32 %v5297
      %v5300 = vcvt.s32.f32 %v5298
      %5301 = vmin.xlane.f32.xlu0 %v5300
      %v5302 = vpop.xlane.xlu0 %5301
      %vm5303 = vcmp.eq.f32.partialorder %v5300, %v5302
      %v5304 = vsel %vm5303, %v5299, inf
      %5305 = vmin.xlane.f32.xlu0 %v5304
      %v5306 = vpop.xlane.xlu0 %5305
      %v5307 = vcvt.f32.s32 %v5306
      %v5308 = vcvt.f32.s32 %v5302
      %v5309 = vshll.u32 %v5308, 16
      %v5310 = vadd.s32 %v5309, %v5307
      %vm5311 = vcmp.lt.s32.totalorder %v4883, %v4884
      %v5312 = vsel %vm5311, %v4883, %v4884
      %v5313 = vand.u32 %v5312, 65535
      %v5314 = vshra.s32 %v5312, 16
      %v5315 = vcvt.s32.f32 %v5313
      %v5316 = vcvt.s32.f32 %v5314
      %5317 = vmin.xlane.f32.xlu0 %v5316
      %v5318 = vpop.xlane.xlu0 %5317
      %vm5319 = vcmp.eq.f32.partialorder %v5316, %v5318
      %v5320 = vsel %vm5319, %v5315, inf
      %5321 = vmin.xlane.f32.xlu0 %v5320
      %v5322 = vpop.xlane.xlu0 %5321
      %v5323 = vcvt.f32.s32 %v5322
      %v5324 = vcvt.f32.s32 %v5318
      %v5325 = vshll.u32 %v5324, 16
      %v5326 = vadd.s32 %v5325, %v5323
      %vm5327 = vcmp.lt.s32.totalorder %v4885, %v4886
      %v5328 = vsel %vm5327, %v4885, %v4886
      %v5329 = vand.u32 %v5328, 65535
      %v5330 = vshra.s32 %v5328, 16
      %v5331 = vcvt.s32.f32 %v5329
      %v5332 = vcvt.s32.f32 %v5330
      %5333 = vmin.xlane.f32.xlu0 %v5332
      %v5334 = vpop.xlane.xlu0 %5333
      %vm5335 = vcmp.eq.f32.partialorder %v5332, %v5334
      %v5336 = vsel %vm5335, %v5331, inf
      %5337 = vmin.xlane.f32.xlu0 %v5336
      %v5338 = vpop.xlane.xlu0 %5337
      %v5339 = vcvt.f32.s32 %v5338
      %v5340 = vcvt.f32.s32 %v5334
      %v5341 = vshll.u32 %v5340, 16
      %v5342 = vadd.s32 %v5341, %v5339
      %vm5343 = vcmp.lt.s32.totalorder %v4887, %v4888
      %v5344 = vsel %vm5343, %v4887, %v4888
      %v5345 = vand.u32 %v5344, 65535
      %v5346 = vshra.s32 %v5344, 16
      %v5347 = vcvt.s32.f32 %v5345
      %v5348 = vcvt.s32.f32 %v5346
      %5349 = vmin.xlane.f32.xlu0 %v5348
      %v5350 = vpop.xlane.xlu0 %5349
      %vm5351 = vcmp.eq.f32.partialorder %v5348, %v5350
      %v5352 = vsel %vm5351, %v5347, inf
      %5353 = vmin.xlane.f32.xlu0 %v5352
      %v5354 = vpop.xlane.xlu0 %5353
      %v5355 = vcvt.f32.s32 %v5354
      %v5356 = vcvt.f32.s32 %v5350
      %v5357 = vshll.u32 %v5356, 16
      %v5358 = vadd.s32 %v5357, %v5355
      %vm5359 = vcmp.lt.s32.totalorder %v4889, %v4890
      %v5360 = vsel %vm5359, %v4889, %v4890
      %v5361 = vand.u32 %v5360, 65535
      %v5362 = vshra.s32 %v5360, 16
      %v5363 = vcvt.s32.f32 %v5361
      %v5364 = vcvt.s32.f32 %v5362
      %5365 = vmin.xlane.f32.xlu0 %v5364
      %v5366 = vpop.xlane.xlu0 %5365
      %vm5367 = vcmp.eq.f32.partialorder %v5364, %v5366
      %v5368 = vsel %vm5367, %v5363, inf
      %5369 = vmin.xlane.f32.xlu0 %v5368
      %v5370 = vpop.xlane.xlu0 %5369
      %v5371 = vcvt.f32.s32 %v5370
      %v5372 = vcvt.f32.s32 %v5366
      %v5373 = vshll.u32 %v5372, 16
      %v5374 = vadd.s32 %v5373, %v5371
      %vm5375 = vcmp.lt.s32.totalorder %v4891, %v4892
      %v5376 = vsel %vm5375, %v4891, %v4892
      %v5377 = vand.u32 %v5376, 65535
      %v5378 = vshra.s32 %v5376, 16
      %v5379 = vcvt.s32.f32 %v5377
      %v5380 = vcvt.s32.f32 %v5378
      %5381 = vmin.xlane.f32.xlu0 %v5380
      %v5382 = vpop.xlane.xlu0 %5381
      %vm5383 = vcmp.eq.f32.partialorder %v5380, %v5382
      %v5384 = vsel %vm5383, %v5379, inf
      %5385 = vmin.xlane.f32.xlu0 %v5384
      %v5386 = vpop.xlane.xlu0 %5385
      %v5387 = vcvt.f32.s32 %v5386
      %v5388 = vcvt.f32.s32 %v5382
      %v5389 = vshll.u32 %v5388, 16
      %v5390 = vadd.s32 %v5389, %v5387
      %vm5391 = vcmp.lt.s32.totalorder %v4893, %v4894
      %v5392 = vsel %vm5391, %v4893, %v4894
      %v5393 = vand.u32 %v5392, 65535
      %v5394 = vshra.s32 %v5392, 16
      %v5395 = vcvt.s32.f32 %v5393
      %v5396 = vcvt.s32.f32 %v5394
      %5397 = vmin.xlane.f32.xlu0 %v5396
      %v5398 = vpop.xlane.xlu0 %5397
      %vm5399 = vcmp.eq.f32.partialorder %v5396, %v5398
      %v5400 = vsel %vm5399, %v5395, inf
      %5401 = vmin.xlane.f32.xlu0 %v5400
      %v5402 = vpop.xlane.xlu0 %5401
      %v5403 = vcvt.f32.s32 %v5402
      %v5404 = vcvt.f32.s32 %v5398
      %v5405 = vshll.u32 %v5404, 16
      %v5406 = vadd.s32 %v5405, %v5403
      %vm5407 = vcmp.eq.s32.totalorder %v3677, %v4910
      %vm5408 = vcmp.eq.s32.totalorder %v3678, %v4910
      %vm5409 = vcmp.eq.s32.totalorder %v3677, %v4926
      %vm5410 = vcmp.eq.s32.totalorder %v3678, %v4926
      %vm5411 = vcmp.eq.s32.totalorder %v3677, %v4942
      %vm5412 = vcmp.eq.s32.totalorder %v3678, %v4942
      %vm5413 = vcmp.eq.s32.totalorder %v3677, %v4958
      %vm5414 = vcmp.eq.s32.totalorder %v3678, %v4958
      %vm5415 = vcmp.eq.s32.totalorder %v3677, %v4974
      %vm5416 = vcmp.eq.s32.totalorder %v3678, %v4974
      %vm5417 = vcmp.eq.s32.totalorder %v3677, %v4990
      %vm5418 = vcmp.eq.s32.totalorder %v3678, %v4990
      %vm5419 = vcmp.eq.s32.totalorder %v3677, %v5006
      %vm5420 = vcmp.eq.s32.totalorder %v3678, %v5006
      %vm5421 = vcmp.eq.s32.totalorder %v3677, %v5022
      %vm5422 = vcmp.eq.s32.totalorder %v3678, %v5022
      %vm5423 = vcmp.eq.s32.totalorder %v3677, %v5038
      %vm5424 = vcmp.eq.s32.totalorder %v3678, %v5038
      %vm5425 = vcmp.eq.s32.totalorder %v3677, %v5054
      %vm5426 = vcmp.eq.s32.totalorder %v3678, %v5054
      %vm5427 = vcmp.eq.s32.totalorder %v3677, %v5070
      %vm5428 = vcmp.eq.s32.totalorder %v3678, %v5070
      %vm5429 = vcmp.eq.s32.totalorder %v3677, %v5086
      %vm5430 = vcmp.eq.s32.totalorder %v3678, %v5086
      %vm5431 = vcmp.eq.s32.totalorder %v3677, %v5102
      %vm5432 = vcmp.eq.s32.totalorder %v3678, %v5102
      %vm5433 = vcmp.eq.s32.totalorder %v3677, %v5118
      %vm5434 = vcmp.eq.s32.totalorder %v3678, %v5118
      %vm5435 = vcmp.eq.s32.totalorder %v3677, %v5134
      %vm5436 = vcmp.eq.s32.totalorder %v3678, %v5134
      %vm5437 = vcmp.eq.s32.totalorder %v3677, %v5150
      %vm5438 = vcmp.eq.s32.totalorder %v3678, %v5150
      %vm5439 = vcmp.eq.s32.totalorder %v3677, %v5166
      %vm5440 = vcmp.eq.s32.totalorder %v3678, %v5166
      %vm5441 = vcmp.eq.s32.totalorder %v3677, %v5182
      %vm5442 = vcmp.eq.s32.totalorder %v3678, %v5182
      %vm5443 = vcmp.eq.s32.totalorder %v3677, %v5198
      %vm5444 = vcmp.eq.s32.totalorder %v3678, %v5198
      %vm5445 = vcmp.eq.s32.totalorder %v3677, %v5214
      %vm5446 = vcmp.eq.s32.totalorder %v3678, %v5214
      %vm5447 = vcmp.eq.s32.totalorder %v3677, %v5230
      %vm5448 = vcmp.eq.s32.totalorder %v3678, %v5230
      %vm5449 = vcmp.eq.s32.totalorder %v3677, %v5246
      %vm5450 = vcmp.eq.s32.totalorder %v3678, %v5246
      %vm5451 = vcmp.eq.s32.totalorder %v3677, %v5262
      %vm5452 = vcmp.eq.s32.totalorder %v3678, %v5262
      %vm5453 = vcmp.eq.s32.totalorder %v3677, %v5278
      %vm5454 = vcmp.eq.s32.totalorder %v3678, %v5278
      %vm5455 = vcmp.eq.s32.totalorder %v3677, %v5294
      %vm5456 = vcmp.eq.s32.totalorder %v3678, %v5294
      %vm5457 = vcmp.eq.s32.totalorder %v3677, %v5310
      %vm5458 = vcmp.eq.s32.totalorder %v3678, %v5310
      %vm5459 = vcmp.eq.s32.totalorder %v3677, %v5326
      %vm5460 = vcmp.eq.s32.totalorder %v3678, %v5326
      %vm5461 = vcmp.eq.s32.totalorder %v3677, %v5342
      %vm5462 = vcmp.eq.s32.totalorder %v3678, %v5342
      %vm5463 = vcmp.eq.s32.totalorder %v3677, %v5358
      %vm5464 = vcmp.eq.s32.totalorder %v3678, %v5358
      %vm5465 = vcmp.eq.s32.totalorder %v3677, %v5374
      %vm5466 = vcmp.eq.s32.totalorder %v3678, %v5374
      %vm5467 = vcmp.eq.s32.totalorder %v3677, %v5390
      %vm5468 = vcmp.eq.s32.totalorder %v3678, %v5390
      %vm5469 = vcmp.eq.s32.totalorder %v3677, %v5406
      %vm5470 = vcmp.eq.s32.totalorder %v3678, %v5406
      %v5471 = vsel %vm5407, 1, 0
      %v5472 = vsel %vm5408, 1, 0
      %v5473 = vsel %vm5409, 1, 0
      %v5474 = vsel %vm5410, 1, 0
      %v5475 = vsel %vm5411, 1, 0
      %v5476 = vsel %vm5412, 1, 0
      %v5477 = vsel %vm5413, 1, 0
      %v5478 = vsel %vm5414, 1, 0
      %v5479 = vsel %vm5415, 1, 0
      %v5480 = vsel %vm5416, 1, 0
      %v5481 = vsel %vm5417, 1, 0
      %v5482 = vsel %vm5418, 1, 0
      %v5483 = vsel %vm5419, 1, 0
      %v5484 = vsel %vm5420, 1, 0
      %v5485 = vsel %vm5421, 1, 0
      %v5486 = vsel %vm5422, 1, 0
      %v5487 = vsel %vm5423, 1, 0
      %v5488 = vsel %vm5424, 1, 0
      %v5489 = vsel %vm5425, 1, 0
      %v5490 = vsel %vm5426, 1, 0
      %v5491 = vsel %vm5427, 1, 0
      %v5492 = vsel %vm5428, 1, 0
      %v5493 = vsel %vm5429, 1, 0
      %v5494 = vsel %vm5430, 1, 0
      %v5495 = vsel %vm5431, 1, 0
      %v5496 = vsel %vm5432, 1, 0
      %v5497 = vsel %vm5433, 1, 0
      %v5498 = vsel %vm5434, 1, 0
      %v5499 = vsel %vm5435, 1, 0
      %v5500 = vsel %vm5436, 1, 0
      %v5501 = vsel %vm5437, 1, 0
      %v5502 = vsel %vm5438, 1, 0
      %v5503 = vsel %vm5439, 1, 0
      %v5504 = vsel %vm5440, 1, 0
      %v5505 = vsel %vm5441, 1, 0
      %v5506 = vsel %vm5442, 1, 0
      %v5507 = vsel %vm5443, 1, 0
      %v5508 = vsel %vm5444, 1, 0
      %v5509 = vsel %vm5445, 1, 0
      %v5510 = vsel %vm5446, 1, 0
      %v5511 = vsel %vm5447, 1, 0
      %v5512 = vsel %vm5448, 1, 0
      %v5513 = vsel %vm5449, 1, 0
      %v5514 = vsel %vm5450, 1, 0
      %v5515 = vsel %vm5451, 1, 0
      %v5516 = vsel %vm5452, 1, 0
      %v5517 = vsel %vm5453, 1, 0
      %v5518 = vsel %vm5454, 1, 0
      %v5519 = vsel %vm5455, 1, 0
      %v5520 = vsel %vm5456, 1, 0
      %v5521 = vsel %vm5457, 1, 0
      %v5522 = vsel %vm5458, 1, 0
      %v5523 = vsel %vm5459, 1, 0
      %v5524 = vsel %vm5460, 1, 0
      %v5525 = vsel %vm5461, 1, 0
      %v5526 = vsel %vm5462, 1, 0
      %v5527 = vsel %vm5463, 1, 0
      %v5528 = vsel %vm5464, 1, 0
      %v5529 = vsel %vm5465, 1, 0
      %v5530 = vsel %vm5466, 1, 0
      %v5531 = vsel %vm5467, 1, 0
      %v5532 = vsel %vm5468, 1, 0
      %v5533 = vsel %vm5469, 1, 0
      %v5534 = vsel %vm5470, 1, 0
      %v5535 = vcvt.s32.f32 %v5471
      %v5536 = vcvt.s32.f32 %v5472
      %v5537 = vcvt.s32.f32 %v5473
      %v5538 = vcvt.s32.f32 %v5474
      %v5539 = vcvt.s32.f32 %v5475
      %v5540 = vcvt.s32.f32 %v5476
      %v5541 = vcvt.s32.f32 %v5477
      %v5542 = vcvt.s32.f32 %v5478
      %v5543 = vcvt.s32.f32 %v5479
      %v5544 = vcvt.s32.f32 %v5480
      %v5545 = vcvt.s32.f32 %v5481
      %v5546 = vcvt.s32.f32 %v5482
      %v5547 = vcvt.s32.f32 %v5483
      %v5548 = vcvt.s32.f32 %v5484
      %v5549 = vcvt.s32.f32 %v5485
      %v5550 = vcvt.s32.f32 %v5486
      %v5551 = vcvt.s32.f32 %v5487
      %v5552 = vcvt.s32.f32 %v5488
      %v5553 = vcvt.s32.f32 %v5489
      %v5554 = vcvt.s32.f32 %v5490
      %v5555 = vcvt.s32.f32 %v5491
      %v5556 = vcvt.s32.f32 %v5492
      %v5557 = vcvt.s32.f32 %v5493
      %v5558 = vcvt.s32.f32 %v5494
      %v5559 = vcvt.s32.f32 %v5495
      %v5560 = vcvt.s32.f32 %v5496
      %v5561 = vcvt.s32.f32 %v5497
      %v5562 = vcvt.s32.f32 %v5498
      %v5563 = vcvt.s32.f32 %v5499
      %v5564 = vcvt.s32.f32 %v5500
      %v5565 = vcvt.s32.f32 %v5501
      %v5566 = vcvt.s32.f32 %v5502
      %v5567 = vcvt.s32.f32 %v5503
      %v5568 = vcvt.s32.f32 %v5504
      %v5569 = vcvt.s32.f32 %v5505
      %v5570 = vcvt.s32.f32 %v5506
      %v5571 = vcvt.s32.f32 %v5507
      %v5572 = vcvt.s32.f32 %v5508
      %v5573 = vcvt.s32.f32 %v5509
      %v5574 = vcvt.s32.f32 %v5510
      %v5575 = vcvt.s32.f32 %v5511
      %v5576 = vcvt.s32.f32 %v5512
      %v5577 = vcvt.s32.f32 %v5513
      %v5578 = vcvt.s32.f32 %v5514
      %v5579 = vcvt.s32.f32 %v5515
      %v5580 = vcvt.s32.f32 %v5516
      %v5581 = vcvt.s32.f32 %v5517
      %v5582 = vcvt.s32.f32 %v5518
      %v5583 = vcvt.s32.f32 %v5519
      %v5584 = vcvt.s32.f32 %v5520
      %v5585 = vcvt.s32.f32 %v5521
      %v5586 = vcvt.s32.f32 %v5522
      %v5587 = vcvt.s32.f32 %v5523
      %v5588 = vcvt.s32.f32 %v5524
      %v5589 = vcvt.s32.f32 %v5525
      %v5590 = vcvt.s32.f32 %v5526
      %v5591 = vcvt.s32.f32 %v5527
      %v5592 = vcvt.s32.f32 %v5528
      %v5593 = vcvt.s32.f32 %v5529
      %v5594 = vcvt.s32.f32 %v5530
      %v5595 = vcvt.s32.f32 %v5531
      %v5596 = vcvt.s32.f32 %v5532
      %v5597 = vcvt.s32.f32 %v5533
      %v5598 = vcvt.s32.f32 %v5534
      %5599 = vmatprep.subr.mxu0 %v5566
      %5600 = vmatpush1.xpose.msra.mxu0 %v5565
      %5601 = vmatprep.subr.mxu0 %v5564
      %5602 = vmatpush1.xpose.msra.mxu0 %v5563
      %5603 = vmatprep.subr.mxu0 %v5562
      %5604 = vmatpush1.xpose.msra.mxu0 %v5561
      %5605 = vmatprep.subr.mxu0 %v5560
      %5606 = vmatpush1.xpose.msra.mxu0 %v5559
      %5607 = vmatprep.subr.mxu0 %v5558
      %5608 = vmatpush1.xpose.msra.mxu0 %v5557
      %5609 = vmatprep.subr.mxu0 %v5556
      %5610 = vmatpush1.xpose.msra.mxu0 %v5555
      %5611 = vmatprep.subr.mxu0 %v5554
      %5612 = vmatpush1.xpose.msra.mxu0 %v5553
      %5613 = vmatprep.subr.mxu0 %v5552
      %5614 = vmatpush1.xpose.msra.mxu0 %v5551
      %5615 = vmatprep.subr.mxu0 %v5550
      %5616 = vmatpush1.xpose.msra.mxu0 %v5549
      %5617 = vmatprep.subr.mxu0 %v5548
      %5618 = vmatpush1.xpose.msra.mxu0 %v5547
      %5619 = vmatprep.subr.mxu0 %v5546
      %5620 = vmatpush1.xpose.msra.mxu0 %v5545
      %5621 = vmatprep.subr.mxu0 %v5544
      %5622 = vmatpush1.xpose.msra.mxu0 %v5543
      %5623 = vmatprep.subr.mxu0 %v5542
      %5624 = vmatpush1.xpose.msra.mxu0 %v5541
      %5625 = vmatprep.subr.mxu0 %v5540
      %5626 = vmatpush1.xpose.msra.mxu0 %v5539
      %5627 = vmatprep.subr.mxu0 %v5538
      %5628 = vmatpush1.xpose.msra.mxu0 %v5537
      %5629 = vmatprep.subr.mxu0 %v5536
      %5630 = vmatpush1.xpose.msra.mxu0 %v5535
      %5631 = vmatprep.subr.mxu0 %v5598
      %5632 = vmatpush2.xpose.msra.mxu0 %v5597
      %5633 = vmatprep.subr.mxu0 %v5596
      %5634 = vmatpush2.xpose.msra.mxu0 %v5595
      %5635 = vmatprep.subr.mxu0 %v5594
      %5636 = vmatpush2.xpose.msra.mxu0 %v5593
      %5637 = vmatprep.subr.mxu0 %v5592
      %5638 = vmatpush2.xpose.msra.mxu0 %v5591
      %5639 = vmatprep.subr.mxu0 %v5590
      %5640 = vmatpush2.xpose.msra.mxu0 %v5589
      %5641 = vmatprep.subr.mxu0 %v5588
      %5642 = vmatpush2.xpose.msra.mxu0 %v5587
      %5643 = vmatprep.subr.mxu0 %v5586
      %5644 = vmatpush2.xpose.msra.mxu0 %v5585
      %5645 = vmatprep.subr.mxu0 %v5584
      %5646 = vmatpush2.xpose.msra.mxu0 %v5583
      %5647 = vmatprep.subr.mxu0 %v5582
      %5648 = vmatpush2.xpose.msra.mxu0 %v5581
      %5649 = vmatprep.subr.mxu0 %v5580
      %5650 = vmatpush2.xpose.msra.mxu0 %v5579
      %5651 = vmatprep.subr.mxu0 %v5578
      %5652 = vmatpush2.xpose.msra.mxu0 %v5577
      %5653 = vmatprep.subr.mxu0 %v5576
      %5654 = vmatpush2.xpose.msra.mxu0 %v5575
      %5655 = vmatprep.subr.mxu0 %v5574
      %5656 = vmatpush2.xpose.msra.mxu0 %v5573
      %5657 = vmatprep.subr.mxu0 %v5572
      %5658 = vmatpush2.xpose.msra.mxu0 %v5571
      %5659 = vmatprep.subr.mxu0 %v5570
      %5660 = vmatpush2.xpose.msra.mxu0 %v5569
      %5661 = vmatprep.subr.mxu0 %v5568
      %5662 = vmatpush2.xpose.msra.mxu0 %v5567
      %5663 = vmatprep.mubr.f32.mxu0 %v3524
      %5664 = vmatmul.mubr.f32.gmra.mxu0 %v3522
      %v5665 = vpop.f32.mrf.mxu0
      %v5666 = vadd.f32 0.0, %v5665
      %v5667 = vpop.f32.mrf.mxu0
      %v5668 = vadd.f32 0.0, %v5667
      %5669 = vdwg.mxu0
      %5670 = vmatprep.subr.mxu0 %v4574
      %5671 = vmatpush1.xpose.msra.mxu0 %v4573
      %5672 = vmatprep.subr.mxu0 %v4572
      %5673 = vmatpush1.xpose.msra.mxu0 %v4571
      %5674 = vmatprep.subr.mxu0 %v4570
      %5675 = vmatpush1.xpose.msra.mxu0 %v4569
      %5676 = vmatprep.subr.mxu0 %v4568
      %5677 = vmatpush1.xpose.msra.mxu0 %v4567
      %5678 = vmatprep.subr.mxu0 %v4566
      %5679 = vmatpush1.xpose.msra.mxu0 %v4565
      %5680 = vmatprep.subr.mxu0 %v4564
      %5681 = vmatpush1.xpose.msra.mxu0 %v4563
      %5682 = vmatprep.subr.mxu0 %v4562
      %5683 = vmatpush1.xpose.msra.mxu0 %v4561
      %5684 = vmatprep.subr.mxu0 %v4560
      %5685 = vmatpush1.xpose.msra.mxu0 %v4559
      %5686 = vmatprep.subr.mxu0 %v4558
      %5687 = vmatpush1.xpose.msra.mxu0 %v4557
      %5688 = vmatprep.subr.mxu0 %v4556
      %5689 = vmatpush1.xpose.msra.mxu0 %v4555
      %5690 = vmatprep.subr.mxu0 %v4554
      %5691 = vmatpush1.xpose.msra.mxu0 %v4553
      %5692 = vmatprep.subr.mxu0 %v4552
      %5693 = vmatpush1.xpose.msra.mxu0 %v4551
      %5694 = vmatprep.subr.mxu0 %v4550
      %5695 = vmatpush1.xpose.msra.mxu0 %v4549
      %5696 = vmatprep.subr.mxu0 %v4548
      %5697 = vmatpush1.xpose.msra.mxu0 %v4547
      %5698 = vmatprep.subr.mxu0 %v4546
      %5699 = vmatpush1.xpose.msra.mxu0 %v4545
      %5700 = vmatprep.subr.mxu0 %v4544
      %5701 = vmatpush1.xpose.msra.mxu0 %v4543
      %5702 = vmatprep.subr.mxu0 %v4606
      %5703 = vmatpush2.xpose.msra.mxu0 %v4605
      %5704 = vmatprep.subr.mxu0 %v4604
      %5705 = vmatpush2.xpose.msra.mxu0 %v4603
      %5706 = vmatprep.subr.mxu0 %v4602
      %5707 = vmatpush2.xpose.msra.mxu0 %v4601
      %5708 = vmatprep.subr.mxu0 %v4600
      %5709 = vmatpush2.xpose.msra.mxu0 %v4599
      %5710 = vmatprep.subr.mxu0 %v4598
      %5711 = vmatpush2.xpose.msra.mxu0 %v4597
      %5712 = vmatprep.subr.mxu0 %v4596
      %5713 = vmatpush2.xpose.msra.mxu0 %v4595
      %5714 = vmatprep.subr.mxu0 %v4594
      %5715 = vmatpush2.xpose.msra.mxu0 %v4593
      %5716 = vmatprep.subr.mxu0 %v4592
      %5717 = vmatpush2.xpose.msra.mxu0 %v4591
      %5718 = vmatprep.subr.mxu0 %v4590
      %5719 = vmatpush2.xpose.msra.mxu0 %v4589
      %5720 = vmatprep.subr.mxu0 %v4588
      %5721 = vmatpush2.xpose.msra.mxu0 %v4587
      %5722 = vmatprep.subr.mxu0 %v4586
      %5723 = vmatpush2.xpose.msra.mxu0 %v4585
      %5724 = vmatprep.subr.mxu0 %v4584
      %5725 = vmatpush2.xpose.msra.mxu0 %v4583
      %5726 = vmatprep.subr.mxu0 %v4582
      %5727 = vmatpush2.xpose.msra.mxu0 %v4581
      %5728 = vmatprep.subr.mxu0 %v4580
      %5729 = vmatpush2.xpose.msra.mxu0 %v4579
      %5730 = vmatprep.subr.mxu0 %v4578
      %5731 = vmatpush2.xpose.msra.mxu0 %v4577
      %5732 = vmatprep.subr.mxu0 %v4576
      %5733 = vmatpush2.xpose.msra.mxu0 %v4575
      %5734 = vmatprep.mubr.f32.mxu0 %v3449
      %5735 = vmatmul.mubr.f32.gmra.mxu0 %v3447
      %v5736 = vpop.f32.mrf.mxu0
      %v5737 = vadd.f32 %v5666, %v5736
      %v5738 = vpop.f32.mrf.mxu0
      %v5739 = vadd.f32 %v5668, %v5738
      %5740 = vdwg.mxu0
      %v5741 = vsel %vm5407, -1e+30, %v4607
      %v5742 = vsel %vm5408, -1e+30, %v4608
      %v5743 = vsel %vm5409, -1e+30, %v4609
      %v5744 = vsel %vm5410, -1e+30, %v4610
      %v5745 = vsel %vm5411, -1e+30, %v4611
      %v5746 = vsel %vm5412, -1e+30, %v4612
      %v5747 = vsel %vm5413, -1e+30, %v4613
      %v5748 = vsel %vm5414, -1e+30, %v4614
      %v5749 = vsel %vm5415, -1e+30, %v4615
      %v5750 = vsel %vm5416, -1e+30, %v4616
      %v5751 = vsel %vm5417, -1e+30, %v4617
      %v5752 = vsel %vm5418, -1e+30, %v4618
      %v5753 = vsel %vm5419, -1e+30, %v4619
      %v5754 = vsel %vm5420, -1e+30, %v4620
      %v5755 = vsel %vm5421, -1e+30, %v4621
      %v5756 = vsel %vm5422, -1e+30, %v4622
      %v5757 = vsel %vm5423, -1e+30, %v4623
      %v5758 = vsel %vm5424, -1e+30, %v4624
      %v5759 = vsel %vm5425, -1e+30, %v4625
      %v5760 = vsel %vm5426, -1e+30, %v4626
      %v5761 = vsel %vm5427, -1e+30, %v4627
      %v5762 = vsel %vm5428, -1e+30, %v4628
      %v5763 = vsel %vm5429, -1e+30, %v4629
      %v5764 = vsel %vm5430, -1e+30, %v4630
      %v5765 = vsel %vm5431, -1e+30, %v4631
      %v5766 = vsel %vm5432, -1e+30, %v4632
      %v5767 = vsel %vm5433, -1e+30, %v4633
      %v5768 = vsel %vm5434, -1e+30, %v4634
      %v5769 = vsel %vm5435, -1e+30, %v4635
      %v5770 = vsel %vm5436, -1e+30, %v4636
      %v5771 = vsel %vm5437, -1e+30, %v4637
      %v5772 = vsel %vm5438, -1e+30, %v4638
      %v5773 = vsel %vm5439, -1e+30, %v4639
      %v5774 = vsel %vm5440, -1e+30, %v4640
      %v5775 = vsel %vm5441, -1e+30, %v4641
      %v5776 = vsel %vm5442, -1e+30, %v4642
      %v5777 = vsel %vm5443, -1e+30, %v4643
      %v5778 = vsel %vm5444, -1e+30, %v4644
      %v5779 = vsel %vm5445, -1e+30, %v4645
      %v5780 = vsel %vm5446, -1e+30, %v4646
      %v5781 = vsel %vm5447, -1e+30, %v4647
      %v5782 = vsel %vm5448, -1e+30, %v4648
      %v5783 = vsel %vm5449, -1e+30, %v4649
      %v5784 = vsel %vm5450, -1e+30, %v4650
      %v5785 = vsel %vm5451, -1e+30, %v4651
      %v5786 = vsel %vm5452, -1e+30, %v4652
      %v5787 = vsel %vm5453, -1e+30, %v4653
      %v5788 = vsel %vm5454, -1e+30, %v4654
      %v5789 = vsel %vm5455, -1e+30, %v4655
      %v5790 = vsel %vm5456, -1e+30, %v4656
      %v5791 = vsel %vm5457, -1e+30, %v4657
      %v5792 = vsel %vm5458, -1e+30, %v4658
      %v5793 = vsel %vm5459, -1e+30, %v4659
      %v5794 = vsel %vm5460, -1e+30, %v4660
      %v5795 = vsel %vm5461, -1e+30, %v4661
      %v5796 = vsel %vm5462, -1e+30, %v4662
      %v5797 = vsel %vm5463, -1e+30, %v4663
      %v5798 = vsel %vm5464, -1e+30, %v4664
      %v5799 = vsel %vm5465, -1e+30, %v4665
      %v5800 = vsel %vm5466, -1e+30, %v4666
      %v5801 = vsel %vm5467, -1e+30, %v4667
      %v5802 = vsel %vm5468, -1e+30, %v4668
      %v5803 = vsel %vm5469, -1e+30, %v4669
      %v5804 = vsel %vm5470, -1e+30, %v4670
      %v5805 = vmax.f32 %v5741, %v5742
      %5806 = vmax.xlane.f32.xlu0 %v5805
      %v5807 = vpop.xlane.xlu0 %5806
      %v5808 = vmax.f32 %v5743, %v5744
      %5809 = vmax.xlane.f32.xlu0 %v5808
      %v5810 = vpop.xlane.xlu0 %5809
      %v5811 = vmax.f32 %v5745, %v5746
      %5812 = vmax.xlane.f32.xlu0 %v5811
      %v5813 = vpop.xlane.xlu0 %5812
      %v5814 = vmax.f32 %v5747, %v5748
      %5815 = vmax.xlane.f32.xlu0 %v5814
      %v5816 = vpop.xlane.xlu0 %5815
      %v5817 = vmax.f32 %v5749, %v5750
      %5818 = vmax.xlane.f32.xlu0 %v5817
      %v5819 = vpop.xlane.xlu0 %5818
      %v5820 = vmax.f32 %v5751, %v5752
      %5821 = vmax.xlane.f32.xlu0 %v5820
      %v5822 = vpop.xlane.xlu0 %5821
      %v5823 = vmax.f32 %v5753, %v5754
      %5824 = vmax.xlane.f32.xlu0 %v5823
      %v5825 = vpop.xlane.xlu0 %5824
      %v5826 = vmax.f32 %v5755, %v5756
      %5827 = vmax.xlane.f32.xlu0 %v5826
      %v5828 = vpop.xlane.xlu0 %5827
      %v5829 = vmax.f32 %v5757, %v5758
      %5830 = vmax.xlane.f32.xlu0 %v5829
      %v5831 = vpop.xlane.xlu0 %5830
      %v5832 = vmax.f32 %v5759, %v5760
      %5833 = vmax.xlane.f32.xlu0 %v5832
      %v5834 = vpop.xlane.xlu0 %5833
      %v5835 = vmax.f32 %v5761, %v5762
      %5836 = vmax.xlane.f32.xlu0 %v5835
      %v5837 = vpop.xlane.xlu0 %5836
      %v5838 = vmax.f32 %v5763, %v5764
      %5839 = vmax.xlane.f32.xlu0 %v5838
      %v5840 = vpop.xlane.xlu0 %5839
      %v5841 = vmax.f32 %v5765, %v5766
      %5842 = vmax.xlane.f32.xlu0 %v5841
      %v5843 = vpop.xlane.xlu0 %5842
      %v5844 = vmax.f32 %v5767, %v5768
      %5845 = vmax.xlane.f32.xlu0 %v5844
      %v5846 = vpop.xlane.xlu0 %5845
      %v5847 = vmax.f32 %v5769, %v5770
      %5848 = vmax.xlane.f32.xlu0 %v5847
      %v5849 = vpop.xlane.xlu0 %5848
      %v5850 = vmax.f32 %v5771, %v5772
      %5851 = vmax.xlane.f32.xlu0 %v5850
      %v5852 = vpop.xlane.xlu0 %5851
      %v5853 = vmax.f32 %v5773, %v5774
      %5854 = vmax.xlane.f32.xlu0 %v5853
      %v5855 = vpop.xlane.xlu0 %5854
      %v5856 = vmax.f32 %v5775, %v5776
      %5857 = vmax.xlane.f32.xlu0 %v5856
      %v5858 = vpop.xlane.xlu0 %5857
      %v5859 = vmax.f32 %v5777, %v5778
      %5860 = vmax.xlane.f32.xlu0 %v5859
      %v5861 = vpop.xlane.xlu0 %5860
      %v5862 = vmax.f32 %v5779, %v5780
      %5863 = vmax.xlane.f32.xlu0 %v5862
      %v5864 = vpop.xlane.xlu0 %5863
      %v5865 = vmax.f32 %v5781, %v5782
      %5866 = vmax.xlane.f32.xlu0 %v5865
      %v5867 = vpop.xlane.xlu0 %5866
      %v5868 = vmax.f32 %v5783, %v5784
      %5869 = vmax.xlane.f32.xlu0 %v5868
      %v5870 = vpop.xlane.xlu0 %5869
      %v5871 = vmax.f32 %v5785, %v5786
      %5872 = vmax.xlane.f32.xlu0 %v5871
      %v5873 = vpop.xlane.xlu0 %5872
      %v5874 = vmax.f32 %v5787, %v5788
      %5875 = vmax.xlane.f32.xlu0 %v5874
      %v5876 = vpop.xlane.xlu0 %5875
      %v5877 = vmax.f32 %v5789, %v5790
      %5878 = vmax.xlane.f32.xlu0 %v5877
      %v5879 = vpop.xlane.xlu0 %5878
      %v5880 = vmax.f32 %v5791, %v5792
      %5881 = vmax.xlane.f32.xlu0 %v5880
      %v5882 = vpop.xlane.xlu0 %5881
      %v5883 = vmax.f32 %v5793, %v5794
      %5884 = vmax.xlane.f32.xlu0 %v5883
      %v5885 = vpop.xlane.xlu0 %5884
      %v5886 = vmax.f32 %v5795, %v5796
      %5887 = vmax.xlane.f32.xlu0 %v5886
      %v5888 = vpop.xlane.xlu0 %5887
      %v5889 = vmax.f32 %v5797, %v5798
      %5890 = vmax.xlane.f32.xlu0 %v5889
      %v5891 = vpop.xlane.xlu0 %5890
      %v5892 = vmax.f32 %v5799, %v5800
      %5893 = vmax.xlane.f32.xlu0 %v5892
      %v5894 = vpop.xlane.xlu0 %5893
      %v5895 = vmax.f32 %v5801, %v5802
      %5896 = vmax.xlane.f32.xlu0 %v5895
      %v5897 = vpop.xlane.xlu0 %5896
      %v5898 = vmax.f32 %v5803, %v5804
      %5899 = vmax.xlane.f32.xlu0 %v5898
      %v5900 = vpop.xlane.xlu0 %5899
      %vm5901 = vcmp.ge.f32.partialorder %v5741, %v5807
      %vm5902 = vcmp.ge.f32.partialorder %v5742, %v5807
      %vm5903 = vcmp.ge.f32.partialorder %v5743, %v5810
      %vm5904 = vcmp.ge.f32.partialorder %v5744, %v5810
      %vm5905 = vcmp.ge.f32.partialorder %v5745, %v5813
      %vm5906 = vcmp.ge.f32.partialorder %v5746, %v5813
      %vm5907 = vcmp.ge.f32.partialorder %v5747, %v5816
      %vm5908 = vcmp.ge.f32.partialorder %v5748, %v5816
      %vm5909 = vcmp.ge.f32.partialorder %v5749, %v5819
      %vm5910 = vcmp.ge.f32.partialorder %v5750, %v5819
      %vm5911 = vcmp.ge.f32.partialorder %v5751, %v5822
      %vm5912 = vcmp.ge.f32.partialorder %v5752, %v5822
      %vm5913 = vcmp.ge.f32.partialorder %v5753, %v5825
      %vm5914 = vcmp.ge.f32.partialorder %v5754, %v5825
      %vm5915 = vcmp.ge.f32.partialorder %v5755, %v5828
      %vm5916 = vcmp.ge.f32.partialorder %v5756, %v5828
      %vm5917 = vcmp.ge.f32.partialorder %v5757, %v5831
      %vm5918 = vcmp.ge.f32.partialorder %v5758, %v5831
      %vm5919 = vcmp.ge.f32.partialorder %v5759, %v5834
      %vm5920 = vcmp.ge.f32.partialorder %v5760, %v5834
      %vm5921 = vcmp.ge.f32.partialorder %v5761, %v5837
      %vm5922 = vcmp.ge.f32.partialorder %v5762, %v5837
      %vm5923 = vcmp.ge.f32.partialorder %v5763, %v5840
      %vm5924 = vcmp.ge.f32.partialorder %v5764, %v5840
      %vm5925 = vcmp.ge.f32.partialorder %v5765, %v5843
      %vm5926 = vcmp.ge.f32.partialorder %v5766, %v5843
      %vm5927 = vcmp.ge.f32.partialorder %v5767, %v5846
      %vm5928 = vcmp.ge.f32.partialorder %v5768, %v5846
      %vm5929 = vcmp.ge.f32.partialorder %v5769, %v5849
      %vm5930 = vcmp.ge.f32.partialorder %v5770, %v5849
      %vm5931 = vcmp.ge.f32.partialorder %v5771, %v5852
      %vm5932 = vcmp.ge.f32.partialorder %v5772, %v5852
      %vm5933 = vcmp.ge.f32.partialorder %v5773, %v5855
      %vm5934 = vcmp.ge.f32.partialorder %v5774, %v5855
      %vm5935 = vcmp.ge.f32.partialorder %v5775, %v5858
      %vm5936 = vcmp.ge.f32.partialorder %v5776, %v5858
      %vm5937 = vcmp.ge.f32.partialorder %v5777, %v5861
      %vm5938 = vcmp.ge.f32.partialorder %v5778, %v5861
      %vm5939 = vcmp.ge.f32.partialorder %v5779, %v5864
      %vm5940 = vcmp.ge.f32.partialorder %v5780, %v5864
      %vm5941 = vcmp.ge.f32.partialorder %v5781, %v5867
      %vm5942 = vcmp.ge.f32.partialorder %v5782, %v5867
      %vm5943 = vcmp.ge.f32.partialorder %v5783, %v5870
      %vm5944 = vcmp.ge.f32.partialorder %v5784, %v5870
      %vm5945 = vcmp.ge.f32.partialorder %v5785, %v5873
      %vm5946 = vcmp.ge.f32.partialorder %v5786, %v5873
      %vm5947 = vcmp.ge.f32.partialorder %v5787, %v5876
      %vm5948 = vcmp.ge.f32.partialorder %v5788, %v5876
      %vm5949 = vcmp.ge.f32.partialorder %v5789, %v5879
      %vm5950 = vcmp.ge.f32.partialorder %v5790, %v5879
      %vm5951 = vcmp.ge.f32.partialorder %v5791, %v5882
      %vm5952 = vcmp.ge.f32.partialorder %v5792, %v5882
      %vm5953 = vcmp.ge.f32.partialorder %v5793, %v5885
      %vm5954 = vcmp.ge.f32.partialorder %v5794, %v5885
      %vm5955 = vcmp.ge.f32.partialorder %v5795, %v5888
      %vm5956 = vcmp.ge.f32.partialorder %v5796, %v5888
      %vm5957 = vcmp.ge.f32.partialorder %v5797, %v5891
      %vm5958 = vcmp.ge.f32.partialorder %v5798, %v5891
      %vm5959 = vcmp.ge.f32.partialorder %v5799, %v5894
      %vm5960 = vcmp.ge.f32.partialorder %v5800, %v5894
      %vm5961 = vcmp.ge.f32.partialorder %v5801, %v5897
      %vm5962 = vcmp.ge.f32.partialorder %v5802, %v5897
      %vm5963 = vcmp.ge.f32.partialorder %v5803, %v5900
      %vm5964 = vcmp.ge.f32.partialorder %v5804, %v5900
      %v5965 = vsel %vm5901, %v3677, 256
      %v5966 = vsel %vm5902, %v3678, 256
      %v5967 = vsel %vm5903, %v3677, 256
      %v5968 = vsel %vm5904, %v3678, 256
      %v5969 = vsel %vm5905, %v3677, 256
      %v5970 = vsel %vm5906, %v3678, 256
      %v5971 = vsel %vm5907, %v3677, 256
      %v5972 = vsel %vm5908, %v3678, 256
      %v5973 = vsel %vm5909, %v3677, 256
      %v5974 = vsel %vm5910, %v3678, 256
      %v5975 = vsel %vm5911, %v3677, 256
      %v5976 = vsel %vm5912, %v3678, 256
      %v5977 = vsel %vm5913, %v3677, 256
      %v5978 = vsel %vm5914, %v3678, 256
      %v5979 = vsel %vm5915, %v3677, 256
      %v5980 = vsel %vm5916, %v3678, 256
      %v5981 = vsel %vm5917, %v3677, 256
      %v5982 = vsel %vm5918, %v3678, 256
      %v5983 = vsel %vm5919, %v3677, 256
      %v5984 = vsel %vm5920, %v3678, 256
      %v5985 = vsel %vm5921, %v3677, 256
      %v5986 = vsel %vm5922, %v3678, 256
      %v5987 = vsel %vm5923, %v3677, 256
      %v5988 = vsel %vm5924, %v3678, 256
      %v5989 = vsel %vm5925, %v3677, 256
      %v5990 = vsel %vm5926, %v3678, 256
      %v5991 = vsel %vm5927, %v3677, 256
      %v5992 = vsel %vm5928, %v3678, 256
      %v5993 = vsel %vm5929, %v3677, 256
      %v5994 = vsel %vm5930, %v3678, 256
      %v5995 = vsel %vm5931, %v3677, 256
      %v5996 = vsel %vm5932, %v3678, 256
      %v5997 = vsel %vm5933, %v3677, 256
      %v5998 = vsel %vm5934, %v3678, 256
      %v5999 = vsel %vm5935, %v3677, 256
      %v6000 = vsel %vm5936, %v3678, 256
      %v6001 = vsel %vm5937, %v3677, 256
      %v6002 = vsel %vm5938, %v3678, 256
      %v6003 = vsel %vm5939, %v3677, 256
      %v6004 = vsel %vm5940, %v3678, 256
      %v6005 = vsel %vm5941, %v3677, 256
      %v6006 = vsel %vm5942, %v3678, 256
      %v6007 = vsel %vm5943, %v3677, 256
      %v6008 = vsel %vm5944, %v3678, 256
      %v6009 = vsel %vm5945, %v3677, 256
      %v6010 = vsel %vm5946, %v3678, 256
      %v6011 = vsel %vm5947, %v3677, 256
      %v6012 = vsel %vm5948, %v3678, 256
      %v6013 = vsel %vm5949, %v3677, 256
      %v6014 = vsel %vm5950, %v3678, 256
      %v6015 = vsel %vm5951, %v3677, 256
      %v6016 = vsel %vm5952, %v3678, 256
      %v6017 = vsel %vm5953, %v3677, 256
      %v6018 = vsel %vm5954, %v3678, 256
      %v6019 = vsel %vm5955, %v3677, 256
      %v6020 = vsel %vm5956, %v3678, 256
      %v6021 = vsel %vm5957, %v3677, 256
      %v6022 = vsel %vm5958, %v3678, 256
      %v6023 = vsel %vm5959, %v3677, 256
      %v6024 = vsel %vm5960, %v3678, 256
      %v6025 = vsel %vm5961, %v3677, 256
      %v6026 = vsel %vm5962, %v3678, 256
      %v6027 = vsel %vm5963, %v3677, 256
      %v6028 = vsel %vm5964, %v3678, 256
      %vm6029 = vcmp.lt.s32.totalorder %v5965, %v5966
      %v6030 = vsel %vm6029, %v5965, %v5966
      %v6031 = vand.u32 %v6030, 65535
      %v6032 = vshra.s32 %v6030, 16
      %v6033 = vcvt.s32.f32 %v6031
      %v6034 = vcvt.s32.f32 %v6032
      %6035 = vmin.xlane.f32.xlu0 %v6034
      %v6036 = vpop.xlane.xlu0 %6035
      %vm6037 = vcmp.eq.f32.partialorder %v6034, %v6036
      %v6038 = vsel %vm6037, %v6033, inf
      %6039 = vmin.xlane.f32.xlu0 %v6038
      %v6040 = vpop.xlane.xlu0 %6039
      %v6041 = vcvt.f32.s32 %v6040
      %v6042 = vcvt.f32.s32 %v6036
      %v6043 = vshll.u32 %v6042, 16
      %v6044 = vadd.s32 %v6043, %v6041
      %vm6045 = vcmp.lt.s32.totalorder %v5967, %v5968
      %v6046 = vsel %vm6045, %v5967, %v5968
      %v6047 = vand.u32 %v6046, 65535
      %v6048 = vshra.s32 %v6046, 16
      %v6049 = vcvt.s32.f32 %v6047
      %v6050 = vcvt.s32.f32 %v6048
      %6051 = vmin.xlane.f32.xlu0 %v6050
      %v6052 = vpop.xlane.xlu0 %6051
      %vm6053 = vcmp.eq.f32.partialorder %v6050, %v6052
      %v6054 = vsel %vm6053, %v6049, inf
      %6055 = vmin.xlane.f32.xlu0 %v6054
      %v6056 = vpop.xlane.xlu0 %6055
      %v6057 = vcvt.f32.s32 %v6056
      %v6058 = vcvt.f32.s32 %v6052
      %v6059 = vshll.u32 %v6058, 16
      %v6060 = vadd.s32 %v6059, %v6057
      %vm6061 = vcmp.lt.s32.totalorder %v5969, %v5970
      %v6062 = vsel %vm6061, %v5969, %v5970
      %v6063 = vand.u32 %v6062, 65535
      %v6064 = vshra.s32 %v6062, 16
      %v6065 = vcvt.s32.f32 %v6063
      %v6066 = vcvt.s32.f32 %v6064
      %6067 = vmin.xlane.f32.xlu0 %v6066
      %v6068 = vpop.xlane.xlu0 %6067
      %vm6069 = vcmp.eq.f32.partialorder %v6066, %v6068
      %v6070 = vsel %vm6069, %v6065, inf
      %6071 = vmin.xlane.f32.xlu0 %v6070
      %v6072 = vpop.xlane.xlu0 %6071
      %v6073 = vcvt.f32.s32 %v6072
      %v6074 = vcvt.f32.s32 %v6068
      %v6075 = vshll.u32 %v6074, 16
      %v6076 = vadd.s32 %v6075, %v6073
      %vm6077 = vcmp.lt.s32.totalorder %v5971, %v5972
      %v6078 = vsel %vm6077, %v5971, %v5972
      %v6079 = vand.u32 %v6078, 65535
      %v6080 = vshra.s32 %v6078, 16
      %v6081 = vcvt.s32.f32 %v6079
      %v6082 = vcvt.s32.f32 %v6080
      %6083 = vmin.xlane.f32.xlu0 %v6082
      %v6084 = vpop.xlane.xlu0 %6083
      %vm6085 = vcmp.eq.f32.partialorder %v6082, %v6084
      %v6086 = vsel %vm6085, %v6081, inf
      %6087 = vmin.xlane.f32.xlu0 %v6086
      %v6088 = vpop.xlane.xlu0 %6087
      %v6089 = vcvt.f32.s32 %v6088
      %v6090 = vcvt.f32.s32 %v6084
      %v6091 = vshll.u32 %v6090, 16
      %v6092 = vadd.s32 %v6091, %v6089
      %vm6093 = vcmp.lt.s32.totalorder %v5973, %v5974
      %v6094 = vsel %vm6093, %v5973, %v5974
      %v6095 = vand.u32 %v6094, 65535
      %v6096 = vshra.s32 %v6094, 16
      %v6097 = vcvt.s32.f32 %v6095
      %v6098 = vcvt.s32.f32 %v6096
      %6099 = vmin.xlane.f32.xlu0 %v6098
      %v6100 = vpop.xlane.xlu0 %6099
      %vm6101 = vcmp.eq.f32.partialorder %v6098, %v6100
      %v6102 = vsel %vm6101, %v6097, inf
      %6103 = vmin.xlane.f32.xlu0 %v6102
      %v6104 = vpop.xlane.xlu0 %6103
      %v6105 = vcvt.f32.s32 %v6104
      %v6106 = vcvt.f32.s32 %v6100
      %v6107 = vshll.u32 %v6106, 16
      %v6108 = vadd.s32 %v6107, %v6105
      %vm6109 = vcmp.lt.s32.totalorder %v5975, %v5976
      %v6110 = vsel %vm6109, %v5975, %v5976
      %v6111 = vand.u32 %v6110, 65535
      %v6112 = vshra.s32 %v6110, 16
      %v6113 = vcvt.s32.f32 %v6111
      %v6114 = vcvt.s32.f32 %v6112
      %6115 = vmin.xlane.f32.xlu0 %v6114
      %v6116 = vpop.xlane.xlu0 %6115
      %vm6117 = vcmp.eq.f32.partialorder %v6114, %v6116
      %v6118 = vsel %vm6117, %v6113, inf
      %6119 = vmin.xlane.f32.xlu0 %v6118
      %v6120 = vpop.xlane.xlu0 %6119
      %v6121 = vcvt.f32.s32 %v6120
      %v6122 = vcvt.f32.s32 %v6116
      %v6123 = vshll.u32 %v6122, 16
      %v6124 = vadd.s32 %v6123, %v6121
      %vm6125 = vcmp.lt.s32.totalorder %v5977, %v5978
      %v6126 = vsel %vm6125, %v5977, %v5978
      %v6127 = vand.u32 %v6126, 65535
      %v6128 = vshra.s32 %v6126, 16
      %v6129 = vcvt.s32.f32 %v6127
      %v6130 = vcvt.s32.f32 %v6128
      %6131 = vmin.xlane.f32.xlu0 %v6130
      %v6132 = vpop.xlane.xlu0 %6131
      %vm6133 = vcmp.eq.f32.partialorder %v6130, %v6132
      %v6134 = vsel %vm6133, %v6129, inf
      %6135 = vmin.xlane.f32.xlu0 %v6134
      %v6136 = vpop.xlane.xlu0 %6135
      %v6137 = vcvt.f32.s32 %v6136
      %v6138 = vcvt.f32.s32 %v6132
      %v6139 = vshll.u32 %v6138, 16
      %v6140 = vadd.s32 %v6139, %v6137
      %vm6141 = vcmp.lt.s32.totalorder %v5979, %v5980
      %v6142 = vsel %vm6141, %v5979, %v5980
      %v6143 = vand.u32 %v6142, 65535
      %v6144 = vshra.s32 %v6142, 16
      %v6145 = vcvt.s32.f32 %v6143
      %v6146 = vcvt.s32.f32 %v6144
      %6147 = vmin.xlane.f32.xlu0 %v6146
      %v6148 = vpop.xlane.xlu0 %6147
      %vm6149 = vcmp.eq.f32.partialorder %v6146, %v6148
      %v6150 = vsel %vm6149, %v6145, inf
      %6151 = vmin.xlane.f32.xlu0 %v6150
      %v6152 = vpop.xlane.xlu0 %6151
      %v6153 = vcvt.f32.s32 %v6152
      %v6154 = vcvt.f32.s32 %v6148
      %v6155 = vshll.u32 %v6154, 16
      %v6156 = vadd.s32 %v6155, %v6153
      %vm6157 = vcmp.lt.s32.totalorder %v5981, %v5982
      %v6158 = vsel %vm6157, %v5981, %v5982
      %v6159 = vand.u32 %v6158, 65535
      %v6160 = vshra.s32 %v6158, 16
      %v6161 = vcvt.s32.f32 %v6159
      %v6162 = vcvt.s32.f32 %v6160
      %6163 = vmin.xlane.f32.xlu0 %v6162
      %v6164 = vpop.xlane.xlu0 %6163
      %vm6165 = vcmp.eq.f32.partialorder %v6162, %v6164
      %v6166 = vsel %vm6165, %v6161, inf
      %6167 = vmin.xlane.f32.xlu0 %v6166
      %v6168 = vpop.xlane.xlu0 %6167
      %v6169 = vcvt.f32.s32 %v6168
      %v6170 = vcvt.f32.s32 %v6164
      %v6171 = vshll.u32 %v6170, 16
      %v6172 = vadd.s32 %v6171, %v6169
      %vm6173 = vcmp.lt.s32.totalorder %v5983, %v5984
      %v6174 = vsel %vm6173, %v5983, %v5984
      %v6175 = vand.u32 %v6174, 65535
      %v6176 = vshra.s32 %v6174, 16
      %v6177 = vcvt.s32.f32 %v6175
      %v6178 = vcvt.s32.f32 %v6176
      %6179 = vmin.xlane.f32.xlu0 %v6178
      %v6180 = vpop.xlane.xlu0 %6179
      %vm6181 = vcmp.eq.f32.partialorder %v6178, %v6180
      %v6182 = vsel %vm6181, %v6177, inf
      %6183 = vmin.xlane.f32.xlu0 %v6182
      %v6184 = vpop.xlane.xlu0 %6183
      %v6185 = vcvt.f32.s32 %v6184
      %v6186 = vcvt.f32.s32 %v6180
      %v6187 = vshll.u32 %v6186, 16
      %v6188 = vadd.s32 %v6187, %v6185
      %vm6189 = vcmp.lt.s32.totalorder %v5985, %v5986
      %v6190 = vsel %vm6189, %v5985, %v5986
      %v6191 = vand.u32 %v6190, 65535
      %v6192 = vshra.s32 %v6190, 16
      %v6193 = vcvt.s32.f32 %v6191
      %v6194 = vcvt.s32.f32 %v6192
      %6195 = vmin.xlane.f32.xlu0 %v6194
      %v6196 = vpop.xlane.xlu0 %6195
      %vm6197 = vcmp.eq.f32.partialorder %v6194, %v6196
      %v6198 = vsel %vm6197, %v6193, inf
      %6199 = vmin.xlane.f32.xlu0 %v6198
      %v6200 = vpop.xlane.xlu0 %6199
      %v6201 = vcvt.f32.s32 %v6200
      %v6202 = vcvt.f32.s32 %v6196
      %v6203 = vshll.u32 %v6202, 16
      %v6204 = vadd.s32 %v6203, %v6201
      %vm6205 = vcmp.lt.s32.totalorder %v5987, %v5988
      %v6206 = vsel %vm6205, %v5987, %v5988
      %v6207 = vand.u32 %v6206, 65535
      %v6208 = vshra.s32 %v6206, 16
      %v6209 = vcvt.s32.f32 %v6207
      %v6210 = vcvt.s32.f32 %v6208
      %6211 = vmin.xlane.f32.xlu0 %v6210
      %v6212 = vpop.xlane.xlu0 %6211
      %vm6213 = vcmp.eq.f32.partialorder %v6210, %v6212
      %v6214 = vsel %vm6213, %v6209, inf
      %6215 = vmin.xlane.f32.xlu0 %v6214
      %v6216 = vpop.xlane.xlu0 %6215
      %v6217 = vcvt.f32.s32 %v6216
      %v6218 = vcvt.f32.s32 %v6212
      %v6219 = vshll.u32 %v6218, 16
      %v6220 = vadd.s32 %v6219, %v6217
      %vm6221 = vcmp.lt.s32.totalorder %v5989, %v5990
      %v6222 = vsel %vm6221, %v5989, %v5990
      %v6223 = vand.u32 %v6222, 65535
      %v6224 = vshra.s32 %v6222, 16
      %v6225 = vcvt.s32.f32 %v6223
      %v6226 = vcvt.s32.f32 %v6224
      %6227 = vmin.xlane.f32.xlu0 %v6226
      %v6228 = vpop.xlane.xlu0 %6227
      %vm6229 = vcmp.eq.f32.partialorder %v6226, %v6228
      %v6230 = vsel %vm6229, %v6225, inf
      %6231 = vmin.xlane.f32.xlu0 %v6230
      %v6232 = vpop.xlane.xlu0 %6231
      %v6233 = vcvt.f32.s32 %v6232
      %v6234 = vcvt.f32.s32 %v6228
      %v6235 = vshll.u32 %v6234, 16
      %v6236 = vadd.s32 %v6235, %v6233
      %vm6237 = vcmp.lt.s32.totalorder %v5991, %v5992
      %v6238 = vsel %vm6237, %v5991, %v5992
      %v6239 = vand.u32 %v6238, 65535
      %v6240 = vshra.s32 %v6238, 16
      %v6241 = vcvt.s32.f32 %v6239
      %v6242 = vcvt.s32.f32 %v6240
      %6243 = vmin.xlane.f32.xlu0 %v6242
      %v6244 = vpop.xlane.xlu0 %6243
      %vm6245 = vcmp.eq.f32.partialorder %v6242, %v6244
      %v6246 = vsel %vm6245, %v6241, inf
      %6247 = vmin.xlane.f32.xlu0 %v6246
      %v6248 = vpop.xlane.xlu0 %6247
      %v6249 = vcvt.f32.s32 %v6248
      %v6250 = vcvt.f32.s32 %v6244
      %v6251 = vshll.u32 %v6250, 16
      %v6252 = vadd.s32 %v6251, %v6249
      %vm6253 = vcmp.lt.s32.totalorder %v5993, %v5994
      %v6254 = vsel %vm6253, %v5993, %v5994
      %v6255 = vand.u32 %v6254, 65535
      %v6256 = vshra.s32 %v6254, 16
      %v6257 = vcvt.s32.f32 %v6255
      %v6258 = vcvt.s32.f32 %v6256
      %6259 = vmin.xlane.f32.xlu0 %v6258
      %v6260 = vpop.xlane.xlu0 %6259
      %vm6261 = vcmp.eq.f32.partialorder %v6258, %v6260
      %v6262 = vsel %vm6261, %v6257, inf
      %6263 = vmin.xlane.f32.xlu0 %v6262
      %v6264 = vpop.xlane.xlu0 %6263
      %v6265 = vcvt.f32.s32 %v6264
      %v6266 = vcvt.f32.s32 %v6260
      %v6267 = vshll.u32 %v6266, 16
      %v6268 = vadd.s32 %v6267, %v6265
      %vm6269 = vcmp.lt.s32.totalorder %v5995, %v5996
      %v6270 = vsel %vm6269, %v5995, %v5996
      %v6271 = vand.u32 %v6270, 65535
      %v6272 = vshra.s32 %v6270, 16
      %v6273 = vcvt.s32.f32 %v6271
      %v6274 = vcvt.s32.f32 %v6272
      %6275 = vmin.xlane.f32.xlu0 %v6274
      %v6276 = vpop.xlane.xlu0 %6275
      %vm6277 = vcmp.eq.f32.partialorder %v6274, %v6276
      %v6278 = vsel %vm6277, %v6273, inf
      %6279 = vmin.xlane.f32.xlu0 %v6278
      %v6280 = vpop.xlane.xlu0 %6279
      %v6281 = vcvt.f32.s32 %v6280
      %v6282 = vcvt.f32.s32 %v6276
      %v6283 = vshll.u32 %v6282, 16
      %v6284 = vadd.s32 %v6283, %v6281
      %vm6285 = vcmp.lt.s32.totalorder %v5997, %v5998
      %v6286 = vsel %vm6285, %v5997, %v5998
      %v6287 = vand.u32 %v6286, 65535
      %v6288 = vshra.s32 %v6286, 16
      %v6289 = vcvt.s32.f32 %v6287
      %v6290 = vcvt.s32.f32 %v6288
      %6291 = vmin.xlane.f32.xlu0 %v6290
      %v6292 = vpop.xlane.xlu0 %6291
      %vm6293 = vcmp.eq.f32.partialorder %v6290, %v6292
      %v6294 = vsel %vm6293, %v6289, inf
      %6295 = vmin.xlane.f32.xlu0 %v6294
      %v6296 = vpop.xlane.xlu0 %6295
      %v6297 = vcvt.f32.s32 %v6296
      %v6298 = vcvt.f32.s32 %v6292
      %v6299 = vshll.u32 %v6298, 16
      %v6300 = vadd.s32 %v6299, %v6297
      %vm6301 = vcmp.lt.s32.totalorder %v5999, %v6000
      %v6302 = vsel %vm6301, %v5999, %v6000
      %v6303 = vand.u32 %v6302, 65535
      %v6304 = vshra.s32 %v6302, 16
      %v6305 = vcvt.s32.f32 %v6303
      %v6306 = vcvt.s32.f32 %v6304
      %6307 = vmin.xlane.f32.xlu0 %v6306
      %v6308 = vpop.xlane.xlu0 %6307
      %vm6309 = vcmp.eq.f32.partialorder %v6306, %v6308
      %v6310 = vsel %vm6309, %v6305, inf
      %6311 = vmin.xlane.f32.xlu0 %v6310
      %v6312 = vpop.xlane.xlu0 %6311
      %v6313 = vcvt.f32.s32 %v6312
      %v6314 = vcvt.f32.s32 %v6308
      %v6315 = vshll.u32 %v6314, 16
      %v6316 = vadd.s32 %v6315, %v6313
      %vm6317 = vcmp.lt.s32.totalorder %v6001, %v6002
      %v6318 = vsel %vm6317, %v6001, %v6002
      %v6319 = vand.u32 %v6318, 65535
      %v6320 = vshra.s32 %v6318, 16
      %v6321 = vcvt.s32.f32 %v6319
      %v6322 = vcvt.s32.f32 %v6320
      %6323 = vmin.xlane.f32.xlu0 %v6322
      %v6324 = vpop.xlane.xlu0 %6323
      %vm6325 = vcmp.eq.f32.partialorder %v6322, %v6324
      %v6326 = vsel %vm6325, %v6321, inf
      %6327 = vmin.xlane.f32.xlu0 %v6326
      %v6328 = vpop.xlane.xlu0 %6327
      %v6329 = vcvt.f32.s32 %v6328
      %v6330 = vcvt.f32.s32 %v6324
      %v6331 = vshll.u32 %v6330, 16
      %v6332 = vadd.s32 %v6331, %v6329
      %vm6333 = vcmp.lt.s32.totalorder %v6003, %v6004
      %v6334 = vsel %vm6333, %v6003, %v6004
      %v6335 = vand.u32 %v6334, 65535
      %v6336 = vshra.s32 %v6334, 16
      %v6337 = vcvt.s32.f32 %v6335
      %v6338 = vcvt.s32.f32 %v6336
      %6339 = vmin.xlane.f32.xlu0 %v6338
      %v6340 = vpop.xlane.xlu0 %6339
      %vm6341 = vcmp.eq.f32.partialorder %v6338, %v6340
      %v6342 = vsel %vm6341, %v6337, inf
      %6343 = vmin.xlane.f32.xlu0 %v6342
      %v6344 = vpop.xlane.xlu0 %6343
      %v6345 = vcvt.f32.s32 %v6344
      %v6346 = vcvt.f32.s32 %v6340
      %v6347 = vshll.u32 %v6346, 16
      %v6348 = vadd.s32 %v6347, %v6345
      %vm6349 = vcmp.lt.s32.totalorder %v6005, %v6006
      %v6350 = vsel %vm6349, %v6005, %v6006
      %v6351 = vand.u32 %v6350, 65535
      %v6352 = vshra.s32 %v6350, 16
      %v6353 = vcvt.s32.f32 %v6351
      %v6354 = vcvt.s32.f32 %v6352
      %6355 = vmin.xlane.f32.xlu0 %v6354
      %v6356 = vpop.xlane.xlu0 %6355
      %vm6357 = vcmp.eq.f32.partialorder %v6354, %v6356
      %v6358 = vsel %vm6357, %v6353, inf
      %6359 = vmin.xlane.f32.xlu0 %v6358
      %v6360 = vpop.xlane.xlu0 %6359
      %v6361 = vcvt.f32.s32 %v6360
      %v6362 = vcvt.f32.s32 %v6356
      %v6363 = vshll.u32 %v6362, 16
      %v6364 = vadd.s32 %v6363, %v6361
      %vm6365 = vcmp.lt.s32.totalorder %v6007, %v6008
      %v6366 = vsel %vm6365, %v6007, %v6008
      %v6367 = vand.u32 %v6366, 65535
      %v6368 = vshra.s32 %v6366, 16
      %v6369 = vcvt.s32.f32 %v6367
      %v6370 = vcvt.s32.f32 %v6368
      %6371 = vmin.xlane.f32.xlu0 %v6370
      %v6372 = vpop.xlane.xlu0 %6371
      %vm6373 = vcmp.eq.f32.partialorder %v6370, %v6372
      %v6374 = vsel %vm6373, %v6369, inf
      %6375 = vmin.xlane.f32.xlu0 %v6374
      %v6376 = vpop.xlane.xlu0 %6375
      %v6377 = vcvt.f32.s32 %v6376
      %v6378 = vcvt.f32.s32 %v6372
      %v6379 = vshll.u32 %v6378, 16
      %v6380 = vadd.s32 %v6379, %v6377
      %vm6381 = vcmp.lt.s32.totalorder %v6009, %v6010
      %v6382 = vsel %vm6381, %v6009, %v6010
      %v6383 = vand.u32 %v6382, 65535
      %v6384 = vshra.s32 %v6382, 16
      %v6385 = vcvt.s32.f32 %v6383
      %v6386 = vcvt.s32.f32 %v6384
      %6387 = vmin.xlane.f32.xlu0 %v6386
      %v6388 = vpop.xlane.xlu0 %6387
      %vm6389 = vcmp.eq.f32.partialorder %v6386, %v6388
      %v6390 = vsel %vm6389, %v6385, inf
      %6391 = vmin.xlane.f32.xlu0 %v6390
      %v6392 = vpop.xlane.xlu0 %6391
      %v6393 = vcvt.f32.s32 %v6392
      %v6394 = vcvt.f32.s32 %v6388
      %v6395 = vshll.u32 %v6394, 16
      %v6396 = vadd.s32 %v6395, %v6393
      %vm6397 = vcmp.lt.s32.totalorder %v6011, %v6012
      %v6398 = vsel %vm6397, %v6011, %v6012
      %v6399 = vand.u32 %v6398, 65535
      %v6400 = vshra.s32 %v6398, 16
      %v6401 = vcvt.s32.f32 %v6399
      %v6402 = vcvt.s32.f32 %v6400
      %6403 = vmin.xlane.f32.xlu0 %v6402
      %v6404 = vpop.xlane.xlu0 %6403
      %vm6405 = vcmp.eq.f32.partialorder %v6402, %v6404
      %v6406 = vsel %vm6405, %v6401, inf
      %6407 = vmin.xlane.f32.xlu0 %v6406
      %v6408 = vpop.xlane.xlu0 %6407
      %v6409 = vcvt.f32.s32 %v6408
      %v6410 = vcvt.f32.s32 %v6404
      %v6411 = vshll.u32 %v6410, 16
      %v6412 = vadd.s32 %v6411, %v6409
      %vm6413 = vcmp.lt.s32.totalorder %v6013, %v6014
      %v6414 = vsel %vm6413, %v6013, %v6014
      %v6415 = vand.u32 %v6414, 65535
      %v6416 = vshra.s32 %v6414, 16
      %v6417 = vcvt.s32.f32 %v6415
      %v6418 = vcvt.s32.f32 %v6416
      %6419 = vmin.xlane.f32.xlu0 %v6418
      %v6420 = vpop.xlane.xlu0 %6419
      %vm6421 = vcmp.eq.f32.partialorder %v6418, %v6420
      %v6422 = vsel %vm6421, %v6417, inf
      %6423 = vmin.xlane.f32.xlu0 %v6422
      %v6424 = vpop.xlane.xlu0 %6423
      %v6425 = vcvt.f32.s32 %v6424
      %v6426 = vcvt.f32.s32 %v6420
      %v6427 = vshll.u32 %v6426, 16
      %v6428 = vadd.s32 %v6427, %v6425
      %vm6429 = vcmp.lt.s32.totalorder %v6015, %v6016
      %v6430 = vsel %vm6429, %v6015, %v6016
      %v6431 = vand.u32 %v6430, 65535
      %v6432 = vshra.s32 %v6430, 16
      %v6433 = vcvt.s32.f32 %v6431
      %v6434 = vcvt.s32.f32 %v6432
      %6435 = vmin.xlane.f32.xlu0 %v6434
      %v6436 = vpop.xlane.xlu0 %6435
      %vm6437 = vcmp.eq.f32.partialorder %v6434, %v6436
      %v6438 = vsel %vm6437, %v6433, inf
      %6439 = vmin.xlane.f32.xlu0 %v6438
      %v6440 = vpop.xlane.xlu0 %6439
      %v6441 = vcvt.f32.s32 %v6440
      %v6442 = vcvt.f32.s32 %v6436
      %v6443 = vshll.u32 %v6442, 16
      %v6444 = vadd.s32 %v6443, %v6441
      %vm6445 = vcmp.lt.s32.totalorder %v6017, %v6018
      %v6446 = vsel %vm6445, %v6017, %v6018
      %v6447 = vand.u32 %v6446, 65535
      %v6448 = vshra.s32 %v6446, 16
      %v6449 = vcvt.s32.f32 %v6447
      %v6450 = vcvt.s32.f32 %v6448
      %6451 = vmin.xlane.f32.xlu0 %v6450
      %v6452 = vpop.xlane.xlu0 %6451
      %vm6453 = vcmp.eq.f32.partialorder %v6450, %v6452
      %v6454 = vsel %vm6453, %v6449, inf
      %6455 = vmin.xlane.f32.xlu0 %v6454
      %v6456 = vpop.xlane.xlu0 %6455
      %v6457 = vcvt.f32.s32 %v6456
      %v6458 = vcvt.f32.s32 %v6452
      %v6459 = vshll.u32 %v6458, 16
      %v6460 = vadd.s32 %v6459, %v6457
      %vm6461 = vcmp.lt.s32.totalorder %v6019, %v6020
      %v6462 = vsel %vm6461, %v6019, %v6020
      %v6463 = vand.u32 %v6462, 65535
      %v6464 = vshra.s32 %v6462, 16
      %v6465 = vcvt.s32.f32 %v6463
      %v6466 = vcvt.s32.f32 %v6464
      %6467 = vmin.xlane.f32.xlu0 %v6466
      %v6468 = vpop.xlane.xlu0 %6467
      %vm6469 = vcmp.eq.f32.partialorder %v6466, %v6468
      %v6470 = vsel %vm6469, %v6465, inf
      %6471 = vmin.xlane.f32.xlu0 %v6470
      %v6472 = vpop.xlane.xlu0 %6471
      %v6473 = vcvt.f32.s32 %v6472
      %v6474 = vcvt.f32.s32 %v6468
      %v6475 = vshll.u32 %v6474, 16
      %v6476 = vadd.s32 %v6475, %v6473
      %vm6477 = vcmp.lt.s32.totalorder %v6021, %v6022
      %v6478 = vsel %vm6477, %v6021, %v6022
      %v6479 = vand.u32 %v6478, 65535
      %v6480 = vshra.s32 %v6478, 16
      %v6481 = vcvt.s32.f32 %v6479
      %v6482 = vcvt.s32.f32 %v6480
      %6483 = vmin.xlane.f32.xlu0 %v6482
      %v6484 = vpop.xlane.xlu0 %6483
      %vm6485 = vcmp.eq.f32.partialorder %v6482, %v6484
      %v6486 = vsel %vm6485, %v6481, inf
      %6487 = vmin.xlane.f32.xlu0 %v6486
      %v6488 = vpop.xlane.xlu0 %6487
      %v6489 = vcvt.f32.s32 %v6488
      %v6490 = vcvt.f32.s32 %v6484
      %v6491 = vshll.u32 %v6490, 16
      %v6492 = vadd.s32 %v6491, %v6489
      %vm6493 = vcmp.lt.s32.totalorder %v6023, %v6024
      %v6494 = vsel %vm6493, %v6023, %v6024
      %v6495 = vand.u32 %v6494, 65535
      %v6496 = vshra.s32 %v6494, 16
      %v6497 = vcvt.s32.f32 %v6495
      %v6498 = vcvt.s32.f32 %v6496
      %6499 = vmin.xlane.f32.xlu0 %v6498
      %v6500 = vpop.xlane.xlu0 %6499
      %vm6501 = vcmp.eq.f32.partialorder %v6498, %v6500
      %v6502 = vsel %vm6501, %v6497, inf
      %6503 = vmin.xlane.f32.xlu0 %v6502
      %v6504 = vpop.xlane.xlu0 %6503
      %v6505 = vcvt.f32.s32 %v6504
      %v6506 = vcvt.f32.s32 %v6500
      %v6507 = vshll.u32 %v6506, 16
      %v6508 = vadd.s32 %v6507, %v6505
      %vm6509 = vcmp.lt.s32.totalorder %v6025, %v6026
      %v6510 = vsel %vm6509, %v6025, %v6026
      %v6511 = vand.u32 %v6510, 65535
      %v6512 = vshra.s32 %v6510, 16
      %v6513 = vcvt.s32.f32 %v6511
      %v6514 = vcvt.s32.f32 %v6512
      %6515 = vmin.xlane.f32.xlu0 %v6514
      %v6516 = vpop.xlane.xlu0 %6515
      %vm6517 = vcmp.eq.f32.partialorder %v6514, %v6516
      %v6518 = vsel %vm6517, %v6513, inf
      %6519 = vmin.xlane.f32.xlu0 %v6518
      %v6520 = vpop.xlane.xlu0 %6519
      %v6521 = vcvt.f32.s32 %v6520
      %v6522 = vcvt.f32.s32 %v6516
      %v6523 = vshll.u32 %v6522, 16
      %v6524 = vadd.s32 %v6523, %v6521
      %vm6525 = vcmp.lt.s32.totalorder %v6027, %v6028
      %v6526 = vsel %vm6525, %v6027, %v6028
      %v6527 = vand.u32 %v6526, 65535
      %v6528 = vshra.s32 %v6526, 16
      %v6529 = vcvt.s32.f32 %v6527
      %v6530 = vcvt.s32.f32 %v6528
      %6531 = vmin.xlane.f32.xlu0 %v6530
      %v6532 = vpop.xlane.xlu0 %6531
      %vm6533 = vcmp.eq.f32.partialorder %v6530, %v6532
      %v6534 = vsel %vm6533, %v6529, inf
      %6535 = vmin.xlane.f32.xlu0 %v6534
      %v6536 = vpop.xlane.xlu0 %6535
      %v6537 = vcvt.f32.s32 %v6536
      %v6538 = vcvt.f32.s32 %v6532
      %v6539 = vshll.u32 %v6538, 16
      %v6540 = vadd.s32 %v6539, %v6537
      %vm6541 = vcmp.eq.s32.totalorder %v3677, %v6044
      %vm6542 = vcmp.eq.s32.totalorder %v3678, %v6044
      %vm6543 = vcmp.eq.s32.totalorder %v3677, %v6060
      %vm6544 = vcmp.eq.s32.totalorder %v3678, %v6060
      %vm6545 = vcmp.eq.s32.totalorder %v3677, %v6076
      %vm6546 = vcmp.eq.s32.totalorder %v3678, %v6076
      %vm6547 = vcmp.eq.s32.totalorder %v3677, %v6092
      %vm6548 = vcmp.eq.s32.totalorder %v3678, %v6092
      %vm6549 = vcmp.eq.s32.totalorder %v3677, %v6108
      %vm6550 = vcmp.eq.s32.totalorder %v3678, %v6108
      %vm6551 = vcmp.eq.s32.totalorder %v3677, %v6124
      %vm6552 = vcmp.eq.s32.totalorder %v3678, %v6124
      %vm6553 = vcmp.eq.s32.totalorder %v3677, %v6140
      %vm6554 = vcmp.eq.s32.totalorder %v3678, %v6140
      %vm6555 = vcmp.eq.s32.totalorder %v3677, %v6156
      %vm6556 = vcmp.eq.s32.totalorder %v3678, %v6156
      %vm6557 = vcmp.eq.s32.totalorder %v3677, %v6172
      %vm6558 = vcmp.eq.s32.totalorder %v3678, %v6172
      %vm6559 = vcmp.eq.s32.totalorder %v3677, %v6188
      %vm6560 = vcmp.eq.s32.totalorder %v3678, %v6188
      %vm6561 = vcmp.eq.s32.totalorder %v3677, %v6204
      %vm6562 = vcmp.eq.s32.totalorder %v3678, %v6204
      %vm6563 = vcmp.eq.s32.totalorder %v3677, %v6220
      %vm6564 = vcmp.eq.s32.totalorder %v3678, %v6220
      %vm6565 = vcmp.eq.s32.totalorder %v3677, %v6236
      %vm6566 = vcmp.eq.s32.totalorder %v3678, %v6236
      %vm6567 = vcmp.eq.s32.totalorder %v3677, %v6252
      %vm6568 = vcmp.eq.s32.totalorder %v3678, %v6252
      %vm6569 = vcmp.eq.s32.totalorder %v3677, %v6268
      %vm6570 = vcmp.eq.s32.totalorder %v3678, %v6268
      %vm6571 = vcmp.eq.s32.totalorder %v3677, %v6284
      %vm6572 = vcmp.eq.s32.totalorder %v3678, %v6284
      %vm6573 = vcmp.eq.s32.totalorder %v3677, %v6300
      %vm6574 = vcmp.eq.s32.totalorder %v3678, %v6300
      %vm6575 = vcmp.eq.s32.totalorder %v3677, %v6316
      %vm6576 = vcmp.eq.s32.totalorder %v3678, %v6316
      %vm6577 = vcmp.eq.s32.totalorder %v3677, %v6332
      %vm6578 = vcmp.eq.s32.totalorder %v3678, %v6332
      %vm6579 = vcmp.eq.s32.totalorder %v3677, %v6348
      %vm6580 = vcmp.eq.s32.totalorder %v3678, %v6348
      %vm6581 = vcmp.eq.s32.totalorder %v3677, %v6364
      %vm6582 = vcmp.eq.s32.totalorder %v3678, %v6364
      %vm6583 = vcmp.eq.s32.totalorder %v3677, %v6380
      %vm6584 = vcmp.eq.s32.totalorder %v3678, %v6380
      %vm6585 = vcmp.eq.s32.totalorder %v3677, %v6396
      %vm6586 = vcmp.eq.s32.totalorder %v3678, %v6396
      %vm6587 = vcmp.eq.s32.totalorder %v3677, %v6412
      %vm6588 = vcmp.eq.s32.totalorder %v3678, %v6412
      %vm6589 = vcmp.eq.s32.totalorder %v3677, %v6428
      %vm6590 = vcmp.eq.s32.totalorder %v3678, %v6428
      %vm6591 = vcmp.eq.s32.totalorder %v3677, %v6444
      %vm6592 = vcmp.eq.s32.totalorder %v3678, %v6444
      %vm6593 = vcmp.eq.s32.totalorder %v3677, %v6460
      %vm6594 = vcmp.eq.s32.totalorder %v3678, %v6460
      %vm6595 = vcmp.eq.s32.totalorder %v3677, %v6476
      %vm6596 = vcmp.eq.s32.totalorder %v3678, %v6476
      %vm6597 = vcmp.eq.s32.totalorder %v3677, %v6492
      %vm6598 = vcmp.eq.s32.totalorder %v3678, %v6492
      %vm6599 = vcmp.eq.s32.totalorder %v3677, %v6508
      %vm6600 = vcmp.eq.s32.totalorder %v3678, %v6508
      %vm6601 = vcmp.eq.s32.totalorder %v3677, %v6524
      %vm6602 = vcmp.eq.s32.totalorder %v3678, %v6524
      %vm6603 = vcmp.eq.s32.totalorder %v3677, %v6540
      %vm6604 = vcmp.eq.s32.totalorder %v3678, %v6540
      %v6605 = vsel %vm6541, 1, 0
      %v6606 = vsel %vm6542, 1, 0
      %v6607 = vsel %vm6543, 1, 0
      %v6608 = vsel %vm6544, 1, 0
      %v6609 = vsel %vm6545, 1, 0
      %v6610 = vsel %vm6546, 1, 0
      %v6611 = vsel %vm6547, 1, 0
      %v6612 = vsel %vm6548, 1, 0
      %v6613 = vsel %vm6549, 1, 0
      %v6614 = vsel %vm6550, 1, 0
      %v6615 = vsel %vm6551, 1, 0
      %v6616 = vsel %vm6552, 1, 0
      %v6617 = vsel %vm6553, 1, 0
      %v6618 = vsel %vm6554, 1, 0
      %v6619 = vsel %vm6555, 1, 0
      %v6620 = vsel %vm6556, 1, 0
      %v6621 = vsel %vm6557, 1, 0
      %v6622 = vsel %vm6558, 1, 0
      %v6623 = vsel %vm6559, 1, 0
      %v6624 = vsel %vm6560, 1, 0
      %v6625 = vsel %vm6561, 1, 0
      %v6626 = vsel %vm6562, 1, 0
      %v6627 = vsel %vm6563, 1, 0
      %v6628 = vsel %vm6564, 1, 0
      %v6629 = vsel %vm6565, 1, 0
      %v6630 = vsel %vm6566, 1, 0
      %v6631 = vsel %vm6567, 1, 0
      %v6632 = vsel %vm6568, 1, 0
      %v6633 = vsel %vm6569, 1, 0
      %v6634 = vsel %vm6570, 1, 0
      %v6635 = vsel %vm6571, 1, 0
      %v6636 = vsel %vm6572, 1, 0
      %v6637 = vsel %vm6573, 1, 0
      %v6638 = vsel %vm6574, 1, 0
      %v6639 = vsel %vm6575, 1, 0
      %v6640 = vsel %vm6576, 1, 0
      %v6641 = vsel %vm6577, 1, 0
      %v6642 = vsel %vm6578, 1, 0
      %v6643 = vsel %vm6579, 1, 0
      %v6644 = vsel %vm6580, 1, 0
      %v6645 = vsel %vm6581, 1, 0
      %v6646 = vsel %vm6582, 1, 0
      %v6647 = vsel %vm6583, 1, 0
      %v6648 = vsel %vm6584, 1, 0
      %v6649 = vsel %vm6585, 1, 0
      %v6650 = vsel %vm6586, 1, 0
      %v6651 = vsel %vm6587, 1, 0
      %v6652 = vsel %vm6588, 1, 0
      %v6653 = vsel %vm6589, 1, 0
      %v6654 = vsel %vm6590, 1, 0
      %v6655 = vsel %vm6591, 1, 0
      %v6656 = vsel %vm6592, 1, 0
      %v6657 = vsel %vm6593, 1, 0
      %v6658 = vsel %vm6594, 1, 0
      %v6659 = vsel %vm6595, 1, 0
      %v6660 = vsel %vm6596, 1, 0
      %v6661 = vsel %vm6597, 1, 0
      %v6662 = vsel %vm6598, 1, 0
      %v6663 = vsel %vm6599, 1, 0
      %v6664 = vsel %vm6600, 1, 0
      %v6665 = vsel %vm6601, 1, 0
      %v6666 = vsel %vm6602, 1, 0
      %v6667 = vsel %vm6603, 1, 0
      %v6668 = vsel %vm6604, 1, 0
      %v6669 = vcvt.s32.f32 %v6605
      %v6670 = vcvt.s32.f32 %v6606
      %v6671 = vcvt.s32.f32 %v6607
      %v6672 = vcvt.s32.f32 %v6608
      %v6673 = vcvt.s32.f32 %v6609
      %v6674 = vcvt.s32.f32 %v6610
      %v6675 = vcvt.s32.f32 %v6611
      %v6676 = vcvt.s32.f32 %v6612
      %v6677 = vcvt.s32.f32 %v6613
      %v6678 = vcvt.s32.f32 %v6614
      %v6679 = vcvt.s32.f32 %v6615
      %v6680 = vcvt.s32.f32 %v6616
      %v6681 = vcvt.s32.f32 %v6617
      %v6682 = vcvt.s32.f32 %v6618
      %v6683 = vcvt.s32.f32 %v6619
      %v6684 = vcvt.s32.f32 %v6620
      %v6685 = vcvt.s32.f32 %v6621
      %v6686 = vcvt.s32.f32 %v6622
      %v6687 = vcvt.s32.f32 %v6623
      %v6688 = vcvt.s32.f32 %v6624
      %v6689 = vcvt.s32.f32 %v6625
      %v6690 = vcvt.s32.f32 %v6626
      %v6691 = vcvt.s32.f32 %v6627
      %v6692 = vcvt.s32.f32 %v6628
      %v6693 = vcvt.s32.f32 %v6629
      %v6694 = vcvt.s32.f32 %v6630
      %v6695 = vcvt.s32.f32 %v6631
      %v6696 = vcvt.s32.f32 %v6632
      %v6697 = vcvt.s32.f32 %v6633
      %v6698 = vcvt.s32.f32 %v6634
      %v6699 = vcvt.s32.f32 %v6635
      %v6700 = vcvt.s32.f32 %v6636
      %v6701 = vcvt.s32.f32 %v6637
      %v6702 = vcvt.s32.f32 %v6638
      %v6703 = vcvt.s32.f32 %v6639
      %v6704 = vcvt.s32.f32 %v6640
      %v6705 = vcvt.s32.f32 %v6641
      %v6706 = vcvt.s32.f32 %v6642
      %v6707 = vcvt.s32.f32 %v6643
      %v6708 = vcvt.s32.f32 %v6644
      %v6709 = vcvt.s32.f32 %v6645
      %v6710 = vcvt.s32.f32 %v6646
      %v6711 = vcvt.s32.f32 %v6647
      %v6712 = vcvt.s32.f32 %v6648
      %v6713 = vcvt.s32.f32 %v6649
      %v6714 = vcvt.s32.f32 %v6650
      %v6715 = vcvt.s32.f32 %v6651
      %v6716 = vcvt.s32.f32 %v6652
      %v6717 = vcvt.s32.f32 %v6653
      %v6718 = vcvt.s32.f32 %v6654
      %v6719 = vcvt.s32.f32 %v6655
      %v6720 = vcvt.s32.f32 %v6656
      %v6721 = vcvt.s32.f32 %v6657
      %v6722 = vcvt.s32.f32 %v6658
      %v6723 = vcvt.s32.f32 %v6659
      %v6724 = vcvt.s32.f32 %v6660
      %v6725 = vcvt.s32.f32 %v6661
      %v6726 = vcvt.s32.f32 %v6662
      %v6727 = vcvt.s32.f32 %v6663
      %v6728 = vcvt.s32.f32 %v6664
      %v6729 = vcvt.s32.f32 %v6665
      %v6730 = vcvt.s32.f32 %v6666
      %v6731 = vcvt.s32.f32 %v6667
      %v6732 = vcvt.s32.f32 %v6668
      %6733 = vmatprep.subr.mxu0 %v6700
      %6734 = vmatpush1.xpose.msra.mxu0 %v6699
      %6735 = vmatprep.subr.mxu0 %v6698
      %6736 = vmatpush1.xpose.msra.mxu0 %v6697
      %6737 = vmatprep.subr.mxu0 %v6696
      %6738 = vmatpush1.xpose.msra.mxu0 %v6695
      %6739 = vmatprep.subr.mxu0 %v6694
      %6740 = vmatpush1.xpose.msra.mxu0 %v6693
      %6741 = vmatprep.subr.mxu0 %v6692
      %6742 = vmatpush1.xpose.msra.mxu0 %v6691
      %6743 = vmatprep.subr.mxu0 %v6690
      %6744 = vmatpush1.xpose.msra.mxu0 %v6689
      %6745 = vmatprep.subr.mxu0 %v6688
      %6746 = vmatpush1.xpose.msra.mxu0 %v6687
      %6747 = vmatprep.subr.mxu0 %v6686
      %6748 = vmatpush1.xpose.msra.mxu0 %v6685
      %6749 = vmatprep.subr.mxu0 %v6684
      %6750 = vmatpush1.xpose.msra.mxu0 %v6683
      %6751 = vmatprep.subr.mxu0 %v6682
      %6752 = vmatpush1.xpose.msra.mxu0 %v6681
      %6753 = vmatprep.subr.mxu0 %v6680
      %6754 = vmatpush1.xpose.msra.mxu0 %v6679
      %6755 = vmatprep.subr.mxu0 %v6678
      %6756 = vmatpush1.xpose.msra.mxu0 %v6677
      %6757 = vmatprep.subr.mxu0 %v6676
      %6758 = vmatpush1.xpose.msra.mxu0 %v6675
      %6759 = vmatprep.subr.mxu0 %v6674
      %6760 = vmatpush1.xpose.msra.mxu0 %v6673
      %6761 = vmatprep.subr.mxu0 %v6672
      %6762 = vmatpush1.xpose.msra.mxu0 %v6671
      %6763 = vmatprep.subr.mxu0 %v6670
      %6764 = vmatpush1.xpose.msra.mxu0 %v6669
      %6765 = vmatprep.subr.mxu0 %v6732
      %6766 = vmatpush2.xpose.msra.mxu0 %v6731
      %6767 = vmatprep.subr.mxu0 %v6730
      %6768 = vmatpush2.xpose.msra.mxu0 %v6729
      %6769 = vmatprep.subr.mxu0 %v6728
      %6770 = vmatpush2.xpose.msra.mxu0 %v6727
      %6771 = vmatprep.subr.mxu0 %v6726
      %6772 = vmatpush2.xpose.msra.mxu0 %v6725
      %6773 = vmatprep.subr.mxu0 %v6724
      %6774 = vmatpush2.xpose.msra.mxu0 %v6723
      %6775 = vmatprep.subr.mxu0 %v6722
      %6776 = vmatpush2.xpose.msra.mxu0 %v6721
      %6777 = vmatprep.subr.mxu0 %v6720
      %6778 = vmatpush2.xpose.msra.mxu0 %v6719
      %6779 = vmatprep.subr.mxu0 %v6718
      %6780 = vmatpush2.xpose.msra.mxu0 %v6717
      %6781 = vmatprep.subr.mxu0 %v6716
      %6782 = vmatpush2.xpose.msra.mxu0 %v6715
      %6783 = vmatprep.subr.mxu0 %v6714
      %6784 = vmatpush2.xpose.msra.mxu0 %v6713
      %6785 = vmatprep.subr.mxu0 %v6712
      %6786 = vmatpush2.xpose.msra.mxu0 %v6711
      %6787 = vmatprep.subr.mxu0 %v6710
      %6788 = vmatpush2.xpose.msra.mxu0 %v6709
      %6789 = vmatprep.subr.mxu0 %v6708
      %6790 = vmatpush2.xpose.msra.mxu0 %v6707
      %6791 = vmatprep.subr.mxu0 %v6706
      %6792 = vmatpush2.xpose.msra.mxu0 %v6705
      %6793 = vmatprep.subr.mxu0 %v6704
      %6794 = vmatpush2.xpose.msra.mxu0 %v6703
      %6795 = vmatprep.subr.mxu0 %v6702
      %6796 = vmatpush2.xpose.msra.mxu0 %v6701
      %6797 = vmatprep.mubr.f32.mxu0 %v3599
      %6798 = vmatmul.mubr.f32.gmra.mxu0 %v3597
      %v6799 = vpop.f32.mrf.mxu0
      %v6800 = vadd.f32 0.0, %v6799
      %v6801 = vpop.f32.mrf.mxu0
      %v6802 = vadd.f32 0.0, %v6801
      %6803 = vdwg.mxu0
      %v6804 = vadd.f32 %v5737, %v6800
      %v6805 = vadd.f32 %v5739, %v6802
      %v6806 = vsel %vm6541, -1e+30, %v5741
      %v6807 = vsel %vm6542, -1e+30, %v5742
      %v6808 = vsel %vm6543, -1e+30, %v5743
      %v6809 = vsel %vm6544, -1e+30, %v5744
      %v6810 = vsel %vm6545, -1e+30, %v5745
      %v6811 = vsel %vm6546, -1e+30, %v5746
      %v6812 = vsel %vm6547, -1e+30, %v5747
      %v6813 = vsel %vm6548, -1e+30, %v5748
      %v6814 = vsel %vm6549, -1e+30, %v5749
      %v6815 = vsel %vm6550, -1e+30, %v5750
      %v6816 = vsel %vm6551, -1e+30, %v5751
      %v6817 = vsel %vm6552, -1e+30, %v5752
      %v6818 = vsel %vm6553, -1e+30, %v5753
      %v6819 = vsel %vm6554, -1e+30, %v5754
      %v6820 = vsel %vm6555, -1e+30, %v5755
      %v6821 = vsel %vm6556, -1e+30, %v5756
      %v6822 = vsel %vm6557, -1e+30, %v5757
      %v6823 = vsel %vm6558, -1e+30, %v5758
      %v6824 = vsel %vm6559, -1e+30, %v5759
      %v6825 = vsel %vm6560, -1e+30, %v5760
      %v6826 = vsel %vm6561, -1e+30, %v5761
      %v6827 = vsel %vm6562, -1e+30, %v5762
      %v6828 = vsel %vm6563, -1e+30, %v5763
      %v6829 = vsel %vm6564, -1e+30, %v5764
      %v6830 = vsel %vm6565, -1e+30, %v5765
      %v6831 = vsel %vm6566, -1e+30, %v5766
      %v6832 = vsel %vm6567, -1e+30, %v5767
      %v6833 = vsel %vm6568, -1e+30, %v5768
      %v6834 = vsel %vm6569, -1e+30, %v5769
      %v6835 = vsel %vm6570, -1e+30, %v5770
      %v6836 = vsel %vm6571, -1e+30, %v5771
      %v6837 = vsel %vm6572, -1e+30, %v5772
      %v6838 = vsel %vm6573, -1e+30, %v5773
      %v6839 = vsel %vm6574, -1e+30, %v5774
      %v6840 = vsel %vm6575, -1e+30, %v5775
      %v6841 = vsel %vm6576, -1e+30, %v5776
      %v6842 = vsel %vm6577, -1e+30, %v5777
      %v6843 = vsel %vm6578, -1e+30, %v5778
      %v6844 = vsel %vm6579, -1e+30, %v5779
      %v6845 = vsel %vm6580, -1e+30, %v5780
      %v6846 = vsel %vm6581, -1e+30, %v5781
      %v6847 = vsel %vm6582, -1e+30, %v5782
      %v6848 = vsel %vm6583, -1e+30, %v5783
      %v6849 = vsel %vm6584, -1e+30, %v5784
      %v6850 = vsel %vm6585, -1e+30, %v5785
      %v6851 = vsel %vm6586, -1e+30, %v5786
      %v6852 = vsel %vm6587, -1e+30, %v5787
      %v6853 = vsel %vm6588, -1e+30, %v5788
      %v6854 = vsel %vm6589, -1e+30, %v5789
      %v6855 = vsel %vm6590, -1e+30, %v5790
      %v6856 = vsel %vm6591, -1e+30, %v5791
      %v6857 = vsel %vm6592, -1e+30, %v5792
      %v6858 = vsel %vm6593, -1e+30, %v5793
      %v6859 = vsel %vm6594, -1e+30, %v5794
      %v6860 = vsel %vm6595, -1e+30, %v5795
      %v6861 = vsel %vm6596, -1e+30, %v5796
      %v6862 = vsel %vm6597, -1e+30, %v5797
      %v6863 = vsel %vm6598, -1e+30, %v5798
      %v6864 = vsel %vm6599, -1e+30, %v5799
      %v6865 = vsel %vm6600, -1e+30, %v5800
      %v6866 = vsel %vm6601, -1e+30, %v5801
      %v6867 = vsel %vm6602, -1e+30, %v5802
      %v6868 = vsel %vm6603, -1e+30, %v5803
      %v6869 = vsel %vm6604, -1e+30, %v5804
      %v6870 = vmax.f32 %v6806, %v6807
      %6871 = vmax.xlane.f32.xlu0 %v6870
      %v6872 = vpop.xlane.xlu0 %6871
      %v6873 = vmax.f32 %v6808, %v6809
      %6874 = vmax.xlane.f32.xlu0 %v6873
      %v6875 = vpop.xlane.xlu0 %6874
      %v6876 = vmax.f32 %v6810, %v6811
      %6877 = vmax.xlane.f32.xlu0 %v6876
      %v6878 = vpop.xlane.xlu0 %6877
      %v6879 = vmax.f32 %v6812, %v6813
      %6880 = vmax.xlane.f32.xlu0 %v6879
      %v6881 = vpop.xlane.xlu0 %6880
      %v6882 = vmax.f32 %v6814, %v6815
      %6883 = vmax.xlane.f32.xlu0 %v6882
      %v6884 = vpop.xlane.xlu0 %6883
      %v6885 = vmax.f32 %v6816, %v6817
      %6886 = vmax.xlane.f32.xlu0 %v6885
      %v6887 = vpop.xlane.xlu0 %6886
      %v6888 = vmax.f32 %v6818, %v6819
      %6889 = vmax.xlane.f32.xlu0 %v6888
      %v6890 = vpop.xlane.xlu0 %6889
      %v6891 = vmax.f32 %v6820, %v6821
      %6892 = vmax.xlane.f32.xlu0 %v6891
      %v6893 = vpop.xlane.xlu0 %6892
      %v6894 = vmax.f32 %v6822, %v6823
      %6895 = vmax.xlane.f32.xlu0 %v6894
      %v6896 = vpop.xlane.xlu0 %6895
      %v6897 = vmax.f32 %v6824, %v6825
      %6898 = vmax.xlane.f32.xlu0 %v6897
      %v6899 = vpop.xlane.xlu0 %6898
      %v6900 = vmax.f32 %v6826, %v6827
      %6901 = vmax.xlane.f32.xlu0 %v6900
      %v6902 = vpop.xlane.xlu0 %6901
      %v6903 = vmax.f32 %v6828, %v6829
      %6904 = vmax.xlane.f32.xlu0 %v6903
      %v6905 = vpop.xlane.xlu0 %6904
      %v6906 = vmax.f32 %v6830, %v6831
      %6907 = vmax.xlane.f32.xlu0 %v6906
      %v6908 = vpop.xlane.xlu0 %6907
      %v6909 = vmax.f32 %v6832, %v6833
      %6910 = vmax.xlane.f32.xlu0 %v6909
      %v6911 = vpop.xlane.xlu0 %6910
      %v6912 = vmax.f32 %v6834, %v6835
      %6913 = vmax.xlane.f32.xlu0 %v6912
      %v6914 = vpop.xlane.xlu0 %6913
      %v6915 = vmax.f32 %v6836, %v6837
      %6916 = vmax.xlane.f32.xlu0 %v6915
      %v6917 = vpop.xlane.xlu0 %6916
      %v6918 = vmax.f32 %v6838, %v6839
      %6919 = vmax.xlane.f32.xlu0 %v6918
      %v6920 = vpop.xlane.xlu0 %6919
      %v6921 = vmax.f32 %v6840, %v6841
      %6922 = vmax.xlane.f32.xlu0 %v6921
      %v6923 = vpop.xlane.xlu0 %6922
      %v6924 = vmax.f32 %v6842, %v6843
      %6925 = vmax.xlane.f32.xlu0 %v6924
      %v6926 = vpop.xlane.xlu0 %6925
      %v6927 = vmax.f32 %v6844, %v6845
      %6928 = vmax.xlane.f32.xlu0 %v6927
      %v6929 = vpop.xlane.xlu0 %6928
      %v6930 = vmax.f32 %v6846, %v6847
      %6931 = vmax.xlane.f32.xlu0 %v6930
      %v6932 = vpop.xlane.xlu0 %6931
      %v6933 = vmax.f32 %v6848, %v6849
      %6934 = vmax.xlane.f32.xlu0 %v6933
      %v6935 = vpop.xlane.xlu0 %6934
      %v6936 = vmax.f32 %v6850, %v6851
      %6937 = vmax.xlane.f32.xlu0 %v6936
      %v6938 = vpop.xlane.xlu0 %6937
      %v6939 = vmax.f32 %v6852, %v6853
      %6940 = vmax.xlane.f32.xlu0 %v6939
      %v6941 = vpop.xlane.xlu0 %6940
      %v6942 = vmax.f32 %v6854, %v6855
      %6943 = vmax.xlane.f32.xlu0 %v6942
      %v6944 = vpop.xlane.xlu0 %6943
      %v6945 = vmax.f32 %v6856, %v6857
      %6946 = vmax.xlane.f32.xlu0 %v6945
      %v6947 = vpop.xlane.xlu0 %6946
      %v6948 = vmax.f32 %v6858, %v6859
      %6949 = vmax.xlane.f32.xlu0 %v6948
      %v6950 = vpop.xlane.xlu0 %6949
      %v6951 = vmax.f32 %v6860, %v6861
      %6952 = vmax.xlane.f32.xlu0 %v6951
      %v6953 = vpop.xlane.xlu0 %6952
      %v6954 = vmax.f32 %v6862, %v6863
      %6955 = vmax.xlane.f32.xlu0 %v6954
      %v6956 = vpop.xlane.xlu0 %6955
      %v6957 = vmax.f32 %v6864, %v6865
      %6958 = vmax.xlane.f32.xlu0 %v6957
      %v6959 = vpop.xlane.xlu0 %6958
      %v6960 = vmax.f32 %v6866, %v6867
      %6961 = vmax.xlane.f32.xlu0 %v6960
      %v6962 = vpop.xlane.xlu0 %6961
      %v6963 = vmax.f32 %v6868, %v6869
      %6964 = vmax.xlane.f32.xlu0 %v6963
      %v6965 = vpop.xlane.xlu0 %6964
      %vm6966 = vcmp.ge.f32.partialorder %v6806, %v6872
      %vm6967 = vcmp.ge.f32.partialorder %v6807, %v6872
      %vm6968 = vcmp.ge.f32.partialorder %v6808, %v6875
      %vm6969 = vcmp.ge.f32.partialorder %v6809, %v6875
      %vm6970 = vcmp.ge.f32.partialorder %v6810, %v6878
      %vm6971 = vcmp.ge.f32.partialorder %v6811, %v6878
      %vm6972 = vcmp.ge.f32.partialorder %v6812, %v6881
      %vm6973 = vcmp.ge.f32.partialorder %v6813, %v6881
      %vm6974 = vcmp.ge.f32.partialorder %v6814, %v6884
      %vm6975 = vcmp.ge.f32.partialorder %v6815, %v6884
      %vm6976 = vcmp.ge.f32.partialorder %v6816, %v6887
      %vm6977 = vcmp.ge.f32.partialorder %v6817, %v6887
      %vm6978 = vcmp.ge.f32.partialorder %v6818, %v6890
      %vm6979 = vcmp.ge.f32.partialorder %v6819, %v6890
      %vm6980 = vcmp.ge.f32.partialorder %v6820, %v6893
      %vm6981 = vcmp.ge.f32.partialorder %v6821, %v6893
      %vm6982 = vcmp.ge.f32.partialorder %v6822, %v6896
      %vm6983 = vcmp.ge.f32.partialorder %v6823, %v6896
      %vm6984 = vcmp.ge.f32.partialorder %v6824, %v6899
      %vm6985 = vcmp.ge.f32.partialorder %v6825, %v6899
      %vm6986 = vcmp.ge.f32.partialorder %v6826, %v6902
      %vm6987 = vcmp.ge.f32.partialorder %v6827, %v6902
      %vm6988 = vcmp.ge.f32.partialorder %v6828, %v6905
      %vm6989 = vcmp.ge.f32.partialorder %v6829, %v6905
      %vm6990 = vcmp.ge.f32.partialorder %v6830, %v6908
      %vm6991 = vcmp.ge.f32.partialorder %v6831, %v6908
      %vm6992 = vcmp.ge.f32.partialorder %v6832, %v6911
      %vm6993 = vcmp.ge.f32.partialorder %v6833, %v6911
      %vm6994 = vcmp.ge.f32.partialorder %v6834, %v6914
      %vm6995 = vcmp.ge.f32.partialorder %v6835, %v6914
      %vm6996 = vcmp.ge.f32.partialorder %v6836, %v6917
      %vm6997 = vcmp.ge.f32.partialorder %v6837, %v6917
      %vm6998 = vcmp.ge.f32.partialorder %v6838, %v6920
      %vm6999 = vcmp.ge.f32.partialorder %v6839, %v6920
      %vm7000 = vcmp.ge.f32.partialorder %v6840, %v6923
      %vm7001 = vcmp.ge.f32.partialorder %v6841, %v6923
      %vm7002 = vcmp.ge.f32.partialorder %v6842, %v6926
      %vm7003 = vcmp.ge.f32.partialorder %v6843, %v6926
      %vm7004 = vcmp.ge.f32.partialorder %v6844, %v6929
      %vm7005 = vcmp.ge.f32.partialorder %v6845, %v6929
      %vm7006 = vcmp.ge.f32.partialorder %v6846, %v6932
      %vm7007 = vcmp.ge.f32.partialorder %v6847, %v6932
      %vm7008 = vcmp.ge.f32.partialorder %v6848, %v6935
      %vm7009 = vcmp.ge.f32.partialorder %v6849, %v6935
      %vm7010 = vcmp.ge.f32.partialorder %v6850, %v6938
      %vm7011 = vcmp.ge.f32.partialorder %v6851, %v6938
      %vm7012 = vcmp.ge.f32.partialorder %v6852, %v6941
      %vm7013 = vcmp.ge.f32.partialorder %v6853, %v6941
      %vm7014 = vcmp.ge.f32.partialorder %v6854, %v6944
      %vm7015 = vcmp.ge.f32.partialorder %v6855, %v6944
      %vm7016 = vcmp.ge.f32.partialorder %v6856, %v6947
      %vm7017 = vcmp.ge.f32.partialorder %v6857, %v6947
      %vm7018 = vcmp.ge.f32.partialorder %v6858, %v6950
      %vm7019 = vcmp.ge.f32.partialorder %v6859, %v6950
      %vm7020 = vcmp.ge.f32.partialorder %v6860, %v6953
      %vm7021 = vcmp.ge.f32.partialorder %v6861, %v6953
      %vm7022 = vcmp.ge.f32.partialorder %v6862, %v6956
      %vm7023 = vcmp.ge.f32.partialorder %v6863, %v6956
      %vm7024 = vcmp.ge.f32.partialorder %v6864, %v6959
      %vm7025 = vcmp.ge.f32.partialorder %v6865, %v6959
      %vm7026 = vcmp.ge.f32.partialorder %v6866, %v6962
      %vm7027 = vcmp.ge.f32.partialorder %v6867, %v6962
      %vm7028 = vcmp.ge.f32.partialorder %v6868, %v6965
      %vm7029 = vcmp.ge.f32.partialorder %v6869, %v6965
      %v7030 = vsel %vm6966, %v3677, 256
      %v7031 = vsel %vm6967, %v3678, 256
      %v7032 = vsel %vm6968, %v3677, 256
      %v7033 = vsel %vm6969, %v3678, 256
      %v7034 = vsel %vm6970, %v3677, 256
      %v7035 = vsel %vm6971, %v3678, 256
      %v7036 = vsel %vm6972, %v3677, 256
      %v7037 = vsel %vm6973, %v3678, 256
      %v7038 = vsel %vm6974, %v3677, 256
      %v7039 = vsel %vm6975, %v3678, 256
      %v7040 = vsel %vm6976, %v3677, 256
      %v7041 = vsel %vm6977, %v3678, 256
      %v7042 = vsel %vm6978, %v3677, 256
      %v7043 = vsel %vm6979, %v3678, 256
      %v7044 = vsel %vm6980, %v3677, 256
      %v7045 = vsel %vm6981, %v3678, 256
      %v7046 = vsel %vm6982, %v3677, 256
      %v7047 = vsel %vm6983, %v3678, 256
      %v7048 = vsel %vm6984, %v3677, 256
      %v7049 = vsel %vm6985, %v3678, 256
      %v7050 = vsel %vm6986, %v3677, 256
      %v7051 = vsel %vm6987, %v3678, 256
      %v7052 = vsel %vm6988, %v3677, 256
      %v7053 = vsel %vm6989, %v3678, 256
      %v7054 = vsel %vm6990, %v3677, 256
      %v7055 = vsel %vm6991, %v3678, 256
      %v7056 = vsel %vm6992, %v3677, 256
      %v7057 = vsel %vm6993, %v3678, 256
      %v7058 = vsel %vm6994, %v3677, 256
      %v7059 = vsel %vm6995, %v3678, 256
      %v7060 = vsel %vm6996, %v3677, 256
      %v7061 = vsel %vm6997, %v3678, 256
      %v7062 = vsel %vm6998, %v3677, 256
      %v7063 = vsel %vm6999, %v3678, 256
      %v7064 = vsel %vm7000, %v3677, 256
      %v7065 = vsel %vm7001, %v3678, 256
      %v7066 = vsel %vm7002, %v3677, 256
      %v7067 = vsel %vm7003, %v3678, 256
      %v7068 = vsel %vm7004, %v3677, 256
      %v7069 = vsel %vm7005, %v3678, 256
      %v7070 = vsel %vm7006, %v3677, 256
      %v7071 = vsel %vm7007, %v3678, 256
      %v7072 = vsel %vm7008, %v3677, 256
      %v7073 = vsel %vm7009, %v3678, 256
      %v7074 = vsel %vm7010, %v3677, 256
      %v7075 = vsel %vm7011, %v3678, 256
      %v7076 = vsel %vm7012, %v3677, 256
      %v7077 = vsel %vm7013, %v3678, 256
      %v7078 = vsel %vm7014, %v3677, 256
      %v7079 = vsel %vm7015, %v3678, 256
      %v7080 = vsel %vm7016, %v3677, 256
      %v7081 = vsel %vm7017, %v3678, 256
      %v7082 = vsel %vm7018, %v3677, 256
      %v7083 = vsel %vm7019, %v3678, 256
      %v7084 = vsel %vm7020, %v3677, 256
      %v7085 = vsel %vm7021, %v3678, 256
      %v7086 = vsel %vm7022, %v3677, 256
      %v7087 = vsel %vm7023, %v3678, 256
      %v7088 = vsel %vm7024, %v3677, 256
      %v7089 = vsel %vm7025, %v3678, 256
      %v7090 = vsel %vm7026, %v3677, 256
      %v7091 = vsel %vm7027, %v3678, 256
      %v7092 = vsel %vm7028, %v3677, 256
      %v7093 = vsel %vm7029, %v3678, 256
      %vm7094 = vcmp.lt.s32.totalorder %v7030, %v7031
      %v7095 = vsel %vm7094, %v7030, %v7031
      %v7096 = vand.u32 %v7095, 65535
      %v7097 = vshra.s32 %v7095, 16
      %v7098 = vcvt.s32.f32 %v7096
      %v7099 = vcvt.s32.f32 %v7097
      %7100 = vmin.xlane.f32.xlu0 %v7099
      %v7101 = vpop.xlane.xlu0 %7100
      %vm7102 = vcmp.eq.f32.partialorder %v7099, %v7101
      %v7103 = vsel %vm7102, %v7098, inf
      %7104 = vmin.xlane.f32.xlu0 %v7103
      %v7105 = vpop.xlane.xlu0 %7104
      %v7106 = vcvt.f32.s32 %v7105
      %v7107 = vcvt.f32.s32 %v7101
      %v7108 = vshll.u32 %v7107, 16
      %v7109 = vadd.s32 %v7108, %v7106
      %vm7110 = vcmp.lt.s32.totalorder %v7032, %v7033
      %v7111 = vsel %vm7110, %v7032, %v7033
      %v7112 = vand.u32 %v7111, 65535
      %v7113 = vshra.s32 %v7111, 16
      %v7114 = vcvt.s32.f32 %v7112
      %v7115 = vcvt.s32.f32 %v7113
      %7116 = vmin.xlane.f32.xlu0 %v7115
      %v7117 = vpop.xlane.xlu0 %7116
      %vm7118 = vcmp.eq.f32.partialorder %v7115, %v7117
      %v7119 = vsel %vm7118, %v7114, inf
      %7120 = vmin.xlane.f32.xlu0 %v7119
      %v7121 = vpop.xlane.xlu0 %7120
      %v7122 = vcvt.f32.s32 %v7121
      %v7123 = vcvt.f32.s32 %v7117
      %v7124 = vshll.u32 %v7123, 16
      %v7125 = vadd.s32 %v7124, %v7122
      %vm7126 = vcmp.lt.s32.totalorder %v7034, %v7035
      %v7127 = vsel %vm7126, %v7034, %v7035
      %v7128 = vand.u32 %v7127, 65535
      %v7129 = vshra.s32 %v7127, 16
      %v7130 = vcvt.s32.f32 %v7128
      %v7131 = vcvt.s32.f32 %v7129
      %7132 = vmin.xlane.f32.xlu0 %v7131
      %v7133 = vpop.xlane.xlu0 %7132
      %vm7134 = vcmp.eq.f32.partialorder %v7131, %v7133
      %v7135 = vsel %vm7134, %v7130, inf
      %7136 = vmin.xlane.f32.xlu0 %v7135
      %v7137 = vpop.xlane.xlu0 %7136
      %v7138 = vcvt.f32.s32 %v7137
      %v7139 = vcvt.f32.s32 %v7133
      %v7140 = vshll.u32 %v7139, 16
      %v7141 = vadd.s32 %v7140, %v7138
      %vm7142 = vcmp.lt.s32.totalorder %v7036, %v7037
      %v7143 = vsel %vm7142, %v7036, %v7037
      %v7144 = vand.u32 %v7143, 65535
      %v7145 = vshra.s32 %v7143, 16
      %v7146 = vcvt.s32.f32 %v7144
      %v7147 = vcvt.s32.f32 %v7145
      %7148 = vmin.xlane.f32.xlu0 %v7147
      %v7149 = vpop.xlane.xlu0 %7148
      %vm7150 = vcmp.eq.f32.partialorder %v7147, %v7149
      %v7151 = vsel %vm7150, %v7146, inf
      %7152 = vmin.xlane.f32.xlu0 %v7151
      %v7153 = vpop.xlane.xlu0 %7152
      %v7154 = vcvt.f32.s32 %v7153
      %v7155 = vcvt.f32.s32 %v7149
      %v7156 = vshll.u32 %v7155, 16
      %v7157 = vadd.s32 %v7156, %v7154
      %vm7158 = vcmp.lt.s32.totalorder %v7038, %v7039
      %v7159 = vsel %vm7158, %v7038, %v7039
      %v7160 = vand.u32 %v7159, 65535
      %v7161 = vshra.s32 %v7159, 16
      %v7162 = vcvt.s32.f32 %v7160
      %v7163 = vcvt.s32.f32 %v7161
      %7164 = vmin.xlane.f32.xlu0 %v7163
      %v7165 = vpop.xlane.xlu0 %7164
      %vm7166 = vcmp.eq.f32.partialorder %v7163, %v7165
      %v7167 = vsel %vm7166, %v7162, inf
      %7168 = vmin.xlane.f32.xlu0 %v7167
      %v7169 = vpop.xlane.xlu0 %7168
      %v7170 = vcvt.f32.s32 %v7169
      %v7171 = vcvt.f32.s32 %v7165
      %v7172 = vshll.u32 %v7171, 16
      %v7173 = vadd.s32 %v7172, %v7170
      %vm7174 = vcmp.lt.s32.totalorder %v7040, %v7041
      %v7175 = vsel %vm7174, %v7040, %v7041
      %v7176 = vand.u32 %v7175, 65535
      %v7177 = vshra.s32 %v7175, 16
      %v7178 = vcvt.s32.f32 %v7176
      %v7179 = vcvt.s32.f32 %v7177
      %7180 = vmin.xlane.f32.xlu0 %v7179
      %v7181 = vpop.xlane.xlu0 %7180
      %vm7182 = vcmp.eq.f32.partialorder %v7179, %v7181
      %v7183 = vsel %vm7182, %v7178, inf
      %7184 = vmin.xlane.f32.xlu0 %v7183
      %v7185 = vpop.xlane.xlu0 %7184
      %v7186 = vcvt.f32.s32 %v7185
      %v7187 = vcvt.f32.s32 %v7181
      %v7188 = vshll.u32 %v7187, 16
      %v7189 = vadd.s32 %v7188, %v7186
      %vm7190 = vcmp.lt.s32.totalorder %v7042, %v7043
      %v7191 = vsel %vm7190, %v7042, %v7043
      %v7192 = vand.u32 %v7191, 65535
      %v7193 = vshra.s32 %v7191, 16
      %v7194 = vcvt.s32.f32 %v7192
      %v7195 = vcvt.s32.f32 %v7193
      %7196 = vmin.xlane.f32.xlu0 %v7195
      %v7197 = vpop.xlane.xlu0 %7196
      %vm7198 = vcmp.eq.f32.partialorder %v7195, %v7197
      %v7199 = vsel %vm7198, %v7194, inf
      %7200 = vmin.xlane.f32.xlu0 %v7199
      %v7201 = vpop.xlane.xlu0 %7200
      %v7202 = vcvt.f32.s32 %v7201
      %v7203 = vcvt.f32.s32 %v7197
      %v7204 = vshll.u32 %v7203, 16
      %v7205 = vadd.s32 %v7204, %v7202
      %vm7206 = vcmp.lt.s32.totalorder %v7044, %v7045
      %v7207 = vsel %vm7206, %v7044, %v7045
      %v7208 = vand.u32 %v7207, 65535
      %v7209 = vshra.s32 %v7207, 16
      %v7210 = vcvt.s32.f32 %v7208
      %v7211 = vcvt.s32.f32 %v7209
      %7212 = vmin.xlane.f32.xlu0 %v7211
      %v7213 = vpop.xlane.xlu0 %7212
      %vm7214 = vcmp.eq.f32.partialorder %v7211, %v7213
      %v7215 = vsel %vm7214, %v7210, inf
      %7216 = vmin.xlane.f32.xlu0 %v7215
      %v7217 = vpop.xlane.xlu0 %7216
      %v7218 = vcvt.f32.s32 %v7217
      %v7219 = vcvt.f32.s32 %v7213
      %v7220 = vshll.u32 %v7219, 16
      %v7221 = vadd.s32 %v7220, %v7218
      %vm7222 = vcmp.lt.s32.totalorder %v7046, %v7047
      %v7223 = vsel %vm7222, %v7046, %v7047
      %v7224 = vand.u32 %v7223, 65535
      %v7225 = vshra.s32 %v7223, 16
      %v7226 = vcvt.s32.f32 %v7224
      %v7227 = vcvt.s32.f32 %v7225
      %7228 = vmin.xlane.f32.xlu0 %v7227
      %v7229 = vpop.xlane.xlu0 %7228
      %vm7230 = vcmp.eq.f32.partialorder %v7227, %v7229
      %v7231 = vsel %vm7230, %v7226, inf
      %7232 = vmin.xlane.f32.xlu0 %v7231
      %v7233 = vpop.xlane.xlu0 %7232
      %v7234 = vcvt.f32.s32 %v7233
      %v7235 = vcvt.f32.s32 %v7229
      %v7236 = vshll.u32 %v7235, 16
      %v7237 = vadd.s32 %v7236, %v7234
      %vm7238 = vcmp.lt.s32.totalorder %v7048, %v7049
      %v7239 = vsel %vm7238, %v7048, %v7049
      %v7240 = vand.u32 %v7239, 65535
      %v7241 = vshra.s32 %v7239, 16
      %v7242 = vcvt.s32.f32 %v7240
      %v7243 = vcvt.s32.f32 %v7241
      %7244 = vmin.xlane.f32.xlu0 %v7243
      %v7245 = vpop.xlane.xlu0 %7244
      %vm7246 = vcmp.eq.f32.partialorder %v7243, %v7245
      %v7247 = vsel %vm7246, %v7242, inf
      %7248 = vmin.xlane.f32.xlu0 %v7247
      %v7249 = vpop.xlane.xlu0 %7248
      %v7250 = vcvt.f32.s32 %v7249
      %v7251 = vcvt.f32.s32 %v7245
      %v7252 = vshll.u32 %v7251, 16
      %v7253 = vadd.s32 %v7252, %v7250
      %vm7254 = vcmp.lt.s32.totalorder %v7050, %v7051
      %v7255 = vsel %vm7254, %v7050, %v7051
      %v7256 = vand.u32 %v7255, 65535
      %v7257 = vshra.s32 %v7255, 16
      %v7258 = vcvt.s32.f32 %v7256
      %v7259 = vcvt.s32.f32 %v7257
      %7260 = vmin.xlane.f32.xlu0 %v7259
      %v7261 = vpop.xlane.xlu0 %7260
      %vm7262 = vcmp.eq.f32.partialorder %v7259, %v7261
      %v7263 = vsel %vm7262, %v7258, inf
      %7264 = vmin.xlane.f32.xlu0 %v7263
      %v7265 = vpop.xlane.xlu0 %7264
      %v7266 = vcvt.f32.s32 %v7265
      %v7267 = vcvt.f32.s32 %v7261
      %v7268 = vshll.u32 %v7267, 16
      %v7269 = vadd.s32 %v7268, %v7266
      %vm7270 = vcmp.lt.s32.totalorder %v7052, %v7053
      %v7271 = vsel %vm7270, %v7052, %v7053
      %v7272 = vand.u32 %v7271, 65535
      %v7273 = vshra.s32 %v7271, 16
      %v7274 = vcvt.s32.f32 %v7272
      %v7275 = vcvt.s32.f32 %v7273
      %7276 = vmin.xlane.f32.xlu0 %v7275
      %v7277 = vpop.xlane.xlu0 %7276
      %vm7278 = vcmp.eq.f32.partialorder %v7275, %v7277
      %v7279 = vsel %vm7278, %v7274, inf
      %7280 = vmin.xlane.f32.xlu0 %v7279
      %v7281 = vpop.xlane.xlu0 %7280
      %v7282 = vcvt.f32.s32 %v7281
      %v7283 = vcvt.f32.s32 %v7277
      %v7284 = vshll.u32 %v7283, 16
      %v7285 = vadd.s32 %v7284, %v7282
      %vm7286 = vcmp.lt.s32.totalorder %v7054, %v7055
      %v7287 = vsel %vm7286, %v7054, %v7055
      %v7288 = vand.u32 %v7287, 65535
      %v7289 = vshra.s32 %v7287, 16
      %v7290 = vcvt.s32.f32 %v7288
      %v7291 = vcvt.s32.f32 %v7289
      %7292 = vmin.xlane.f32.xlu0 %v7291
      %v7293 = vpop.xlane.xlu0 %7292
      %vm7294 = vcmp.eq.f32.partialorder %v7291, %v7293
      %v7295 = vsel %vm7294, %v7290, inf
      %7296 = vmin.xlane.f32.xlu0 %v7295
      %v7297 = vpop.xlane.xlu0 %7296
      %v7298 = vcvt.f32.s32 %v7297
      %v7299 = vcvt.f32.s32 %v7293
      %v7300 = vshll.u32 %v7299, 16
      %v7301 = vadd.s32 %v7300, %v7298
      %vm7302 = vcmp.lt.s32.totalorder %v7056, %v7057
      %v7303 = vsel %vm7302, %v7056, %v7057
      %v7304 = vand.u32 %v7303, 65535
      %v7305 = vshra.s32 %v7303, 16
      %v7306 = vcvt.s32.f32 %v7304
      %v7307 = vcvt.s32.f32 %v7305
      %7308 = vmin.xlane.f32.xlu0 %v7307
      %v7309 = vpop.xlane.xlu0 %7308
      %vm7310 = vcmp.eq.f32.partialorder %v7307, %v7309
      %v7311 = vsel %vm7310, %v7306, inf
      %7312 = vmin.xlane.f32.xlu0 %v7311
      %v7313 = vpop.xlane.xlu0 %7312
      %v7314 = vcvt.f32.s32 %v7313
      %v7315 = vcvt.f32.s32 %v7309
      %v7316 = vshll.u32 %v7315, 16
      %v7317 = vadd.s32 %v7316, %v7314
      %vm7318 = vcmp.lt.s32.totalorder %v7058, %v7059
      %v7319 = vsel %vm7318, %v7058, %v7059
      %v7320 = vand.u32 %v7319, 65535
      %v7321 = vshra.s32 %v7319, 16
      %v7322 = vcvt.s32.f32 %v7320
      %v7323 = vcvt.s32.f32 %v7321
      %7324 = vmin.xlane.f32.xlu0 %v7323
      %v7325 = vpop.xlane.xlu0 %7324
      %vm7326 = vcmp.eq.f32.partialorder %v7323, %v7325
      %v7327 = vsel %vm7326, %v7322, inf
      %7328 = vmin.xlane.f32.xlu0 %v7327
      %v7329 = vpop.xlane.xlu0 %7328
      %v7330 = vcvt.f32.s32 %v7329
      %v7331 = vcvt.f32.s32 %v7325
      %v7332 = vshll.u32 %v7331, 16
      %v7333 = vadd.s32 %v7332, %v7330
      %vm7334 = vcmp.lt.s32.totalorder %v7060, %v7061
      %v7335 = vsel %vm7334, %v7060, %v7061
      %v7336 = vand.u32 %v7335, 65535
      %v7337 = vshra.s32 %v7335, 16
      %v7338 = vcvt.s32.f32 %v7336
      %v7339 = vcvt.s32.f32 %v7337
      %7340 = vmin.xlane.f32.xlu0 %v7339
      %v7341 = vpop.xlane.xlu0 %7340
      %vm7342 = vcmp.eq.f32.partialorder %v7339, %v7341
      %v7343 = vsel %vm7342, %v7338, inf
      %7344 = vmin.xlane.f32.xlu0 %v7343
      %v7345 = vpop.xlane.xlu0 %7344
      %v7346 = vcvt.f32.s32 %v7345
      %v7347 = vcvt.f32.s32 %v7341
      %v7348 = vshll.u32 %v7347, 16
      %v7349 = vadd.s32 %v7348, %v7346
      %vm7350 = vcmp.lt.s32.totalorder %v7062, %v7063
      %v7351 = vsel %vm7350, %v7062, %v7063
      %v7352 = vand.u32 %v7351, 65535
      %v7353 = vshra.s32 %v7351, 16
      %v7354 = vcvt.s32.f32 %v7352
      %v7355 = vcvt.s32.f32 %v7353
      %7356 = vmin.xlane.f32.xlu0 %v7355
      %v7357 = vpop.xlane.xlu0 %7356
      %vm7358 = vcmp.eq.f32.partialorder %v7355, %v7357
      %v7359 = vsel %vm7358, %v7354, inf
      %7360 = vmin.xlane.f32.xlu0 %v7359
      %v7361 = vpop.xlane.xlu0 %7360
      %v7362 = vcvt.f32.s32 %v7361
      %v7363 = vcvt.f32.s32 %v7357
      %v7364 = vshll.u32 %v7363, 16
      %v7365 = vadd.s32 %v7364, %v7362
      %vm7366 = vcmp.lt.s32.totalorder %v7064, %v7065
      %v7367 = vsel %vm7366, %v7064, %v7065
      %v7368 = vand.u32 %v7367, 65535
      %v7369 = vshra.s32 %v7367, 16
      %v7370 = vcvt.s32.f32 %v7368
      %v7371 = vcvt.s32.f32 %v7369
      %7372 = vmin.xlane.f32.xlu0 %v7371
      %v7373 = vpop.xlane.xlu0 %7372
      %vm7374 = vcmp.eq.f32.partialorder %v7371, %v7373
      %v7375 = vsel %vm7374, %v7370, inf
      %7376 = vmin.xlane.f32.xlu0 %v7375
      %v7377 = vpop.xlane.xlu0 %7376
      %v7378 = vcvt.f32.s32 %v7377
      %v7379 = vcvt.f32.s32 %v7373
      %v7380 = vshll.u32 %v7379, 16
      %v7381 = vadd.s32 %v7380, %v7378
      %vm7382 = vcmp.lt.s32.totalorder %v7066, %v7067
      %v7383 = vsel %vm7382, %v7066, %v7067
      %v7384 = vand.u32 %v7383, 65535
      %v7385 = vshra.s32 %v7383, 16
      %v7386 = vcvt.s32.f32 %v7384
      %v7387 = vcvt.s32.f32 %v7385
      %7388 = vmin.xlane.f32.xlu0 %v7387
      %v7389 = vpop.xlane.xlu0 %7388
      %vm7390 = vcmp.eq.f32.partialorder %v7387, %v7389
      %v7391 = vsel %vm7390, %v7386, inf
      %7392 = vmin.xlane.f32.xlu0 %v7391
      %v7393 = vpop.xlane.xlu0 %7392
      %v7394 = vcvt.f32.s32 %v7393
      %v7395 = vcvt.f32.s32 %v7389
      %v7396 = vshll.u32 %v7395, 16
      %v7397 = vadd.s32 %v7396, %v7394
      %vm7398 = vcmp.lt.s32.totalorder %v7068, %v7069
      %v7399 = vsel %vm7398, %v7068, %v7069
      %v7400 = vand.u32 %v7399, 65535
      %v7401 = vshra.s32 %v7399, 16
      %v7402 = vcvt.s32.f32 %v7400
      %v7403 = vcvt.s32.f32 %v7401
      %7404 = vmin.xlane.f32.xlu0 %v7403
      %v7405 = vpop.xlane.xlu0 %7404
      %vm7406 = vcmp.eq.f32.partialorder %v7403, %v7405
      %v7407 = vsel %vm7406, %v7402, inf
      %7408 = vmin.xlane.f32.xlu0 %v7407
      %v7409 = vpop.xlane.xlu0 %7408
      %v7410 = vcvt.f32.s32 %v7409
      %v7411 = vcvt.f32.s32 %v7405
      %v7412 = vshll.u32 %v7411, 16
      %v7413 = vadd.s32 %v7412, %v7410
      %vm7414 = vcmp.lt.s32.totalorder %v7070, %v7071
      %v7415 = vsel %vm7414, %v7070, %v7071
      %v7416 = vand.u32 %v7415, 65535
      %v7417 = vshra.s32 %v7415, 16
      %v7418 = vcvt.s32.f32 %v7416
      %v7419 = vcvt.s32.f32 %v7417
      %7420 = vmin.xlane.f32.xlu0 %v7419
      %v7421 = vpop.xlane.xlu0 %7420
      %vm7422 = vcmp.eq.f32.partialorder %v7419, %v7421
      %v7423 = vsel %vm7422, %v7418, inf
      %7424 = vmin.xlane.f32.xlu0 %v7423
      %v7425 = vpop.xlane.xlu0 %7424
      %v7426 = vcvt.f32.s32 %v7425
      %v7427 = vcvt.f32.s32 %v7421
      %v7428 = vshll.u32 %v7427, 16
      %v7429 = vadd.s32 %v7428, %v7426
      %vm7430 = vcmp.lt.s32.totalorder %v7072, %v7073
      %v7431 = vsel %vm7430, %v7072, %v7073
      %v7432 = vand.u32 %v7431, 65535
      %v7433 = vshra.s32 %v7431, 16
      %v7434 = vcvt.s32.f32 %v7432
      %v7435 = vcvt.s32.f32 %v7433
      %7436 = vmin.xlane.f32.xlu0 %v7435
      %v7437 = vpop.xlane.xlu0 %7436
      %vm7438 = vcmp.eq.f32.partialorder %v7435, %v7437
      %v7439 = vsel %vm7438, %v7434, inf
      %7440 = vmin.xlane.f32.xlu0 %v7439
      %v7441 = vpop.xlane.xlu0 %7440
      %v7442 = vcvt.f32.s32 %v7441
      %v7443 = vcvt.f32.s32 %v7437
      %v7444 = vshll.u32 %v7443, 16
      %v7445 = vadd.s32 %v7444, %v7442
      %vm7446 = vcmp.lt.s32.totalorder %v7074, %v7075
      %v7447 = vsel %vm7446, %v7074, %v7075
      %v7448 = vand.u32 %v7447, 65535
      %v7449 = vshra.s32 %v7447, 16
      %v7450 = vcvt.s32.f32 %v7448
      %v7451 = vcvt.s32.f32 %v7449
      %7452 = vmin.xlane.f32.xlu0 %v7451
      %v7453 = vpop.xlane.xlu0 %7452
      %vm7454 = vcmp.eq.f32.partialorder %v7451, %v7453
      %v7455 = vsel %vm7454, %v7450, inf
      %7456 = vmin.xlane.f32.xlu0 %v7455
      %v7457 = vpop.xlane.xlu0 %7456
      %v7458 = vcvt.f32.s32 %v7457
      %v7459 = vcvt.f32.s32 %v7453
      %v7460 = vshll.u32 %v7459, 16
      %v7461 = vadd.s32 %v7460, %v7458
      %vm7462 = vcmp.lt.s32.totalorder %v7076, %v7077
      %v7463 = vsel %vm7462, %v7076, %v7077
      %v7464 = vand.u32 %v7463, 65535
      %v7465 = vshra.s32 %v7463, 16
      %v7466 = vcvt.s32.f32 %v7464
      %v7467 = vcvt.s32.f32 %v7465
      %7468 = vmin.xlane.f32.xlu0 %v7467
      %v7469 = vpop.xlane.xlu0 %7468
      %vm7470 = vcmp.eq.f32.partialorder %v7467, %v7469
      %v7471 = vsel %vm7470, %v7466, inf
      %7472 = vmin.xlane.f32.xlu0 %v7471
      %v7473 = vpop.xlane.xlu0 %7472
      %v7474 = vcvt.f32.s32 %v7473
      %v7475 = vcvt.f32.s32 %v7469
      %v7476 = vshll.u32 %v7475, 16
      %v7477 = vadd.s32 %v7476, %v7474
      %vm7478 = vcmp.lt.s32.totalorder %v7078, %v7079
      %v7479 = vsel %vm7478, %v7078, %v7079
      %v7480 = vand.u32 %v7479, 65535
      %v7481 = vshra.s32 %v7479, 16
      %v7482 = vcvt.s32.f32 %v7480
      %v7483 = vcvt.s32.f32 %v7481
      %7484 = vmin.xlane.f32.xlu0 %v7483
      %v7485 = vpop.xlane.xlu0 %7484
      %vm7486 = vcmp.eq.f32.partialorder %v7483, %v7485
      %v7487 = vsel %vm7486, %v7482, inf
      %7488 = vmin.xlane.f32.xlu0 %v7487
      %v7489 = vpop.xlane.xlu0 %7488
      %v7490 = vcvt.f32.s32 %v7489
      %v7491 = vcvt.f32.s32 %v7485
      %v7492 = vshll.u32 %v7491, 16
      %v7493 = vadd.s32 %v7492, %v7490
      %vm7494 = vcmp.lt.s32.totalorder %v7080, %v7081
      %v7495 = vsel %vm7494, %v7080, %v7081
      %v7496 = vand.u32 %v7495, 65535
      %v7497 = vshra.s32 %v7495, 16
      %v7498 = vcvt.s32.f32 %v7496
      %v7499 = vcvt.s32.f32 %v7497
      %7500 = vmin.xlane.f32.xlu0 %v7499
      %v7501 = vpop.xlane.xlu0 %7500
      %vm7502 = vcmp.eq.f32.partialorder %v7499, %v7501
      %v7503 = vsel %vm7502, %v7498, inf
      %7504 = vmin.xlane.f32.xlu0 %v7503
      %v7505 = vpop.xlane.xlu0 %7504
      %v7506 = vcvt.f32.s32 %v7505
      %v7507 = vcvt.f32.s32 %v7501
      %v7508 = vshll.u32 %v7507, 16
      %v7509 = vadd.s32 %v7508, %v7506
      %vm7510 = vcmp.lt.s32.totalorder %v7082, %v7083
      %v7511 = vsel %vm7510, %v7082, %v7083
      %v7512 = vand.u32 %v7511, 65535
      %v7513 = vshra.s32 %v7511, 16
      %v7514 = vcvt.s32.f32 %v7512
      %v7515 = vcvt.s32.f32 %v7513
      %7516 = vmin.xlane.f32.xlu0 %v7515
      %v7517 = vpop.xlane.xlu0 %7516
      %vm7518 = vcmp.eq.f32.partialorder %v7515, %v7517
      %v7519 = vsel %vm7518, %v7514, inf
      %7520 = vmin.xlane.f32.xlu0 %v7519
      %v7521 = vpop.xlane.xlu0 %7520
      %v7522 = vcvt.f32.s32 %v7521
      %v7523 = vcvt.f32.s32 %v7517
      %v7524 = vshll.u32 %v7523, 16
      %v7525 = vadd.s32 %v7524, %v7522
      %vm7526 = vcmp.lt.s32.totalorder %v7084, %v7085
      %v7527 = vsel %vm7526, %v7084, %v7085
      %v7528 = vand.u32 %v7527, 65535
      %v7529 = vshra.s32 %v7527, 16
      %v7530 = vcvt.s32.f32 %v7528
      %v7531 = vcvt.s32.f32 %v7529
      %7532 = vmin.xlane.f32.xlu0 %v7531
      %v7533 = vpop.xlane.xlu0 %7532
      %vm7534 = vcmp.eq.f32.partialorder %v7531, %v7533
      %v7535 = vsel %vm7534, %v7530, inf
      %7536 = vmin.xlane.f32.xlu0 %v7535
      %v7537 = vpop.xlane.xlu0 %7536
      %v7538 = vcvt.f32.s32 %v7537
      %v7539 = vcvt.f32.s32 %v7533
      %v7540 = vshll.u32 %v7539, 16
      %v7541 = vadd.s32 %v7540, %v7538
      %vm7542 = vcmp.lt.s32.totalorder %v7086, %v7087
      %v7543 = vsel %vm7542, %v7086, %v7087
      %v7544 = vand.u32 %v7543, 65535
      %v7545 = vshra.s32 %v7543, 16
      %v7546 = vcvt.s32.f32 %v7544
      %v7547 = vcvt.s32.f32 %v7545
      %7548 = vmin.xlane.f32.xlu0 %v7547
      %v7549 = vpop.xlane.xlu0 %7548
      %vm7550 = vcmp.eq.f32.partialorder %v7547, %v7549
      %v7551 = vsel %vm7550, %v7546, inf
      %7552 = vmin.xlane.f32.xlu0 %v7551
      %v7553 = vpop.xlane.xlu0 %7552
      %v7554 = vcvt.f32.s32 %v7553
      %v7555 = vcvt.f32.s32 %v7549
      %v7556 = vshll.u32 %v7555, 16
      %v7557 = vadd.s32 %v7556, %v7554
      %vm7558 = vcmp.lt.s32.totalorder %v7088, %v7089
      %v7559 = vsel %vm7558, %v7088, %v7089
      %v7560 = vand.u32 %v7559, 65535
      %v7561 = vshra.s32 %v7559, 16
      %v7562 = vcvt.s32.f32 %v7560
      %v7563 = vcvt.s32.f32 %v7561
      %7564 = vmin.xlane.f32.xlu0 %v7563
      %v7565 = vpop.xlane.xlu0 %7564
      %vm7566 = vcmp.eq.f32.partialorder %v7563, %v7565
      %v7567 = vsel %vm7566, %v7562, inf
      %7568 = vmin.xlane.f32.xlu0 %v7567
      %v7569 = vpop.xlane.xlu0 %7568
      %v7570 = vcvt.f32.s32 %v7569
      %v7571 = vcvt.f32.s32 %v7565
      %v7572 = vshll.u32 %v7571, 16
      %v7573 = vadd.s32 %v7572, %v7570
      %vm7574 = vcmp.lt.s32.totalorder %v7090, %v7091
      %v7575 = vsel %vm7574, %v7090, %v7091
      %v7576 = vand.u32 %v7575, 65535
      %v7577 = vshra.s32 %v7575, 16
      %v7578 = vcvt.s32.f32 %v7576
      %v7579 = vcvt.s32.f32 %v7577
      %7580 = vmin.xlane.f32.xlu0 %v7579
      %v7581 = vpop.xlane.xlu0 %7580
      %vm7582 = vcmp.eq.f32.partialorder %v7579, %v7581
      %v7583 = vsel %vm7582, %v7578, inf
      %7584 = vmin.xlane.f32.xlu0 %v7583
      %v7585 = vpop.xlane.xlu0 %7584
      %v7586 = vcvt.f32.s32 %v7585
      %v7587 = vcvt.f32.s32 %v7581
      %v7588 = vshll.u32 %v7587, 16
      %v7589 = vadd.s32 %v7588, %v7586
      %vm7590 = vcmp.lt.s32.totalorder %v7092, %v7093
      %v7591 = vsel %vm7590, %v7092, %v7093
      %v7592 = vand.u32 %v7591, 65535
      %v7593 = vshra.s32 %v7591, 16
      %v7594 = vcvt.s32.f32 %v7592
      %v7595 = vcvt.s32.f32 %v7593
      %7596 = vmin.xlane.f32.xlu0 %v7595
      %v7597 = vpop.xlane.xlu0 %7596
      %vm7598 = vcmp.eq.f32.partialorder %v7595, %v7597
      %v7599 = vsel %vm7598, %v7594, inf
      %7600 = vmin.xlane.f32.xlu0 %v7599
      %v7601 = vpop.xlane.xlu0 %7600
      %v7602 = vcvt.f32.s32 %v7601
      %v7603 = vcvt.f32.s32 %v7597
      %v7604 = vshll.u32 %v7603, 16
      %v7605 = vadd.s32 %v7604, %v7602
      %vm7606 = vcmp.eq.s32.totalorder %v3677, %v7109
      %vm7607 = vcmp.eq.s32.totalorder %v3678, %v7109
      %vm7608 = vcmp.eq.s32.totalorder %v3677, %v7125
      %vm7609 = vcmp.eq.s32.totalorder %v3678, %v7125
      %vm7610 = vcmp.eq.s32.totalorder %v3677, %v7141
      %vm7611 = vcmp.eq.s32.totalorder %v3678, %v7141
      %vm7612 = vcmp.eq.s32.totalorder %v3677, %v7157
      %vm7613 = vcmp.eq.s32.totalorder %v3678, %v7157
      %vm7614 = vcmp.eq.s32.totalorder %v3677, %v7173
      %vm7615 = vcmp.eq.s32.totalorder %v3678, %v7173
      %vm7616 = vcmp.eq.s32.totalorder %v3677, %v7189
      %vm7617 = vcmp.eq.s32.totalorder %v3678, %v7189
      %vm7618 = vcmp.eq.s32.totalorder %v3677, %v7205
      %vm7619 = vcmp.eq.s32.totalorder %v3678, %v7205
      %vm7620 = vcmp.eq.s32.totalorder %v3677, %v7221
      %vm7621 = vcmp.eq.s32.totalorder %v3678, %v7221
      %vm7622 = vcmp.eq.s32.totalorder %v3677, %v7237
      %vm7623 = vcmp.eq.s32.totalorder %v3678, %v7237
      %vm7624 = vcmp.eq.s32.totalorder %v3677, %v7253
      %vm7625 = vcmp.eq.s32.totalorder %v3678, %v7253
      %vm7626 = vcmp.eq.s32.totalorder %v3677, %v7269
      %vm7627 = vcmp.eq.s32.totalorder %v3678, %v7269
      %vm7628 = vcmp.eq.s32.totalorder %v3677, %v7285
      %vm7629 = vcmp.eq.s32.totalorder %v3678, %v7285
      %vm7630 = vcmp.eq.s32.totalorder %v3677, %v7301
      %vm7631 = vcmp.eq.s32.totalorder %v3678, %v7301
      %vm7632 = vcmp.eq.s32.totalorder %v3677, %v7317
      %vm7633 = vcmp.eq.s32.totalorder %v3678, %v7317
      %vm7634 = vcmp.eq.s32.totalorder %v3677, %v7333
      %vm7635 = vcmp.eq.s32.totalorder %v3678, %v7333
      %vm7636 = vcmp.eq.s32.totalorder %v3677, %v7349
      %vm7637 = vcmp.eq.s32.totalorder %v3678, %v7349
      %vm7638 = vcmp.eq.s32.totalorder %v3677, %v7365
      %vm7639 = vcmp.eq.s32.totalorder %v3678, %v7365
      %vm7640 = vcmp.eq.s32.totalorder %v3677, %v7381
      %vm7641 = vcmp.eq.s32.totalorder %v3678, %v7381
      %vm7642 = vcmp.eq.s32.totalorder %v3677, %v7397
      %vm7643 = vcmp.eq.s32.totalorder %v3678, %v7397
      %vm7644 = vcmp.eq.s32.totalorder %v3677, %v7413
      %vm7645 = vcmp.eq.s32.totalorder %v3678, %v7413
      %vm7646 = vcmp.eq.s32.totalorder %v3677, %v7429
      %vm7647 = vcmp.eq.s32.totalorder %v3678, %v7429
      %vm7648 = vcmp.eq.s32.totalorder %v3677, %v7445
      %vm7649 = vcmp.eq.s32.totalorder %v3678, %v7445
      %vm7650 = vcmp.eq.s32.totalorder %v3677, %v7461
      %vm7651 = vcmp.eq.s32.totalorder %v3678, %v7461
      %vm7652 = vcmp.eq.s32.totalorder %v3677, %v7477
      %vm7653 = vcmp.eq.s32.totalorder %v3678, %v7477
      %vm7654 = vcmp.eq.s32.totalorder %v3677, %v7493
      %vm7655 = vcmp.eq.s32.totalorder %v3678, %v7493
      %vm7656 = vcmp.eq.s32.totalorder %v3677, %v7509
      %vm7657 = vcmp.eq.s32.totalorder %v3678, %v7509
      %vm7658 = vcmp.eq.s32.totalorder %v3677, %v7525
      %vm7659 = vcmp.eq.s32.totalorder %v3678, %v7525
      %vm7660 = vcmp.eq.s32.totalorder %v3677, %v7541
      %vm7661 = vcmp.eq.s32.totalorder %v3678, %v7541
      %vm7662 = vcmp.eq.s32.totalorder %v3677, %v7557
      %vm7663 = vcmp.eq.s32.totalorder %v3678, %v7557
      %vm7664 = vcmp.eq.s32.totalorder %v3677, %v7573
      %vm7665 = vcmp.eq.s32.totalorder %v3678, %v7573
      %vm7666 = vcmp.eq.s32.totalorder %v3677, %v7589
      %vm7667 = vcmp.eq.s32.totalorder %v3678, %v7589
      %vm7668 = vcmp.eq.s32.totalorder %v3677, %v7605
      %vm7669 = vcmp.eq.s32.totalorder %v3678, %v7605
      %v7670 = vsel %vm7606, 1, 0
      %v7671 = vsel %vm7607, 1, 0
      %v7672 = vsel %vm7608, 1, 0
      %v7673 = vsel %vm7609, 1, 0
      %v7674 = vsel %vm7610, 1, 0
      %v7675 = vsel %vm7611, 1, 0
      %v7676 = vsel %vm7612, 1, 0
      %v7677 = vsel %vm7613, 1, 0
      %v7678 = vsel %vm7614, 1, 0
      %v7679 = vsel %vm7615, 1, 0
      %v7680 = vsel %vm7616, 1, 0
      %v7681 = vsel %vm7617, 1, 0
      %v7682 = vsel %vm7618, 1, 0
      %v7683 = vsel %vm7619, 1, 0
      %v7684 = vsel %vm7620, 1, 0
      %v7685 = vsel %vm7621, 1, 0
      %v7686 = vsel %vm7622, 1, 0
      %v7687 = vsel %vm7623, 1, 0
      %v7688 = vsel %vm7624, 1, 0
      %v7689 = vsel %vm7625, 1, 0
      %v7690 = vsel %vm7626, 1, 0
      %v7691 = vsel %vm7627, 1, 0
      %v7692 = vsel %vm7628, 1, 0
      %v7693 = vsel %vm7629, 1, 0
      %v7694 = vsel %vm7630, 1, 0
      %v7695 = vsel %vm7631, 1, 0
      %v7696 = vsel %vm7632, 1, 0
      %v7697 = vsel %vm7633, 1, 0
      %v7698 = vsel %vm7634, 1, 0
      %v7699 = vsel %vm7635, 1, 0
      %v7700 = vsel %vm7636, 1, 0
      %v7701 = vsel %vm7637, 1, 0
      %v7702 = vsel %vm7638, 1, 0
      %v7703 = vsel %vm7639, 1, 0
      %v7704 = vsel %vm7640, 1, 0
      %v7705 = vsel %vm7641, 1, 0
      %v7706 = vsel %vm7642, 1, 0
      %v7707 = vsel %vm7643, 1, 0
      %v7708 = vsel %vm7644, 1, 0
      %v7709 = vsel %vm7645, 1, 0
      %v7710 = vsel %vm7646, 1, 0
      %v7711 = vsel %vm7647, 1, 0
      %v7712 = vsel %vm7648, 1, 0
      %v7713 = vsel %vm7649, 1, 0
      %v7714 = vsel %vm7650, 1, 0
      %v7715 = vsel %vm7651, 1, 0
      %v7716 = vsel %vm7652, 1, 0
      %v7717 = vsel %vm7653, 1, 0
      %v7718 = vsel %vm7654, 1, 0
      %v7719 = vsel %vm7655, 1, 0
      %v7720 = vsel %vm7656, 1, 0
      %v7721 = vsel %vm7657, 1, 0
      %v7722 = vsel %vm7658, 1, 0
      %v7723 = vsel %vm7659, 1, 0
      %v7724 = vsel %vm7660, 1, 0
      %v7725 = vsel %vm7661, 1, 0
      %v7726 = vsel %vm7662, 1, 0
      %v7727 = vsel %vm7663, 1, 0
      %v7728 = vsel %vm7664, 1, 0
      %v7729 = vsel %vm7665, 1, 0
      %v7730 = vsel %vm7666, 1, 0
      %v7731 = vsel %vm7667, 1, 0
      %v7732 = vsel %vm7668, 1, 0
      %v7733 = vsel %vm7669, 1, 0
      %v7734 = vcvt.s32.f32 %v7670
      %v7735 = vcvt.s32.f32 %v7671
      %v7736 = vcvt.s32.f32 %v7672
      %v7737 = vcvt.s32.f32 %v7673
      %v7738 = vcvt.s32.f32 %v7674
      %v7739 = vcvt.s32.f32 %v7675
      %v7740 = vcvt.s32.f32 %v7676
      %v7741 = vcvt.s32.f32 %v7677
      %v7742 = vcvt.s32.f32 %v7678
      %v7743 = vcvt.s32.f32 %v7679
      %v7744 = vcvt.s32.f32 %v7680
      %v7745 = vcvt.s32.f32 %v7681
      %v7746 = vcvt.s32.f32 %v7682
      %v7747 = vcvt.s32.f32 %v7683
      %v7748 = vcvt.s32.f32 %v7684
      %v7749 = vcvt.s32.f32 %v7685
      %v7750 = vcvt.s32.f32 %v7686
      %v7751 = vcvt.s32.f32 %v7687
      %v7752 = vcvt.s32.f32 %v7688
      %v7753 = vcvt.s32.f32 %v7689
      %v7754 = vcvt.s32.f32 %v7690
      %v7755 = vcvt.s32.f32 %v7691
      %v7756 = vcvt.s32.f32 %v7692
      %v7757 = vcvt.s32.f32 %v7693
      %v7758 = vcvt.s32.f32 %v7694
      %v7759 = vcvt.s32.f32 %v7695
      %v7760 = vcvt.s32.f32 %v7696
      %v7761 = vcvt.s32.f32 %v7697
      %v7762 = vcvt.s32.f32 %v7698
      %v7763 = vcvt.s32.f32 %v7699
      %v7764 = vcvt.s32.f32 %v7700
      %v7765 = vcvt.s32.f32 %v7701
      %v7766 = vcvt.s32.f32 %v7702
      %v7767 = vcvt.s32.f32 %v7703
      %v7768 = vcvt.s32.f32 %v7704
      %v7769 = vcvt.s32.f32 %v7705
      %v7770 = vcvt.s32.f32 %v7706
      %v7771 = vcvt.s32.f32 %v7707
      %v7772 = vcvt.s32.f32 %v7708
      %v7773 = vcvt.s32.f32 %v7709
      %v7774 = vcvt.s32.f32 %v7710
      %v7775 = vcvt.s32.f32 %v7711
      %v7776 = vcvt.s32.f32 %v7712
      %v7777 = vcvt.s32.f32 %v7713
      %v7778 = vcvt.s32.f32 %v7714
      %v7779 = vcvt.s32.f32 %v7715
      %v7780 = vcvt.s32.f32 %v7716
      %v7781 = vcvt.s32.f32 %v7717
      %v7782 = vcvt.s32.f32 %v7718
      %v7783 = vcvt.s32.f32 %v7719
      %v7784 = vcvt.s32.f32 %v7720
      %v7785 = vcvt.s32.f32 %v7721
      %v7786 = vcvt.s32.f32 %v7722
      %v7787 = vcvt.s32.f32 %v7723
      %v7788 = vcvt.s32.f32 %v7724
      %v7789 = vcvt.s32.f32 %v7725
      %v7790 = vcvt.s32.f32 %v7726
      %v7791 = vcvt.s32.f32 %v7727
      %v7792 = vcvt.s32.f32 %v7728
      %v7793 = vcvt.s32.f32 %v7729
      %v7794 = vcvt.s32.f32 %v7730
      %v7795 = vcvt.s32.f32 %v7731
      %v7796 = vcvt.s32.f32 %v7732
      %v7797 = vcvt.s32.f32 %v7733
      %7798 = vmatprep.subr.mxu0 %v7765
      %7799 = vmatpush1.xpose.msra.mxu0 %v7764
      %7800 = vmatprep.subr.mxu0 %v7763
      %7801 = vmatpush1.xpose.msra.mxu0 %v7762
      %7802 = vmatprep.subr.mxu0 %v7761
      %7803 = vmatpush1.xpose.msra.mxu0 %v7760
      %7804 = vmatprep.subr.mxu0 %v7759
      %7805 = vmatpush1.xpose.msra.mxu0 %v7758
      %7806 = vmatprep.subr.mxu0 %v7757
      %7807 = vmatpush1.xpose.msra.mxu0 %v7756
      %7808 = vmatprep.subr.mxu0 %v7755
      %7809 = vmatpush1.xpose.msra.mxu0 %v7754
      %7810 = vmatprep.subr.mxu0 %v7753
      %7811 = vmatpush1.xpose.msra.mxu0 %v7752
      %7812 = vmatprep.subr.mxu0 %v7751
      %7813 = vmatpush1.xpose.msra.mxu0 %v7750
      %7814 = vmatprep.subr.mxu0 %v7749
      %7815 = vmatpush1.xpose.msra.mxu0 %v7748
      %7816 = vmatprep.subr.mxu0 %v7747
      %7817 = vmatpush1.xpose.msra.mxu0 %v7746
      %7818 = vmatprep.subr.mxu0 %v7745
      %7819 = vmatpush1.xpose.msra.mxu0 %v7744
      %7820 = vmatprep.subr.mxu0 %v7743
      %7821 = vmatpush1.xpose.msra.mxu0 %v7742
      %7822 = vmatprep.subr.mxu0 %v7741
      %7823 = vmatpush1.xpose.msra.mxu0 %v7740
      %7824 = vmatprep.subr.mxu0 %v7739
      %7825 = vmatpush1.xpose.msra.mxu0 %v7738
      %7826 = vmatprep.subr.mxu0 %v7737
      %7827 = vmatpush1.xpose.msra.mxu0 %v7736
      %7828 = vmatprep.subr.mxu0 %v7735
      %7829 = vmatpush1.xpose.msra.mxu0 %v7734
      %7830 = vmatprep.subr.mxu0 %v7797
      %7831 = vmatpush2.xpose.msra.mxu0 %v7796
      %7832 = vmatprep.subr.mxu0 %v7795
      %7833 = vmatpush2.xpose.msra.mxu0 %v7794
      %7834 = vmatprep.subr.mxu0 %v7793
      %7835 = vmatpush2.xpose.msra.mxu0 %v7792
      %7836 = vmatprep.subr.mxu0 %v7791
      %7837 = vmatpush2.xpose.msra.mxu0 %v7790
      %7838 = vmatprep.subr.mxu0 %v7789
      %7839 = vmatpush2.xpose.msra.mxu0 %v7788
      %7840 = vmatprep.subr.mxu0 %v7787
      %7841 = vmatpush2.xpose.msra.mxu0 %v7786
      %7842 = vmatprep.subr.mxu0 %v7785
      %7843 = vmatpush2.xpose.msra.mxu0 %v7784
      %7844 = vmatprep.subr.mxu0 %v7783
      %7845 = vmatpush2.xpose.msra.mxu0 %v7782
      %7846 = vmatprep.subr.mxu0 %v7781
      %7847 = vmatpush2.xpose.msra.mxu0 %v7780
      %7848 = vmatprep.subr.mxu0 %v7779
      %7849 = vmatpush2.xpose.msra.mxu0 %v7778
      %7850 = vmatprep.subr.mxu0 %v7777
      %7851 = vmatpush2.xpose.msra.mxu0 %v7776
      %7852 = vmatprep.subr.mxu0 %v7775
      %7853 = vmatpush2.xpose.msra.mxu0 %v7774
      %7854 = vmatprep.subr.mxu0 %v7773
      %7855 = vmatpush2.xpose.msra.mxu0 %v7772
      %7856 = vmatprep.subr.mxu0 %v7771
      %7857 = vmatpush2.xpose.msra.mxu0 %v7770
      %7858 = vmatprep.subr.mxu0 %v7769
      %7859 = vmatpush2.xpose.msra.mxu0 %v7768
      %7860 = vmatprep.subr.mxu0 %v7767
      %7861 = vmatpush2.xpose.msra.mxu0 %v7766
      %7862 = vmatprep.mubr.f32.mxu0 %v3674
      %7863 = vmatmul.mubr.f32.gmra.mxu0 %v3672
      %v7864 = vpop.f32.mrf.mxu0
      %v7865 = vadd.f32 0.0, %v7864
      %v7866 = vpop.f32.mrf.mxu0
      %v7867 = vadd.f32 0.0, %v7866
      %7868 = vdwg.mxu0
      %v7869 = vadd.f32 %v6804, %v7865
      %v7870 = vadd.f32 %v6805, %v7867
      %v7871 = vld [vmem:[%s10] sm:$0x3f]
      %7873 = vset.pattern.permute.xlu0 0
      %7874 = vperm.xlu0 %7873, %v7871
      %v7875 = vpop.permute.xlu0 %7874
      %v7877 = vadd.f32 %v7869, %v7875
      %v7878 = vadd.f32 %v7870, %v7875
      %v7879 = vld [vmem:[%s11] sm:$0xf]
      %v7880 = vld [vmem:[%s12] sm:$0xf]
      %7882 = vset.pattern.permute.xlu0 0
      %7883 = vperm.xlu0 %7882, %v7880
      %v7884 = vpop.permute.xlu0 %7883
      %v7887 = vsel %vm518, %v7879, 0
      %v7890 = vsel %vm528, %v7877, 0
      %v7893 = vsel %vm528, %v7878, 0
      %7895 = vmatprep.subr.mxu0 0.0
      %7896 = vmatpush1.msra.mxu0 0.0
      %7897 = vmatprep.subr.mxu0 0.0
      %7898 = vmatpush1.msra.mxu0 0.0
      %7899 = vmatprep.subr.mxu0 0.0
      %7900 = vmatpush1.msra.mxu0 0.0
      %7901 = vmatprep.subr.mxu0 0.0
      %7902 = vmatpush1.msra.mxu0 0.0
      %7903 = vmatprep.subr.mxu0 0.0
      %7904 = vmatpush1.msra.mxu0 0.0
      %7905 = vmatprep.subr.mxu0 0.0
      %7906 = vmatpush1.msra.mxu0 0.0
      %7907 = vmatprep.subr.mxu0 0.0
      %7908 = vmatpush1.msra.mxu0 0.0
      %7909 = vmatprep.subr.mxu0 0.0
      %7910 = vmatpush1.msra.mxu0 0.0
      %7911 = vmatprep.subr.mxu0 0.0
      %7912 = vmatpush1.msra.mxu0 0.0
      %7913 = vmatprep.subr.mxu0 0.0
      %7914 = vmatpush1.msra.mxu0 0.0
      %7915 = vmatprep.subr.mxu0 0.0
      %7916 = vmatpush1.msra.mxu0 0.0
      %7917 = vmatprep.subr.mxu0 0.0
      %7918 = vmatpush1.msra.mxu0 0.0
      %7919 = vmatprep.subr.mxu0 0.0
      %7920 = vmatpush1.msra.mxu0 0.0
      %7921 = vmatprep.subr.mxu0 0.0
      %7922 = vmatpush1.msra.mxu0 0.0
      %7923 = vmatprep.subr.mxu0 0.0
      %7924 = vmatpush1.msra.mxu0 0.0
      %7925 = vmatprep.subr.mxu0 %v7893
      %7926 = vmatpush1.msra.mxu0 %v7890
      %7927 = vmatprep.subr.mxu0 0.0
      %7928 = vmatpush2.msra.mxu0 0.0
      %7929 = vmatprep.subr.mxu0 0.0
      %7930 = vmatpush2.msra.mxu0 0.0
      %7931 = vmatprep.subr.mxu0 0.0
      %7932 = vmatpush2.msra.mxu0 0.0
      %7933 = vmatprep.subr.mxu0 0.0
      %7934 = vmatpush2.msra.mxu0 0.0
      %7935 = vmatprep.subr.mxu0 0.0
      %7936 = vmatpush2.msra.mxu0 0.0
      %7937 = vmatprep.subr.mxu0 0.0
      %7938 = vmatpush2.msra.mxu0 0.0
      %7939 = vmatprep.subr.mxu0 0.0
      %7940 = vmatpush2.msra.mxu0 0.0
      %7941 = vmatprep.subr.mxu0 0.0
      %7942 = vmatpush2.msra.mxu0 0.0
      %7943 = vmatprep.subr.mxu0 0.0
      %7944 = vmatpush2.msra.mxu0 0.0
      %7945 = vmatprep.subr.mxu0 0.0
      %7946 = vmatpush2.msra.mxu0 0.0
      %7947 = vmatprep.subr.mxu0 0.0
      %7948 = vmatpush2.msra.mxu0 0.0
      %7949 = vmatprep.subr.mxu0 0.0
      %7950 = vmatpush2.msra.mxu0 0.0
      %7951 = vmatprep.subr.mxu0 0.0
      %7952 = vmatpush2.msra.mxu0 0.0
      %7953 = vmatprep.subr.mxu0 0.0
      %7954 = vmatpush2.msra.mxu0 0.0
      %7955 = vmatprep.subr.mxu0 0.0
      %7956 = vmatpush2.msra.mxu0 0.0
      %7957 = vmatprep.subr.mxu0 0.0
      %7958 = vmatpush2.msra.mxu0 0.0
      %7959 = vmatprep.mubr.f32.mxu0 0.0
      %7960 = vmatmul.mubr.f32.gmra.mxu0 %v7887
      %v7961 = vpop.f32.mrf.mxu0
      %v7962 = vadd.f32 %v7884, %v7961
      %v7963 = vpop.f32.mrf.mxu0
      %v7964 = vadd.f32 %v7884, %v7963
      %7965 = vdwg.mxu0
      %v7966 = vmax.f32 %v7962, 0.0
      %v7967 = vmax.f32 %v7964, 0.0
      %v7968 = vld [vmem:[%s13] sm:$0xf]
      %7970 = vrot.lane.b32.xlu0 %v7968, 124
      %v7971 = vpop.permute.xlu0 %7970
      %vm7972 = vcmask 31744
      %v7973 = vsel %vm7972, %v7971, 0
      %v7976 = vsel %vm3366, %v7966, 0
      %v7979 = vsel %vm3366, %v7967, 0
      %7981 = vmatprep.subr.mxu0 0.0
      %7982 = vmatpush1.msra.mxu0 0.0
      %7983 = vmatprep.subr.mxu0 0.0
      %7984 = vmatpush1.msra.mxu0 0.0
      %7985 = vmatprep.subr.mxu0 0.0
      %7986 = vmatpush1.msra.mxu0 0.0
      %7987 = vmatprep.subr.mxu0 0.0
      %7988 = vmatpush1.msra.mxu0 0.0
      %7989 = vmatprep.subr.mxu0 0.0
      %7990 = vmatpush1.msra.mxu0 0.0
      %7991 = vmatprep.subr.mxu0 0.0
      %7992 = vmatpush1.msra.mxu0 0.0
      %7993 = vmatprep.subr.mxu0 0.0
      %7994 = vmatpush1.msra.mxu0 0.0
      %7995 = vmatprep.subr.mxu0 0.0
      %7996 = vmatpush1.msra.mxu0 0.0
      %7997 = vmatprep.subr.mxu0 0.0
      %7998 = vmatpush1.msra.mxu0 0.0
      %7999 = vmatprep.subr.mxu0 0.0
      %8000 = vmatpush1.msra.mxu0 0.0
      %8001 = vmatprep.subr.mxu0 0.0
      %8002 = vmatpush1.msra.mxu0 0.0
      %8003 = vmatprep.subr.mxu0 0.0
      %8004 = vmatpush1.msra.mxu0 0.0
      %8005 = vmatprep.subr.mxu0 0.0
      %8006 = vmatpush1.msra.mxu0 0.0
      %8007 = vmatprep.subr.mxu0 0.0
      %8008 = vmatpush1.msra.mxu0 0.0
      %8009 = vmatprep.subr.mxu0 0.0
      %8010 = vmatpush1.msra.mxu0 0.0
      %8011 = vmatprep.subr.mxu0 %v7979
      %8012 = vmatpush1.msra.mxu0 %v7976
      %8013 = vmatprep.subr.mxu0 0.0
      %8014 = vmatpush2.msra.mxu0 0.0
      %8015 = vmatprep.subr.mxu0 0.0
      %8016 = vmatpush2.msra.mxu0 0.0
      %8017 = vmatprep.subr.mxu0 0.0
      %8018 = vmatpush2.msra.mxu0 0.0
      %8019 = vmatprep.subr.mxu0 0.0
      %8020 = vmatpush2.msra.mxu0 0.0
      %8021 = vmatprep.subr.mxu0 0.0
      %8022 = vmatpush2.msra.mxu0 0.0
      %8023 = vmatprep.subr.mxu0 0.0
      %8024 = vmatpush2.msra.mxu0 0.0
      %8025 = vmatprep.subr.mxu0 0.0
      %8026 = vmatpush2.msra.mxu0 0.0
      %8027 = vmatprep.subr.mxu0 0.0
      %8028 = vmatpush2.msra.mxu0 0.0
      %8029 = vmatprep.subr.mxu0 0.0
      %8030 = vmatpush2.msra.mxu0 0.0
      %8031 = vmatprep.subr.mxu0 0.0
      %8032 = vmatpush2.msra.mxu0 0.0
      %8033 = vmatprep.subr.mxu0 0.0
      %8034 = vmatpush2.msra.mxu0 0.0
      %8035 = vmatprep.subr.mxu0 0.0
      %8036 = vmatpush2.msra.mxu0 0.0
      %8037 = vmatprep.subr.mxu0 0.0
      %8038 = vmatpush2.msra.mxu0 0.0
      %8039 = vmatprep.subr.mxu0 0.0
      %8040 = vmatpush2.msra.mxu0 0.0
      %8041 = vmatprep.subr.mxu0 0.0
      %8042 = vmatpush2.msra.mxu0 0.0
      %8043 = vmatprep.subr.mxu0 0.0
      %8044 = vmatpush2.msra.mxu0 0.0
      %8045 = vmatprep.mubr.f32.mxu0 0.0
      %8046 = vmatmul.mubr.f32.gmra.mxu0 %v7973
      %v8047 = vpop.f32.mrf.mxu0
      %v8048 = vadd.f32 0.0, %v8047
      %v8049 = vpop.f32.mrf.mxu0
      %v8050 = vadd.f32 0.0, %v8049
      %8051 = vdwg.mxu0
      %v8052 = vsel %vm7972, %v7968, 0
      %v8055 = vsel %vm3366, %v2817, 0
      %v8058 = vsel %vm3366, %v2818, 0
      %8060 = vmatprep.subr.mxu0 0.0
      %8061 = vmatpush1.msra.mxu0 0.0
      %8062 = vmatprep.subr.mxu0 0.0
      %8063 = vmatpush1.msra.mxu0 0.0
      %8064 = vmatprep.subr.mxu0 0.0
      %8065 = vmatpush1.msra.mxu0 0.0
      %8066 = vmatprep.subr.mxu0 0.0
      %8067 = vmatpush1.msra.mxu0 0.0
      %8068 = vmatprep.subr.mxu0 0.0
      %8069 = vmatpush1.msra.mxu0 0.0
      %8070 = vmatprep.subr.mxu0 0.0
      %8071 = vmatpush1.msra.mxu0 0.0
      %8072 = vmatprep.subr.mxu0 0.0
      %8073 = vmatpush1.msra.mxu0 0.0
      %8074 = vmatprep.subr.mxu0 0.0
      %8075 = vmatpush1.msra.mxu0 0.0
      %8076 = vmatprep.subr.mxu0 0.0
      %8077 = vmatpush1.msra.mxu0 0.0
      %8078 = vmatprep.subr.mxu0 0.0
      %8079 = vmatpush1.msra.mxu0 0.0
      %8080 = vmatprep.subr.mxu0 0.0
      %8081 = vmatpush1.msra.mxu0 0.0
      %8082 = vmatprep.subr.mxu0 0.0
      %8083 = vmatpush1.msra.mxu0 0.0
      %8084 = vmatprep.subr.mxu0 0.0
      %8085 = vmatpush1.msra.mxu0 0.0
      %8086 = vmatprep.subr.mxu0 0.0
      %8087 = vmatpush1.msra.mxu0 0.0
      %8088 = vmatprep.subr.mxu0 0.0
      %8089 = vmatpush1.msra.mxu0 0.0
      %8090 = vmatprep.subr.mxu0 %v8058
      %8091 = vmatpush1.msra.mxu0 %v8055
      %8092 = vmatprep.subr.mxu0 0.0
      %8093 = vmatpush2.msra.mxu0 0.0
      %8094 = vmatprep.subr.mxu0 0.0
      %8095 = vmatpush2.msra.mxu0 0.0
      %8096 = vmatprep.subr.mxu0 0.0
      %8097 = vmatpush2.msra.mxu0 0.0
      %8098 = vmatprep.subr.mxu0 0.0
      %8099 = vmatpush2.msra.mxu0 0.0
      %8100 = vmatprep.subr.mxu0 0.0
      %8101 = vmatpush2.msra.mxu0 0.0
      %8102 = vmatprep.subr.mxu0 0.0
      %8103 = vmatpush2.msra.mxu0 0.0
      %8104 = vmatprep.subr.mxu0 0.0
      %8105 = vmatpush2.msra.mxu0 0.0
      %8106 = vmatprep.subr.mxu0 0.0
      %8107 = vmatpush2.msra.mxu0 0.0
      %8108 = vmatprep.subr.mxu0 0.0
      %8109 = vmatpush2.msra.mxu0 0.0
      %8110 = vmatprep.subr.mxu0 0.0
      %8111 = vmatpush2.msra.mxu0 0.0
      %8112 = vmatprep.subr.mxu0 0.0
      %8113 = vmatpush2.msra.mxu0 0.0
      %8114 = vmatprep.subr.mxu0 0.0
      %8115 = vmatpush2.msra.mxu0 0.0
      %8116 = vmatprep.subr.mxu0 0.0
      %8117 = vmatpush2.msra.mxu0 0.0
      %8118 = vmatprep.subr.mxu0 0.0
      %8119 = vmatpush2.msra.mxu0 0.0
      %8120 = vmatprep.subr.mxu0 0.0
      %8121 = vmatpush2.msra.mxu0 0.0
      %8122 = vmatprep.subr.mxu0 0.0
      %8123 = vmatpush2.msra.mxu0 0.0
      %8124 = vmatprep.mubr.f32.mxu0 0.0
      %8125 = vmatmul.mubr.f32.gmra.mxu0 %v8052
      %v8126 = vpop.f32.mrf.mxu0
      %v8127 = vadd.f32 %v8048, %v8126
      %v8128 = vpop.f32.mrf.mxu0
      %v8129 = vadd.f32 %v8050, %v8128
      %8130 = vdwg.mxu0
      %v8131 = vld [vmem:[%s14] sm:$0xf]
      %8133 = vset.pattern.permute.xlu0 0
      %8134 = vperm.xlu0 %8133, %v8131
      %v8135 = vpop.permute.xlu0 %8134
      %v8137 = vadd.f32 %v8127, %v8135
      %v8138 = vadd.f32 %v8129, %v8135
      %v8141 = vcombine.low %v8137, %v8138
      %8143 = vst [vmem:[%s494] sm:$0xff] %v8141
      %p8144 = scmp.lt.s32.totalorder %s26, 1
      %s8145 = scalar_select %p8144, %s26, 1
      %s8146 = smul.addr %s8145, 2
      %s8147 = smul.addr %s8146, 4
      %s8148 = scalar_lea.vmem %s15, %s8147
      // Predicated region
      $region81: #{attention_convnn_attn_branching.1} parent=79 // pred_check
        %p8149 = pneg %p364
      $region82: #{attention_convnn_attn_branching.1} parent=79 // pred_check_branch
        %8151 = sbr.rel (%p8149) target = $region84
      $region83: #{attention_convnn_attn_branching.1} parent=79 // pred_region
        _
      $region84: #{attention_convnn_attn_branching.1} parent=79 // pred_fallthru
        _
    $region80: #{attention_convnn_attn_branching.1} parent=5 // pred_fallthru
      _
    %p8152 = scmp.le.s32.totalorder 2, %s21
    // Predicated region
    $region85: #{attention_convnn_attn_branching.1} parent=5 // pred_check
      %p8153 = pneg %p8152
    $region86: #{attention_convnn_attn_branching.1} parent=5 // pred_check_branch
      %8155 = sbr.rel (%p8153) target = $region88
    $region87: #{attention_convnn_attn_branching.1} parent=5 // pred_region
      %s8156 = ssub.s32 %s21, 2
      // Predicated region
      $region89: #{attention_convnn_attn_branching.1} parent=87 // pred_check
        %p8157 = pneg %p370
      $region90: #{attention_convnn_attn_branching.1} parent=87 // pred_check_branch
        %8159 = sbr.rel (%p8157) target = $region92
      $region91: #{attention_convnn_attn_branching.1} parent=87 // pred_region
        %p8160 = scmp.lt.s32.totalorder %s27, 1
        %s8161 = scalar_select %p8160, %s27, 1
        %s8162 = smul.addr %s8161, 2
        %s8163 = smul.addr %s8162, 4
        %s8164 = scalar_lea.vmem %s15, %s8163
      $region92: #{attention_convnn_attn_branching.1} parent=87 // pred_fallthru
        _
    $region88: #{attention_convnn_attn_branching.1} parent=5 // pred_fallthru
      _
  $region6: #{attention_convnn_attn_branching.1} parent=0 // loop_footer
    %s25 = sadd.s32 1, %s21
  $region7: #{attention_convnn_attn_branching.1} parent=0 // loop_footer_branch
    %20 = sbr.rel target = $region3
  $region8: #{attention_convnn_attn_branching.1} parent=0 // loop_exit
    _

</llo_original>
